<compile_context>
chip_gen: v7x
topology: tpu7x:2x2x1
jax: 0.10.0
libtpu: 0.0.40
codegen_flags: <defaults>
</compile_context>

<pallas_src>
import functools
import math

import jax
import jax.numpy as jnp
from jax.experimental import pallas as pl
from jax.experimental.pallas import tpu as pltpu


def _mish(x):
    # x * tanh(softplus(x)), numerically-stable softplus (threshold as in PyTorch)
    sp = jnp.where(x > 20.0, x, jnp.log1p(jnp.exp(jnp.minimum(x, 20.0))))
    return x * jnp.tanh(sp)


def _round_up(x, m):
    return (x + m - 1) // m * m


# ------------------------------- fused kernel ------------------------------- #

def _basic_block_mish_kernel(x_ref, w1_ref, s1_ref, b1_ref,
                             w2_ref, s2_ref, b2_ref, *rest,
                             stride, has_conv_shortcut, H, W, Ho, Wo):
    rest = list(rest)
    if has_conv_shortcut:
        wsc_ref, ssc_ref, bsc_ref = rest[:3]
        rest = rest[3:]
    o_ref = rest[0]
    rest = rest[1:]
    if stride == 1:
        xpad_s, opad_s = rest[0], rest[1]
    else:
        opad_s = rest[0]

    cin_p = x_ref.shape[-1]
    p_p = o_ref.shape[-1]
    m = Ho * Wo
    f32 = jnp.float32

    # hoist folded-BN params once per tile (f32, shape (1, p_p))
    s1 = s1_ref[...]
    b1 = b1_ref[...]
    s2 = s2_ref[...]
    b2 = b2_ref[...]

    # ---- conv1 input ---------------------------------------------------------
    if stride == 1:
        # in-VMEM zero padding (pad=1): zero only the 1-px halo, interior is
        # fully overwritten by the input tile below.
        zrow = jnp.zeros((1, W + 2, cin_p), f32)
        zcol = jnp.zeros((H + 2, 1, cin_p), f32)
        xpad_s[0:1, :, :] = zrow
        xpad_s[H + 1:H + 2, :, :] = zrow
        xpad_s[:, 0:1, :] = zcol
        xpad_s[:, W + 1:W + 2, :] = zcol
        xpad_s[1:H + 1, 1:W + 1, :] = x_ref[0]

        def tap1(kh, kw):
            win = xpad_s[kh:kh + Ho, kw:kw + Wo, :]
            return win.reshape(m, cin_p).astype(jnp.bfloat16)
    else:
        # x_ref holds stride*stride pre-padded phase images of shape
        # (Ho+1, Wo+1, cin_p); every tap is a unit-stride static window.
        def tap1(kh, kw):
            a, qh = kh % stride, kh // stride
            b, qw = kw % stride, kw // stride
            win = x_ref[a * stride + b, qh:qh + Ho, qw:qw + Wo, :]
            return win.reshape(m, cin_p).astype(jnp.bfloat16)

    # ---- conv1 (3x3, stride, pad=1) + bn1 + mish ------------------------------
    acc1 = jnp.zeros((m, p_p), f32)
    for kh in range(3):
        for kw in range(3):
            acc1 = acc1 + jnp.dot(tap1(kh, kw), w1_ref[kh * 3 + kw],
                                  preferred_element_type=f32)
    out1 = _mish(acc1 * s1 + b1)

    # stash conv2's padded input in VMEM (never touches HBM); halo-only zeroing
    zrow2 = jnp.zeros((1, Wo + 2, p_p), f32)
    zcol2 = jnp.zeros((Ho + 2, 1, p_p), f32)
    opad_s[0:1, :, :] = zrow2
    opad_s[Ho + 1:Ho + 2, :, :] = zrow2
    opad_s[:, 0:1, :] = zcol2
    opad_s[:, Wo + 1:Wo + 2, :] = zcol2
    opad_s[1:Ho + 1, 1:Wo + 1, :] = out1.reshape(Ho, Wo, p_p)

    # ---- conv2 (3x3, stride=1, pad=1) + bn2 -----------------------------------
    acc2 = jnp.zeros((m, p_p), f32)
    for kh in range(3):
        for kw in range(3):
            win = opad_s[kh:kh + Ho, kw:kw + Wo, :]
            acc2 = acc2 + jnp.dot(win.reshape(m, p_p).astype(jnp.bfloat16),
                                  w2_ref[kh * 3 + kw],
                                  preferred_element_type=f32)
    out2 = acc2 * s2 + b2

    # ---- shortcut branch, fused (never leaves VMEM) ---------------------------
    if has_conv_shortcut:
        if stride == 1:
            x_sub = x_ref[0].reshape(m, cin_p)
        else:
            # phase (1,1) window [0:Ho, 0:Wo] == x[::stride, ::stride]
            x_sub = x_ref[stride + 1, 0:Ho, 0:Wo, :].reshape(m, cin_p)
        sc = jnp.dot(x_sub.astype(jnp.bfloat16), wsc_ref[...],
                     preferred_element_type=f32)
        sc = sc * ssc_ref[...] + bsc_ref[...]
    else:
        # identity shortcut (stride == 1 and in_planes == planes)
        sc = x_ref[0].reshape(m, p_p)

    # ---- residual add + final mish --------------------------------------------
    o_ref[0] = _mish(out2 + sc).reshape(Ho, Wo, p_p).astype(o_ref.dtype)


# -------------------------------- wrapper ----------------------------------- #

def basic_block_mish_forward(x_nchw, params, stride=1):
    """Inference forward pass of BasicBlock_Mish (NCHW in / NCHW out)."""
    if stride not in (1, 2):
        raise NotImplementedError("ResNet BasicBlock only uses stride 1 or 2")
    n, cin, h, w = x_nchw.shape
    planes = params["w1"].shape[-1]
    has_conv_shortcut = (stride != 1) or (cin != planes)   # expansion == 1

    ho = (h - 1) // stride + 1
    wo = (w - 1) // stride + 1

    cin_p = _round_up(cin, 128)   # lane-dense channel padding
    p_p = _round_up(planes, 128)

    # NCHW -> NHWC (channels on the 128-lane axis), channels zero-padded.
    x = jnp.transpose(x_nchw, (0, 2, 3, 1)).astype(jnp.float32)
    x = jnp.pad(x, ((0, 0), (0, 0), (0, 0), (0, cin_p - cin)))

    if stride == 1:
        x_in = x
        x_spec = pl.BlockSpec((1, h, w, cin_p), lambda i: (i, 0, 0, 0))
    else:
        # Pre-split the (pad=1) input into stride x stride phase images so every
        # in-kernel MXU feed is a unit-stride window: only the strided output
        # positions are computed and no strided VMEM access is needed.
        s = stride
        hp, wp = ho + 1, wo + 1
        xpad = jnp.pad(x, ((0, 0), (1, s * hp - h - 1),
                           (1, s * wp - w - 1), (0, 0)))
        phases = [xpad[:, a::s, b::s, :] for a in range(s) for b in range(s)]
        x_in = jnp.stack(phases, axis=1).reshape(n * s * s, hp, wp, cin_p)
        x_spec = pl.BlockSpec((s * s, hp, wp, cin_p), lambda i: (i, 0, 0, 0))

    def pad_w3(wgt, c0, c0p, c1, c1p):     # (3,3,c0,c1) -> (9, c0p, c1p) bf16
        wgt = jnp.pad(wgt, ((0, 0), (0, 0), (0, c0p - c0), (0, c1p - c1)))
        return wgt.reshape(9, c0p, c1p).astype(jnp.bfloat16)

    def pad_v(v, cp):                       # (c,) -> (1, cp) f32
        return jnp.pad(v, (0, cp - v.shape[0])).reshape(1, cp).astype(jnp.float32)

    w1 = pad_w3(params["w1"], cin, cin_p, planes, p_p)
    w2 = pad_w3(params["w2"], planes, p_p, planes, p_p)
    s1, b1 = pad_v(params["s1"], p_p), pad_v(params["b1"], p_p)
    s2, b2 = pad_v(params["s2"], p_p), pad_v(params["b2"], p_p)

    args = [x_in, w1, s1, b1, w2, s2, b2]
    in_specs = [
        x_spec,
        pl.BlockSpec((9, cin_p, p_p), lambda i: (0, 0, 0)),
        pl.BlockSpec((1, p_p), lambda i: (0, 0)),
        pl.BlockSpec((1, p_p), lambda i: (0, 0)),
        pl.BlockSpec((9, p_p, p_p), lambda i: (0, 0, 0)),
        pl.BlockSpec((1, p_p), lambda i: (0, 0)),
        pl.BlockSpec((1, p_p), lambda i: (0, 0)),
    ]
    if has_conv_shortcut:
        wsc = jnp.pad(params["wsc"], ((0, cin_p - cin), (0, p_p - planes)))
        args += [wsc.astype(jnp.bfloat16),
                 pad_v(params["ssc"], p_p), pad_v(params["bsc"], p_p)]
        in_specs += [
            pl.BlockSpec((cin_p, p_p), lambda i: (0, 0)),
            pl.BlockSpec((1, p_p), lambda i: (0, 0)),
            pl.BlockSpec((1, p_p), lambda i: (0, 0)),
        ]

    scratch_shapes = []
    if stride == 1:
        scratch_shapes.append(pltpu.VMEM((h + 2, w + 2, cin_p), jnp.float32))
    scratch_shapes.append(pltpu.VMEM((ho + 2, wo + 2, p_p), jnp.float32))

    kernel = functools.partial(
        _basic_block_mish_kernel,
        stride=stride, has_conv_shortcut=has_conv_shortcut,
        H=h, W=w, Ho=ho, Wo=wo)

    out = pl.pallas_call(
        kernel,
        out_shape=jax.ShapeDtypeStruct((n, ho, wo, p_p), jnp.float32),
        grid_spec=pltpu.PrefetchScalarGridSpec(
            num_scalar_prefetch=0,
            grid=(n,),                      # one image per grid step
            in_specs=in_specs,
            out_specs=pl.BlockSpec((1, ho, wo, p_p), lambda i: (i, 0, 0, 0)),
            scratch_shapes=scratch_shapes),
        compiler_params=pltpu.CompilerParams(
            dimension_semantics=("parallel",),   # shard batch over TCs (v7x)
            vmem_limit_bytes=32 * 1024 * 1024),
    )(*args)

    out = out[..., :planes]                      # drop lane-padding channels
    return jnp.transpose(out, (0, 3, 1, 2))      # NHWC -> NCHW


# ----------------------------- parameter init ------------------------------- #

def make_params(key, in_planes, planes, stride=1):
    """Deterministic params matching BasicBlock_Mish.__init__ (inference BN
    folded into per-channel scale/bias)."""
    ks = iter(jax.random.split(key, 16))
    eps = 1e-5

    def conv_w(kh, kw, cin, cout):
        bound = 1.0 / math.sqrt(cin * kh * kw)
        return jax.random.uniform(next(ks), (kh, kw, cin, cout), jnp.float32,
                                  -bound, bound)

    def bn_fold(c):
        gamma = jax.random.uniform(next(ks), (c,), jnp.float32, 0.5, 1.5)
        beta = jax.random.uniform(next(ks), (c,), jnp.float32, -0.5, 0.5)
        mean = jax.random.uniform(next(ks), (c,), jnp.float32, -0.1, 0.1)
        var = jax.random.uniform(next(ks), (c,), jnp.float32, 0.5, 1.5)
        scale = gamma / jnp.sqrt(var + eps)
        bias = beta - mean * scale
        return scale, bias

    p = {"w1": conv_w(3, 3, in_planes, planes)}
    p["s1"], p["b1"] = bn_fold(planes)
    p["w2"] = conv_w(3, 3, planes, planes)
    p["s2"], p["b2"] = bn_fold(planes)
    if stride != 1 or in_planes != planes:
        p["wsc"] = conv_w(1, 1, in_planes, planes)[0, 0]    # (in_planes, planes)
        p["ssc"], p["bsc"] = bn_fold(planes)
    return p


# ---------------------------- pure-JAX reference ---------------------------- #

def _reference(x_nchw, params, stride=1):
    x = jnp.transpose(x_nchw, (0, 2, 3, 1)).astype(jnp.float32)
    planes = params["w1"].shape[-1]
    cin = x.shape[-1]
    dn = ("NHWC", "HWIO", "NHWC")
    hp = jax.lax.Precision.HIGHEST

    def bn(y, s, b):
        return y * s.reshape(1, 1, 1, -1) + b.reshape(1, 1, 1, -1)

    o = jax.lax.conv_general_dilated(x, params["w1"], (stride, stride),
                                     ((1, 1), (1, 1)), dimension_numbers=dn,
                                     precision=hp)
    o = _mish(bn(o, params["s1"], params["b1"]))
    o = jax.lax.conv_general_dilated(o, params["w2"], (1, 1),
                                     ((1, 1), (1, 1)), dimension_numbers=dn,
                                     precision=hp)
    o = bn(o, params["s2"], params["b2"])
    if stride != 1 or cin != planes:
        xs = x[:, ::stride, ::stride, :]
        sc = bn(jnp.einsum("nhwc,co->nhwo", xs, params["wsc"], precision=hp),
                params["ssc"], params["bsc"])
    else:
        sc = x
    return jnp.transpose(_mish(o + sc), (0, 3, 1, 2))


# ---------------------------------- main ------------------------------------ #

if __name__ == "__main__":
    key = jax.random.PRNGKey(0)

    configs = [
        # (N, in_planes, planes, H, W, stride)
        (2, 4, 4, 16, 16, 1),    # identity shortcut
        (2, 8, 4, 16, 16, 1),    # 1x1-conv + bn shortcut (in_planes != planes)
        (2, 4, 8, 16, 16, 2),    # strided block: strided conv1 + strided 1x1 shortcut
    ]
    for idx, (N, CIN, PLANES, H, W, STRIDE) in enumerate(configs):
        k_x, k_p = jax.random.split(jax.random.fold_in(key, idx))
        x = jax.random.normal(k_x, (N, CIN, H, W), jnp.float32)   # NCHW input
        params = make_params(k_p, CIN, PLANES, STRIDE)

        out = jax.block_until_ready(basic_block_mish_forward(x, params, STRIDE))
        HO = (H - 1) // STRIDE + 1
        WO = (W - 1) // STRIDE + 1
        assert out.shape == (N, PLANES, HO, WO), out.shape

        ref = jax.block_until_ready(_reference(x, params, STRIDE))
        err = float(jnp.max(jnp.abs(out - ref)))
        # bf16 MXU inputs (f32 accumulation) => slightly looser tolerance
        assert jnp.allclose(out, ref, atol=3e-2, rtol=3e-2), err

    print("KERNEL_OK")
</pallas_src>

<mosaic_0001>
module attributes {stable_mosaic.version = 11 : i64} {
  func.func @_basic_block_mish_kernel(%arg0: i32, %arg1: memref<1x16x16x128xf32, #tpu.memory_space<vmem>>, %arg2: memref<9x128x128xbf16, #tpu.memory_space<vmem>>, %arg3: memref<1x128xf32, #tpu.memory_space<vmem>>, %arg4: memref<1x128xf32, #tpu.memory_space<vmem>>, %arg5: memref<9x128x128xbf16, #tpu.memory_space<vmem>>, %arg6: memref<1x128xf32, #tpu.memory_space<vmem>>, %arg7: memref<1x128xf32, #tpu.memory_space<vmem>>, %arg8: memref<1x16x16x128xf32, #tpu.memory_space<vmem>>, %arg9: memref<18x18x128xf32, #tpu.memory_space<vmem>>, %arg10: memref<18x18x128xf32, #tpu.memory_space<vmem>>) attributes {dimension_semantics = [#tpu.dimension_semantics<parallel>], iteration_bounds = array<i64: 2>, scalar_prefetch = 0 : i64, scratch_operands = 2 : i64, tpu.core_type = #tpu.core_type<tc>, window_params = [{transform_indices = @transform_0, window_bounds = array<i64: 1, 16, 16, 128>}, {pipeline_mode = #tpu.pipeline_mode<synchronous>, transform_indices = @transform_1, window_bounds = array<i64: 9, 128, 128>}, {pipeline_mode = #tpu.pipeline_mode<synchronous>, transform_indices = @transform_2, window_bounds = array<i64: 1, 128>}, {pipeline_mode = #tpu.pipeline_mode<synchronous>, transform_indices = @transform_3, window_bounds = array<i64: 1, 128>}, {pipeline_mode = #tpu.pipeline_mode<synchronous>, transform_indices = @transform_4, window_bounds = array<i64: 9, 128, 128>}, {pipeline_mode = #tpu.pipeline_mode<synchronous>, transform_indices = @transform_5, window_bounds = array<i64: 1, 128>}, {pipeline_mode = #tpu.pipeline_mode<synchronous>, transform_indices = @transform_6, window_bounds = array<i64: 1, 128>}, {transform_indices = @transform_7, window_bounds = array<i64: 1, 16, 16, 128>}]} {
    %c0 = arith.constant 0 : index
    %c0_0 = arith.constant 0 : index
    %0 = vector.load %arg3[%c0, %c0_0] : memref<1x128xf32, #tpu.memory_space<vmem>>, vector<1x128xf32>
    %c0_1 = arith.constant 0 : index
    %c0_2 = arith.constant 0 : index
    %1 = vector.load %arg4[%c0_1, %c0_2] : memref<1x128xf32, #tpu.memory_space<vmem>>, vector<1x128xf32>
    %c0_3 = arith.constant 0 : index
    %c0_4 = arith.constant 0 : index
    %2 = vector.load %arg6[%c0_3, %c0_4] : memref<1x128xf32, #tpu.memory_space<vmem>>, vector<1x128xf32>
    %c0_5 = arith.constant 0 : index
    %c0_6 = arith.constant 0 : index
    %3 = vector.load %arg7[%c0_5, %c0_6] : memref<1x128xf32, #tpu.memory_space<vmem>>, vector<1x128xf32>
    %cst = arith.constant 0.000000e+00 : f32
    %4 = vector.broadcast %cst : f32 to vector<1x18x128xf32>
    %cst_7 = arith.constant 0.000000e+00 : f32
    %5 = vector.broadcast %cst_7 : f32 to vector<18x1x128xf32>
    %c0_8 = arith.constant 0 : index
    %c0_9 = arith.constant 0 : index
    %c0_10 = arith.constant 0 : index
    %6 = vector.load %arg9[%c0_8, %c0_9, %c0_10] : memref<18x18x128xf32, #tpu.memory_space<vmem>>, vector<1x18x128xf32>
    tpu.vector_store %arg9[%c0_8, %c0_9, %c0_10], %4 {strides = array<i32>} : memref<18x18x128xf32, #tpu.memory_space<vmem>>, vector<1x18x128xf32>,
    %c17 = arith.constant 17 : index
    %c0_11 = arith.constant 0 : index
    %c0_12 = arith.constant 0 : index
    %7 = vector.load %arg9[%c17, %c0_11, %c0_12] : memref<18x18x128xf32, #tpu.memory_space<vmem>>, vector<1x18x128xf32>
    tpu.vector_store %arg9[%c17, %c0_11, %c0_12], %4 {strides = array<i32>} : memref<18x18x128xf32, #tpu.memory_space<vmem>>, vector<1x18x128xf32>,
    %c0_13 = arith.constant 0 : index
    %c0_14 = arith.constant 0 : index
    %c0_15 = arith.constant 0 : index
    %8 = vector.load %arg9[%c0_13, %c0_14, %c0_15] : memref<18x18x128xf32, #tpu.memory_space<vmem>>, vector<18x1x128xf32>
    tpu.vector_store %arg9[%c0_13, %c0_14, %c0_15], %5 {strides = array<i32>} : memref<18x18x128xf32, #tpu.memory_space<vmem>>, vector<18x1x128xf32>,
    %c0_16 = arith.constant 0 : index
    %c17_17 = arith.constant 17 : index
    %c0_18 = arith.constant 0 : index
    %9 = vector.load %arg9[%c0_16, %c17_17, %c0_18] : memref<18x18x128xf32, #tpu.memory_space<vmem>>, vector<18x1x128xf32>
    tpu.vector_store %arg9[%c0_16, %c17_17, %c0_18], %5 {strides = array<i32>} : memref<18x18x128xf32, #tpu.memory_space<vmem>>, vector<18x1x128xf32>,
    %c0_19 = arith.constant 0 : index
    %c0_20 = arith.constant 0 : index
    %c0_21 = arith.constant 0 : index
    %c0_22 = arith.constant 0 : index
    %10 = vector.load %arg1[%c0_19, %c0_20, %c0_21, %c0_22] : memref<1x16x16x128xf32, #tpu.memory_space<vmem>>, vector<1x16x16x128xf32>
    %11 = vector.shape_cast %10 : vector<1x16x16x128xf32> to vector<16x16x128xf32>
    %c1 = arith.constant 1 : index
    %c1_23 = arith.constant 1 : index
    %c0_24 = arith.constant 0 : index
    %12 = vector.load %arg9[%c1, %c1_23, %c0_24] : memref<18x18x128xf32, #tpu.memory_space<vmem>>, vector<16x16x128xf32>
    tpu.vector_store %arg9[%c1, %c1_23, %c0_24], %11 {strides = array<i32>} : memref<18x18x128xf32, #tpu.memory_space<vmem>>, vector<16x16x128xf32>,
    %cst_25 = arith.constant 0.000000e+00 : f32
    %13 = vector.broadcast %cst_25 : f32 to vector<256x128xf32>
    %c0_26 = arith.constant 0 : index
    %c0_27 = arith.constant 0 : index
    %c0_28 = arith.constant 0 : index
    %14 = vector.load %arg9[%c0_26, %c0_27, %c0_28] : memref<18x18x128xf32, #tpu.memory_space<vmem>>, vector<16x16x128xf32>
    %15 = vector.shape_cast %14 : vector<16x16x128xf32> to vector<256x128xf32>
    %16 = arith.truncf %15 : vector<256x128xf32> to vector<256x128xbf16>
    %c0_29 = arith.constant 0 : index
    %c0_30 = arith.constant 0 : index
    %c0_31 = arith.constant 0 : index
    %17 = vector.load %arg2[%c0_29, %c0_30, %c0_31] : memref<9x128x128xbf16, #tpu.memory_space<vmem>>, vector<1x128x128xbf16>
    %18 = vector.shape_cast %17 : vector<1x128x128xbf16> to vector<128x128xbf16>
    %cst_32 = arith.constant dense<0.000000e+00> : vector<256x128xf32>
    %19 = tpu.matmul %16, %18, %cst_32 {dimension_numbers = #tpu.dot_dimension_numbers<[1], [0], [0], [1], [0, 0, 1, 1], [], []>} : vector<256x128xbf16>, vector<128x128xbf16>, vector<256x128xf32> -> vector<256x128xf32>
    %20 = arith.addf %13, %19 : vector<256x128xf32>
    %c0_33 = arith.constant 0 : index
    %c1_34 = arith.constant 1 : index
    %c0_35 = arith.constant 0 : index
    %21 = vector.load %arg9[%c0_33, %c1_34, %c0_35] : memref<18x18x128xf32, #tpu.memory_space<vmem>>, vector<16x16x128xf32>
    %22 = vector.shape_cast %21 : vector<16x16x128xf32> to vector<256x128xf32>
    %23 = arith.truncf %22 : vector<256x128xf32> to vector<256x128xbf16>
    %c1_36 = arith.constant 1 : index
    %c0_37 = arith.constant 0 : index
    %c0_38 = arith.constant 0 : index
    %24 = vector.load %arg2[%c1_36, %c0_37, %c0_38] : memref<9x128x128xbf16, #tpu.memory_space<vmem>>, vector<1x128x128xbf16>
    %25 = vector.shape_cast %24 : vector<1x128x128xbf16> to vector<128x128xbf16>
    %cst_39 = arith.constant dense<0.000000e+00> : vector<256x128xf32>
    %26 = tpu.matmul %23, %25, %cst_39 {dimension_numbers = #tpu.dot_dimension_numbers<[1], [0], [0], [1], [0, 0, 1, 1], [], []>} : vector<256x128xbf16>, vector<128x128xbf16>, vector<256x128xf32> -> vector<256x128xf32>
    %27 = arith.addf %20, %26 : vector<256x128xf32>
    %c0_40 = arith.constant 0 : index
    %c2 = arith.constant 2 : index
    %c0_41 = arith.constant 0 : index
    %28 = vector.load %arg9[%c0_40, %c2, %c0_41] : memref<18x18x128xf32, #tpu.memory_space<vmem>>, vector<16x16x128xf32>
    %29 = vector.shape_cast %28 : vector<16x16x128xf32> to vector<256x128xf32>
    %30 = arith.truncf %29 : vector<256x128xf32> to vector<256x128xbf16>
    %c2_42 = arith.constant 2 : index
    %c0_43 = arith.constant 0 : index
    %c0_44 = arith.constant 0 : index
    %31 = vector.load %arg2[%c2_42, %c0_43, %c0_44] : memref<9x128x128xbf16, #tpu.memory_space<vmem>>, vector<1x128x128xbf16>
    %32 = vector.shape_cast %31 : vector<1x128x128xbf16> to vector<128x128xbf16>
    %cst_45 = arith.constant dense<0.000000e+00> : vector<256x128xf32>
    %33 = tpu.matmul %30, %32, %cst_45 {dimension_numbers = #tpu.dot_dimension_numbers<[1], [0], [0], [1], [0, 0, 1, 1], [], []>} : vector<256x128xbf16>, vector<128x128xbf16>, vector<256x128xf32> -> vector<256x128xf32>
    %34 = arith.addf %27, %33 : vector<256x128xf32>
    %c1_46 = arith.constant 1 : index
    %c0_47 = arith.constant 0 : index
    %c0_48 = arith.constant 0 : index
    %35 = vector.load %arg9[%c1_46, %c0_47, %c0_48] : memref<18x18x128xf32, #tpu.memory_space<vmem>>, vector<16x16x128xf32>
    %36 = vector.shape_cast %35 : vector<16x16x128xf32> to vector<256x128xf32>
    %37 = arith.truncf %36 : vector<256x128xf32> to vector<256x128xbf16>
    %c3 = arith.constant 3 : index
    %c0_49 = arith.constant 0 : index
    %c0_50 = arith.constant 0 : index
    %38 = vector.load %arg2[%c3, %c0_49, %c0_50] : memref<9x128x128xbf16, #tpu.memory_space<vmem>>, vector<1x128x128xbf16>
    %39 = vector.shape_cast %38 : vector<1x128x128xbf16> to vector<128x128xbf16>
    %cst_51 = arith.constant dense<0.000000e+00> : vector<256x128xf32>
    %40 = tpu.matmul %37, %39, %cst_51 {dimension_numbers = #tpu.dot_dimension_numbers<[1], [0], [0], [1], [0, 0, 1, 1], [], []>} : vector<256x128xbf16>, vector<128x128xbf16>, vector<256x128xf32> -> vector<256x128xf32>
    %41 = arith.addf %34, %40 : vector<256x128xf32>
    %c1_52 = arith.constant 1 : index
    %c1_53 = arith.constant 1 : index
    %c0_54 = arith.constant 0 : index
    %42 = vector.load %arg9[%c1_52, %c1_53, %c0_54] : memref<18x18x128xf32, #tpu.memory_space<vmem>>, vector<16x16x128xf32>
    %43 = vector.shape_cast %42 : vector<16x16x128xf32> to vector<256x128xf32>
    %44 = arith.truncf %43 : vector<256x128xf32> to vector<256x128xbf16>
    %c4 = arith.constant 4 : index
    %c0_55 = arith.constant 0 : index
    %c0_56 = arith.constant 0 : index
    %45 = vector.load %arg2[%c4, %c0_55, %c0_56] : memref<9x128x128xbf16, #tpu.memory_space<vmem>>, vector<1x128x128xbf16>
    %46 = vector.shape_cast %45 : vector<1x128x128xbf16> to vector<128x128xbf16>
    %cst_57 = arith.constant dense<0.000000e+00> : vector<256x128xf32>
    %47 = tpu.matmul %44, %46, %cst_57 {dimension_numbers = #tpu.dot_dimension_numbers<[1], [0], [0], [1], [0, 0, 1, 1], [], []>} : vector<256x128xbf16>, vector<128x128xbf16>, vector<256x128xf32> -> vector<256x128xf32>
    %48 = arith.addf %41, %47 : vector<256x128xf32>
    %c1_58 = arith.constant 1 : index
    %c2_59 = arith.constant 2 : index
    %c0_60 = arith.constant 0 : index
    %49 = vector.load %arg9[%c1_58, %c2_59, %c0_60] : memref<18x18x128xf32, #tpu.memory_space<vmem>>, vector<16x16x128xf32>
    %50 = vector.shape_cast %49 : vector<16x16x128xf32> to vector<256x128xf32>
    %51 = arith.truncf %50 : vector<256x128xf32> to vector<256x128xbf16>
    %c5 = arith.constant 5 : index
    %c0_61 = arith.constant 0 : index
    %c0_62 = arith.constant 0 : index
    %52 = vector.load %arg2[%c5, %c0_61, %c0_62] : memref<9x128x128xbf16, #tpu.memory_space<vmem>>, vector<1x128x128xbf16>
    %53 = vector.shape_cast %52 : vector<1x128x128xbf16> to vector<128x128xbf16>
    %cst_63 = arith.constant dense<0.000000e+00> : vector<256x128xf32>
    %54 = tpu.matmul %51, %53, %cst_63 {dimension_numbers = #tpu.dot_dimension_numbers<[1], [0], [0], [1], [0, 0, 1, 1], [], []>} : vector<256x128xbf16>, vector<128x128xbf16>, vector<256x128xf32> -> vector<256x128xf32>
    %55 = arith.addf %48, %54 : vector<256x128xf32>
    %c2_64 = arith.constant 2 : index
    %c0_65 = arith.constant 0 : index
    %c0_66 = arith.constant 0 : index
    %56 = vector.load %arg9[%c2_64, %c0_65, %c0_66] : memref<18x18x128xf32, #tpu.memory_space<vmem>>, vector<16x16x128xf32>
    %57 = vector.shape_cast %56 : vector<16x16x128xf32> to vector<256x128xf32>
    %58 = arith.truncf %57 : vector<256x128xf32> to vector<256x128xbf16>
    %c6 = arith.constant 6 : index
    %c0_67 = arith.constant 0 : index
    %c0_68 = arith.constant 0 : index
    %59 = vector.load %arg2[%c6, %c0_67, %c0_68] : memref<9x128x128xbf16, #tpu.memory_space<vmem>>, vector<1x128x128xbf16>
    %60 = vector.shape_cast %59 : vector<1x128x128xbf16> to vector<128x128xbf16>
    %cst_69 = arith.constant dense<0.000000e+00> : vector<256x128xf32>
    %61 = tpu.matmul %58, %60, %cst_69 {dimension_numbers = #tpu.dot_dimension_numbers<[1], [0], [0], [1], [0, 0, 1, 1], [], []>} : vector<256x128xbf16>, vector<128x128xbf16>, vector<256x128xf32> -> vector<256x128xf32>
    %62 = arith.addf %55, %61 : vector<256x128xf32>
    %c2_70 = arith.constant 2 : index
    %c1_71 = arith.constant 1 : index
    %c0_72 = arith.constant 0 : index
    %63 = vector.load %arg9[%c2_70, %c1_71, %c0_72] : memref<18x18x128xf32, #tpu.memory_space<vmem>>, vector<16x16x128xf32>
    %64 = vector.shape_cast %63 : vector<16x16x128xf32> to vector<256x128xf32>
    %65 = arith.truncf %64 : vector<256x128xf32> to vector<256x128xbf16>
    %c7 = arith.constant 7 : index
    %c0_73 = arith.constant 0 : index
    %c0_74 = arith.constant 0 : index
    %66 = vector.load %arg2[%c7, %c0_73, %c0_74] : memref<9x128x128xbf16, #tpu.memory_space<vmem>>, vector<1x128x128xbf16>
    %67 = vector.shape_cast %66 : vector<1x128x128xbf16> to vector<128x128xbf16>
    %cst_75 = arith.constant dense<0.000000e+00> : vector<256x128xf32>
    %68 = tpu.matmul %65, %67, %cst_75 {dimension_numbers = #tpu.dot_dimension_numbers<[1], [0], [0], [1], [0, 0, 1, 1], [], []>} : vector<256x128xbf16>, vector<128x128xbf16>, vector<256x128xf32> -> vector<256x128xf32>
    %69 = arith.addf %62, %68 : vector<256x128xf32>
    %c2_76 = arith.constant 2 : index
    %c2_77 = arith.constant 2 : index
    %c0_78 = arith.constant 0 : index
    %70 = vector.load %arg9[%c2_76, %c2_77, %c0_78] : memref<18x18x128xf32, #tpu.memory_space<vmem>>, vector<16x16x128xf32>
    %71 = vector.shape_cast %70 : vector<16x16x128xf32> to vector<256x128xf32>
    %72 = arith.truncf %71 : vector<256x128xf32> to vector<256x128xbf16>
    %c8 = arith.constant 8 : index
    %c0_79 = arith.constant 0 : index
    %c0_80 = arith.constant 0 : index
    %73 = vector.load %arg2[%c8, %c0_79, %c0_80] : memref<9x128x128xbf16, #tpu.memory_space<vmem>>, vector<1x128x128xbf16>
    %74 = vector.shape_cast %73 : vector<1x128x128xbf16> to vector<128x128xbf16>
    %cst_81 = arith.constant dense<0.000000e+00> : vector<256x128xf32>
    %75 = tpu.matmul %72, %74, %cst_81 {dimension_numbers = #tpu.dot_dimension_numbers<[1], [0], [0], [1], [0, 0, 1, 1], [], []>} : vector<256x128xbf16>, vector<128x128xbf16>, vector<256x128xf32> -> vector<256x128xf32>
    %76 = arith.addf %69, %75 : vector<256x128xf32>
    %77 = vector.broadcast %0 : vector<1x128xf32> to vector<256x128xf32>
    %78 = arith.mulf %76, %77 : vector<256x128xf32>
    %79 = vector.broadcast %1 : vector<1x128xf32> to vector<256x128xf32>
    %80 = arith.addf %78, %79 : vector<256x128xf32>
    %cst_82 = arith.constant 2.000000e+01 : f32
    %81 = vector.broadcast %cst_82 : f32 to vector<256x128xf32>
    %82 = arith.cmpf ogt, %80, %81 : vector<256x128xf32>
    %cst_83 = arith.constant 2.000000e+01 : f32
    %83 = vector.broadcast %cst_83 : f32 to vector<256x128xf32>
    %84 = arith.minimumf %80, %83 : vector<256x128xf32>
    %85 = math.exp %84 : vector<256x128xf32>
    %86 = math.log1p %85 : vector<256x128xf32>
    %87 = arith.select %82, %80, %86 : vector<256x128xi1>, vector<256x128xf32>
    %88 = math.tanh %87 : vector<256x128xf32>
    %89 = arith.mulf %80, %88 : vector<256x128xf32>
    %cst_84 = arith.constant 0.000000e+00 : f32
    %90 = vector.broadcast %cst_84 : f32 to vector<1x18x128xf32>
    %cst_85 = arith.constant 0.000000e+00 : f32
    %91 = vector.broadcast %cst_85 : f32 to vector<18x1x128xf32>
    %c0_86 = arith.constant 0 : index
    %c0_87 = arith.constant 0 : index
    %c0_88 = arith.constant 0 : index
    %92 = vector.load %arg10[%c0_86, %c0_87, %c0_88] : memref<18x18x128xf32, #tpu.memory_space<vmem>>, vector<1x18x128xf32>
    tpu.vector_store %arg10[%c0_86, %c0_87, %c0_88], %90 {strides = array<i32>} : memref<18x18x128xf32, #tpu.memory_space<vmem>>, vector<1x18x128xf32>,
    %c17_89 = arith.constant 17 : index
    %c0_90 = arith.constant 0 : index
    %c0_91 = arith.constant 0 : index
    %93 = vector.load %arg10[%c17_89, %c0_90, %c0_91] : memref<18x18x128xf32, #tpu.memory_space<vmem>>, vector<1x18x128xf32>
    tpu.vector_store %arg10[%c17_89, %c0_90, %c0_91], %90 {strides = array<i32>} : memref<18x18x128xf32, #tpu.memory_space<vmem>>, vector<1x18x128xf32>,
    %c0_92 = arith.constant 0 : index
    %c0_93 = arith.constant 0 : index
    %c0_94 = arith.constant 0 : index
    %94 = vector.load %arg10[%c0_92, %c0_93, %c0_94] : memref<18x18x128xf32, #tpu.memory_space<vmem>>, vector<18x1x128xf32>
    tpu.vector_store %arg10[%c0_92, %c0_93, %c0_94], %91 {strides = array<i32>} : memref<18x18x128xf32, #tpu.memory_space<vmem>>, vector<18x1x128xf32>,
    %c0_95 = arith.constant 0 : index
    %c17_96 = arith.constant 17 : index
    %c0_97 = arith.constant 0 : index
    %95 = vector.load %arg10[%c0_95, %c17_96, %c0_97] : memref<18x18x128xf32, #tpu.memory_space<vmem>>, vector<18x1x128xf32>
    tpu.vector_store %arg10[%c0_95, %c17_96, %c0_97], %91 {strides = array<i32>} : memref<18x18x128xf32, #tpu.memory_space<vmem>>, vector<18x1x128xf32>,
    %96 = vector.shape_cast %89 : vector<256x128xf32> to vector<16x16x128xf32>
    %c1_98 = arith.constant 1 : index
    %c1_99 = arith.constant 1 : index
    %c0_100 = arith.constant 0 : index
    %97 = vector.load %arg10[%c1_98, %c1_99, %c0_100] : memref<18x18x128xf32, #tpu.memory_space<vmem>>, vector<16x16x128xf32>
    tpu.vector_store %arg10[%c1_98, %c1_99, %c0_100], %96 {strides = array<i32>} : memref<18x18x128xf32, #tpu.memory_space<vmem>>, vector<16x16x128xf32>,
    %cst_101 = arith.constant 0.000000e+00 : f32
    %98 = vector.broadcast %cst_101 : f32 to vector<256x128xf32>
    %c0_102 = arith.constant 0 : index
    %c0_103 = arith.constant 0 : index
    %c0_104 = arith.constant 0 : index
    %99 = vector.load %arg10[%c0_102, %c0_103, %c0_104] : memref<18x18x128xf32, #tpu.memory_space<vmem>>, vector<16x16x128xf32>
    %100 = vector.shape_cast %99 : vector<16x16x128xf32> to vector<256x128xf32>
    %101 = arith.truncf %100 : vector<256x128xf32> to vector<256x128xbf16>
    %c0_105 = arith.constant 0 : index
    %c0_106 = arith.constant 0 : index
    %c0_107 = arith.constant 0 : index
    %102 = vector.load %arg5[%c0_105, %c0_106, %c0_107] : memref<9x128x128xbf16, #tpu.memory_space<vmem>>, vector<1x128x128xbf16>
    %103 = vector.shape_cast %102 : vector<1x128x128xbf16> to vector<128x128xbf16>
    %cst_108 = arith.constant dense<0.000000e+00> : vector<256x128xf32>
    %104 = tpu.matmul %101, %103, %cst_108 {dimension_numbers = #tpu.dot_dimension_numbers<[1], [0], [0], [1], [0, 0, 1, 1], [], []>} : vector<256x128xbf16>, vector<128x128xbf16>, vector<256x128xf32> -> vector<256x128xf32>
    %105 = arith.addf %98, %104 : vector<256x128xf32>
    %c0_109 = arith.constant 0 : index
    %c1_110 = arith.constant 1 : index
    %c0_111 = arith.constant 0 : index
    %106 = vector.load %arg10[%c0_109, %c1_110, %c0_111] : memref<18x18x128xf32, #tpu.memory_space<vmem>>, vector<16x16x128xf32>
    %107 = vector.shape_cast %106 : vector<16x16x128xf32> to vector<256x128xf32>
    %108 = arith.truncf %107 : vector<256x128xf32> to vector<256x128xbf16>
    %c1_112 = arith.constant 1 : index
    %c0_113 = arith.constant 0 : index
    %c0_114 = arith.constant 0 : index
    %109 = vector.load %arg5[%c1_112, %c0_113, %c0_114] : memref<9x128x128xbf16, #tpu.memory_space<vmem>>, vector<1x128x128xbf16>
    %110 = vector.shape_cast %109 : vector<1x128x128xbf16> to vector<128x128xbf16>
    %cst_115 = arith.constant dense<0.000000e+00> : vector<256x128xf32>
    %111 = tpu.matmul %108, %110, %cst_115 {dimension_numbers = #tpu.dot_dimension_numbers<[1], [0], [0], [1], [0, 0, 1, 1], [], []>} : vector<256x128xbf16>, vector<128x128xbf16>, vector<256x128xf32> -> vector<256x128xf32>
    %112 = arith.addf %105, %111 : vector<256x128xf32>
    %c0_116 = arith.constant 0 : index
    %c2_117 = arith.constant 2 : index
    %c0_118 = arith.constant 0 : index
    %113 = vector.load %arg10[%c0_116, %c2_117, %c0_118] : memref<18x18x128xf32, #tpu.memory_space<vmem>>, vector<16x16x128xf32>
    %114 = vector.shape_cast %113 : vector<16x16x128xf32> to vector<256x128xf32>
    %115 = arith.truncf %114 : vector<256x128xf32> to vector<256x128xbf16>
    %c2_119 = arith.constant 2 : index
    %c0_120 = arith.constant 0 : index
    %c0_121 = arith.constant 0 : index
    %116 = vector.load %arg5[%c2_119, %c0_120, %c0_121] : memref<9x128x128xbf16, #tpu.memory_space<vmem>>, vector<1x128x128xbf16>
    %117 = vector.shape_cast %116 : vector<1x128x128xbf16> to vector<128x128xbf16>
    %cst_122 = arith.constant dense<0.000000e+00> : vector<256x128xf32>
    %118 = tpu.matmul %115, %117, %cst_122 {dimension_numbers = #tpu.dot_dimension_numbers<[1], [0], [0], [1], [0, 0, 1, 1], [], []>} : vector<256x128xbf16>, vector<128x128xbf16>, vector<256x128xf32> -> vector<256x128xf32>
    %119 = arith.addf %112, %118 : vector<256x128xf32>
    %c1_123 = arith.constant 1 : index
    %c0_124 = arith.constant 0 : index
    %c0_125 = arith.constant 0 : index
    %120 = vector.load %arg10[%c1_123, %c0_124, %c0_125] : memref<18x18x128xf32, #tpu.memory_space<vmem>>, vector<16x16x128xf32>
    %121 = vector.shape_cast %120 : vector<16x16x128xf32> to vector<256x128xf32>
    %122 = arith.truncf %121 : vector<256x128xf32> to vector<256x128xbf16>
    %c3_126 = arith.constant 3 : index
    %c0_127 = arith.constant 0 : index
    %c0_128 = arith.constant 0 : index
    %123 = vector.load %arg5[%c3_126, %c0_127, %c0_128] : memref<9x128x128xbf16, #tpu.memory_space<vmem>>, vector<1x128x128xbf16>
    %124 = vector.shape_cast %123 : vector<1x128x128xbf16> to vector<128x128xbf16>
    %cst_129 = arith.constant dense<0.000000e+00> : vector<256x128xf32>
    %125 = tpu.matmul %122, %124, %cst_129 {dimension_numbers = #tpu.dot_dimension_numbers<[1], [0], [0], [1], [0, 0, 1, 1], [], []>} : vector<256x128xbf16>, vector<128x128xbf16>, vector<256x128xf32> -> vector<256x128xf32>
    %126 = arith.addf %119, %125 : vector<256x128xf32>
    %c1_130 = arith.constant 1 : index
    %c1_131 = arith.constant 1 : index
    %c0_132 = arith.constant 0 : index
    %127 = vector.load %arg10[%c1_130, %c1_131, %c0_132] : memref<18x18x128xf32, #tpu.memory_space<vmem>>, vector<16x16x128xf32>
    %128 = vector.shape_cast %127 : vector<16x16x128xf32> to vector<256x128xf32>
    %129 = arith.truncf %128 : vector<256x128xf32> to vector<256x128xbf16>
    %c4_133 = arith.constant 4 : index
    %c0_134 = arith.constant 0 : index
    %c0_135 = arith.constant 0 : index
    %130 = vector.load %arg5[%c4_133, %c0_134, %c0_135] : memref<9x128x128xbf16, #tpu.memory_space<vmem>>, vector<1x128x128xbf16>
    %131 = vector.shape_cast %130 : vector<1x128x128xbf16> to vector<128x128xbf16>
    %cst_136 = arith.constant dense<0.000000e+00> : vector<256x128xf32>
    %132 = tpu.matmul %129, %131, %cst_136 {dimension_numbers = #tpu.dot_dimension_numbers<[1], [0], [0], [1], [0, 0, 1, 1], [], []>} : vector<256x128xbf16>, vector<128x128xbf16>, vector<256x128xf32> -> vector<256x128xf32>
    %133 = arith.addf %126, %132 : vector<256x128xf32>
    %c1_137 = arith.constant 1 : index
    %c2_138 = arith.constant 2 : index
    %c0_139 = arith.constant 0 : index
    %134 = vector.load %arg10[%c1_137, %c2_138, %c0_139] : memref<18x18x128xf32, #tpu.memory_space<vmem>>, vector<16x16x128xf32>
    %135 = vector.shape_cast %134 : vector<16x16x128xf32> to vector<256x128xf32>
    %136 = arith.truncf %135 : vector<256x128xf32> to vector<256x128xbf16>
    %c5_140 = arith.constant 5 : index
    %c0_141 = arith.constant 0 : index
    %c0_142 = arith.constant 0 : index
    %137 = vector.load %arg5[%c5_140, %c0_141, %c0_142] : memref<9x128x128xbf16, #tpu.memory_space<vmem>>, vector<1x128x128xbf16>
    %138 = vector.shape_cast %137 : vector<1x128x128xbf16> to vector<128x128xbf16>
    %cst_143 = arith.constant dense<0.000000e+00> : vector<256x128xf32>
    %139 = tpu.matmul %136, %138, %cst_143 {dimension_numbers = #tpu.dot_dimension_numbers<[1], [0], [0], [1], [0, 0, 1, 1], [], []>} : vector<256x128xbf16>, vector<128x128xbf16>, vector<256x128xf32> -> vector<256x128xf32>
    %140 = arith.addf %133, %139 : vector<256x128xf32>
    %c2_144 = arith.constant 2 : index
    %c0_145 = arith.constant 0 : index
    %c0_146 = arith.constant 0 : index
    %141 = vector.load %arg10[%c2_144, %c0_145, %c0_146] : memref<18x18x128xf32, #tpu.memory_space<vmem>>, vector<16x16x128xf32>
    %142 = vector.shape_cast %141 : vector<16x16x128xf32> to vector<256x128xf32>
    %143 = arith.truncf %142 : vector<256x128xf32> to vector<256x128xbf16>
    %c6_147 = arith.constant 6 : index
    %c0_148 = arith.constant 0 : index
    %c0_149 = arith.constant 0 : index
    %144 = vector.load %arg5[%c6_147, %c0_148, %c0_149] : memref<9x128x128xbf16, #tpu.memory_space<vmem>>, vector<1x128x128xbf16>
    %145 = vector.shape_cast %144 : vector<1x128x128xbf16> to vector<128x128xbf16>
    %cst_150 = arith.constant dense<0.000000e+00> : vector<256x128xf32>
    %146 = tpu.matmul %143, %145, %cst_150 {dimension_numbers = #tpu.dot_dimension_numbers<[1], [0], [0], [1], [0, 0, 1, 1], [], []>} : vector<256x128xbf16>, vector<128x128xbf16>, vector<256x128xf32> -> vector<256x128xf32>
    %147 = arith.addf %140, %146 : vector<256x128xf32>
    %c2_151 = arith.constant 2 : index
    %c1_152 = arith.constant 1 : index
    %c0_153 = arith.constant 0 : index
    %148 = vector.load %arg10[%c2_151, %c1_152, %c0_153] : memref<18x18x128xf32, #tpu.memory_space<vmem>>, vector<16x16x128xf32>
    %149 = vector.shape_cast %148 : vector<16x16x128xf32> to vector<256x128xf32>
    %150 = arith.truncf %149 : vector<256x128xf32> to vector<256x128xbf16>
    %c7_154 = arith.constant 7 : index
    %c0_155 = arith.constant 0 : index
    %c0_156 = arith.constant 0 : index
    %151 = vector.load %arg5[%c7_154, %c0_155, %c0_156] : memref<9x128x128xbf16, #tpu.memory_space<vmem>>, vector<1x128x128xbf16>
    %152 = vector.shape_cast %151 : vector<1x128x128xbf16> to vector<128x128xbf16>
    %cst_157 = arith.constant dense<0.000000e+00> : vector<256x128xf32>
    %153 = tpu.matmul %150, %152, %cst_157 {dimension_numbers = #tpu.dot_dimension_numbers<[1], [0], [0], [1], [0, 0, 1, 1], [], []>} : vector<256x128xbf16>, vector<128x128xbf16>, vector<256x128xf32> -> vector<256x128xf32>
    %154 = arith.addf %147, %153 : vector<256x128xf32>
    %c2_158 = arith.constant 2 : index
    %c2_159 = arith.constant 2 : index
    %c0_160 = arith.constant 0 : index
    %155 = vector.load %arg10[%c2_158, %c2_159, %c0_160] : memref<18x18x128xf32, #tpu.memory_space<vmem>>, vector<16x16x128xf32>
    %156 = vector.shape_cast %155 : vector<16x16x128xf32> to vector<256x128xf32>
    %157 = arith.truncf %156 : vector<256x128xf32> to vector<256x128xbf16>
    %c8_161 = arith.constant 8 : index
    %c0_162 = arith.constant 0 : index
    %c0_163 = arith.constant 0 : index
    %158 = vector.load %arg5[%c8_161, %c0_162, %c0_163] : memref<9x128x128xbf16, #tpu.memory_space<vmem>>, vector<1x128x128xbf16>
    %159 = vector.shape_cast %158 : vector<1x128x128xbf16> to vector<128x128xbf16>
    %cst_164 = arith.constant dense<0.000000e+00> : vector<256x128xf32>
    %160 = tpu.matmul %157, %159, %cst_164 {dimension_numbers = #tpu.dot_dimension_numbers<[1], [0], [0], [1], [0, 0, 1, 1], [], []>} : vector<256x128xbf16>, vector<128x128xbf16>, vector<256x128xf32> -> vector<256x128xf32>
    %161 = arith.addf %154, %160 : vector<256x128xf32>
    %162 = vector.broadcast %2 : vector<1x128xf32> to vector<256x128xf32>
    %163 = arith.mulf %161, %162 : vector<256x128xf32>
    %164 = vector.broadcast %3 : vector<1x128xf32> to vector<256x128xf32>
    %165 = arith.addf %163, %164 : vector<256x128xf32>
    %c0_165 = arith.constant 0 : index
    %c0_166 = arith.constant 0 : index
    %c0_167 = arith.constant 0 : index
    %c0_168 = arith.constant 0 : index
    %166 = vector.load %arg1[%c0_165, %c0_166, %c0_167, %c0_168] : memref<1x16x16x128xf32, #tpu.memory_space<vmem>>, vector<1x16x16x128xf32>
    %167 = vector.shape_cast %166 : vector<1x16x16x128xf32> to vector<16x16x128xf32>
    %168 = vector.shape_cast %167 : vector<16x16x128xf32> to vector<256x128xf32>
    %169 = arith.addf %165, %168 : vector<256x128xf32>
    %cst_169 = arith.constant 2.000000e+01 : f32
    %170 = vector.broadcast %cst_169 : f32 to vector<256x128xf32>
    %171 = arith.cmpf ogt, %169, %170 : vector<256x128xf32>
    %cst_170 = arith.constant 2.000000e+01 : f32
    %172 = vector.broadcast %cst_170 : f32 to vector<256x128xf32>
    %173 = arith.minimumf %169, %172 : vector<256x128xf32>
    %174 = math.exp %173 : vector<256x128xf32>
    %175 = math.log1p %174 : vector<256x128xf32>
    %176 = arith.select %171, %169, %175 : vector<256x128xi1>, vector<256x128xf32>
    %177 = math.tanh %176 : vector<256x128xf32>
    %178 = arith.mulf %169, %177 : vector<256x128xf32>
    %179 = vector.shape_cast %178 : vector<256x128xf32> to vector<16x16x128xf32>
    %c0_171 = arith.constant 0 : index
    %c0_172 = arith.constant 0 : index
    %c0_173 = arith.constant 0 : index
    %c0_174 = arith.constant 0 : index
    %180 = vector.load %arg8[%c0_171, %c0_172, %c0_173, %c0_174] : memref<1x16x16x128xf32, #tpu.memory_space<vmem>>, vector<1x16x16x128xf32>
    %181 = vector.shape_cast %180 : vector<1x16x16x128xf32> to vector<16x16x128xf32>
    %182 = vector.shape_cast %179 : vector<16x16x128xf32> to vector<1x16x16x128xf32>
    tpu.vector_store %arg8[%c0_171, %c0_172, %c0_173, %c0_174], %182 {strides = array<i32>} : memref<1x16x16x128xf32, #tpu.memory_space<vmem>>, vector<1x16x16x128xf32>,
    return
  }
  func.func @transform_0(%arg0: i32) -> (i32, i32, i32, i32) {
    %c0_i32 = arith.constant 0 : i32
    %c0_i32_0 = arith.constant 0 : i32
    %c0_i32_1 = arith.constant 0 : i32
    %c0_i32_2 = arith.constant 0 : i32
    return %arg0, %c0_i32, %c0_i32_0, %c0_i32_1 : i32, i32, i32, i32
  }
  func.func @transform_1(%arg0: i32) -> (i32, i32, i32) {
    %c0_i32 = arith.constant 0 : i32
    %c0_i32_0 = arith.constant 0 : i32
    %c0_i32_1 = arith.constant 0 : i32
    %c0_i32_2 = arith.constant 0 : i32
    return %c0_i32, %c0_i32_0, %c0_i32_1 : i32, i32, i32
  }
  func.func @transform_2(%arg0: i32) -> (i32, i32) {
    %c0_i32 = arith.constant 0 : i32
    %c0_i32_0 = arith.constant 0 : i32
    %c0_i32_1 = arith.constant 0 : i32
    return %c0_i32, %c0_i32_0 : i32, i32
  }
  func.func @transform_3(%arg0: i32) -> (i32, i32) {
    %c0_i32 = arith.constant 0 : i32
    %c0_i32_0 = arith.constant 0 : i32
    %c0_i32_1 = arith.constant 0 : i32
    return %c0_i32, %c0_i32_0 : i32, i32
  }
  func.func @transform_4(%arg0: i32) -> (i32, i32, i32) {
    %c0_i32 = arith.constant 0 : i32
    %c0_i32_0 = arith.constant 0 : i32
    %c0_i32_1 = arith.constant 0 : i32
    %c0_i32_2 = arith.constant 0 : i32
    return %c0_i32, %c0_i32_0, %c0_i32_1 : i32, i32, i32
  }
  func.func @transform_5(%arg0: i32) -> (i32, i32) {
    %c0_i32 = arith.constant 0 : i32
    %c0_i32_0 = arith.constant 0 : i32
    %c0_i32_1 = arith.constant 0 : i32
    return %c0_i32, %c0_i32_0 : i32, i32
  }
  func.func @transform_6(%arg0: i32) -> (i32, i32) {
    %c0_i32 = arith.constant 0 : i32
    %c0_i32_0 = arith.constant 0 : i32
    %c0_i32_1 = arith.constant 0 : i32
    return %c0_i32, %c0_i32_0 : i32, i32
  }
  func.func @transform_7(%arg0: i32) -> (i32, i32, i32, i32) {
    %c0_i32 = arith.constant 0 : i32
    %c0_i32_0 = arith.constant 0 : i32
    %c0_i32_1 = arith.constant 0 : i32
    %c0_i32_2 = arith.constant 0 : i32
    return %arg0, %c0_i32, %c0_i32_0, %c0_i32_1 : i32, i32, i32, i32
  }
}

</mosaic_0001>

<llo_original>
// kernel: tpu_custom_call.1
$region0: #{tpu_custom_call.1}
  #allocation0 [shape = 'u32[]', space=smem, size = 0x4, offset = 0x4, fixed_abs, tag = 'smem constant byte address 0x4 - core index']
  #allocation1 [shape = 'u32[144,128]{1,0:T(1,128)}', space=vmem, size = 0x12000, scoped, tag = 'internal scratch']
  #allocation2 [shape = 'f32[18,18,128]{2,1,0:T(8,128)}', space=vmem, size = 0x36000, scoped, tag = 'scratch operand']
  #allocation3 [shape = 'f32[18,18,128]{2,1,0:T(8,128)}', space=vmem, size = 0x36000, scoped, tag = 'scratch operand']
  %s0 = inlined_call_operand.hbm [shape: f32[2,16,16,128], index: 0, kind: input, shape index: {}]
  %s1 = inlined_call_operand.hbm [shape: bf16[9,128,128], index: 1, kind: input, shape index: {}]
  %s2 = inlined_call_operand.vmem [shape: f32[1,128], index: 2, kind: input, shape index: {}]
  %s3 = inlined_call_operand.vmem [shape: f32[1,128], index: 3, kind: input, shape index: {}]
  %s4 = inlined_call_operand.hbm [shape: bf16[9,128,128], index: 4, kind: input, shape index: {}]
  %s5 = inlined_call_operand.vmem [shape: f32[1,128], index: 5, kind: input, shape index: {}]
  %s6 = inlined_call_operand.vmem [shape: f32[1,128], index: 6, kind: input, shape index: {}]
  %s7 = inlined_call_operand.hbm [shape: f32[2,16,16,128], index: 7, kind: output, shape index: {}]
  %s8 = sld [smem:[#allocation0]]
  $region73: #{tpu_custom_call.1} parent=0
    _
  %s10 = ssub.s32 1, %s8
  %s11 = scalar_select 0, %s10, %s8
  $region1: #{tpu_custom_call.1} parent=0
    #allocation4 [shape = 'u8[262144]{0}', space=vmem, size = 0x40000, scoped, tag = 'input window, operand 0']
    #allocation5 [shape = 's32[2]{0}', space=sflag, size = 0x8, scoped, tag = 'scoped memory for tpu_custom_call.1']
    #allocation6 [shape = 's32[2]{0}', space=sflag, size = 0x8, scoped, tag = 'scoped memory for tpu_custom_call.1']
    #allocation7 [shape = 'u8[294912]{0}', space=vmem, size = 0x48000, scoped, tag = 'input window, operand 1, single buffered']
    #allocation8 [shape = 's32[1]{0}', space=sflag, size = 0x4, scoped, tag = 'scoped memory for tpu_custom_call.1']
    #allocation9 [shape = 'u8[294912]{0}', space=vmem, size = 0x48000, scoped, tag = 'input window, operand 4, single buffered']
    #allocation10 [shape = 'u8[262144]{0}', space=vmem, size = 0x40000, scoped, tag = 'output window, operand 0']
    %12 = vsyncpa [#allocation5], 0
    %s13 = scalar_lea.sflag [#allocation5], 1
    %14 = vsyncpa %s13, 0
    %15 = vsyncpa [#allocation8], 0
    %16 = vsyncpa [#allocation6], 0
    %s17 = scalar_lea.sflag [#allocation6], 1
    %18 = vsyncpa %s17, 0
    loop: start=0, step=1, limit=4
    $region2: #{tpu_custom_call.1} parent=1 // loop_pre_header
      _
    $region3: #{tpu_custom_call.1} parent=1 // loop_header
      %s20 = sphi 0, %s24
      %p21 = scmp.ge.s32.totalorder %s20, 4
      %s30 = sphi 0, %s32
      %s33 = sphi 0, %s30
      %s34 = sphi 0, %s33
      %s50 = sphi 0, %s34
      %s54 = sphi 0, %s54
      %s56 = sphi 0, %s54
      %s57 = sphi 0, %s56
      %s71 = sphi 0, %s57
      %s75 = sphi 0, %s75
      %s77 = sphi 0, %s75
      %s78 = sphi 0, %s77
      %s92 = sphi 0, %s78
      %s96 = sphi 0, %s96
      %s98 = sphi 0, %s96
      %s99 = sphi 0, %s98
      %s113 = sphi 0, %s99
      %s117 = sphi 0, %s117
      %s119 = sphi 0, %s117
      %s120 = sphi 0, %s119
      %s134 = sphi 0, %s120
      %s138 = sphi 0, %s138
      %s140 = sphi 0, %s138
      %s141 = sphi 0, %s140
      %s155 = sphi 0, %s141
      %s159 = sphi 0, %s159
      %s161 = sphi 0, %s159
      %s162 = sphi 0, %s161
      %s176 = sphi 0, %s162
      %s182 = sphi 0, %s184
      %s185 = sphi 0, %s182
      %s186 = sphi 0, %s185
      %s202 = sphi 0, %s186
    $region4: #{tpu_custom_call.1} parent=1 // loop_header_branch
      %23 = sbr.rel (%p21) target = $region8
    $region5: #{tpu_custom_call.1} parent=1 // loop_body
      %s25 = ssub.s32 %s20, 1
      %s26 = ssub.s32 %s20, 2
      %s27 = sadd.s32 %s20, 1
      %s28 = ssub.s32 %s20, %s27
      %p29 = scmp.eq.s32.totalorder %s28, 0
      %s31 = sadd.s32 %s30, 1
      %s32 = scalar_select %p29, %s30, %s31
      %p35 = pneg %p29
      %p36 = scmp.eq.s32.totalorder %s20, 1
      %p37 = por %p35, %p36
      %p38 = scmp.ne.s32.totalorder %s30, %s33
      %p39 = scmp.eq.s32.totalorder %s20, 0
      %p40 = por %p38, %p39
      %p41 = scmp.ne.s32.totalorder %s30, %s33
      %p42 = scmp.eq.s32.totalorder %s25, 1
      %p43 = por %p41, %p42
      %p44 = scmp.ne.s32.totalorder %s33, %s34
      %p45 = scmp.eq.s32.totalorder %s25, 0
      %p46 = por %p44, %p45
      %p47 = scmp.ne.s32.totalorder %s33, %s34
      %p48 = scmp.eq.s32.totalorder %s26, 1
      %p49 = por %p47, %p48
      %p51 = scmp.ne.s32.totalorder %s34, %s50
      %p52 = scmp.eq.s32.totalorder %s26, 0
      %p53 = por %p51, %p52
      %s55 = sadd.s32 %s54, 1
      %p58 = scmp.eq.s32.totalorder %s20, 1
      %p59 = scmp.ne.s32.totalorder %s54, %s56
      %p60 = scmp.eq.s32.totalorder %s20, 0
      %p61 = por %p59, %p60
      %p62 = scmp.ne.s32.totalorder %s54, %s56
      %p63 = scmp.eq.s32.totalorder %s25, 1
      %p64 = por %p62, %p63
      %p65 = scmp.ne.s32.totalorder %s56, %s57
      %p66 = scmp.eq.s32.totalorder %s25, 0
      %p67 = por %p65, %p66
      %p68 = scmp.ne.s32.totalorder %s56, %s57
      %p69 = scmp.eq.s32.totalorder %s26, 1
      %p70 = por %p68, %p69
      %p72 = scmp.ne.s32.totalorder %s57, %s71
      %p73 = scmp.eq.s32.totalorder %s26, 0
      %p74 = por %p72, %p73
      %s76 = sadd.s32 %s75, 1
      %p79 = scmp.eq.s32.totalorder %s20, 1
      %p80 = scmp.ne.s32.totalorder %s75, %s77
      %p81 = scmp.eq.s32.totalorder %s20, 0
      %p82 = por %p80, %p81
      %p83 = scmp.ne.s32.totalorder %s75, %s77
      %p84 = scmp.eq.s32.totalorder %s25, 1
      %p85 = por %p83, %p84
      %p86 = scmp.ne.s32.totalorder %s77, %s78
      %p87 = scmp.eq.s32.totalorder %s25, 0
      %p88 = por %p86, %p87
      %p89 = scmp.ne.s32.totalorder %s77, %s78
      %p90 = scmp.eq.s32.totalorder %s26, 1
      %p91 = por %p89, %p90
      %p93 = scmp.ne.s32.totalorder %s78, %s92
      %p94 = scmp.eq.s32.totalorder %s26, 0
      %p95 = por %p93, %p94
      %s97 = sadd.s32 %s96, 1
      %p100 = scmp.eq.s32.totalorder %s20, 1
      %p101 = scmp.ne.s32.totalorder %s96, %s98
      %p102 = scmp.eq.s32.totalorder %s20, 0
      %p103 = por %p101, %p102
      %p104 = scmp.ne.s32.totalorder %s96, %s98
      %p105 = scmp.eq.s32.totalorder %s25, 1
      %p106 = por %p104, %p105
      %p107 = scmp.ne.s32.totalorder %s98, %s99
      %p108 = scmp.eq.s32.totalorder %s25, 0
      %p109 = por %p107, %p108
      %p110 = scmp.ne.s32.totalorder %s98, %s99
      %p111 = scmp.eq.s32.totalorder %s26, 1
      %p112 = por %p110, %p111
      %p114 = scmp.ne.s32.totalorder %s99, %s113
      %p115 = scmp.eq.s32.totalorder %s26, 0
      %p116 = por %p114, %p115
      %s118 = sadd.s32 %s117, 1
      %p121 = scmp.eq.s32.totalorder %s20, 1
      %p122 = scmp.ne.s32.totalorder %s117, %s119
      %p123 = scmp.eq.s32.totalorder %s20, 0
      %p124 = por %p122, %p123
      %p125 = scmp.ne.s32.totalorder %s117, %s119
      %p126 = scmp.eq.s32.totalorder %s25, 1
      %p127 = por %p125, %p126
      %p128 = scmp.ne.s32.totalorder %s119, %s120
      %p129 = scmp.eq.s32.totalorder %s25, 0
      %p130 = por %p128, %p129
      %p131 = scmp.ne.s32.totalorder %s119, %s120
      %p132 = scmp.eq.s32.totalorder %s26, 1
      %p133 = por %p131, %p132
      %p135 = scmp.ne.s32.totalorder %s120, %s134
      %p136 = scmp.eq.s32.totalorder %s26, 0
      %p137 = por %p135, %p136
      %s139 = sadd.s32 %s138, 1
      %p142 = scmp.eq.s32.totalorder %s20, 1
      %p143 = scmp.ne.s32.totalorder %s138, %s140
      %p144 = scmp.eq.s32.totalorder %s20, 0
      %p145 = por %p143, %p144
      %p146 = scmp.ne.s32.totalorder %s138, %s140
      %p147 = scmp.eq.s32.totalorder %s25, 1
      %p148 = por %p146, %p147
      %p149 = scmp.ne.s32.totalorder %s140, %s141
      %p150 = scmp.eq.s32.totalorder %s25, 0
      %p151 = por %p149, %p150
      %p152 = scmp.ne.s32.totalorder %s140, %s141
      %p153 = scmp.eq.s32.totalorder %s26, 1
      %p154 = por %p152, %p153
      %p156 = scmp.ne.s32.totalorder %s141, %s155
      %p157 = scmp.eq.s32.totalorder %s26, 0
      %p158 = por %p156, %p157
      %s160 = sadd.s32 %s159, 1
      %p163 = scmp.eq.s32.totalorder %s20, 1
      %p164 = scmp.ne.s32.totalorder %s159, %s161
      %p165 = scmp.eq.s32.totalorder %s20, 0
      %p166 = por %p164, %p165
      %p167 = scmp.ne.s32.totalorder %s159, %s161
      %p168 = scmp.eq.s32.totalorder %s25, 1
      %p169 = por %p167, %p168
      %p170 = scmp.ne.s32.totalorder %s161, %s162
      %p171 = scmp.eq.s32.totalorder %s25, 0
      %p172 = por %p170, %p171
      %p173 = scmp.ne.s32.totalorder %s161, %s162
      %p174 = scmp.eq.s32.totalorder %s26, 1
      %p175 = por %p173, %p174
      %p177 = scmp.ne.s32.totalorder %s162, %s176
      %p178 = scmp.eq.s32.totalorder %s26, 0
      %p179 = por %p177, %p178
      %s180 = ssub.s32 %s20, %s27
      %p181 = scmp.eq.s32.totalorder %s180, 0
      %s183 = sadd.s32 %s182, 1
      %s184 = scalar_select %p181, %s182, %s183
      %p187 = pneg %p181
      %p188 = scmp.eq.s32.totalorder %s20, 1
      %p189 = por %p187, %p188
      %p190 = scmp.ne.s32.totalorder %s182, %s185
      %p191 = scmp.eq.s32.totalorder %s20, 0
      %p192 = por %p190, %p191
      %p193 = scmp.ne.s32.totalorder %s182, %s185
      %p194 = scmp.eq.s32.totalorder %s25, 1
      %p195 = por %p193, %p194
      %p196 = scmp.ne.s32.totalorder %s185, %s186
      %p197 = scmp.eq.s32.totalorder %s25, 0
      %p198 = por %p196, %p197
      %p199 = scmp.ne.s32.totalorder %s185, %s186
      %p200 = scmp.eq.s32.totalorder %s26, 1
      %p201 = por %p199, %p200
      %p203 = scmp.ne.s32.totalorder %s186, %s202
      %p204 = scmp.eq.s32.totalorder %s26, 0
      %p205 = por %p203, %p204
      %p206 = scmp.le.s32.totalorder 1, %s20
      %p207 = scmp.lt.s32.totalorder %s20, 3
      %p208 = pnand %p206, %p207
      %p209 = pneg %p208
      // Predicated region
      $region9: #{tpu_custom_call.1} parent=5 // pred_check
        _
      $region10: #{tpu_custom_call.1} parent=5 // pred_check_branch
        %211 = sbr.rel (%p208) target = $region12
      $region11: #{tpu_custom_call.1} parent=5 // pred_region
        %s212 = ssub.s32 %s20, 1
        // Predicated region
        $region13: #{tpu_custom_call.1} parent=11 // pred_check
          %p213 = pneg %p67
        $region14: #{tpu_custom_call.1} parent=11 // pred_check_branch
          %215 = sbr.rel (%p213) target = $region16
        $region15: #{tpu_custom_call.1} parent=11 // pred_region
          %s217 = ssub.s32 9216, 9216
          %218 = vsyncadd [#allocation8], %s217
          %s219 = sshll.u32 [#allocation7], 4
          %s220 = int_to_ptr.vmem [resolvable:$true] %s219
          %225 = dma.hbm_to_vmem [thread:$0]  %s1, 9216, %s220, [#allocation8], 64, 64, 4
        $region16: #{tpu_custom_call.1} parent=11 // pred_fallthru
          _
        // Predicated region
        $region17: #{tpu_custom_call.1} parent=11 // pred_check
          %p226 = pneg %p88
        $region18: #{tpu_custom_call.1} parent=11 // pred_check_branch
          %228 = sbr.rel (%p226) target = $region20
        $region19: #{tpu_custom_call.1} parent=11 // pred_region
          _
        $region20: #{tpu_custom_call.1} parent=11 // pred_fallthru
          _
        // Predicated region
        $region21: #{tpu_custom_call.1} parent=11 // pred_check
          %p229 = pneg %p109
        $region22: #{tpu_custom_call.1} parent=11 // pred_check_branch
          %231 = sbr.rel (%p229) target = $region24
        $region23: #{tpu_custom_call.1} parent=11 // pred_region
          _
        $region24: #{tpu_custom_call.1} parent=11 // pred_fallthru
          _
        // Predicated region
        $region25: #{tpu_custom_call.1} parent=11 // pred_check
          %p232 = pneg %p130
        $region26: #{tpu_custom_call.1} parent=11 // pred_check_branch
          %234 = sbr.rel (%p232) target = $region28
        $region27: #{tpu_custom_call.1} parent=11 // pred_region
          %s236 = ssub.s32 9216, 9216
          %237 = vsyncadd [#allocation8], %s236
          %s238 = sshll.u32 [#allocation9], 4
          %s239 = int_to_ptr.vmem [resolvable:$true] %s238
          %244 = dma.hbm_to_vmem [thread:$0]  %s4, 9216, %s239, [#allocation8], 64, 64, 4
        $region28: #{tpu_custom_call.1} parent=11 // pred_fallthru
          _
        // Predicated region
        $region29: #{tpu_custom_call.1} parent=11 // pred_check
          %p245 = pneg %p151
        $region30: #{tpu_custom_call.1} parent=11 // pred_check_branch
          %247 = sbr.rel (%p245) target = $region32
        $region31: #{tpu_custom_call.1} parent=11 // pred_region
          _
        $region32: #{tpu_custom_call.1} parent=11 // pred_fallthru
          _
        // Predicated region
        $region33: #{tpu_custom_call.1} parent=11 // pred_check
          %p248 = pneg %p172
        $region34: #{tpu_custom_call.1} parent=11 // pred_check_branch
          %250 = sbr.rel (%p248) target = $region36
        $region35: #{tpu_custom_call.1} parent=11 // pred_region
          _
        $region36: #{tpu_custom_call.1} parent=11 // pred_fallthru
          _
      $region12: #{tpu_custom_call.1} parent=5 // pred_fallthru
        _
      %p251 = scmp.lt.s32.totalorder %s20, 2
      // Predicated region
      $region37: #{tpu_custom_call.1} parent=5 // pred_check
        %p252 = pneg %p251
      $region38: #{tpu_custom_call.1} parent=5 // pred_check_branch
        %254 = sbr.rel (%p252) target = $region40
      $region39: #{tpu_custom_call.1} parent=5 // pred_region
        // Predicated region
        $region41: #{tpu_custom_call.1} parent=39 // pred_check
          %p255 = pneg %p40
        $region42: #{tpu_custom_call.1} parent=39 // pred_check_branch
          %257 = sbr.rel (%p255) target = $region44
        $region43: #{tpu_custom_call.1} parent=39 // pred_region
          %s258 = sand.u32 %s30, 1
          %s259 = scalar_lea.sflag [#allocation5], %s258
          %s260 = sand.u32 %s30, 1
          %s261 = smul.addr %s260, 256
          %s262 = scalar_lea.vmem [#allocation4], %s261
          %s264 = ssub.s32 4096, 4096
          %265 = vsyncadd %s259, %s264
          %s266 = smul.addr %s20, 32
          %s267 = smul.addr %s266, 128
          %s268 = scalar_lea.hbm %s0, %s267
          %s269 = sshll.u32 %s262, 4
          %s270 = int_to_ptr.vmem [resolvable:$true] %s269
          %275 = dma.hbm_to_vmem [thread:$0]  %s268, 4096, %s270, %s259, 128, 128, 8
        $region44: #{tpu_custom_call.1} parent=39 // pred_fallthru
          _
      $region40: #{tpu_custom_call.1} parent=5 // pred_fallthru
        _
      %p276 = scmp.le.s32.totalorder 1, %s20
      %p277 = scmp.lt.s32.totalorder %s20, 3
      %p278 = pnand %p276, %p277
      %p279 = pneg %p278
      // Predicated region
      $region45: #{tpu_custom_call.1} parent=5 // pred_check
        _
      $region46: #{tpu_custom_call.1} parent=5 // pred_check_branch
        %281 = sbr.rel (%p278) target = $region48
      $region47: #{tpu_custom_call.1} parent=5 // pred_region
        %s282 = ssub.s32 %s20, 1
        %s283 = sand.u32 %s33, 1
        %s284 = scalar_lea.sflag [#allocation5], %s283
        %s285 = sand.u32 %s33, 1
        %s286 = smul.addr %s285, 256
        %s287 = scalar_lea.vmem [#allocation4], %s286
        // Predicated region
        $region49: #{tpu_custom_call.1} parent=47 // pred_check
          %p288 = pneg %p46
        $region50: #{tpu_custom_call.1} parent=47 // pred_check_branch
          %290 = sbr.rel (%p288) target = $region52
        $region51: #{tpu_custom_call.1} parent=47 // pred_region
          %291 = dma.done %s284, 4096
        $region52: #{tpu_custom_call.1} parent=47 // pred_fallthru
          _
        // Predicated region
        $region53: #{tpu_custom_call.1} parent=47 // pred_check
          %p292 = pneg %p67
        $region54: #{tpu_custom_call.1} parent=47 // pred_check_branch
          %294 = sbr.rel (%p292) target = $region56
        $region55: #{tpu_custom_call.1} parent=47 // pred_region
          %295 = dma.done [#allocation8], 9216
        $region56: #{tpu_custom_call.1} parent=47 // pred_fallthru
          _
        // Predicated region
        $region57: #{tpu_custom_call.1} parent=47 // pred_check
          %p296 = pneg %p130
        $region58: #{tpu_custom_call.1} parent=47 // pred_check_branch
          %298 = sbr.rel (%p296) target = $region60
        $region59: #{tpu_custom_call.1} parent=47 // pred_region
          %299 = dma.done [#allocation8], 9216
        $region60: #{tpu_custom_call.1} parent=47 // pred_fallthru
          _
        %s300 = sand.u32 %s33, 1
        %s301 = scalar_lea.sflag [#allocation5], %s300
        %s302 = sand.u32 %s33, 1
        %s303 = smul.addr %s302, 256
        %s304 = scalar_lea.vmem [#allocation4], %s303
        %p305 = pneg %p46
        %p306 = pneg %p43
        %p307 = pneg %p67
        %p308 = pneg %p64
        %p309 = pneg %p88
        %p310 = pneg %p85
        %p311 = pneg %p109
        %p312 = pneg %p106
        %p313 = pneg %p130
        %p314 = pneg %p127
        %p315 = pneg %p151
        %p316 = pneg %p148
        %p317 = pneg %p172
        %p318 = pneg %p169
        %p319 = pneg %p198
        %p320 = pneg %p195
        %s321 = sand.u32 %s185, 1
        %s322 = scalar_lea.sflag [#allocation6], %s321
        %s323 = sand.u32 %s185, 1
        %s324 = smul.addr %s323, 256
        %s325 = scalar_lea.vmem [#allocation10], %s324
        %v327 = vld [vmem:[%s2] sm:$0x1]
        %v328 = vld [vmem:[%s3] sm:$0x1]
        %v329 = vld [vmem:[%s5] sm:$0x1]
        %v330 = vld [vmem:[%s6] sm:$0x1]
        %331 = vst [vmem:[#allocation2] sm:$0xff] 0.0
        %332 = vst [vmem:[#allocation2 + $0x8] sm:$0xff] 0.0
        %333 = vst [vmem:[#allocation2 + $0x10] sm:$0x3] 0.0
        %s334 = scalar_lea.vmem [#allocation2], 408
        %335 = vst [vmem:[%s334] sm:$0xff] 0.0
        %336 = vst [vmem:[%s334 + $0x8] sm:$0xff] 0.0
        %337 = vst [vmem:[%s334 + $0x10] sm:$0x3] 0.0
        %338 = vst [vmem:[#allocation2] sm:$0x1] 0.0
        %339 = vst [vmem:[#allocation2 + $0x18] sm:$0x1] 0.0
        %340 = vst [vmem:[#allocation2 + $0x30] sm:$0x1] 0.0
        %341 = vst [vmem:[#allocation2 + $0x48] sm:$0x1] 0.0
        %342 = vst [vmem:[#allocation2 + $0x60] sm:$0x1] 0.0
        %343 = vst [vmem:[#allocation2 + $0x78] sm:$0x1] 0.0
        %344 = vst [vmem:[#allocation2 + $0x90] sm:$0x1] 0.0
        %345 = vst [vmem:[#allocation2 + $0xa8] sm:$0x1] 0.0
        %346 = vst [vmem:[#allocation2 + $0xc0] sm:$0x1] 0.0
        %347 = vst [vmem:[#allocation2 + $0xd8] sm:$0x1] 0.0
        %348 = vst [vmem:[#allocation2 + $0xf0] sm:$0x1] 0.0
        %349 = vst [vmem:[#allocation2 + $0x108] sm:$0x1] 0.0
        %350 = vst [vmem:[#allocation2 + $0x120] sm:$0x1] 0.0
        %351 = vst [vmem:[#allocation2 + $0x138] sm:$0x1] 0.0
        %352 = vst [vmem:[#allocation2 + $0x150] sm:$0x1] 0.0
        %353 = vst [vmem:[#allocation2 + $0x168] sm:$0x1] 0.0
        %354 = vst [vmem:[#allocation2 + $0x180] sm:$0x1] 0.0
        %355 = vst [vmem:[#allocation2 + $0x198] sm:$0x1] 0.0
        %356 = vst [vmem:[#allocation2 + $0x11] sm:$0x1] 0.0
        %357 = vst [vmem:[#allocation2 + $0x29] sm:$0x1] 0.0
        %358 = vst [vmem:[#allocation2 + $0x41] sm:$0x1] 0.0
        %359 = vst [vmem:[#allocation2 + $0x59] sm:$0x1] 0.0
        %360 = vst [vmem:[#allocation2 + $0x71] sm:$0x1] 0.0
        %361 = vst [vmem:[#allocation2 + $0x89] sm:$0x1] 0.0
        %362 = vst [vmem:[#allocation2 + $0xa1] sm:$0x1] 0.0
        %363 = vst [vmem:[#allocation2 + $0xb9] sm:$0x1] 0.0
        %364 = vst [vmem:[#allocation2 + $0xd1] sm:$0x1] 0.0
        %365 = vst [vmem:[#allocation2 + $0xe9] sm:$0x1] 0.0
        %366 = vst [vmem:[#allocation2 + $0x101] sm:$0x1] 0.0
        %367 = vst [vmem:[#allocation2 + $0x119] sm:$0x1] 0.0
        %368 = vst [vmem:[#allocation2 + $0x131] sm:$0x1] 0.0
        %369 = vst [vmem:[#allocation2 + $0x149] sm:$0x1] 0.0
        %370 = vst [vmem:[#allocation2 + $0x161] sm:$0x1] 0.0
        %371 = vst [vmem:[#allocation2 + $0x179] sm:$0x1] 0.0
        %372 = vst [vmem:[#allocation2 + $0x191] sm:$0x1] 0.0
        %373 = vst [vmem:[#allocation2 + $0x1a9] sm:$0x1] 0.0
        %v374 = vld [vmem:[%s287] sm:$0xff]
        %v375 = vld [vmem:[%s287 + $0x8] sm:$0xff]
        %v376 = vld [vmem:[%s287 + $0x10] sm:$0xff]
        %v377 = vld [vmem:[%s287 + $0x18] sm:$0xff]
        %v378 = vld [vmem:[%s287 + $0x20] sm:$0xff]
        %v379 = vld [vmem:[%s287 + $0x28] sm:$0xff]
        %v380 = vld [vmem:[%s287 + $0x30] sm:$0xff]
        %v381 = vld [vmem:[%s287 + $0x38] sm:$0xff]
        %v382 = vld [vmem:[%s287 + $0x40] sm:$0xff]
        %v383 = vld [vmem:[%s287 + $0x48] sm:$0xff]
        %v384 = vld [vmem:[%s287 + $0x50] sm:$0xff]
        %v385 = vld [vmem:[%s287 + $0x58] sm:$0xff]
        %v386 = vld [vmem:[%s287 + $0x60] sm:$0xff]
        %v387 = vld [vmem:[%s287 + $0x68] sm:$0xff]
        %v388 = vld [vmem:[%s287 + $0x70] sm:$0xff]
        %v389 = vld [vmem:[%s287 + $0x78] sm:$0xff]
        %v390 = vld [vmem:[%s287 + $0x80] sm:$0xff]
        %v391 = vld [vmem:[%s287 + $0x88] sm:$0xff]
        %v392 = vld [vmem:[%s287 + $0x90] sm:$0xff]
        %v393 = vld [vmem:[%s287 + $0x98] sm:$0xff]
        %v394 = vld [vmem:[%s287 + $0xa0] sm:$0xff]
        %v395 = vld [vmem:[%s287 + $0xa8] sm:$0xff]
        %v396 = vld [vmem:[%s287 + $0xb0] sm:$0xff]
        %v397 = vld [vmem:[%s287 + $0xb8] sm:$0xff]
        %v398 = vld [vmem:[%s287 + $0xc0] sm:$0xff]
        %v399 = vld [vmem:[%s287 + $0xc8] sm:$0xff]
        %v400 = vld [vmem:[%s287 + $0xd0] sm:$0xff]
        %v401 = vld [vmem:[%s287 + $0xd8] sm:$0xff]
        %v402 = vld [vmem:[%s287 + $0xe0] sm:$0xff]
        %v403 = vld [vmem:[%s287 + $0xe8] sm:$0xff]
        %v404 = vld [vmem:[%s287 + $0xf0] sm:$0xff]
        %v405 = vld [vmem:[%s287 + $0xf8] sm:$0xff]
        %s406 = scalar_lea.vmem [#allocation2], 24
        %407 = vst [vmem:[%s406 + $0x1] sm:$0xff] %v374
        %408 = vst [vmem:[%s406 + $0x9] sm:$0xff] %v375
        %409 = vst [vmem:[%s406 + $0x19] sm:$0xff] %v376
        %410 = vst [vmem:[%s406 + $0x21] sm:$0xff] %v377
        %411 = vst [vmem:[%s406 + $0x31] sm:$0xff] %v378
        %412 = vst [vmem:[%s406 + $0x39] sm:$0xff] %v379
        %413 = vst [vmem:[%s406 + $0x49] sm:$0xff] %v380
        %414 = vst [vmem:[%s406 + $0x51] sm:$0xff] %v381
        %415 = vst [vmem:[%s406 + $0x61] sm:$0xff] %v382
        %416 = vst [vmem:[%s406 + $0x69] sm:$0xff] %v383
        %417 = vst [vmem:[%s406 + $0x79] sm:$0xff] %v384
        %418 = vst [vmem:[%s406 + $0x81] sm:$0xff] %v385
        %419 = vst [vmem:[%s406 + $0x91] sm:$0xff] %v386
        %420 = vst [vmem:[%s406 + $0x99] sm:$0xff] %v387
        %421 = vst [vmem:[%s406 + $0xa9] sm:$0xff] %v388
        %422 = vst [vmem:[%s406 + $0xb1] sm:$0xff] %v389
        %423 = vst [vmem:[%s406 + $0xc1] sm:$0xff] %v390
        %424 = vst [vmem:[%s406 + $0xc9] sm:$0xff] %v391
        %425 = vst [vmem:[%s406 + $0xd9] sm:$0xff] %v392
        %426 = vst [vmem:[%s406 + $0xe1] sm:$0xff] %v393
        %427 = vst [vmem:[%s406 + $0xf1] sm:$0xff] %v394
        %428 = vst [vmem:[%s406 + $0xf9] sm:$0xff] %v395
        %429 = vst [vmem:[%s406 + $0x109] sm:$0xff] %v396
        %430 = vst [vmem:[%s406 + $0x111] sm:$0xff] %v397
        %431 = vst [vmem:[%s406 + $0x121] sm:$0xff] %v398
        %432 = vst [vmem:[%s406 + $0x129] sm:$0xff] %v399
        %433 = vst [vmem:[%s406 + $0x139] sm:$0xff] %v400
        %434 = vst [vmem:[%s406 + $0x141] sm:$0xff] %v401
        %435 = vst [vmem:[%s406 + $0x151] sm:$0xff] %v402
        %436 = vst [vmem:[%s406 + $0x159] sm:$0xff] %v403
        %437 = vst [vmem:[%s406 + $0x169] sm:$0xff] %v404
        %438 = vst [vmem:[%s406 + $0x171] sm:$0xff] %v405
        %v439 = vld [vmem:[#allocation2] sm:$0xff]
        %v440 = vld [vmem:[#allocation2 + $0x8] sm:$0xff]
        %v441 = vld [vmem:[#allocation2 + $0x18] sm:$0xff]
        %v442 = vld [vmem:[#allocation2 + $0x20] sm:$0xff]
        %v443 = vld [vmem:[#allocation2 + $0x30] sm:$0xff]
        %v444 = vld [vmem:[#allocation2 + $0x38] sm:$0xff]
        %v445 = vld [vmem:[#allocation2 + $0x48] sm:$0xff]
        %v446 = vld [vmem:[#allocation2 + $0x50] sm:$0xff]
        %v447 = vld [vmem:[#allocation2 + $0x60] sm:$0xff]
        %v448 = vld [vmem:[#allocation2 + $0x68] sm:$0xff]
        %v449 = vld [vmem:[#allocation2 + $0x78] sm:$0xff]
        %v450 = vld [vmem:[#allocation2 + $0x80] sm:$0xff]
        %v451 = vld [vmem:[#allocation2 + $0x90] sm:$0xff]
        %v452 = vld [vmem:[#allocation2 + $0x98] sm:$0xff]
        %v453 = vld [vmem:[#allocation2 + $0xa8] sm:$0xff]
        %v454 = vld [vmem:[#allocation2 + $0xb0] sm:$0xff]
        %v455 = vld [vmem:[#allocation2 + $0xc0] sm:$0xff]
        %v456 = vld [vmem:[#allocation2 + $0xc8] sm:$0xff]
        %v457 = vld [vmem:[#allocation2 + $0xd8] sm:$0xff]
        %v458 = vld [vmem:[#allocation2 + $0xe0] sm:$0xff]
        %v459 = vld [vmem:[#allocation2 + $0xf0] sm:$0xff]
        %v460 = vld [vmem:[#allocation2 + $0xf8] sm:$0xff]
        %v461 = vld [vmem:[#allocation2 + $0x108] sm:$0xff]
        %v462 = vld [vmem:[#allocation2 + $0x110] sm:$0xff]
        %v463 = vld [vmem:[#allocation2 + $0x120] sm:$0xff]
        %v464 = vld [vmem:[#allocation2 + $0x128] sm:$0xff]
        %v465 = vld [vmem:[#allocation2 + $0x138] sm:$0xff]
        %v466 = vld [vmem:[#allocation2 + $0x140] sm:$0xff]
        %v467 = vld [vmem:[#allocation2 + $0x150] sm:$0xff]
        %v468 = vld [vmem:[#allocation2 + $0x158] sm:$0xff]
        %v469 = vld [vmem:[#allocation2 + $0x168] sm:$0xff]
        %v470 = vld [vmem:[#allocation2 + $0x170] sm:$0xff]
        %v471 = vpack.c.bf16 %v440, %v439
        %v472 = vpack.c.bf16 %v442, %v441
        %v473 = vpack.c.bf16 %v444, %v443
        %v474 = vpack.c.bf16 %v446, %v445
        %v475 = vpack.c.bf16 %v448, %v447
        %v476 = vpack.c.bf16 %v450, %v449
        %v477 = vpack.c.bf16 %v452, %v451
        %v478 = vpack.c.bf16 %v454, %v453
        %v479 = vpack.c.bf16 %v456, %v455
        %v480 = vpack.c.bf16 %v458, %v457
        %v481 = vpack.c.bf16 %v460, %v459
        %v482 = vpack.c.bf16 %v462, %v461
        %v483 = vpack.c.bf16 %v464, %v463
        %v484 = vpack.c.bf16 %v466, %v465
        %v485 = vpack.c.bf16 %v468, %v467
        %v486 = vpack.c.bf16 %v470, %v469
        %v487 = vld [vmem:[#allocation7] sm:$0xf]
        %v488 = vld [vmem:[#allocation7 + $0x4] sm:$0xf]
        %v489 = vld [vmem:[#allocation7 + $0x8] sm:$0xf]
        %v490 = vld [vmem:[#allocation7 + $0xc] sm:$0xf]
        %v491 = vld [vmem:[#allocation7 + $0x10] sm:$0xf]
        %v492 = vld [vmem:[#allocation7 + $0x14] sm:$0xf]
        %v493 = vld [vmem:[#allocation7 + $0x18] sm:$0xf]
        %v494 = vld [vmem:[#allocation7 + $0x1c] sm:$0xf]
        %v495 = vld [vmem:[#allocation7 + $0x20] sm:$0xf]
        %v496 = vld [vmem:[#allocation7 + $0x24] sm:$0xf]
        %v497 = vld [vmem:[#allocation7 + $0x28] sm:$0xf]
        %v498 = vld [vmem:[#allocation7 + $0x2c] sm:$0xf]
        %v499 = vld [vmem:[#allocation7 + $0x30] sm:$0xf]
        %v500 = vld [vmem:[#allocation7 + $0x34] sm:$0xf]
        %v501 = vld [vmem:[#allocation7 + $0x38] sm:$0xf]
        %v502 = vld [vmem:[#allocation7 + $0x3c] sm:$0xf]
        %v503 = vld [vmem:[#allocation2 + $0x1] sm:$0xff]
        %v504 = vld [vmem:[#allocation2 + $0x9] sm:$0xff]
        %v505 = vld [vmem:[#allocation2 + $0x19] sm:$0xff]
        %v506 = vld [vmem:[#allocation2 + $0x21] sm:$0xff]
        %v507 = vld [vmem:[#allocation2 + $0x31] sm:$0xff]
        %v508 = vld [vmem:[#allocation2 + $0x39] sm:$0xff]
        %v509 = vld [vmem:[#allocation2 + $0x49] sm:$0xff]
        %v510 = vld [vmem:[#allocation2 + $0x51] sm:$0xff]
        %v511 = vld [vmem:[#allocation2 + $0x61] sm:$0xff]
        %v512 = vld [vmem:[#allocation2 + $0x69] sm:$0xff]
        %v513 = vld [vmem:[#allocation2 + $0x79] sm:$0xff]
        %v514 = vld [vmem:[#allocation2 + $0x81] sm:$0xff]
        %v515 = vld [vmem:[#allocation2 + $0x91] sm:$0xff]
        %v516 = vld [vmem:[#allocation2 + $0x99] sm:$0xff]
        %v517 = vld [vmem:[#allocation2 + $0xa9] sm:$0xff]
        %v518 = vld [vmem:[#allocation2 + $0xb1] sm:$0xff]
        %v519 = vld [vmem:[#allocation2 + $0xc1] sm:$0xff]
        %v520 = vld [vmem:[#allocation2 + $0xc9] sm:$0xff]
        %v521 = vld [vmem:[#allocation2 + $0xd9] sm:$0xff]
        %v522 = vld [vmem:[#allocation2 + $0xe1] sm:$0xff]
        %v523 = vld [vmem:[#allocation2 + $0xf1] sm:$0xff]
        %v524 = vld [vmem:[#allocation2 + $0xf9] sm:$0xff]
        %v525 = vld [vmem:[#allocation2 + $0x109] sm:$0xff]
        %v526 = vld [vmem:[#allocation2 + $0x111] sm:$0xff]
        %v527 = vld [vmem:[#allocation2 + $0x121] sm:$0xff]
        %v528 = vld [vmem:[#allocation2 + $0x129] sm:$0xff]
        %v529 = vld [vmem:[#allocation2 + $0x139] sm:$0xff]
        %v530 = vld [vmem:[#allocation2 + $0x141] sm:$0xff]
        %v531 = vld [vmem:[#allocation2 + $0x151] sm:$0xff]
        %v532 = vld [vmem:[#allocation2 + $0x159] sm:$0xff]
        %v533 = vld [vmem:[#allocation2 + $0x169] sm:$0xff]
        %v534 = vld [vmem:[#allocation2 + $0x171] sm:$0xff]
        %v535 = vpack.c.bf16 %v504, %v503
        %v536 = vpack.c.bf16 %v506, %v505
        %v537 = vpack.c.bf16 %v508, %v507
        %v538 = vpack.c.bf16 %v510, %v509
        %v539 = vpack.c.bf16 %v512, %v511
        %v540 = vpack.c.bf16 %v514, %v513
        %v541 = vpack.c.bf16 %v516, %v515
        %v542 = vpack.c.bf16 %v518, %v517
        %v543 = vpack.c.bf16 %v520, %v519
        %v544 = vpack.c.bf16 %v522, %v521
        %v545 = vpack.c.bf16 %v524, %v523
        %v546 = vpack.c.bf16 %v526, %v525
        %v547 = vpack.c.bf16 %v528, %v527
        %v548 = vpack.c.bf16 %v530, %v529
        %v549 = vpack.c.bf16 %v532, %v531
        %v550 = vpack.c.bf16 %v534, %v533
        %s551 = scalar_lea.vmem [#allocation7], 64
        %v552 = vld [vmem:[%s551] sm:$0xf]
        %v553 = vld [vmem:[%s551 + $0x4] sm:$0xf]
        %v554 = vld [vmem:[%s551 + $0x8] sm:$0xf]
        %v555 = vld [vmem:[%s551 + $0xc] sm:$0xf]
        %v556 = vld [vmem:[%s551 + $0x10] sm:$0xf]
        %v557 = vld [vmem:[%s551 + $0x14] sm:$0xf]
        %v558 = vld [vmem:[%s551 + $0x18] sm:$0xf]
        %v559 = vld [vmem:[%s551 + $0x1c] sm:$0xf]
        %v560 = vld [vmem:[%s551 + $0x20] sm:$0xf]
        %v561 = vld [vmem:[%s551 + $0x24] sm:$0xf]
        %v562 = vld [vmem:[%s551 + $0x28] sm:$0xf]
        %v563 = vld [vmem:[%s551 + $0x2c] sm:$0xf]
        %v564 = vld [vmem:[%s551 + $0x30] sm:$0xf]
        %v565 = vld [vmem:[%s551 + $0x34] sm:$0xf]
        %v566 = vld [vmem:[%s551 + $0x38] sm:$0xf]
        %v567 = vld [vmem:[%s551 + $0x3c] sm:$0xf]
        %v584 = vunpack.c.l.b16 %v552
        %v585 = vunpack.c.l.b16 %v553
        %v586 = vunpack.c.l.b16 %v554
        %v587 = vunpack.c.l.b16 %v555
        %v588 = vunpack.c.l.b16 %v556
        %v589 = vunpack.c.l.b16 %v557
        %v590 = vunpack.c.l.b16 %v558
        %v591 = vunpack.c.l.b16 %v559
        %v592 = vunpack.c.l.b16 %v560
        %v593 = vunpack.c.l.b16 %v561
        %v594 = vunpack.c.l.b16 %v562
        %v595 = vunpack.c.l.b16 %v563
        %v596 = vunpack.c.l.b16 %v564
        %v597 = vunpack.c.l.b16 %v565
        %v598 = vunpack.c.l.b16 %v566
        %v599 = vunpack.c.l.b16 %v567
        %v600 = vpack.c.b16 %v585, %v584
        %v601 = vpack.c.b16 %v587, %v586
        %v602 = vpack.c.b16 %v589, %v588
        %v603 = vpack.c.b16 %v591, %v590
        %v604 = vpack.c.b16 %v593, %v592
        %v605 = vpack.c.b16 %v595, %v594
        %v606 = vpack.c.b16 %v597, %v596
        %v607 = vpack.c.b16 %v599, %v598
        %616 = vmatprep.subr.bf16.mxu0 0
        %617 = vmatpush1.bf16.msra.mxu0 %v600
        %618 = vmatprep.subr.bf16.mxu0 0
        %619 = vmatpush1.bf16.msra.mxu0 %v601
        %620 = vmatprep.subr.bf16.mxu0 0
        %621 = vmatpush1.bf16.msra.mxu0 %v602
        %622 = vmatprep.subr.bf16.mxu0 0
        %623 = vmatpush1.bf16.msra.mxu0 %v603
        %624 = vmatprep.subr.bf16.mxu0 0
        %625 = vmatpush1.bf16.msra.mxu0 %v604
        %626 = vmatprep.subr.bf16.mxu0 0
        %627 = vmatpush1.bf16.msra.mxu0 %v605
        %628 = vmatprep.subr.bf16.mxu0 0
        %629 = vmatpush1.bf16.msra.mxu0 %v606
        %630 = vmatprep.subr.bf16.mxu0 0
        %631 = vmatpush1.bf16.msra.mxu0 %v607
        %632 = vmatprep.subr.bf16.mxu0 0
        %633 = vmatpush1.bf16.msra.mxu0 0
        %634 = vmatprep.subr.bf16.mxu0 0
        %635 = vmatpush1.bf16.msra.mxu0 0
        %636 = vmatprep.subr.bf16.mxu0 0
        %637 = vmatpush1.bf16.msra.mxu0 0
        %638 = vmatprep.subr.bf16.mxu0 0
        %639 = vmatpush1.bf16.msra.mxu0 0
        %640 = vmatprep.subr.bf16.mxu0 0
        %641 = vmatpush1.bf16.msra.mxu0 0
        %642 = vmatprep.subr.bf16.mxu0 0
        %643 = vmatpush1.bf16.msra.mxu0 0
        %644 = vmatprep.subr.bf16.mxu0 0
        %645 = vmatpush1.bf16.msra.mxu0 0
        %646 = vmatprep.subr.bf16.mxu0 0
        %647 = vmatpush1.bf16.msra.mxu0 0
        %648 = vmatprep.mubr.bf16.mxu0 0
        %649 = vmatmul.mubr.bf16.gmra.mrb[0].mxu0 %v535
        %v650 = vpop.f32.mrb[0].mxu0
        %v651 = vadd.f32 0.0, %v650
        %v652 = vpop.f32.mrb[0].mxu0
        %v653 = vpop.f32.mrb[0].mxu0
        %v654 = vadd.f32 0.0, %v653
        %v655 = vpop.f32.mrb[0].mxu0
        %656 = vmatprep.mubr.bf16.mxu0 0
        %657 = vmatmul.mubr.bf16.gmra.mrb[0].mxu0 %v536
        %v658 = vpop.f32.mrb[0].mxu0
        %v659 = vadd.f32 0.0, %v658
        %v660 = vpop.f32.mrb[0].mxu0
        %v661 = vpop.f32.mrb[0].mxu0
        %v662 = vadd.f32 0.0, %v661
        %v663 = vpop.f32.mrb[0].mxu0
        %664 = vmatprep.mubr.bf16.mxu0 0
        %665 = vmatmul.mubr.bf16.gmra.mrb[0].mxu0 %v537
        %v666 = vpop.f32.mrb[0].mxu0
        %v667 = vadd.f32 0.0, %v666
        %v668 = vpop.f32.mrb[0].mxu0
        %v669 = vpop.f32.mrb[0].mxu0
        %v670 = vadd.f32 0.0, %v669
        %v671 = vpop.f32.mrb[0].mxu0
        %672 = vmatprep.mubr.bf16.mxu0 0
        %673 = vmatmul.mubr.bf16.gmra.mrb[0].mxu0 %v538
        %v674 = vpop.f32.mrb[0].mxu0
        %v675 = vadd.f32 0.0, %v674
        %v676 = vpop.f32.mrb[0].mxu0
        %v677 = vpop.f32.mrb[0].mxu0
        %v678 = vadd.f32 0.0, %v677
        %v679 = vpop.f32.mrb[0].mxu0
        %680 = vmatprep.mubr.bf16.mxu0 0
        %681 = vmatmul.mubr.bf16.gmra.mrb[0].mxu0 %v539
        %v682 = vpop.f32.mrb[0].mxu0
        %v683 = vadd.f32 0.0, %v682
        %v684 = vpop.f32.mrb[0].mxu0
        %v685 = vpop.f32.mrb[0].mxu0
        %v686 = vadd.f32 0.0, %v685
        %v687 = vpop.f32.mrb[0].mxu0
        %688 = vmatprep.mubr.bf16.mxu0 0
        %689 = vmatmul.mubr.bf16.gmra.mrb[0].mxu0 %v540
        %v690 = vpop.f32.mrb[0].mxu0
        %v691 = vadd.f32 0.0, %v690
        %v692 = vpop.f32.mrb[0].mxu0
        %v693 = vpop.f32.mrb[0].mxu0
        %v694 = vadd.f32 0.0, %v693
        %v695 = vpop.f32.mrb[0].mxu0
        %696 = vmatprep.mubr.bf16.mxu0 0
        %697 = vmatmul.mubr.bf16.gmra.mrb[0].mxu0 %v541
        %v698 = vpop.f32.mrb[0].mxu0
        %v699 = vadd.f32 0.0, %v698
        %v700 = vpop.f32.mrb[0].mxu0
        %v701 = vpop.f32.mrb[0].mxu0
        %v702 = vadd.f32 0.0, %v701
        %v703 = vpop.f32.mrb[0].mxu0
        %704 = vmatprep.mubr.bf16.mxu0 0
        %705 = vmatmul.mubr.bf16.gmra.mrb[0].mxu0 %v542
        %v706 = vpop.f32.mrb[0].mxu0
        %v707 = vadd.f32 0.0, %v706
        %v708 = vpop.f32.mrb[0].mxu0
        %v709 = vpop.f32.mrb[0].mxu0
        %v710 = vadd.f32 0.0, %v709
        %v711 = vpop.f32.mrb[0].mxu0
        %712 = vmatprep.mubr.bf16.mxu0 0
        %713 = vmatmul.mubr.bf16.gmra.mrb[0].mxu0 %v543
        %v714 = vpop.f32.mrb[0].mxu0
        %v715 = vadd.f32 0.0, %v714
        %v716 = vpop.f32.mrb[0].mxu0
        %v717 = vpop.f32.mrb[0].mxu0
        %v718 = vadd.f32 0.0, %v717
        %v719 = vpop.f32.mrb[0].mxu0
        %720 = vmatprep.mubr.bf16.mxu0 0
        %721 = vmatmul.mubr.bf16.gmra.mrb[0].mxu0 %v544
        %v722 = vpop.f32.mrb[0].mxu0
        %v723 = vadd.f32 0.0, %v722
        %v724 = vpop.f32.mrb[0].mxu0
        %v725 = vpop.f32.mrb[0].mxu0
        %v726 = vadd.f32 0.0, %v725
        %v727 = vpop.f32.mrb[0].mxu0
        %728 = vmatprep.mubr.bf16.mxu0 0
        %729 = vmatmul.mubr.bf16.gmra.mrb[0].mxu0 %v545
        %v730 = vpop.f32.mrb[0].mxu0
        %v731 = vadd.f32 0.0, %v730
        %v732 = vpop.f32.mrb[0].mxu0
        %v733 = vpop.f32.mrb[0].mxu0
        %v734 = vadd.f32 0.0, %v733
        %v735 = vpop.f32.mrb[0].mxu0
        %736 = vmatprep.mubr.bf16.mxu0 0
        %737 = vmatmul.mubr.bf16.gmra.mrb[0].mxu0 %v546
        %v738 = vpop.f32.mrb[0].mxu0
        %v739 = vadd.f32 0.0, %v738
        %v740 = vpop.f32.mrb[0].mxu0
        %v741 = vpop.f32.mrb[0].mxu0
        %v742 = vadd.f32 0.0, %v741
        %v743 = vpop.f32.mrb[0].mxu0
        %744 = vmatprep.mubr.bf16.mxu0 0
        %745 = vmatmul.mubr.bf16.gmra.mrb[0].mxu0 %v547
        %v746 = vpop.f32.mrb[0].mxu0
        %v747 = vadd.f32 0.0, %v746
        %v748 = vpop.f32.mrb[0].mxu0
        %v749 = vpop.f32.mrb[0].mxu0
        %v750 = vadd.f32 0.0, %v749
        %v751 = vpop.f32.mrb[0].mxu0
        %752 = vmatprep.mubr.bf16.mxu0 0
        %753 = vmatmul.mubr.bf16.gmra.mrb[0].mxu0 %v548
        %v754 = vpop.f32.mrb[0].mxu0
        %v755 = vadd.f32 0.0, %v754
        %v756 = vpop.f32.mrb[0].mxu0
        %v757 = vpop.f32.mrb[0].mxu0
        %v758 = vadd.f32 0.0, %v757
        %v759 = vpop.f32.mrb[0].mxu0
        %760 = vmatprep.mubr.bf16.mxu0 0
        %761 = vmatmul.mubr.bf16.gmra.mrb[0].mxu0 %v549
        %v762 = vpop.f32.mrb[0].mxu0
        %v763 = vadd.f32 0.0, %v762
        %v764 = vpop.f32.mrb[0].mxu0
        %v765 = vpop.f32.mrb[0].mxu0
        %v766 = vadd.f32 0.0, %v765
        %v767 = vpop.f32.mrb[0].mxu0
        %768 = vmatprep.mubr.bf16.mxu0 0
        %769 = vmatmul.mubr.bf16.gmra.mrb[0].mxu0 %v550
        %v770 = vpop.f32.mrb[0].mxu0
        %v771 = vadd.f32 0.0, %v770
        %v772 = vpop.f32.mrb[0].mxu0
        %v773 = vpop.f32.mrb[0].mxu0
        %v774 = vadd.f32 0.0, %v773
        %v775 = vpop.f32.mrb[0].mxu0
        %776 = vdwg.mxu0
        %v793 = vunpack.c.l.b16 %v487
        %v794 = vunpack.c.l.b16 %v488
        %v795 = vunpack.c.l.b16 %v489
        %v796 = vunpack.c.l.b16 %v490
        %v797 = vunpack.c.l.b16 %v491
        %v798 = vunpack.c.l.b16 %v492
        %v799 = vunpack.c.l.b16 %v493
        %v800 = vunpack.c.l.b16 %v494
        %v801 = vunpack.c.l.b16 %v495
        %v802 = vunpack.c.l.b16 %v496
        %v803 = vunpack.c.l.b16 %v497
        %v804 = vunpack.c.l.b16 %v498
        %v805 = vunpack.c.l.b16 %v499
        %v806 = vunpack.c.l.b16 %v500
        %v807 = vunpack.c.l.b16 %v501
        %v808 = vunpack.c.l.b16 %v502
        %v809 = vpack.c.b16 %v794, %v793
        %v810 = vpack.c.b16 %v796, %v795
        %v811 = vpack.c.b16 %v798, %v797
        %v812 = vpack.c.b16 %v800, %v799
        %v813 = vpack.c.b16 %v802, %v801
        %v814 = vpack.c.b16 %v804, %v803
        %v815 = vpack.c.b16 %v806, %v805
        %v816 = vpack.c.b16 %v808, %v807
        %825 = vmatprep.subr.bf16.mxu0 0
        %826 = vmatpush1.bf16.msra.mxu0 %v809
        %827 = vmatprep.subr.bf16.mxu0 0
        %828 = vmatpush1.bf16.msra.mxu0 %v810
        %829 = vmatprep.subr.bf16.mxu0 0
        %830 = vmatpush1.bf16.msra.mxu0 %v811
        %831 = vmatprep.subr.bf16.mxu0 0
        %832 = vmatpush1.bf16.msra.mxu0 %v812
        %833 = vmatprep.subr.bf16.mxu0 0
        %834 = vmatpush1.bf16.msra.mxu0 %v813
        %835 = vmatprep.subr.bf16.mxu0 0
        %836 = vmatpush1.bf16.msra.mxu0 %v814
        %837 = vmatprep.subr.bf16.mxu0 0
        %838 = vmatpush1.bf16.msra.mxu0 %v815
        %839 = vmatprep.subr.bf16.mxu0 0
        %840 = vmatpush1.bf16.msra.mxu0 %v816
        %841 = vmatprep.subr.bf16.mxu0 0
        %842 = vmatpush1.bf16.msra.mxu0 0
        %843 = vmatprep.subr.bf16.mxu0 0
        %844 = vmatpush1.bf16.msra.mxu0 0
        %845 = vmatprep.subr.bf16.mxu0 0
        %846 = vmatpush1.bf16.msra.mxu0 0
        %847 = vmatprep.subr.bf16.mxu0 0
        %848 = vmatpush1.bf16.msra.mxu0 0
        %849 = vmatprep.subr.bf16.mxu0 0
        %850 = vmatpush1.bf16.msra.mxu0 0
        %851 = vmatprep.subr.bf16.mxu0 0
        %852 = vmatpush1.bf16.msra.mxu0 0
        %853 = vmatprep.subr.bf16.mxu0 0
        %854 = vmatpush1.bf16.msra.mxu0 0
        %855 = vmatprep.subr.bf16.mxu0 0
        %856 = vmatpush1.bf16.msra.mxu0 0
        %857 = vmatprep.mubr.bf16.mxu0 0
        %858 = vmatmul.mubr.bf16.gmra.mrb[0].mxu0 %v471
        %v859 = vpop.f32.mrb[0].mxu0
        %v860 = vadd.f32 %v651, %v859
        %v861 = vpop.f32.mrb[0].mxu0
        %v862 = vpop.f32.mrb[0].mxu0
        %v863 = vadd.f32 %v654, %v862
        %v864 = vpop.f32.mrb[0].mxu0
        %865 = vmatprep.mubr.bf16.mxu0 0
        %866 = vmatmul.mubr.bf16.gmra.mrb[0].mxu0 %v472
        %v867 = vpop.f32.mrb[0].mxu0
        %v868 = vadd.f32 %v659, %v867
        %v869 = vpop.f32.mrb[0].mxu0
        %v870 = vpop.f32.mrb[0].mxu0
        %v871 = vadd.f32 %v662, %v870
        %v872 = vpop.f32.mrb[0].mxu0
        %873 = vmatprep.mubr.bf16.mxu0 0
        %874 = vmatmul.mubr.bf16.gmra.mrb[0].mxu0 %v473
        %v875 = vpop.f32.mrb[0].mxu0
        %v876 = vadd.f32 %v667, %v875
        %v877 = vpop.f32.mrb[0].mxu0
        %v878 = vpop.f32.mrb[0].mxu0
        %v879 = vadd.f32 %v670, %v878
        %v880 = vpop.f32.mrb[0].mxu0
        %881 = vmatprep.mubr.bf16.mxu0 0
        %882 = vmatmul.mubr.bf16.gmra.mrb[0].mxu0 %v474
        %v883 = vpop.f32.mrb[0].mxu0
        %v884 = vadd.f32 %v675, %v883
        %v885 = vpop.f32.mrb[0].mxu0
        %v886 = vpop.f32.mrb[0].mxu0
        %v887 = vadd.f32 %v678, %v886
        %v888 = vpop.f32.mrb[0].mxu0
        %889 = vmatprep.mubr.bf16.mxu0 0
        %890 = vmatmul.mubr.bf16.gmra.mrb[0].mxu0 %v475
        %v891 = vpop.f32.mrb[0].mxu0
        %v892 = vadd.f32 %v683, %v891
        %v893 = vpop.f32.mrb[0].mxu0
        %v894 = vpop.f32.mrb[0].mxu0
        %v895 = vadd.f32 %v686, %v894
        %v896 = vpop.f32.mrb[0].mxu0
        %897 = vmatprep.mubr.bf16.mxu0 0
        %898 = vmatmul.mubr.bf16.gmra.mrb[0].mxu0 %v476
        %v899 = vpop.f32.mrb[0].mxu0
        %v900 = vadd.f32 %v691, %v899
        %v901 = vpop.f32.mrb[0].mxu0
        %v902 = vpop.f32.mrb[0].mxu0
        %v903 = vadd.f32 %v694, %v902
        %v904 = vpop.f32.mrb[0].mxu0
        %905 = vmatprep.mubr.bf16.mxu0 0
        %906 = vmatmul.mubr.bf16.gmra.mrb[0].mxu0 %v477
        %v907 = vpop.f32.mrb[0].mxu0
        %v908 = vadd.f32 %v699, %v907
        %v909 = vpop.f32.mrb[0].mxu0
        %v910 = vpop.f32.mrb[0].mxu0
        %v911 = vadd.f32 %v702, %v910
        %v912 = vpop.f32.mrb[0].mxu0
        %913 = vmatprep.mubr.bf16.mxu0 0
        %914 = vmatmul.mubr.bf16.gmra.mrb[0].mxu0 %v478
        %v915 = vpop.f32.mrb[0].mxu0
        %v916 = vadd.f32 %v707, %v915
        %v917 = vpop.f32.mrb[0].mxu0
        %v918 = vpop.f32.mrb[0].mxu0
        %v919 = vadd.f32 %v710, %v918
        %v920 = vpop.f32.mrb[0].mxu0
        %921 = vmatprep.mubr.bf16.mxu0 0
        %922 = vmatmul.mubr.bf16.gmra.mrb[0].mxu0 %v479
        %v923 = vpop.f32.mrb[0].mxu0
        %v924 = vadd.f32 %v715, %v923
        %v925 = vpop.f32.mrb[0].mxu0
        %v926 = vpop.f32.mrb[0].mxu0
        %v927 = vadd.f32 %v718, %v926
        %v928 = vpop.f32.mrb[0].mxu0
        %929 = vmatprep.mubr.bf16.mxu0 0
        %930 = vmatmul.mubr.bf16.gmra.mrb[0].mxu0 %v480
        %v931 = vpop.f32.mrb[0].mxu0
        %v932 = vadd.f32 %v723, %v931
        %v933 = vpop.f32.mrb[0].mxu0
        %v934 = vpop.f32.mrb[0].mxu0
        %v935 = vadd.f32 %v726, %v934
        %v936 = vpop.f32.mrb[0].mxu0
        %937 = vmatprep.mubr.bf16.mxu0 0
        %938 = vmatmul.mubr.bf16.gmra.mrb[0].mxu0 %v481
        %v939 = vpop.f32.mrb[0].mxu0
        %v940 = vadd.f32 %v731, %v939
        %v941 = vpop.f32.mrb[0].mxu0
        %v942 = vpop.f32.mrb[0].mxu0
        %v943 = vadd.f32 %v734, %v942
        %v944 = vpop.f32.mrb[0].mxu0
        %945 = vmatprep.mubr.bf16.mxu0 0
        %946 = vmatmul.mubr.bf16.gmra.mrb[0].mxu0 %v482
        %v947 = vpop.f32.mrb[0].mxu0
        %v948 = vadd.f32 %v739, %v947
        %v949 = vpop.f32.mrb[0].mxu0
        %v950 = vpop.f32.mrb[0].mxu0
        %v951 = vadd.f32 %v742, %v950
        %v952 = vpop.f32.mrb[0].mxu0
        %953 = vmatprep.mubr.bf16.mxu0 0
        %954 = vmatmul.mubr.bf16.gmra.mrb[0].mxu0 %v483
        %v955 = vpop.f32.mrb[0].mxu0
        %v956 = vadd.f32 %v747, %v955
        %v957 = vpop.f32.mrb[0].mxu0
        %v958 = vpop.f32.mrb[0].mxu0
        %v959 = vadd.f32 %v750, %v958
        %v960 = vpop.f32.mrb[0].mxu0
        %961 = vmatprep.mubr.bf16.mxu0 0
        %962 = vmatmul.mubr.bf16.gmra.mrb[0].mxu0 %v484
        %v963 = vpop.f32.mrb[0].mxu0
        %v964 = vadd.f32 %v755, %v963
        %v965 = vpop.f32.mrb[0].mxu0
        %v966 = vpop.f32.mrb[0].mxu0
        %v967 = vadd.f32 %v758, %v966
        %v968 = vpop.f32.mrb[0].mxu0
        %969 = vmatprep.mubr.bf16.mxu0 0
        %970 = vmatmul.mubr.bf16.gmra.mrb[0].mxu0 %v485
        %v971 = vpop.f32.mrb[0].mxu0
        %v972 = vadd.f32 %v763, %v971
        %v973 = vpop.f32.mrb[0].mxu0
        %v974 = vpop.f32.mrb[0].mxu0
        %v975 = vadd.f32 %v766, %v974
        %v976 = vpop.f32.mrb[0].mxu0
        %977 = vmatprep.mubr.bf16.mxu0 0
        %978 = vmatmul.mubr.bf16.gmra.mrb[0].mxu0 %v486
        %v979 = vpop.f32.mrb[0].mxu0
        %v980 = vadd.f32 %v771, %v979
        %v981 = vpop.f32.mrb[0].mxu0
        %v982 = vpop.f32.mrb[0].mxu0
        %v983 = vadd.f32 %v774, %v982
        %v984 = vpop.f32.mrb[0].mxu0
        %985 = vdwg.mxu0
        %v986 = vld [vmem:[#allocation2 + $0x2] sm:$0xff]
        %v987 = vld [vmem:[#allocation2 + $0xa] sm:$0xff]
        %v988 = vld [vmem:[#allocation2 + $0x1a] sm:$0xff]
        %v989 = vld [vmem:[#allocation2 + $0x22] sm:$0xff]
        %v990 = vld [vmem:[#allocation2 + $0x32] sm:$0xff]
        %v991 = vld [vmem:[#allocation2 + $0x3a] sm:$0xff]
        %v992 = vld [vmem:[#allocation2 + $0x4a] sm:$0xff]
        %v993 = vld [vmem:[#allocation2 + $0x52] sm:$0xff]
        %v994 = vld [vmem:[#allocation2 + $0x62] sm:$0xff]
        %v995 = vld [vmem:[#allocation2 + $0x6a] sm:$0xff]
        %v996 = vld [vmem:[#allocation2 + $0x7a] sm:$0xff]
        %v997 = vld [vmem:[#allocation2 + $0x82] sm:$0xff]
        %v998 = vld [vmem:[#allocation2 + $0x92] sm:$0xff]
        %v999 = vld [vmem:[#allocation2 + $0x9a] sm:$0xff]
        %v1000 = vld [vmem:[#allocation2 + $0xaa] sm:$0xff]
        %v1001 = vld [vmem:[#allocation2 + $0xb2] sm:$0xff]
        %v1002 = vld [vmem:[#allocation2 + $0xc2] sm:$0xff]
        %v1003 = vld [vmem:[#allocation2 + $0xca] sm:$0xff]
        %v1004 = vld [vmem:[#allocation2 + $0xda] sm:$0xff]
        %v1005 = vld [vmem:[#allocation2 + $0xe2] sm:$0xff]
        %v1006 = vld [vmem:[#allocation2 + $0xf2] sm:$0xff]
        %v1007 = vld [vmem:[#allocation2 + $0xfa] sm:$0xff]
        %v1008 = vld [vmem:[#allocation2 + $0x10a] sm:$0xff]
        %v1009 = vld [vmem:[#allocation2 + $0x112] sm:$0xff]
        %v1010 = vld [vmem:[#allocation2 + $0x122] sm:$0xff]
        %v1011 = vld [vmem:[#allocation2 + $0x12a] sm:$0xff]
        %v1012 = vld [vmem:[#allocation2 + $0x13a] sm:$0xff]
        %v1013 = vld [vmem:[#allocation2 + $0x142] sm:$0xff]
        %v1014 = vld [vmem:[#allocation2 + $0x152] sm:$0xff]
        %v1015 = vld [vmem:[#allocation2 + $0x15a] sm:$0xff]
        %v1016 = vld [vmem:[#allocation2 + $0x16a] sm:$0xff]
        %v1017 = vld [vmem:[#allocation2 + $0x172] sm:$0xff]
        %v1018 = vpack.c.bf16 %v987, %v986
        %v1019 = vpack.c.bf16 %v989, %v988
        %v1020 = vpack.c.bf16 %v991, %v990
        %v1021 = vpack.c.bf16 %v993, %v992
        %v1022 = vpack.c.bf16 %v995, %v994
        %v1023 = vpack.c.bf16 %v997, %v996
        %v1024 = vpack.c.bf16 %v999, %v998
        %v1025 = vpack.c.bf16 %v1001, %v1000
        %v1026 = vpack.c.bf16 %v1003, %v1002
        %v1027 = vpack.c.bf16 %v1005, %v1004
        %v1028 = vpack.c.bf16 %v1007, %v1006
        %v1029 = vpack.c.bf16 %v1009, %v1008
        %v1030 = vpack.c.bf16 %v1011, %v1010
        %v1031 = vpack.c.bf16 %v1013, %v1012
        %v1032 = vpack.c.bf16 %v1015, %v1014
        %v1033 = vpack.c.bf16 %v1017, %v1016
        %s1034 = scalar_lea.vmem [#allocation7], 128
        %v1035 = vld [vmem:[%s1034] sm:$0xf]
        %v1036 = vld [vmem:[%s1034 + $0x4] sm:$0xf]
        %v1037 = vld [vmem:[%s1034 + $0x8] sm:$0xf]
        %v1038 = vld [vmem:[%s1034 + $0xc] sm:$0xf]
        %v1039 = vld [vmem:[%s1034 + $0x10] sm:$0xf]
        %v1040 = vld [vmem:[%s1034 + $0x14] sm:$0xf]
        %v1041 = vld [vmem:[%s1034 + $0x18] sm:$0xf]
        %v1042 = vld [vmem:[%s1034 + $0x1c] sm:$0xf]
        %v1043 = vld [vmem:[%s1034 + $0x20] sm:$0xf]
        %v1044 = vld [vmem:[%s1034 + $0x24] sm:$0xf]
        %v1045 = vld [vmem:[%s1034 + $0x28] sm:$0xf]
        %v1046 = vld [vmem:[%s1034 + $0x2c] sm:$0xf]
        %v1047 = vld [vmem:[%s1034 + $0x30] sm:$0xf]
        %v1048 = vld [vmem:[%s1034 + $0x34] sm:$0xf]
        %v1049 = vld [vmem:[%s1034 + $0x38] sm:$0xf]
        %v1050 = vld [vmem:[%s1034 + $0x3c] sm:$0xf]
        %v1067 = vunpack.c.l.b16 %v1035
        %v1068 = vunpack.c.l.b16 %v1036
        %v1069 = vunpack.c.l.b16 %v1037
        %v1070 = vunpack.c.l.b16 %v1038
        %v1071 = vunpack.c.l.b16 %v1039
        %v1072 = vunpack.c.l.b16 %v1040
        %v1073 = vunpack.c.l.b16 %v1041
        %v1074 = vunpack.c.l.b16 %v1042
        %v1075 = vunpack.c.l.b16 %v1043
        %v1076 = vunpack.c.l.b16 %v1044
        %v1077 = vunpack.c.l.b16 %v1045
        %v1078 = vunpack.c.l.b16 %v1046
        %v1079 = vunpack.c.l.b16 %v1047
        %v1080 = vunpack.c.l.b16 %v1048
        %v1081 = vunpack.c.l.b16 %v1049
        %v1082 = vunpack.c.l.b16 %v1050
        %v1083 = vpack.c.b16 %v1068, %v1067
        %v1084 = vpack.c.b16 %v1070, %v1069
        %v1085 = vpack.c.b16 %v1072, %v1071
        %v1086 = vpack.c.b16 %v1074, %v1073
        %v1087 = vpack.c.b16 %v1076, %v1075
        %v1088 = vpack.c.b16 %v1078, %v1077
        %v1089 = vpack.c.b16 %v1080, %v1079
        %v1090 = vpack.c.b16 %v1082, %v1081
        %1099 = vmatprep.subr.bf16.mxu0 0
        %1100 = vmatpush1.bf16.msra.mxu0 %v1083
        %1101 = vmatprep.subr.bf16.mxu0 0
        %1102 = vmatpush1.bf16.msra.mxu0 %v1084
        %1103 = vmatprep.subr.bf16.mxu0 0
        %1104 = vmatpush1.bf16.msra.mxu0 %v1085
        %1105 = vmatprep.subr.bf16.mxu0 0
        %1106 = vmatpush1.bf16.msra.mxu0 %v1086
        %1107 = vmatprep.subr.bf16.mxu0 0
        %1108 = vmatpush1.bf16.msra.mxu0 %v1087
        %1109 = vmatprep.subr.bf16.mxu0 0
        %1110 = vmatpush1.bf16.msra.mxu0 %v1088
        %1111 = vmatprep.subr.bf16.mxu0 0
        %1112 = vmatpush1.bf16.msra.mxu0 %v1089
        %1113 = vmatprep.subr.bf16.mxu0 0
        %1114 = vmatpush1.bf16.msra.mxu0 %v1090
        %1115 = vmatprep.subr.bf16.mxu0 0
        %1116 = vmatpush1.bf16.msra.mxu0 0
        %1117 = vmatprep.subr.bf16.mxu0 0
        %1118 = vmatpush1.bf16.msra.mxu0 0
        %1119 = vmatprep.subr.bf16.mxu0 0
        %1120 = vmatpush1.bf16.msra.mxu0 0
        %1121 = vmatprep.subr.bf16.mxu0 0
        %1122 = vmatpush1.bf16.msra.mxu0 0
        %1123 = vmatprep.subr.bf16.mxu0 0
        %1124 = vmatpush1.bf16.msra.mxu0 0
        %1125 = vmatprep.subr.bf16.mxu0 0
        %1126 = vmatpush1.bf16.msra.mxu0 0
        %1127 = vmatprep.subr.bf16.mxu0 0
        %1128 = vmatpush1.bf16.msra.mxu0 0
        %1129 = vmatprep.subr.bf16.mxu0 0
        %1130 = vmatpush1.bf16.msra.mxu0 0
        %1131 = vmatprep.mubr.bf16.mxu0 0
        %1132 = vmatmul.mubr.bf16.gmra.mrb[0].mxu0 %v1018
        %v1133 = vpop.f32.mrb[0].mxu0
        %v1134 = vadd.f32 0.0, %v1133
        %v1135 = vpop.f32.mrb[0].mxu0
        %v1136 = vpop.f32.mrb[0].mxu0
        %v1137 = vadd.f32 0.0, %v1136
        %v1138 = vpop.f32.mrb[0].mxu0
        %1139 = vmatprep.mubr.bf16.mxu0 0
        %1140 = vmatmul.mubr.bf16.gmra.mrb[0].mxu0 %v1019
        %v1141 = vpop.f32.mrb[0].mxu0
        %v1142 = vadd.f32 0.0, %v1141
        %v1143 = vpop.f32.mrb[0].mxu0
        %v1144 = vpop.f32.mrb[0].mxu0
        %v1145 = vadd.f32 0.0, %v1144
        %v1146 = vpop.f32.mrb[0].mxu0
        %1147 = vmatprep.mubr.bf16.mxu0 0
        %1148 = vmatmul.mubr.bf16.gmra.mrb[0].mxu0 %v1020
        %v1149 = vpop.f32.mrb[0].mxu0
        %v1150 = vadd.f32 0.0, %v1149
        %v1151 = vpop.f32.mrb[0].mxu0
        %v1152 = vpop.f32.mrb[0].mxu0
        %v1153 = vadd.f32 0.0, %v1152
        %v1154 = vpop.f32.mrb[0].mxu0
        %1155 = vmatprep.mubr.bf16.mxu0 0
        %1156 = vmatmul.mubr.bf16.gmra.mrb[0].mxu0 %v1021
        %v1157 = vpop.f32.mrb[0].mxu0
        %v1158 = vadd.f32 0.0, %v1157
        %v1159 = vpop.f32.mrb[0].mxu0
        %v1160 = vpop.f32.mrb[0].mxu0
        %v1161 = vadd.f32 0.0, %v1160
        %v1162 = vpop.f32.mrb[0].mxu0
        %1163 = vmatprep.mubr.bf16.mxu0 0
        %1164 = vmatmul.mubr.bf16.gmra.mrb[0].mxu0 %v1022
        %v1165 = vpop.f32.mrb[0].mxu0
        %v1166 = vadd.f32 0.0, %v1165
        %v1167 = vpop.f32.mrb[0].mxu0
        %v1168 = vpop.f32.mrb[0].mxu0
        %v1169 = vadd.f32 0.0, %v1168
        %v1170 = vpop.f32.mrb[0].mxu0
        %1171 = vmatprep.mubr.bf16.mxu0 0
        %1172 = vmatmul.mubr.bf16.gmra.mrb[0].mxu0 %v1023
        %v1173 = vpop.f32.mrb[0].mxu0
        %v1174 = vadd.f32 0.0, %v1173
        %v1175 = vpop.f32.mrb[0].mxu0
        %v1176 = vpop.f32.mrb[0].mxu0
        %v1177 = vadd.f32 0.0, %v1176
        %v1178 = vpop.f32.mrb[0].mxu0
        %1179 = vmatprep.mubr.bf16.mxu0 0
        %1180 = vmatmul.mubr.bf16.gmra.mrb[0].mxu0 %v1024
        %v1181 = vpop.f32.mrb[0].mxu0
        %v1182 = vadd.f32 0.0, %v1181
        %v1183 = vpop.f32.mrb[0].mxu0
        %v1184 = vpop.f32.mrb[0].mxu0
        %v1185 = vadd.f32 0.0, %v1184
        %v1186 = vpop.f32.mrb[0].mxu0
        %1187 = vmatprep.mubr.bf16.mxu0 0
        %1188 = vmatmul.mubr.bf16.gmra.mrb[0].mxu0 %v1025
        %v1189 = vpop.f32.mrb[0].mxu0
        %v1190 = vadd.f32 0.0, %v1189
        %v1191 = vpop.f32.mrb[0].mxu0
        %v1192 = vpop.f32.mrb[0].mxu0
        %v1193 = vadd.f32 0.0, %v1192
        %v1194 = vpop.f32.mrb[0].mxu0
        %1195 = vmatprep.mubr.bf16.mxu0 0
        %1196 = vmatmul.mubr.bf16.gmra.mrb[0].mxu0 %v1026
        %v1197 = vpop.f32.mrb[0].mxu0
        %v1198 = vadd.f32 0.0, %v1197
        %v1199 = vpop.f32.mrb[0].mxu0
        %v1200 = vpop.f32.mrb[0].mxu0
        %v1201 = vadd.f32 0.0, %v1200
        %v1202 = vpop.f32.mrb[0].mxu0
        %1203 = vmatprep.mubr.bf16.mxu0 0
        %1204 = vmatmul.mubr.bf16.gmra.mrb[0].mxu0 %v1027
        %v1205 = vpop.f32.mrb[0].mxu0
        %v1206 = vadd.f32 0.0, %v1205
        %v1207 = vpop.f32.mrb[0].mxu0
        %v1208 = vpop.f32.mrb[0].mxu0
        %v1209 = vadd.f32 0.0, %v1208
        %v1210 = vpop.f32.mrb[0].mxu0
        %1211 = vmatprep.mubr.bf16.mxu0 0
        %1212 = vmatmul.mubr.bf16.gmra.mrb[0].mxu0 %v1028
        %v1213 = vpop.f32.mrb[0].mxu0
        %v1214 = vadd.f32 0.0, %v1213
        %v1215 = vpop.f32.mrb[0].mxu0
        %v1216 = vpop.f32.mrb[0].mxu0
        %v1217 = vadd.f32 0.0, %v1216
        %v1218 = vpop.f32.mrb[0].mxu0
        %1219 = vmatprep.mubr.bf16.mxu0 0
        %1220 = vmatmul.mubr.bf16.gmra.mrb[0].mxu0 %v1029
        %v1221 = vpop.f32.mrb[0].mxu0
        %v1222 = vadd.f32 0.0, %v1221
        %v1223 = vpop.f32.mrb[0].mxu0
        %v1224 = vpop.f32.mrb[0].mxu0
        %v1225 = vadd.f32 0.0, %v1224
        %v1226 = vpop.f32.mrb[0].mxu0
        %1227 = vmatprep.mubr.bf16.mxu0 0
        %1228 = vmatmul.mubr.bf16.gmra.mrb[0].mxu0 %v1030
        %v1229 = vpop.f32.mrb[0].mxu0
        %v1230 = vadd.f32 0.0, %v1229
        %v1231 = vpop.f32.mrb[0].mxu0
        %v1232 = vpop.f32.mrb[0].mxu0
        %v1233 = vadd.f32 0.0, %v1232
        %v1234 = vpop.f32.mrb[0].mxu0
        %1235 = vmatprep.mubr.bf16.mxu0 0
        %1236 = vmatmul.mubr.bf16.gmra.mrb[0].mxu0 %v1031
        %v1237 = vpop.f32.mrb[0].mxu0
        %v1238 = vadd.f32 0.0, %v1237
        %v1239 = vpop.f32.mrb[0].mxu0
        %v1240 = vpop.f32.mrb[0].mxu0
        %v1241 = vadd.f32 0.0, %v1240
        %v1242 = vpop.f32.mrb[0].mxu0
        %1243 = vmatprep.mubr.bf16.mxu0 0
        %1244 = vmatmul.mubr.bf16.gmra.mrb[0].mxu0 %v1032
        %v1245 = vpop.f32.mrb[0].mxu0
        %v1246 = vadd.f32 0.0, %v1245
        %v1247 = vpop.f32.mrb[0].mxu0
        %v1248 = vpop.f32.mrb[0].mxu0
        %v1249 = vadd.f32 0.0, %v1248
        %v1250 = vpop.f32.mrb[0].mxu0
        %1251 = vmatprep.mubr.bf16.mxu0 0
        %1252 = vmatmul.mubr.bf16.gmra.mrb[0].mxu0 %v1033
        %v1253 = vpop.f32.mrb[0].mxu0
        %v1254 = vadd.f32 0.0, %v1253
        %v1255 = vpop.f32.mrb[0].mxu0
        %v1256 = vpop.f32.mrb[0].mxu0
        %v1257 = vadd.f32 0.0, %v1256
        %v1258 = vpop.f32.mrb[0].mxu0
        %1259 = vdwg.mxu0
        %v1260 = vadd.f32 %v860, %v1134
        %v1261 = vadd.f32 %v863, %v1137
        %v1262 = vadd.f32 %v868, %v1142
        %v1263 = vadd.f32 %v871, %v1145
        %v1264 = vadd.f32 %v876, %v1150
        %v1265 = vadd.f32 %v879, %v1153
        %v1266 = vadd.f32 %v884, %v1158
        %v1267 = vadd.f32 %v887, %v1161
        %v1268 = vadd.f32 %v892, %v1166
        %v1269 = vadd.f32 %v895, %v1169
        %v1270 = vadd.f32 %v900, %v1174
        %v1271 = vadd.f32 %v903, %v1177
        %v1272 = vadd.f32 %v908, %v1182
        %v1273 = vadd.f32 %v911, %v1185
        %v1274 = vadd.f32 %v916, %v1190
        %v1275 = vadd.f32 %v919, %v1193
        %v1276 = vadd.f32 %v924, %v1198
        %v1277 = vadd.f32 %v927, %v1201
        %v1278 = vadd.f32 %v932, %v1206
        %v1279 = vadd.f32 %v935, %v1209
        %v1280 = vadd.f32 %v940, %v1214
        %v1281 = vadd.f32 %v943, %v1217
        %v1282 = vadd.f32 %v948, %v1222
        %v1283 = vadd.f32 %v951, %v1225
        %v1284 = vadd.f32 %v956, %v1230
        %v1285 = vadd.f32 %v959, %v1233
        %v1286 = vadd.f32 %v964, %v1238
        %v1287 = vadd.f32 %v967, %v1241
        %v1288 = vadd.f32 %v972, %v1246
        %v1289 = vadd.f32 %v975, %v1249
        %v1290 = vadd.f32 %v980, %v1254
        %v1291 = vadd.f32 %v983, %v1257
        %v1292 = vld [vmem:[%s406] sm:$0xff]
        %v1293 = vld [vmem:[%s406 + $0x8] sm:$0xff]
        %v1294 = vld [vmem:[%s406 + $0x18] sm:$0xff]
        %v1295 = vld [vmem:[%s406 + $0x20] sm:$0xff]
        %v1296 = vld [vmem:[%s406 + $0x30] sm:$0xff]
        %v1297 = vld [vmem:[%s406 + $0x38] sm:$0xff]
        %v1298 = vld [vmem:[%s406 + $0x48] sm:$0xff]
        %v1299 = vld [vmem:[%s406 + $0x50] sm:$0xff]
        %v1300 = vld [vmem:[%s406 + $0x60] sm:$0xff]
        %v1301 = vld [vmem:[%s406 + $0x68] sm:$0xff]
        %v1302 = vld [vmem:[%s406 + $0x78] sm:$0xff]
        %v1303 = vld [vmem:[%s406 + $0x80] sm:$0xff]
        %v1304 = vld [vmem:[%s406 + $0x90] sm:$0xff]
        %v1305 = vld [vmem:[%s406 + $0x98] sm:$0xff]
        %v1306 = vld [vmem:[%s406 + $0xa8] sm:$0xff]
        %v1307 = vld [vmem:[%s406 + $0xb0] sm:$0xff]
        %v1308 = vld [vmem:[%s406 + $0xc0] sm:$0xff]
        %v1309 = vld [vmem:[%s406 + $0xc8] sm:$0xff]
        %v1310 = vld [vmem:[%s406 + $0xd8] sm:$0xff]
        %v1311 = vld [vmem:[%s406 + $0xe0] sm:$0xff]
        %v1312 = vld [vmem:[%s406 + $0xf0] sm:$0xff]
        %v1313 = vld [vmem:[%s406 + $0xf8] sm:$0xff]
        %v1314 = vld [vmem:[%s406 + $0x108] sm:$0xff]
        %v1315 = vld [vmem:[%s406 + $0x110] sm:$0xff]
        %v1316 = vld [vmem:[%s406 + $0x120] sm:$0xff]
        %v1317 = vld [vmem:[%s406 + $0x128] sm:$0xff]
        %v1318 = vld [vmem:[%s406 + $0x138] sm:$0xff]
        %v1319 = vld [vmem:[%s406 + $0x140] sm:$0xff]
        %v1320 = vld [vmem:[%s406 + $0x150] sm:$0xff]
        %v1321 = vld [vmem:[%s406 + $0x158] sm:$0xff]
        %v1322 = vld [vmem:[%s406 + $0x168] sm:$0xff]
        %v1323 = vld [vmem:[%s406 + $0x170] sm:$0xff]
        %v1324 = vpack.c.bf16 %v1293, %v1292
        %v1325 = vpack.c.bf16 %v1295, %v1294
        %v1326 = vpack.c.bf16 %v1297, %v1296
        %v1327 = vpack.c.bf16 %v1299, %v1298
        %v1328 = vpack.c.bf16 %v1301, %v1300
        %v1329 = vpack.c.bf16 %v1303, %v1302
        %v1330 = vpack.c.bf16 %v1305, %v1304
        %v1331 = vpack.c.bf16 %v1307, %v1306
        %v1332 = vpack.c.bf16 %v1309, %v1308
        %v1333 = vpack.c.bf16 %v1311, %v1310
        %v1334 = vpack.c.bf16 %v1313, %v1312
        %v1335 = vpack.c.bf16 %v1315, %v1314
        %v1336 = vpack.c.bf16 %v1317, %v1316
        %v1337 = vpack.c.bf16 %v1319, %v1318
        %v1338 = vpack.c.bf16 %v1321, %v1320
        %v1339 = vpack.c.bf16 %v1323, %v1322
        %s1340 = scalar_lea.vmem [#allocation7], 192
        %v1341 = vld [vmem:[%s1340] sm:$0xf]
        %v1342 = vld [vmem:[%s1340 + $0x4] sm:$0xf]
        %v1343 = vld [vmem:[%s1340 + $0x8] sm:$0xf]
        %v1344 = vld [vmem:[%s1340 + $0xc] sm:$0xf]
        %v1345 = vld [vmem:[%s1340 + $0x10] sm:$0xf]
        %v1346 = vld [vmem:[%s1340 + $0x14] sm:$0xf]
        %v1347 = vld [vmem:[%s1340 + $0x18] sm:$0xf]
        %v1348 = vld [vmem:[%s1340 + $0x1c] sm:$0xf]
        %v1349 = vld [vmem:[%s1340 + $0x20] sm:$0xf]
        %v1350 = vld [vmem:[%s1340 + $0x24] sm:$0xf]
        %v1351 = vld [vmem:[%s1340 + $0x28] sm:$0xf]
        %v1352 = vld [vmem:[%s1340 + $0x2c] sm:$0xf]
        %v1353 = vld [vmem:[%s1340 + $0x30] sm:$0xf]
        %v1354 = vld [vmem:[%s1340 + $0x34] sm:$0xf]
        %v1355 = vld [vmem:[%s1340 + $0x38] sm:$0xf]
        %v1356 = vld [vmem:[%s1340 + $0x3c] sm:$0xf]
        %v1373 = vunpack.c.l.b16 %v1341
        %v1374 = vunpack.c.l.b16 %v1342
        %v1375 = vunpack.c.l.b16 %v1343
        %v1376 = vunpack.c.l.b16 %v1344
        %v1377 = vunpack.c.l.b16 %v1345
        %v1378 = vunpack.c.l.b16 %v1346
        %v1379 = vunpack.c.l.b16 %v1347
        %v1380 = vunpack.c.l.b16 %v1348
        %v1381 = vunpack.c.l.b16 %v1349
        %v1382 = vunpack.c.l.b16 %v1350
        %v1383 = vunpack.c.l.b16 %v1351
        %v1384 = vunpack.c.l.b16 %v1352
        %v1385 = vunpack.c.l.b16 %v1353
        %v1386 = vunpack.c.l.b16 %v1354
        %v1387 = vunpack.c.l.b16 %v1355
        %v1388 = vunpack.c.l.b16 %v1356
        %v1389 = vpack.c.b16 %v1374, %v1373
        %v1390 = vpack.c.b16 %v1376, %v1375
        %v1391 = vpack.c.b16 %v1378, %v1377
        %v1392 = vpack.c.b16 %v1380, %v1379
        %v1393 = vpack.c.b16 %v1382, %v1381
        %v1394 = vpack.c.b16 %v1384, %v1383
        %v1395 = vpack.c.b16 %v1386, %v1385
        %v1396 = vpack.c.b16 %v1388, %v1387
        %1405 = vmatprep.subr.bf16.mxu0 0
        %1406 = vmatpush1.bf16.msra.mxu0 %v1389
        %1407 = vmatprep.subr.bf16.mxu0 0
        %1408 = vmatpush1.bf16.msra.mxu0 %v1390
        %1409 = vmatprep.subr.bf16.mxu0 0
        %1410 = vmatpush1.bf16.msra.mxu0 %v1391
        %1411 = vmatprep.subr.bf16.mxu0 0
        %1412 = vmatpush1.bf16.msra.mxu0 %v1392
        %1413 = vmatprep.subr.bf16.mxu0 0
        %1414 = vmatpush1.bf16.msra.mxu0 %v1393
        %1415 = vmatprep.subr.bf16.mxu0 0
        %1416 = vmatpush1.bf16.msra.mxu0 %v1394
        %1417 = vmatprep.subr.bf16.mxu0 0
        %1418 = vmatpush1.bf16.msra.mxu0 %v1395
        %1419 = vmatprep.subr.bf16.mxu0 0
        %1420 = vmatpush1.bf16.msra.mxu0 %v1396
        %1421 = vmatprep.subr.bf16.mxu0 0
        %1422 = vmatpush1.bf16.msra.mxu0 0
        %1423 = vmatprep.subr.bf16.mxu0 0
        %1424 = vmatpush1.bf16.msra.mxu0 0
        %1425 = vmatprep.subr.bf16.mxu0 0
        %1426 = vmatpush1.bf16.msra.mxu0 0
        %1427 = vmatprep.subr.bf16.mxu0 0
        %1428 = vmatpush1.bf16.msra.mxu0 0
        %1429 = vmatprep.subr.bf16.mxu0 0
        %1430 = vmatpush1.bf16.msra.mxu0 0
        %1431 = vmatprep.subr.bf16.mxu0 0
        %1432 = vmatpush1.bf16.msra.mxu0 0
        %1433 = vmatprep.subr.bf16.mxu0 0
        %1434 = vmatpush1.bf16.msra.mxu0 0
        %1435 = vmatprep.subr.bf16.mxu0 0
        %1436 = vmatpush1.bf16.msra.mxu0 0
        %1437 = vmatprep.mubr.bf16.mxu0 0
        %1438 = vmatmul.mubr.bf16.gmra.mrb[0].mxu0 %v1324
        %v1439 = vpop.f32.mrb[0].mxu0
        %v1440 = vadd.f32 0.0, %v1439
        %v1441 = vpop.f32.mrb[0].mxu0
        %v1442 = vpop.f32.mrb[0].mxu0
        %v1443 = vadd.f32 0.0, %v1442
        %v1444 = vpop.f32.mrb[0].mxu0
        %1445 = vmatprep.mubr.bf16.mxu0 0
        %1446 = vmatmul.mubr.bf16.gmra.mrb[0].mxu0 %v1325
        %v1447 = vpop.f32.mrb[0].mxu0
        %v1448 = vadd.f32 0.0, %v1447
        %v1449 = vpop.f32.mrb[0].mxu0
        %v1450 = vpop.f32.mrb[0].mxu0
        %v1451 = vadd.f32 0.0, %v1450
        %v1452 = vpop.f32.mrb[0].mxu0
        %1453 = vmatprep.mubr.bf16.mxu0 0
        %1454 = vmatmul.mubr.bf16.gmra.mrb[0].mxu0 %v1326
        %v1455 = vpop.f32.mrb[0].mxu0
        %v1456 = vadd.f32 0.0, %v1455
        %v1457 = vpop.f32.mrb[0].mxu0
        %v1458 = vpop.f32.mrb[0].mxu0
        %v1459 = vadd.f32 0.0, %v1458
        %v1460 = vpop.f32.mrb[0].mxu0
        %1461 = vmatprep.mubr.bf16.mxu0 0
        %1462 = vmatmul.mubr.bf16.gmra.mrb[0].mxu0 %v1327
        %v1463 = vpop.f32.mrb[0].mxu0
        %v1464 = vadd.f32 0.0, %v1463
        %v1465 = vpop.f32.mrb[0].mxu0
        %v1466 = vpop.f32.mrb[0].mxu0
        %v1467 = vadd.f32 0.0, %v1466
        %v1468 = vpop.f32.mrb[0].mxu0
        %1469 = vmatprep.mubr.bf16.mxu0 0
        %1470 = vmatmul.mubr.bf16.gmra.mrb[0].mxu0 %v1328
        %v1471 = vpop.f32.mrb[0].mxu0
        %v1472 = vadd.f32 0.0, %v1471
        %v1473 = vpop.f32.mrb[0].mxu0
        %v1474 = vpop.f32.mrb[0].mxu0
        %v1475 = vadd.f32 0.0, %v1474
        %v1476 = vpop.f32.mrb[0].mxu0
        %1477 = vmatprep.mubr.bf16.mxu0 0
        %1478 = vmatmul.mubr.bf16.gmra.mrb[0].mxu0 %v1329
        %v1479 = vpop.f32.mrb[0].mxu0
        %v1480 = vadd.f32 0.0, %v1479
        %v1481 = vpop.f32.mrb[0].mxu0
        %v1482 = vpop.f32.mrb[0].mxu0
        %v1483 = vadd.f32 0.0, %v1482
        %v1484 = vpop.f32.mrb[0].mxu0
        %1485 = vmatprep.mubr.bf16.mxu0 0
        %1486 = vmatmul.mubr.bf16.gmra.mrb[0].mxu0 %v1330
        %v1487 = vpop.f32.mrb[0].mxu0
        %v1488 = vadd.f32 0.0, %v1487
        %v1489 = vpop.f32.mrb[0].mxu0
        %v1490 = vpop.f32.mrb[0].mxu0
        %v1491 = vadd.f32 0.0, %v1490
        %v1492 = vpop.f32.mrb[0].mxu0
        %1493 = vmatprep.mubr.bf16.mxu0 0
        %1494 = vmatmul.mubr.bf16.gmra.mrb[0].mxu0 %v1331
        %v1495 = vpop.f32.mrb[0].mxu0
        %v1496 = vadd.f32 0.0, %v1495
        %v1497 = vpop.f32.mrb[0].mxu0
        %v1498 = vpop.f32.mrb[0].mxu0
        %v1499 = vadd.f32 0.0, %v1498
        %v1500 = vpop.f32.mrb[0].mxu0
        %1501 = vmatprep.mubr.bf16.mxu0 0
        %1502 = vmatmul.mubr.bf16.gmra.mrb[0].mxu0 %v1332
        %v1503 = vpop.f32.mrb[0].mxu0
        %v1504 = vadd.f32 0.0, %v1503
        %v1505 = vpop.f32.mrb[0].mxu0
        %v1506 = vpop.f32.mrb[0].mxu0
        %v1507 = vadd.f32 0.0, %v1506
        %v1508 = vpop.f32.mrb[0].mxu0
        %1509 = vmatprep.mubr.bf16.mxu0 0
        %1510 = vmatmul.mubr.bf16.gmra.mrb[0].mxu0 %v1333
        %v1511 = vpop.f32.mrb[0].mxu0
        %v1512 = vadd.f32 0.0, %v1511
        %v1513 = vpop.f32.mrb[0].mxu0
        %v1514 = vpop.f32.mrb[0].mxu0
        %v1515 = vadd.f32 0.0, %v1514
        %v1516 = vpop.f32.mrb[0].mxu0
        %1517 = vmatprep.mubr.bf16.mxu0 0
        %1518 = vmatmul.mubr.bf16.gmra.mrb[0].mxu0 %v1334
        %v1519 = vpop.f32.mrb[0].mxu0
        %v1520 = vadd.f32 0.0, %v1519
        %v1521 = vpop.f32.mrb[0].mxu0
        %v1522 = vpop.f32.mrb[0].mxu0
        %v1523 = vadd.f32 0.0, %v1522
        %v1524 = vpop.f32.mrb[0].mxu0
        %1525 = vmatprep.mubr.bf16.mxu0 0
        %1526 = vmatmul.mubr.bf16.gmra.mrb[0].mxu0 %v1335
        %v1527 = vpop.f32.mrb[0].mxu0
        %v1528 = vadd.f32 0.0, %v1527
        %v1529 = vpop.f32.mrb[0].mxu0
        %v1530 = vpop.f32.mrb[0].mxu0
        %v1531 = vadd.f32 0.0, %v1530
        %v1532 = vpop.f32.mrb[0].mxu0
        %1533 = vmatprep.mubr.bf16.mxu0 0
        %1534 = vmatmul.mubr.bf16.gmra.mrb[0].mxu0 %v1336
        %v1535 = vpop.f32.mrb[0].mxu0
        %v1536 = vadd.f32 0.0, %v1535
        %v1537 = vpop.f32.mrb[0].mxu0
        %v1538 = vpop.f32.mrb[0].mxu0
        %v1539 = vadd.f32 0.0, %v1538
        %v1540 = vpop.f32.mrb[0].mxu0
        %1541 = vmatprep.mubr.bf16.mxu0 0
        %1542 = vmatmul.mubr.bf16.gmra.mrb[0].mxu0 %v1337
        %v1543 = vpop.f32.mrb[0].mxu0
        %v1544 = vadd.f32 0.0, %v1543
        %v1545 = vpop.f32.mrb[0].mxu0
        %v1546 = vpop.f32.mrb[0].mxu0
        %v1547 = vadd.f32 0.0, %v1546
        %v1548 = vpop.f32.mrb[0].mxu0
        %1549 = vmatprep.mubr.bf16.mxu0 0
        %1550 = vmatmul.mubr.bf16.gmra.mrb[0].mxu0 %v1338
        %v1551 = vpop.f32.mrb[0].mxu0
        %v1552 = vadd.f32 0.0, %v1551
        %v1553 = vpop.f32.mrb[0].mxu0
        %v1554 = vpop.f32.mrb[0].mxu0
        %v1555 = vadd.f32 0.0, %v1554
        %v1556 = vpop.f32.mrb[0].mxu0
        %1557 = vmatprep.mubr.bf16.mxu0 0
        %1558 = vmatmul.mubr.bf16.gmra.mrb[0].mxu0 %v1339
        %v1559 = vpop.f32.mrb[0].mxu0
        %v1560 = vadd.f32 0.0, %v1559
        %v1561 = vpop.f32.mrb[0].mxu0
        %v1562 = vpop.f32.mrb[0].mxu0
        %v1563 = vadd.f32 0.0, %v1562
        %v1564 = vpop.f32.mrb[0].mxu0
        %1565 = vdwg.mxu0
        %v1566 = vadd.f32 %v1260, %v1440
        %v1567 = vadd.f32 %v1261, %v1443
        %v1568 = vadd.f32 %v1262, %v1448
        %v1569 = vadd.f32 %v1263, %v1451
        %v1570 = vadd.f32 %v1264, %v1456
        %v1571 = vadd.f32 %v1265, %v1459
        %v1572 = vadd.f32 %v1266, %v1464
        %v1573 = vadd.f32 %v1267, %v1467
        %v1574 = vadd.f32 %v1268, %v1472
        %v1575 = vadd.f32 %v1269, %v1475
        %v1576 = vadd.f32 %v1270, %v1480
        %v1577 = vadd.f32 %v1271, %v1483
        %v1578 = vadd.f32 %v1272, %v1488
        %v1579 = vadd.f32 %v1273, %v1491
        %v1580 = vadd.f32 %v1274, %v1496
        %v1581 = vadd.f32 %v1275, %v1499
        %v1582 = vadd.f32 %v1276, %v1504
        %v1583 = vadd.f32 %v1277, %v1507
        %v1584 = vadd.f32 %v1278, %v1512
        %v1585 = vadd.f32 %v1279, %v1515
        %v1586 = vadd.f32 %v1280, %v1520
        %v1587 = vadd.f32 %v1281, %v1523
        %v1588 = vadd.f32 %v1282, %v1528
        %v1589 = vadd.f32 %v1283, %v1531
        %v1590 = vadd.f32 %v1284, %v1536
        %v1591 = vadd.f32 %v1285, %v1539
        %v1592 = vadd.f32 %v1286, %v1544
        %v1593 = vadd.f32 %v1287, %v1547
        %v1594 = vadd.f32 %v1288, %v1552
        %v1595 = vadd.f32 %v1289, %v1555
        %v1596 = vadd.f32 %v1290, %v1560
        %v1597 = vadd.f32 %v1291, %v1563
        %v1598 = vld [vmem:[%s406 + $0x1] sm:$0xff]
        %v1599 = vld [vmem:[%s406 + $0x9] sm:$0xff]
        %v1600 = vld [vmem:[%s406 + $0x19] sm:$0xff]
        %v1601 = vld [vmem:[%s406 + $0x21] sm:$0xff]
        %v1602 = vld [vmem:[%s406 + $0x31] sm:$0xff]
        %v1603 = vld [vmem:[%s406 + $0x39] sm:$0xff]
        %v1604 = vld [vmem:[%s406 + $0x49] sm:$0xff]
        %v1605 = vld [vmem:[%s406 + $0x51] sm:$0xff]
        %v1606 = vld [vmem:[%s406 + $0x61] sm:$0xff]
        %v1607 = vld [vmem:[%s406 + $0x69] sm:$0xff]
        %v1608 = vld [vmem:[%s406 + $0x79] sm:$0xff]
        %v1609 = vld [vmem:[%s406 + $0x81] sm:$0xff]
        %v1610 = vld [vmem:[%s406 + $0x91] sm:$0xff]
        %v1611 = vld [vmem:[%s406 + $0x99] sm:$0xff]
        %v1612 = vld [vmem:[%s406 + $0xa9] sm:$0xff]
        %v1613 = vld [vmem:[%s406 + $0xb1] sm:$0xff]
        %v1614 = vld [vmem:[%s406 + $0xc1] sm:$0xff]
        %v1615 = vld [vmem:[%s406 + $0xc9] sm:$0xff]
        %v1616 = vld [vmem:[%s406 + $0xd9] sm:$0xff]
        %v1617 = vld [vmem:[%s406 + $0xe1] sm:$0xff]
        %v1618 = vld [vmem:[%s406 + $0xf1] sm:$0xff]
        %v1619 = vld [vmem:[%s406 + $0xf9] sm:$0xff]
        %v1620 = vld [vmem:[%s406 + $0x109] sm:$0xff]
        %v1621 = vld [vmem:[%s406 + $0x111] sm:$0xff]
        %v1622 = vld [vmem:[%s406 + $0x121] sm:$0xff]
        %v1623 = vld [vmem:[%s406 + $0x129] sm:$0xff]
        %v1624 = vld [vmem:[%s406 + $0x139] sm:$0xff]
        %v1625 = vld [vmem:[%s406 + $0x141] sm:$0xff]
        %v1626 = vld [vmem:[%s406 + $0x151] sm:$0xff]
        %v1627 = vld [vmem:[%s406 + $0x159] sm:$0xff]
        %v1628 = vld [vmem:[%s406 + $0x169] sm:$0xff]
        %v1629 = vld [vmem:[%s406 + $0x171] sm:$0xff]
        %v1630 = vpack.c.bf16 %v1599, %v1598
        %v1631 = vpack.c.bf16 %v1601, %v1600
        %v1632 = vpack.c.bf16 %v1603, %v1602
        %v1633 = vpack.c.bf16 %v1605, %v1604
        %v1634 = vpack.c.bf16 %v1607, %v1606
        %v1635 = vpack.c.bf16 %v1609, %v1608
        %v1636 = vpack.c.bf16 %v1611, %v1610
        %v1637 = vpack.c.bf16 %v1613, %v1612
        %v1638 = vpack.c.bf16 %v1615, %v1614
        %v1639 = vpack.c.bf16 %v1617, %v1616
        %v1640 = vpack.c.bf16 %v1619, %v1618
        %v1641 = vpack.c.bf16 %v1621, %v1620
        %v1642 = vpack.c.bf16 %v1623, %v1622
        %v1643 = vpack.c.bf16 %v1625, %v1624
        %v1644 = vpack.c.bf16 %v1627, %v1626
        %v1645 = vpack.c.bf16 %v1629, %v1628
        %s1646 = scalar_lea.vmem [#allocation7], 256
        %v1647 = vld [vmem:[%s1646] sm:$0xf]
        %v1648 = vld [vmem:[%s1646 + $0x4] sm:$0xf]
        %v1649 = vld [vmem:[%s1646 + $0x8] sm:$0xf]
        %v1650 = vld [vmem:[%s1646 + $0xc] sm:$0xf]
        %v1651 = vld [vmem:[%s1646 + $0x10] sm:$0xf]
        %v1652 = vld [vmem:[%s1646 + $0x14] sm:$0xf]
        %v1653 = vld [vmem:[%s1646 + $0x18] sm:$0xf]
        %v1654 = vld [vmem:[%s1646 + $0x1c] sm:$0xf]
        %v1655 = vld [vmem:[%s1646 + $0x20] sm:$0xf]
        %v1656 = vld [vmem:[%s1646 + $0x24] sm:$0xf]
        %v1657 = vld [vmem:[%s1646 + $0x28] sm:$0xf]
        %v1658 = vld [vmem:[%s1646 + $0x2c] sm:$0xf]
        %v1659 = vld [vmem:[%s1646 + $0x30] sm:$0xf]
        %v1660 = vld [vmem:[%s1646 + $0x34] sm:$0xf]
        %v1661 = vld [vmem:[%s1646 + $0x38] sm:$0xf]
        %v1662 = vld [vmem:[%s1646 + $0x3c] sm:$0xf]
        %v1679 = vunpack.c.l.b16 %v1647
        %v1680 = vunpack.c.l.b16 %v1648
        %v1681 = vunpack.c.l.b16 %v1649
        %v1682 = vunpack.c.l.b16 %v1650
        %v1683 = vunpack.c.l.b16 %v1651
        %v1684 = vunpack.c.l.b16 %v1652
        %v1685 = vunpack.c.l.b16 %v1653
        %v1686 = vunpack.c.l.b16 %v1654
        %v1687 = vunpack.c.l.b16 %v1655
        %v1688 = vunpack.c.l.b16 %v1656
        %v1689 = vunpack.c.l.b16 %v1657
        %v1690 = vunpack.c.l.b16 %v1658
        %v1691 = vunpack.c.l.b16 %v1659
        %v1692 = vunpack.c.l.b16 %v1660
        %v1693 = vunpack.c.l.b16 %v1661
        %v1694 = vunpack.c.l.b16 %v1662
        %v1695 = vpack.c.b16 %v1680, %v1679
        %v1696 = vpack.c.b16 %v1682, %v1681
        %v1697 = vpack.c.b16 %v1684, %v1683
        %v1698 = vpack.c.b16 %v1686, %v1685
        %v1699 = vpack.c.b16 %v1688, %v1687
        %v1700 = vpack.c.b16 %v1690, %v1689
        %v1701 = vpack.c.b16 %v1692, %v1691
        %v1702 = vpack.c.b16 %v1694, %v1693
        %1711 = vmatprep.subr.bf16.mxu0 0
        %1712 = vmatpush1.bf16.msra.mxu0 %v1695
        %1713 = vmatprep.subr.bf16.mxu0 0
        %1714 = vmatpush1.bf16.msra.mxu0 %v1696
        %1715 = vmatprep.subr.bf16.mxu0 0
        %1716 = vmatpush1.bf16.msra.mxu0 %v1697
        %1717 = vmatprep.subr.bf16.mxu0 0
        %1718 = vmatpush1.bf16.msra.mxu0 %v1698
        %1719 = vmatprep.subr.bf16.mxu0 0
        %1720 = vmatpush1.bf16.msra.mxu0 %v1699
        %1721 = vmatprep.subr.bf16.mxu0 0
        %1722 = vmatpush1.bf16.msra.mxu0 %v1700
        %1723 = vmatprep.subr.bf16.mxu0 0
        %1724 = vmatpush1.bf16.msra.mxu0 %v1701
        %1725 = vmatprep.subr.bf16.mxu0 0
        %1726 = vmatpush1.bf16.msra.mxu0 %v1702
        %1727 = vmatprep.subr.bf16.mxu0 0
        %1728 = vmatpush1.bf16.msra.mxu0 0
        %1729 = vmatprep.subr.bf16.mxu0 0
        %1730 = vmatpush1.bf16.msra.mxu0 0
        %1731 = vmatprep.subr.bf16.mxu0 0
        %1732 = vmatpush1.bf16.msra.mxu0 0
        %1733 = vmatprep.subr.bf16.mxu0 0
        %1734 = vmatpush1.bf16.msra.mxu0 0
        %1735 = vmatprep.subr.bf16.mxu0 0
        %1736 = vmatpush1.bf16.msra.mxu0 0
        %1737 = vmatprep.subr.bf16.mxu0 0
        %1738 = vmatpush1.bf16.msra.mxu0 0
        %1739 = vmatprep.subr.bf16.mxu0 0
        %1740 = vmatpush1.bf16.msra.mxu0 0
        %1741 = vmatprep.subr.bf16.mxu0 0
        %1742 = vmatpush1.bf16.msra.mxu0 0
        %1743 = vmatprep.mubr.bf16.mxu0 0
        %1744 = vmatmul.mubr.bf16.gmra.mrb[0].mxu0 %v1630
        %v1745 = vpop.f32.mrb[0].mxu0
        %v1746 = vadd.f32 0.0, %v1745
        %v1747 = vpop.f32.mrb[0].mxu0
        %v1748 = vpop.f32.mrb[0].mxu0
        %v1749 = vadd.f32 0.0, %v1748
        %v1750 = vpop.f32.mrb[0].mxu0
        %1751 = vmatprep.mubr.bf16.mxu0 0
        %1752 = vmatmul.mubr.bf16.gmra.mrb[0].mxu0 %v1631
        %v1753 = vpop.f32.mrb[0].mxu0
        %v1754 = vadd.f32 0.0, %v1753
        %v1755 = vpop.f32.mrb[0].mxu0
        %v1756 = vpop.f32.mrb[0].mxu0
        %v1757 = vadd.f32 0.0, %v1756
        %v1758 = vpop.f32.mrb[0].mxu0
        %1759 = vmatprep.mubr.bf16.mxu0 0
        %1760 = vmatmul.mubr.bf16.gmra.mrb[0].mxu0 %v1632
        %v1761 = vpop.f32.mrb[0].mxu0
        %v1762 = vadd.f32 0.0, %v1761
        %v1763 = vpop.f32.mrb[0].mxu0
        %v1764 = vpop.f32.mrb[0].mxu0
        %v1765 = vadd.f32 0.0, %v1764
        %v1766 = vpop.f32.mrb[0].mxu0
        %1767 = vmatprep.mubr.bf16.mxu0 0
        %1768 = vmatmul.mubr.bf16.gmra.mrb[0].mxu0 %v1633
        %v1769 = vpop.f32.mrb[0].mxu0
        %v1770 = vadd.f32 0.0, %v1769
        %v1771 = vpop.f32.mrb[0].mxu0
        %v1772 = vpop.f32.mrb[0].mxu0
        %v1773 = vadd.f32 0.0, %v1772
        %v1774 = vpop.f32.mrb[0].mxu0
        %1775 = vmatprep.mubr.bf16.mxu0 0
        %1776 = vmatmul.mubr.bf16.gmra.mrb[0].mxu0 %v1634
        %v1777 = vpop.f32.mrb[0].mxu0
        %v1778 = vadd.f32 0.0, %v1777
        %v1779 = vpop.f32.mrb[0].mxu0
        %v1780 = vpop.f32.mrb[0].mxu0
        %v1781 = vadd.f32 0.0, %v1780
        %v1782 = vpop.f32.mrb[0].mxu0
        %1783 = vmatprep.mubr.bf16.mxu0 0
        %1784 = vmatmul.mubr.bf16.gmra.mrb[0].mxu0 %v1635
        %v1785 = vpop.f32.mrb[0].mxu0
        %v1786 = vadd.f32 0.0, %v1785
        %v1787 = vpop.f32.mrb[0].mxu0
        %v1788 = vpop.f32.mrb[0].mxu0
        %v1789 = vadd.f32 0.0, %v1788
        %v1790 = vpop.f32.mrb[0].mxu0
        %1791 = vmatprep.mubr.bf16.mxu0 0
        %1792 = vmatmul.mubr.bf16.gmra.mrb[0].mxu0 %v1636
        %v1793 = vpop.f32.mrb[0].mxu0
        %v1794 = vadd.f32 0.0, %v1793
        %v1795 = vpop.f32.mrb[0].mxu0
        %v1796 = vpop.f32.mrb[0].mxu0
        %v1797 = vadd.f32 0.0, %v1796
        %v1798 = vpop.f32.mrb[0].mxu0
        %1799 = vmatprep.mubr.bf16.mxu0 0
        %1800 = vmatmul.mubr.bf16.gmra.mrb[0].mxu0 %v1637
        %v1801 = vpop.f32.mrb[0].mxu0
        %v1802 = vadd.f32 0.0, %v1801
        %v1803 = vpop.f32.mrb[0].mxu0
        %v1804 = vpop.f32.mrb[0].mxu0
        %v1805 = vadd.f32 0.0, %v1804
        %v1806 = vpop.f32.mrb[0].mxu0
        %1807 = vmatprep.mubr.bf16.mxu0 0
        %1808 = vmatmul.mubr.bf16.gmra.mrb[0].mxu0 %v1638
        %v1809 = vpop.f32.mrb[0].mxu0
        %v1810 = vadd.f32 0.0, %v1809
        %v1811 = vpop.f32.mrb[0].mxu0
        %v1812 = vpop.f32.mrb[0].mxu0
        %v1813 = vadd.f32 0.0, %v1812
        %v1814 = vpop.f32.mrb[0].mxu0
        %1815 = vmatprep.mubr.bf16.mxu0 0
        %1816 = vmatmul.mubr.bf16.gmra.mrb[0].mxu0 %v1639
        %v1817 = vpop.f32.mrb[0].mxu0
        %v1818 = vadd.f32 0.0, %v1817
        %v1819 = vpop.f32.mrb[0].mxu0
        %v1820 = vpop.f32.mrb[0].mxu0
        %v1821 = vadd.f32 0.0, %v1820
        %v1822 = vpop.f32.mrb[0].mxu0
        %1823 = vmatprep.mubr.bf16.mxu0 0
        %1824 = vmatmul.mubr.bf16.gmra.mrb[0].mxu0 %v1640
        %v1825 = vpop.f32.mrb[0].mxu0
        %v1826 = vadd.f32 0.0, %v1825
        %v1827 = vpop.f32.mrb[0].mxu0
        %v1828 = vpop.f32.mrb[0].mxu0
        %v1829 = vadd.f32 0.0, %v1828
        %v1830 = vpop.f32.mrb[0].mxu0
        %1831 = vmatprep.mubr.bf16.mxu0 0
        %1832 = vmatmul.mubr.bf16.gmra.mrb[0].mxu0 %v1641
        %v1833 = vpop.f32.mrb[0].mxu0
        %v1834 = vadd.f32 0.0, %v1833
        %v1835 = vpop.f32.mrb[0].mxu0
        %v1836 = vpop.f32.mrb[0].mxu0
        %v1837 = vadd.f32 0.0, %v1836
        %v1838 = vpop.f32.mrb[0].mxu0
        %1839 = vmatprep.mubr.bf16.mxu0 0
        %1840 = vmatmul.mubr.bf16.gmra.mrb[0].mxu0 %v1642
        %v1841 = vpop.f32.mrb[0].mxu0
        %v1842 = vadd.f32 0.0, %v1841
        %v1843 = vpop.f32.mrb[0].mxu0
        %v1844 = vpop.f32.mrb[0].mxu0
        %v1845 = vadd.f32 0.0, %v1844
        %v1846 = vpop.f32.mrb[0].mxu0
        %1847 = vmatprep.mubr.bf16.mxu0 0
        %1848 = vmatmul.mubr.bf16.gmra.mrb[0].mxu0 %v1643
        %v1849 = vpop.f32.mrb[0].mxu0
        %v1850 = vadd.f32 0.0, %v1849
        %v1851 = vpop.f32.mrb[0].mxu0
        %v1852 = vpop.f32.mrb[0].mxu0
        %v1853 = vadd.f32 0.0, %v1852
        %v1854 = vpop.f32.mrb[0].mxu0
        %1855 = vmatprep.mubr.bf16.mxu0 0
        %1856 = vmatmul.mubr.bf16.gmra.mrb[0].mxu0 %v1644
        %v1857 = vpop.f32.mrb[0].mxu0
        %v1858 = vadd.f32 0.0, %v1857
        %v1859 = vpop.f32.mrb[0].mxu0
        %v1860 = vpop.f32.mrb[0].mxu0
        %v1861 = vadd.f32 0.0, %v1860
        %v1862 = vpop.f32.mrb[0].mxu0
        %1863 = vmatprep.mubr.bf16.mxu0 0
        %1864 = vmatmul.mubr.bf16.gmra.mrb[0].mxu0 %v1645
        %v1865 = vpop.f32.mrb[0].mxu0
        %v1866 = vadd.f32 0.0, %v1865
        %v1867 = vpop.f32.mrb[0].mxu0
        %v1868 = vpop.f32.mrb[0].mxu0
        %v1869 = vadd.f32 0.0, %v1868
        %v1870 = vpop.f32.mrb[0].mxu0
        %1871 = vdwg.mxu0
        %v1872 = vadd.f32 %v1566, %v1746
        %v1873 = vadd.f32 %v1567, %v1749
        %v1874 = vadd.f32 %v1568, %v1754
        %v1875 = vadd.f32 %v1569, %v1757
        %v1876 = vadd.f32 %v1570, %v1762
        %v1877 = vadd.f32 %v1571, %v1765
        %v1878 = vadd.f32 %v1572, %v1770
        %v1879 = vadd.f32 %v1573, %v1773
        %v1880 = vadd.f32 %v1574, %v1778
        %v1881 = vadd.f32 %v1575, %v1781
        %v1882 = vadd.f32 %v1576, %v1786
        %v1883 = vadd.f32 %v1577, %v1789
        %v1884 = vadd.f32 %v1578, %v1794
        %v1885 = vadd.f32 %v1579, %v1797
        %v1886 = vadd.f32 %v1580, %v1802
        %v1887 = vadd.f32 %v1581, %v1805
        %v1888 = vadd.f32 %v1582, %v1810
        %v1889 = vadd.f32 %v1583, %v1813
        %v1890 = vadd.f32 %v1584, %v1818
        %v1891 = vadd.f32 %v1585, %v1821
        %v1892 = vadd.f32 %v1586, %v1826
        %v1893 = vadd.f32 %v1587, %v1829
        %v1894 = vadd.f32 %v1588, %v1834
        %v1895 = vadd.f32 %v1589, %v1837
        %v1896 = vadd.f32 %v1590, %v1842
        %v1897 = vadd.f32 %v1591, %v1845
        %v1898 = vadd.f32 %v1592, %v1850
        %v1899 = vadd.f32 %v1593, %v1853
        %v1900 = vadd.f32 %v1594, %v1858
        %v1901 = vadd.f32 %v1595, %v1861
        %v1902 = vadd.f32 %v1596, %v1866
        %v1903 = vadd.f32 %v1597, %v1869
        %v1904 = vld [vmem:[%s406 + $0x2] sm:$0xff]
        %v1905 = vld [vmem:[%s406 + $0xa] sm:$0xff]
        %v1906 = vld [vmem:[%s406 + $0x1a] sm:$0xff]
        %v1907 = vld [vmem:[%s406 + $0x22] sm:$0xff]
        %v1908 = vld [vmem:[%s406 + $0x32] sm:$0xff]
        %v1909 = vld [vmem:[%s406 + $0x3a] sm:$0xff]
        %v1910 = vld [vmem:[%s406 + $0x4a] sm:$0xff]
        %v1911 = vld [vmem:[%s406 + $0x52] sm:$0xff]
        %v1912 = vld [vmem:[%s406 + $0x62] sm:$0xff]
        %v1913 = vld [vmem:[%s406 + $0x6a] sm:$0xff]
        %v1914 = vld [vmem:[%s406 + $0x7a] sm:$0xff]
        %v1915 = vld [vmem:[%s406 + $0x82] sm:$0xff]
        %v1916 = vld [vmem:[%s406 + $0x92] sm:$0xff]
        %v1917 = vld [vmem:[%s406 + $0x9a] sm:$0xff]
        %v1918 = vld [vmem:[%s406 + $0xaa] sm:$0xff]
        %v1919 = vld [vmem:[%s406 + $0xb2] sm:$0xff]
        %v1920 = vld [vmem:[%s406 + $0xc2] sm:$0xff]
        %v1921 = vld [vmem:[%s406 + $0xca] sm:$0xff]
        %v1922 = vld [vmem:[%s406 + $0xda] sm:$0xff]
        %v1923 = vld [vmem:[%s406 + $0xe2] sm:$0xff]
        %v1924 = vld [vmem:[%s406 + $0xf2] sm:$0xff]
        %v1925 = vld [vmem:[%s406 + $0xfa] sm:$0xff]
        %v1926 = vld [vmem:[%s406 + $0x10a] sm:$0xff]
        %v1927 = vld [vmem:[%s406 + $0x112] sm:$0xff]
        %v1928 = vld [vmem:[%s406 + $0x122] sm:$0xff]
        %v1929 = vld [vmem:[%s406 + $0x12a] sm:$0xff]
        %v1930 = vld [vmem:[%s406 + $0x13a] sm:$0xff]
        %v1931 = vld [vmem:[%s406 + $0x142] sm:$0xff]
        %v1932 = vld [vmem:[%s406 + $0x152] sm:$0xff]
        %v1933 = vld [vmem:[%s406 + $0x15a] sm:$0xff]
        %v1934 = vld [vmem:[%s406 + $0x16a] sm:$0xff]
        %v1935 = vld [vmem:[%s406 + $0x172] sm:$0xff]
        %v1936 = vpack.c.bf16 %v1905, %v1904
        %v1937 = vpack.c.bf16 %v1907, %v1906
        %v1938 = vpack.c.bf16 %v1909, %v1908
        %v1939 = vpack.c.bf16 %v1911, %v1910
        %v1940 = vpack.c.bf16 %v1913, %v1912
        %v1941 = vpack.c.bf16 %v1915, %v1914
        %v1942 = vpack.c.bf16 %v1917, %v1916
        %v1943 = vpack.c.bf16 %v1919, %v1918
        %v1944 = vpack.c.bf16 %v1921, %v1920
        %v1945 = vpack.c.bf16 %v1923, %v1922
        %v1946 = vpack.c.bf16 %v1925, %v1924
        %v1947 = vpack.c.bf16 %v1927, %v1926
        %v1948 = vpack.c.bf16 %v1929, %v1928
        %v1949 = vpack.c.bf16 %v1931, %v1930
        %v1950 = vpack.c.bf16 %v1933, %v1932
        %v1951 = vpack.c.bf16 %v1935, %v1934
        %s1952 = scalar_lea.vmem [#allocation7], 320
        %v1953 = vld [vmem:[%s1952] sm:$0xf]
        %v1954 = vld [vmem:[%s1952 + $0x4] sm:$0xf]
        %v1955 = vld [vmem:[%s1952 + $0x8] sm:$0xf]
        %v1956 = vld [vmem:[%s1952 + $0xc] sm:$0xf]
        %v1957 = vld [vmem:[%s1952 + $0x10] sm:$0xf]
        %v1958 = vld [vmem:[%s1952 + $0x14] sm:$0xf]
        %v1959 = vld [vmem:[%s1952 + $0x18] sm:$0xf]
        %v1960 = vld [vmem:[%s1952 + $0x1c] sm:$0xf]
        %v1961 = vld [vmem:[%s1952 + $0x20] sm:$0xf]
        %v1962 = vld [vmem:[%s1952 + $0x24] sm:$0xf]
        %v1963 = vld [vmem:[%s1952 + $0x28] sm:$0xf]
        %v1964 = vld [vmem:[%s1952 + $0x2c] sm:$0xf]
        %v1965 = vld [vmem:[%s1952 + $0x30] sm:$0xf]
        %v1966 = vld [vmem:[%s1952 + $0x34] sm:$0xf]
        %v1967 = vld [vmem:[%s1952 + $0x38] sm:$0xf]
        %v1968 = vld [vmem:[%s1952 + $0x3c] sm:$0xf]
        %v1985 = vunpack.c.l.b16 %v1953
        %v1986 = vunpack.c.l.b16 %v1954
        %v1987 = vunpack.c.l.b16 %v1955
        %v1988 = vunpack.c.l.b16 %v1956
        %v1989 = vunpack.c.l.b16 %v1957
        %v1990 = vunpack.c.l.b16 %v1958
        %v1991 = vunpack.c.l.b16 %v1959
        %v1992 = vunpack.c.l.b16 %v1960
        %v1993 = vunpack.c.l.b16 %v1961
        %v1994 = vunpack.c.l.b16 %v1962
        %v1995 = vunpack.c.l.b16 %v1963
        %v1996 = vunpack.c.l.b16 %v1964
        %v1997 = vunpack.c.l.b16 %v1965
        %v1998 = vunpack.c.l.b16 %v1966
        %v1999 = vunpack.c.l.b16 %v1967
        %v2000 = vunpack.c.l.b16 %v1968
        %v2001 = vpack.c.b16 %v1986, %v1985
        %v2002 = vpack.c.b16 %v1988, %v1987
        %v2003 = vpack.c.b16 %v1990, %v1989
        %v2004 = vpack.c.b16 %v1992, %v1991
        %v2005 = vpack.c.b16 %v1994, %v1993
        %v2006 = vpack.c.b16 %v1996, %v1995
        %v2007 = vpack.c.b16 %v1998, %v1997
        %v2008 = vpack.c.b16 %v2000, %v1999
        %2017 = vmatprep.subr.bf16.mxu0 0
        %2018 = vmatpush1.bf16.msra.mxu0 %v2001
        %2019 = vmatprep.subr.bf16.mxu0 0
        %2020 = vmatpush1.bf16.msra.mxu0 %v2002
        %2021 = vmatprep.subr.bf16.mxu0 0
        %2022 = vmatpush1.bf16.msra.mxu0 %v2003
        %2023 = vmatprep.subr.bf16.mxu0 0
        %2024 = vmatpush1.bf16.msra.mxu0 %v2004
        %2025 = vmatprep.subr.bf16.mxu0 0
        %2026 = vmatpush1.bf16.msra.mxu0 %v2005
        %2027 = vmatprep.subr.bf16.mxu0 0
        %2028 = vmatpush1.bf16.msra.mxu0 %v2006
        %2029 = vmatprep.subr.bf16.mxu0 0
        %2030 = vmatpush1.bf16.msra.mxu0 %v2007
        %2031 = vmatprep.subr.bf16.mxu0 0
        %2032 = vmatpush1.bf16.msra.mxu0 %v2008
        %2033 = vmatprep.subr.bf16.mxu0 0
        %2034 = vmatpush1.bf16.msra.mxu0 0
        %2035 = vmatprep.subr.bf16.mxu0 0
        %2036 = vmatpush1.bf16.msra.mxu0 0
        %2037 = vmatprep.subr.bf16.mxu0 0
        %2038 = vmatpush1.bf16.msra.mxu0 0
        %2039 = vmatprep.subr.bf16.mxu0 0
        %2040 = vmatpush1.bf16.msra.mxu0 0
        %2041 = vmatprep.subr.bf16.mxu0 0
        %2042 = vmatpush1.bf16.msra.mxu0 0
        %2043 = vmatprep.subr.bf16.mxu0 0
        %2044 = vmatpush1.bf16.msra.mxu0 0
        %2045 = vmatprep.subr.bf16.mxu0 0
        %2046 = vmatpush1.bf16.msra.mxu0 0
        %2047 = vmatprep.subr.bf16.mxu0 0
        %2048 = vmatpush1.bf16.msra.mxu0 0
        %2049 = vmatprep.mubr.bf16.mxu0 0
        %2050 = vmatmul.mubr.bf16.gmra.mrb[0].mxu0 %v1936
        %v2051 = vpop.f32.mrb[0].mxu0
        %v2052 = vadd.f32 0.0, %v2051
        %v2053 = vpop.f32.mrb[0].mxu0
        %v2054 = vpop.f32.mrb[0].mxu0
        %v2055 = vadd.f32 0.0, %v2054
        %v2056 = vpop.f32.mrb[0].mxu0
        %2057 = vmatprep.mubr.bf16.mxu0 0
        %2058 = vmatmul.mubr.bf16.gmra.mrb[0].mxu0 %v1937
        %v2059 = vpop.f32.mrb[0].mxu0
        %v2060 = vadd.f32 0.0, %v2059
        %v2061 = vpop.f32.mrb[0].mxu0
        %v2062 = vpop.f32.mrb[0].mxu0
        %v2063 = vadd.f32 0.0, %v2062
        %v2064 = vpop.f32.mrb[0].mxu0
        %2065 = vmatprep.mubr.bf16.mxu0 0
        %2066 = vmatmul.mubr.bf16.gmra.mrb[0].mxu0 %v1938
        %v2067 = vpop.f32.mrb[0].mxu0
        %v2068 = vadd.f32 0.0, %v2067
        %v2069 = vpop.f32.mrb[0].mxu0
        %v2070 = vpop.f32.mrb[0].mxu0
        %v2071 = vadd.f32 0.0, %v2070
        %v2072 = vpop.f32.mrb[0].mxu0
        %2073 = vmatprep.mubr.bf16.mxu0 0
        %2074 = vmatmul.mubr.bf16.gmra.mrb[0].mxu0 %v1939
        %v2075 = vpop.f32.mrb[0].mxu0
        %v2076 = vadd.f32 0.0, %v2075
        %v2077 = vpop.f32.mrb[0].mxu0
        %v2078 = vpop.f32.mrb[0].mxu0
        %v2079 = vadd.f32 0.0, %v2078
        %v2080 = vpop.f32.mrb[0].mxu0
        %2081 = vmatprep.mubr.bf16.mxu0 0
        %2082 = vmatmul.mubr.bf16.gmra.mrb[0].mxu0 %v1940
        %v2083 = vpop.f32.mrb[0].mxu0
        %v2084 = vadd.f32 0.0, %v2083
        %v2085 = vpop.f32.mrb[0].mxu0
        %v2086 = vpop.f32.mrb[0].mxu0
        %v2087 = vadd.f32 0.0, %v2086
        %v2088 = vpop.f32.mrb[0].mxu0
        %2089 = vmatprep.mubr.bf16.mxu0 0
        %2090 = vmatmul.mubr.bf16.gmra.mrb[0].mxu0 %v1941
        %v2091 = vpop.f32.mrb[0].mxu0
        %v2092 = vadd.f32 0.0, %v2091
        %v2093 = vpop.f32.mrb[0].mxu0
        %v2094 = vpop.f32.mrb[0].mxu0
        %v2095 = vadd.f32 0.0, %v2094
        %v2096 = vpop.f32.mrb[0].mxu0
        %2097 = vmatprep.mubr.bf16.mxu0 0
        %2098 = vmatmul.mubr.bf16.gmra.mrb[0].mxu0 %v1942
        %v2099 = vpop.f32.mrb[0].mxu0
        %v2100 = vadd.f32 0.0, %v2099
        %v2101 = vpop.f32.mrb[0].mxu0
        %v2102 = vpop.f32.mrb[0].mxu0
        %v2103 = vadd.f32 0.0, %v2102
        %v2104 = vpop.f32.mrb[0].mxu0
        %2105 = vmatprep.mubr.bf16.mxu0 0
        %2106 = vmatmul.mubr.bf16.gmra.mrb[0].mxu0 %v1943
        %v2107 = vpop.f32.mrb[0].mxu0
        %v2108 = vadd.f32 0.0, %v2107
        %v2109 = vpop.f32.mrb[0].mxu0
        %v2110 = vpop.f32.mrb[0].mxu0
        %v2111 = vadd.f32 0.0, %v2110
        %v2112 = vpop.f32.mrb[0].mxu0
        %2113 = vmatprep.mubr.bf16.mxu0 0
        %2114 = vmatmul.mubr.bf16.gmra.mrb[0].mxu0 %v1944
        %v2115 = vpop.f32.mrb[0].mxu0
        %v2116 = vadd.f32 0.0, %v2115
        %v2117 = vpop.f32.mrb[0].mxu0
        %v2118 = vpop.f32.mrb[0].mxu0
        %v2119 = vadd.f32 0.0, %v2118
        %v2120 = vpop.f32.mrb[0].mxu0
        %2121 = vmatprep.mubr.bf16.mxu0 0
        %2122 = vmatmul.mubr.bf16.gmra.mrb[0].mxu0 %v1945
        %v2123 = vpop.f32.mrb[0].mxu0
        %v2124 = vadd.f32 0.0, %v2123
        %v2125 = vpop.f32.mrb[0].mxu0
        %v2126 = vpop.f32.mrb[0].mxu0
        %v2127 = vadd.f32 0.0, %v2126
        %v2128 = vpop.f32.mrb[0].mxu0
        %2129 = vmatprep.mubr.bf16.mxu0 0
        %2130 = vmatmul.mubr.bf16.gmra.mrb[0].mxu0 %v1946
        %v2131 = vpop.f32.mrb[0].mxu0
        %v2132 = vadd.f32 0.0, %v2131
        %v2133 = vpop.f32.mrb[0].mxu0
        %v2134 = vpop.f32.mrb[0].mxu0
        %v2135 = vadd.f32 0.0, %v2134
        %v2136 = vpop.f32.mrb[0].mxu0
        %2137 = vmatprep.mubr.bf16.mxu0 0
        %2138 = vmatmul.mubr.bf16.gmra.mrb[0].mxu0 %v1947
        %v2139 = vpop.f32.mrb[0].mxu0
        %v2140 = vadd.f32 0.0, %v2139
        %v2141 = vpop.f32.mrb[0].mxu0
        %v2142 = vpop.f32.mrb[0].mxu0
        %v2143 = vadd.f32 0.0, %v2142
        %v2144 = vpop.f32.mrb[0].mxu0
        %2145 = vmatprep.mubr.bf16.mxu0 0
        %2146 = vmatmul.mubr.bf16.gmra.mrb[0].mxu0 %v1948
        %v2147 = vpop.f32.mrb[0].mxu0
        %v2148 = vadd.f32 0.0, %v2147
        %v2149 = vpop.f32.mrb[0].mxu0
        %v2150 = vpop.f32.mrb[0].mxu0
        %v2151 = vadd.f32 0.0, %v2150
        %v2152 = vpop.f32.mrb[0].mxu0
        %2153 = vmatprep.mubr.bf16.mxu0 0
        %2154 = vmatmul.mubr.bf16.gmra.mrb[0].mxu0 %v1949
        %v2155 = vpop.f32.mrb[0].mxu0
        %v2156 = vadd.f32 0.0, %v2155
        %v2157 = vpop.f32.mrb[0].mxu0
        %v2158 = vpop.f32.mrb[0].mxu0
        %v2159 = vadd.f32 0.0, %v2158
        %v2160 = vpop.f32.mrb[0].mxu0
        %2161 = vmatprep.mubr.bf16.mxu0 0
        %2162 = vmatmul.mubr.bf16.gmra.mrb[0].mxu0 %v1950
        %v2163 = vpop.f32.mrb[0].mxu0
        %v2164 = vadd.f32 0.0, %v2163
        %v2165 = vpop.f32.mrb[0].mxu0
        %v2166 = vpop.f32.mrb[0].mxu0
        %v2167 = vadd.f32 0.0, %v2166
        %v2168 = vpop.f32.mrb[0].mxu0
        %2169 = vmatprep.mubr.bf16.mxu0 0
        %2170 = vmatmul.mubr.bf16.gmra.mrb[0].mxu0 %v1951
        %v2171 = vpop.f32.mrb[0].mxu0
        %v2172 = vadd.f32 0.0, %v2171
        %v2173 = vpop.f32.mrb[0].mxu0
        %v2174 = vpop.f32.mrb[0].mxu0
        %v2175 = vadd.f32 0.0, %v2174
        %v2176 = vpop.f32.mrb[0].mxu0
        %2177 = vdwg.mxu0
        %v2178 = vadd.f32 %v1872, %v2052
        %v2179 = vadd.f32 %v1873, %v2055
        %v2180 = vadd.f32 %v1874, %v2060
        %v2181 = vadd.f32 %v1875, %v2063
        %v2182 = vadd.f32 %v1876, %v2068
        %v2183 = vadd.f32 %v1877, %v2071
        %v2184 = vadd.f32 %v1878, %v2076
        %v2185 = vadd.f32 %v1879, %v2079
        %v2186 = vadd.f32 %v1880, %v2084
        %v2187 = vadd.f32 %v1881, %v2087
        %v2188 = vadd.f32 %v1882, %v2092
        %v2189 = vadd.f32 %v1883, %v2095
        %v2190 = vadd.f32 %v1884, %v2100
        %v2191 = vadd.f32 %v1885, %v2103
        %v2192 = vadd.f32 %v1886, %v2108
        %v2193 = vadd.f32 %v1887, %v2111
        %v2194 = vadd.f32 %v1888, %v2116
        %v2195 = vadd.f32 %v1889, %v2119
        %v2196 = vadd.f32 %v1890, %v2124
        %v2197 = vadd.f32 %v1891, %v2127
        %v2198 = vadd.f32 %v1892, %v2132
        %v2199 = vadd.f32 %v1893, %v2135
        %v2200 = vadd.f32 %v1894, %v2140
        %v2201 = vadd.f32 %v1895, %v2143
        %v2202 = vadd.f32 %v1896, %v2148
        %v2203 = vadd.f32 %v1897, %v2151
        %v2204 = vadd.f32 %v1898, %v2156
        %v2205 = vadd.f32 %v1899, %v2159
        %v2206 = vadd.f32 %v1900, %v2164
        %v2207 = vadd.f32 %v1901, %v2167
        %v2208 = vadd.f32 %v1902, %v2172
        %v2209 = vadd.f32 %v1903, %v2175
        %s2210 = scalar_lea.vmem [#allocation2], 48
        %v2211 = vld [vmem:[%s2210] sm:$0xff]
        %v2212 = vld [vmem:[%s2210 + $0x8] sm:$0xff]
        %v2213 = vld [vmem:[%s2210 + $0x18] sm:$0xff]
        %v2214 = vld [vmem:[%s2210 + $0x20] sm:$0xff]
        %v2215 = vld [vmem:[%s2210 + $0x30] sm:$0xff]
        %v2216 = vld [vmem:[%s2210 + $0x38] sm:$0xff]
        %v2217 = vld [vmem:[%s2210 + $0x48] sm:$0xff]
        %v2218 = vld [vmem:[%s2210 + $0x50] sm:$0xff]
        %v2219 = vld [vmem:[%s2210 + $0x60] sm:$0xff]
        %v2220 = vld [vmem:[%s2210 + $0x68] sm:$0xff]
        %v2221 = vld [vmem:[%s2210 + $0x78] sm:$0xff]
        %v2222 = vld [vmem:[%s2210 + $0x80] sm:$0xff]
        %v2223 = vld [vmem:[%s2210 + $0x90] sm:$0xff]
        %v2224 = vld [vmem:[%s2210 + $0x98] sm:$0xff]
        %v2225 = vld [vmem:[%s2210 + $0xa8] sm:$0xff]
        %v2226 = vld [vmem:[%s2210 + $0xb0] sm:$0xff]
        %v2227 = vld [vmem:[%s2210 + $0xc0] sm:$0xff]
        %v2228 = vld [vmem:[%s2210 + $0xc8] sm:$0xff]
        %v2229 = vld [vmem:[%s2210 + $0xd8] sm:$0xff]
        %v2230 = vld [vmem:[%s2210 + $0xe0] sm:$0xff]
        %v2231 = vld [vmem:[%s2210 + $0xf0] sm:$0xff]
        %v2232 = vld [vmem:[%s2210 + $0xf8] sm:$0xff]
        %v2233 = vld [vmem:[%s2210 + $0x108] sm:$0xff]
        %v2234 = vld [vmem:[%s2210 + $0x110] sm:$0xff]
        %v2235 = vld [vmem:[%s2210 + $0x120] sm:$0xff]
        %v2236 = vld [vmem:[%s2210 + $0x128] sm:$0xff]
        %v2237 = vld [vmem:[%s2210 + $0x138] sm:$0xff]
        %v2238 = vld [vmem:[%s2210 + $0x140] sm:$0xff]
        %v2239 = vld [vmem:[%s2210 + $0x150] sm:$0xff]
        %v2240 = vld [vmem:[%s2210 + $0x158] sm:$0xff]
        %v2241 = vld [vmem:[%s2210 + $0x168] sm:$0xff]
        %v2242 = vld [vmem:[%s2210 + $0x170] sm:$0xff]
        %v2243 = vpack.c.bf16 %v2212, %v2211
        %v2244 = vpack.c.bf16 %v2214, %v2213
        %v2245 = vpack.c.bf16 %v2216, %v2215
        %v2246 = vpack.c.bf16 %v2218, %v2217
        %v2247 = vpack.c.bf16 %v2220, %v2219
        %v2248 = vpack.c.bf16 %v2222, %v2221
        %v2249 = vpack.c.bf16 %v2224, %v2223
        %v2250 = vpack.c.bf16 %v2226, %v2225
        %v2251 = vpack.c.bf16 %v2228, %v2227
        %v2252 = vpack.c.bf16 %v2230, %v2229
        %v2253 = vpack.c.bf16 %v2232, %v2231
        %v2254 = vpack.c.bf16 %v2234, %v2233
        %v2255 = vpack.c.bf16 %v2236, %v2235
        %v2256 = vpack.c.bf16 %v2238, %v2237
        %v2257 = vpack.c.bf16 %v2240, %v2239
        %v2258 = vpack.c.bf16 %v2242, %v2241
        %s2259 = scalar_lea.vmem [#allocation7], 384
        %v2260 = vld [vmem:[%s2259] sm:$0xf]
        %v2261 = vld [vmem:[%s2259 + $0x4] sm:$0xf]
        %v2262 = vld [vmem:[%s2259 + $0x8] sm:$0xf]
        %v2263 = vld [vmem:[%s2259 + $0xc] sm:$0xf]
        %v2264 = vld [vmem:[%s2259 + $0x10] sm:$0xf]
        %v2265 = vld [vmem:[%s2259 + $0x14] sm:$0xf]
        %v2266 = vld [vmem:[%s2259 + $0x18] sm:$0xf]
        %v2267 = vld [vmem:[%s2259 + $0x1c] sm:$0xf]
        %v2268 = vld [vmem:[%s2259 + $0x20] sm:$0xf]
        %v2269 = vld [vmem:[%s2259 + $0x24] sm:$0xf]
        %v2270 = vld [vmem:[%s2259 + $0x28] sm:$0xf]
        %v2271 = vld [vmem:[%s2259 + $0x2c] sm:$0xf]
        %v2272 = vld [vmem:[%s2259 + $0x30] sm:$0xf]
        %v2273 = vld [vmem:[%s2259 + $0x34] sm:$0xf]
        %v2274 = vld [vmem:[%s2259 + $0x38] sm:$0xf]
        %v2275 = vld [vmem:[%s2259 + $0x3c] sm:$0xf]
        %v2292 = vunpack.c.l.b16 %v2260
        %v2293 = vunpack.c.l.b16 %v2261
        %v2294 = vunpack.c.l.b16 %v2262
        %v2295 = vunpack.c.l.b16 %v2263
        %v2296 = vunpack.c.l.b16 %v2264
        %v2297 = vunpack.c.l.b16 %v2265
        %v2298 = vunpack.c.l.b16 %v2266
        %v2299 = vunpack.c.l.b16 %v2267
        %v2300 = vunpack.c.l.b16 %v2268
        %v2301 = vunpack.c.l.b16 %v2269
        %v2302 = vunpack.c.l.b16 %v2270
        %v2303 = vunpack.c.l.b16 %v2271
        %v2304 = vunpack.c.l.b16 %v2272
        %v2305 = vunpack.c.l.b16 %v2273
        %v2306 = vunpack.c.l.b16 %v2274
        %v2307 = vunpack.c.l.b16 %v2275
        %v2308 = vpack.c.b16 %v2293, %v2292
        %v2309 = vpack.c.b16 %v2295, %v2294
        %v2310 = vpack.c.b16 %v2297, %v2296
        %v2311 = vpack.c.b16 %v2299, %v2298
        %v2312 = vpack.c.b16 %v2301, %v2300
        %v2313 = vpack.c.b16 %v2303, %v2302
        %v2314 = vpack.c.b16 %v2305, %v2304
        %v2315 = vpack.c.b16 %v2307, %v2306
        %2324 = vmatprep.subr.bf16.mxu0 0
        %2325 = vmatpush1.bf16.msra.mxu0 %v2308
        %2326 = vmatprep.subr.bf16.mxu0 0
        %2327 = vmatpush1.bf16.msra.mxu0 %v2309
        %2328 = vmatprep.subr.bf16.mxu0 0
        %2329 = vmatpush1.bf16.msra.mxu0 %v2310
        %2330 = vmatprep.subr.bf16.mxu0 0
        %2331 = vmatpush1.bf16.msra.mxu0 %v2311
        %2332 = vmatprep.subr.bf16.mxu0 0
        %2333 = vmatpush1.bf16.msra.mxu0 %v2312
        %2334 = vmatprep.subr.bf16.mxu0 0
        %2335 = vmatpush1.bf16.msra.mxu0 %v2313
        %2336 = vmatprep.subr.bf16.mxu0 0
        %2337 = vmatpush1.bf16.msra.mxu0 %v2314
        %2338 = vmatprep.subr.bf16.mxu0 0
        %2339 = vmatpush1.bf16.msra.mxu0 %v2315
        %2340 = vmatprep.subr.bf16.mxu0 0
        %2341 = vmatpush1.bf16.msra.mxu0 0
        %2342 = vmatprep.subr.bf16.mxu0 0
        %2343 = vmatpush1.bf16.msra.mxu0 0
        %2344 = vmatprep.subr.bf16.mxu0 0
        %2345 = vmatpush1.bf16.msra.mxu0 0
        %2346 = vmatprep.subr.bf16.mxu0 0
        %2347 = vmatpush1.bf16.msra.mxu0 0
        %2348 = vmatprep.subr.bf16.mxu0 0
        %2349 = vmatpush1.bf16.msra.mxu0 0
        %2350 = vmatprep.subr.bf16.mxu0 0
        %2351 = vmatpush1.bf16.msra.mxu0 0
        %2352 = vmatprep.subr.bf16.mxu0 0
        %2353 = vmatpush1.bf16.msra.mxu0 0
        %2354 = vmatprep.subr.bf16.mxu0 0
        %2355 = vmatpush1.bf16.msra.mxu0 0
        %2356 = vmatprep.mubr.bf16.mxu0 0
        %2357 = vmatmul.mubr.bf16.gmra.mrb[0].mxu0 %v2243
        %v2358 = vpop.f32.mrb[0].mxu0
        %v2359 = vadd.f32 0.0, %v2358
        %v2360 = vpop.f32.mrb[0].mxu0
        %v2361 = vpop.f32.mrb[0].mxu0
        %v2362 = vadd.f32 0.0, %v2361
        %v2363 = vpop.f32.mrb[0].mxu0
        %2364 = vmatprep.mubr.bf16.mxu0 0
        %2365 = vmatmul.mubr.bf16.gmra.mrb[0].mxu0 %v2244
        %v2366 = vpop.f32.mrb[0].mxu0
        %v2367 = vadd.f32 0.0, %v2366
        %v2368 = vpop.f32.mrb[0].mxu0
        %v2369 = vpop.f32.mrb[0].mxu0
        %v2370 = vadd.f32 0.0, %v2369
        %v2371 = vpop.f32.mrb[0].mxu0
        %2372 = vmatprep.mubr.bf16.mxu0 0
        %2373 = vmatmul.mubr.bf16.gmra.mrb[0].mxu0 %v2245
        %v2374 = vpop.f32.mrb[0].mxu0
        %v2375 = vadd.f32 0.0, %v2374
        %v2376 = vpop.f32.mrb[0].mxu0
        %v2377 = vpop.f32.mrb[0].mxu0
        %v2378 = vadd.f32 0.0, %v2377
        %v2379 = vpop.f32.mrb[0].mxu0
        %2380 = vmatprep.mubr.bf16.mxu0 0
        %2381 = vmatmul.mubr.bf16.gmra.mrb[0].mxu0 %v2246
        %v2382 = vpop.f32.mrb[0].mxu0
        %v2383 = vadd.f32 0.0, %v2382
        %v2384 = vpop.f32.mrb[0].mxu0
        %v2385 = vpop.f32.mrb[0].mxu0
        %v2386 = vadd.f32 0.0, %v2385
        %v2387 = vpop.f32.mrb[0].mxu0
        %2388 = vmatprep.mubr.bf16.mxu0 0
        %2389 = vmatmul.mubr.bf16.gmra.mrb[0].mxu0 %v2247
        %v2390 = vpop.f32.mrb[0].mxu0
        %v2391 = vadd.f32 0.0, %v2390
        %v2392 = vpop.f32.mrb[0].mxu0
        %v2393 = vpop.f32.mrb[0].mxu0
        %v2394 = vadd.f32 0.0, %v2393
        %v2395 = vpop.f32.mrb[0].mxu0
        %2396 = vmatprep.mubr.bf16.mxu0 0
        %2397 = vmatmul.mubr.bf16.gmra.mrb[0].mxu0 %v2248
        %v2398 = vpop.f32.mrb[0].mxu0
        %v2399 = vadd.f32 0.0, %v2398
        %v2400 = vpop.f32.mrb[0].mxu0
        %v2401 = vpop.f32.mrb[0].mxu0
        %v2402 = vadd.f32 0.0, %v2401
        %v2403 = vpop.f32.mrb[0].mxu0
        %2404 = vmatprep.mubr.bf16.mxu0 0
        %2405 = vmatmul.mubr.bf16.gmra.mrb[0].mxu0 %v2249
        %v2406 = vpop.f32.mrb[0].mxu0
        %v2407 = vadd.f32 0.0, %v2406
        %v2408 = vpop.f32.mrb[0].mxu0
        %v2409 = vpop.f32.mrb[0].mxu0
        %v2410 = vadd.f32 0.0, %v2409
        %v2411 = vpop.f32.mrb[0].mxu0
        %2412 = vmatprep.mubr.bf16.mxu0 0
        %2413 = vmatmul.mubr.bf16.gmra.mrb[0].mxu0 %v2250
        %v2414 = vpop.f32.mrb[0].mxu0
        %v2415 = vadd.f32 0.0, %v2414
        %v2416 = vpop.f32.mrb[0].mxu0
        %v2417 = vpop.f32.mrb[0].mxu0
        %v2418 = vadd.f32 0.0, %v2417
        %v2419 = vpop.f32.mrb[0].mxu0
        %2420 = vmatprep.mubr.bf16.mxu0 0
        %2421 = vmatmul.mubr.bf16.gmra.mrb[0].mxu0 %v2251
        %v2422 = vpop.f32.mrb[0].mxu0
        %v2423 = vadd.f32 0.0, %v2422
        %v2424 = vpop.f32.mrb[0].mxu0
        %v2425 = vpop.f32.mrb[0].mxu0
        %v2426 = vadd.f32 0.0, %v2425
        %v2427 = vpop.f32.mrb[0].mxu0
        %2428 = vmatprep.mubr.bf16.mxu0 0
        %2429 = vmatmul.mubr.bf16.gmra.mrb[0].mxu0 %v2252
        %v2430 = vpop.f32.mrb[0].mxu0
        %v2431 = vadd.f32 0.0, %v2430
        %v2432 = vpop.f32.mrb[0].mxu0
        %v2433 = vpop.f32.mrb[0].mxu0
        %v2434 = vadd.f32 0.0, %v2433
        %v2435 = vpop.f32.mrb[0].mxu0
        %2436 = vmatprep.mubr.bf16.mxu0 0
        %2437 = vmatmul.mubr.bf16.gmra.mrb[0].mxu0 %v2253
        %v2438 = vpop.f32.mrb[0].mxu0
        %v2439 = vadd.f32 0.0, %v2438
        %v2440 = vpop.f32.mrb[0].mxu0
        %v2441 = vpop.f32.mrb[0].mxu0
        %v2442 = vadd.f32 0.0, %v2441
        %v2443 = vpop.f32.mrb[0].mxu0
        %2444 = vmatprep.mubr.bf16.mxu0 0
        %2445 = vmatmul.mubr.bf16.gmra.mrb[0].mxu0 %v2254
        %v2446 = vpop.f32.mrb[0].mxu0
        %v2447 = vadd.f32 0.0, %v2446
        %v2448 = vpop.f32.mrb[0].mxu0
        %v2449 = vpop.f32.mrb[0].mxu0
        %v2450 = vadd.f32 0.0, %v2449
        %v2451 = vpop.f32.mrb[0].mxu0
        %2452 = vmatprep.mubr.bf16.mxu0 0
        %2453 = vmatmul.mubr.bf16.gmra.mrb[0].mxu0 %v2255
        %v2454 = vpop.f32.mrb[0].mxu0
        %v2455 = vadd.f32 0.0, %v2454
        %v2456 = vpop.f32.mrb[0].mxu0
        %v2457 = vpop.f32.mrb[0].mxu0
        %v2458 = vadd.f32 0.0, %v2457
        %v2459 = vpop.f32.mrb[0].mxu0
        %2460 = vmatprep.mubr.bf16.mxu0 0
        %2461 = vmatmul.mubr.bf16.gmra.mrb[0].mxu0 %v2256
        %v2462 = vpop.f32.mrb[0].mxu0
        %v2463 = vadd.f32 0.0, %v2462
        %v2464 = vpop.f32.mrb[0].mxu0
        %v2465 = vpop.f32.mrb[0].mxu0
        %v2466 = vadd.f32 0.0, %v2465
        %v2467 = vpop.f32.mrb[0].mxu0
        %2468 = vmatprep.mubr.bf16.mxu0 0
        %2469 = vmatmul.mubr.bf16.gmra.mrb[0].mxu0 %v2257
        %v2470 = vpop.f32.mrb[0].mxu0
        %v2471 = vadd.f32 0.0, %v2470
        %v2472 = vpop.f32.mrb[0].mxu0
        %v2473 = vpop.f32.mrb[0].mxu0
        %v2474 = vadd.f32 0.0, %v2473
        %v2475 = vpop.f32.mrb[0].mxu0
        %2476 = vmatprep.mubr.bf16.mxu0 0
        %2477 = vmatmul.mubr.bf16.gmra.mrb[0].mxu0 %v2258
        %v2478 = vpop.f32.mrb[0].mxu0
        %v2479 = vadd.f32 0.0, %v2478
        %v2480 = vpop.f32.mrb[0].mxu0
        %v2481 = vpop.f32.mrb[0].mxu0
        %v2482 = vadd.f32 0.0, %v2481
        %v2483 = vpop.f32.mrb[0].mxu0
        %2484 = vdwg.mxu0
        %v2485 = vadd.f32 %v2178, %v2359
        %v2486 = vadd.f32 %v2179, %v2362
        %v2487 = vadd.f32 %v2180, %v2367
        %v2488 = vadd.f32 %v2181, %v2370
        %v2489 = vadd.f32 %v2182, %v2375
        %v2490 = vadd.f32 %v2183, %v2378
        %v2491 = vadd.f32 %v2184, %v2383
        %v2492 = vadd.f32 %v2185, %v2386
        %v2493 = vadd.f32 %v2186, %v2391
        %v2494 = vadd.f32 %v2187, %v2394
        %v2495 = vadd.f32 %v2188, %v2399
        %v2496 = vadd.f32 %v2189, %v2402
        %v2497 = vadd.f32 %v2190, %v2407
        %v2498 = vadd.f32 %v2191, %v2410
        %v2499 = vadd.f32 %v2192, %v2415
        %v2500 = vadd.f32 %v2193, %v2418
        %v2501 = vadd.f32 %v2194, %v2423
        %v2502 = vadd.f32 %v2195, %v2426
        %v2503 = vadd.f32 %v2196, %v2431
        %v2504 = vadd.f32 %v2197, %v2434
        %v2505 = vadd.f32 %v2198, %v2439
        %v2506 = vadd.f32 %v2199, %v2442
        %v2507 = vadd.f32 %v2200, %v2447
        %v2508 = vadd.f32 %v2201, %v2450
        %v2509 = vadd.f32 %v2202, %v2455
        %v2510 = vadd.f32 %v2203, %v2458
        %v2511 = vadd.f32 %v2204, %v2463
        %v2512 = vadd.f32 %v2205, %v2466
        %v2513 = vadd.f32 %v2206, %v2471
        %v2514 = vadd.f32 %v2207, %v2474
        %v2515 = vadd.f32 %v2208, %v2479
        %v2516 = vadd.f32 %v2209, %v2482
        %v2517 = vld [vmem:[%s2210 + $0x1] sm:$0xff]
        %v2518 = vld [vmem:[%s2210 + $0x9] sm:$0xff]
        %v2519 = vld [vmem:[%s2210 + $0x19] sm:$0xff]
        %v2520 = vld [vmem:[%s2210 + $0x21] sm:$0xff]
        %v2521 = vld [vmem:[%s2210 + $0x31] sm:$0xff]
        %v2522 = vld [vmem:[%s2210 + $0x39] sm:$0xff]
        %v2523 = vld [vmem:[%s2210 + $0x49] sm:$0xff]
        %v2524 = vld [vmem:[%s2210 + $0x51] sm:$0xff]
        %v2525 = vld [vmem:[%s2210 + $0x61] sm:$0xff]
        %v2526 = vld [vmem:[%s2210 + $0x69] sm:$0xff]
        %v2527 = vld [vmem:[%s2210 + $0x79] sm:$0xff]
        %v2528 = vld [vmem:[%s2210 + $0x81] sm:$0xff]
        %v2529 = vld [vmem:[%s2210 + $0x91] sm:$0xff]
        %v2530 = vld [vmem:[%s2210 + $0x99] sm:$0xff]
        %v2531 = vld [vmem:[%s2210 + $0xa9] sm:$0xff]
        %v2532 = vld [vmem:[%s2210 + $0xb1] sm:$0xff]
        %v2533 = vld [vmem:[%s2210 + $0xc1] sm:$0xff]
        %v2534 = vld [vmem:[%s2210 + $0xc9] sm:$0xff]
        %v2535 = vld [vmem:[%s2210 + $0xd9] sm:$0xff]
        %v2536 = vld [vmem:[%s2210 + $0xe1] sm:$0xff]
        %v2537 = vld [vmem:[%s2210 + $0xf1] sm:$0xff]
        %v2538 = vld [vmem:[%s2210 + $0xf9] sm:$0xff]
        %v2539 = vld [vmem:[%s2210 + $0x109] sm:$0xff]
        %v2540 = vld [vmem:[%s2210 + $0x111] sm:$0xff]
        %v2541 = vld [vmem:[%s2210 + $0x121] sm:$0xff]
        %v2542 = vld [vmem:[%s2210 + $0x129] sm:$0xff]
        %v2543 = vld [vmem:[%s2210 + $0x139] sm:$0xff]
        %v2544 = vld [vmem:[%s2210 + $0x141] sm:$0xff]
        %v2545 = vld [vmem:[%s2210 + $0x151] sm:$0xff]
        %v2546 = vld [vmem:[%s2210 + $0x159] sm:$0xff]
        %v2547 = vld [vmem:[%s2210 + $0x169] sm:$0xff]
        %v2548 = vld [vmem:[%s2210 + $0x171] sm:$0xff]
        %v2549 = vpack.c.bf16 %v2518, %v2517
        %v2550 = vpack.c.bf16 %v2520, %v2519
        %v2551 = vpack.c.bf16 %v2522, %v2521
        %v2552 = vpack.c.bf16 %v2524, %v2523
        %v2553 = vpack.c.bf16 %v2526, %v2525
        %v2554 = vpack.c.bf16 %v2528, %v2527
        %v2555 = vpack.c.bf16 %v2530, %v2529
        %v2556 = vpack.c.bf16 %v2532, %v2531
        %v2557 = vpack.c.bf16 %v2534, %v2533
        %v2558 = vpack.c.bf16 %v2536, %v2535
        %v2559 = vpack.c.bf16 %v2538, %v2537
        %v2560 = vpack.c.bf16 %v2540, %v2539
        %v2561 = vpack.c.bf16 %v2542, %v2541
        %v2562 = vpack.c.bf16 %v2544, %v2543
        %v2563 = vpack.c.bf16 %v2546, %v2545
        %v2564 = vpack.c.bf16 %v2548, %v2547
        %s2565 = scalar_lea.vmem [#allocation7], 448
        %v2566 = vld [vmem:[%s2565] sm:$0xf]
        %v2567 = vld [vmem:[%s2565 + $0x4] sm:$0xf]
        %v2568 = vld [vmem:[%s2565 + $0x8] sm:$0xf]
        %v2569 = vld [vmem:[%s2565 + $0xc] sm:$0xf]
        %v2570 = vld [vmem:[%s2565 + $0x10] sm:$0xf]
        %v2571 = vld [vmem:[%s2565 + $0x14] sm:$0xf]
        %v2572 = vld [vmem:[%s2565 + $0x18] sm:$0xf]
        %v2573 = vld [vmem:[%s2565 + $0x1c] sm:$0xf]
        %v2574 = vld [vmem:[%s2565 + $0x20] sm:$0xf]
        %v2575 = vld [vmem:[%s2565 + $0x24] sm:$0xf]
        %v2576 = vld [vmem:[%s2565 + $0x28] sm:$0xf]
        %v2577 = vld [vmem:[%s2565 + $0x2c] sm:$0xf]
        %v2578 = vld [vmem:[%s2565 + $0x30] sm:$0xf]
        %v2579 = vld [vmem:[%s2565 + $0x34] sm:$0xf]
        %v2580 = vld [vmem:[%s2565 + $0x38] sm:$0xf]
        %v2581 = vld [vmem:[%s2565 + $0x3c] sm:$0xf]
        %v2598 = vunpack.c.l.b16 %v2566
        %v2599 = vunpack.c.l.b16 %v2567
        %v2600 = vunpack.c.l.b16 %v2568
        %v2601 = vunpack.c.l.b16 %v2569
        %v2602 = vunpack.c.l.b16 %v2570
        %v2603 = vunpack.c.l.b16 %v2571
        %v2604 = vunpack.c.l.b16 %v2572
        %v2605 = vunpack.c.l.b16 %v2573
        %v2606 = vunpack.c.l.b16 %v2574
        %v2607 = vunpack.c.l.b16 %v2575
        %v2608 = vunpack.c.l.b16 %v2576
        %v2609 = vunpack.c.l.b16 %v2577
        %v2610 = vunpack.c.l.b16 %v2578
        %v2611 = vunpack.c.l.b16 %v2579
        %v2612 = vunpack.c.l.b16 %v2580
        %v2613 = vunpack.c.l.b16 %v2581
        %v2614 = vpack.c.b16 %v2599, %v2598
        %v2615 = vpack.c.b16 %v2601, %v2600
        %v2616 = vpack.c.b16 %v2603, %v2602
        %v2617 = vpack.c.b16 %v2605, %v2604
        %v2618 = vpack.c.b16 %v2607, %v2606
        %v2619 = vpack.c.b16 %v2609, %v2608
        %v2620 = vpack.c.b16 %v2611, %v2610
        %v2621 = vpack.c.b16 %v2613, %v2612
        %2630 = vmatprep.subr.bf16.mxu0 0
        %2631 = vmatpush1.bf16.msra.mxu0 %v2614
        %2632 = vmatprep.subr.bf16.mxu0 0
        %2633 = vmatpush1.bf16.msra.mxu0 %v2615
        %2634 = vmatprep.subr.bf16.mxu0 0
        %2635 = vmatpush1.bf16.msra.mxu0 %v2616
        %2636 = vmatprep.subr.bf16.mxu0 0
        %2637 = vmatpush1.bf16.msra.mxu0 %v2617
        %2638 = vmatprep.subr.bf16.mxu0 0
        %2639 = vmatpush1.bf16.msra.mxu0 %v2618
        %2640 = vmatprep.subr.bf16.mxu0 0
        %2641 = vmatpush1.bf16.msra.mxu0 %v2619
        %2642 = vmatprep.subr.bf16.mxu0 0
        %2643 = vmatpush1.bf16.msra.mxu0 %v2620
        %2644 = vmatprep.subr.bf16.mxu0 0
        %2645 = vmatpush1.bf16.msra.mxu0 %v2621
        %2646 = vmatprep.subr.bf16.mxu0 0
        %2647 = vmatpush1.bf16.msra.mxu0 0
        %2648 = vmatprep.subr.bf16.mxu0 0
        %2649 = vmatpush1.bf16.msra.mxu0 0
        %2650 = vmatprep.subr.bf16.mxu0 0
        %2651 = vmatpush1.bf16.msra.mxu0 0
        %2652 = vmatprep.subr.bf16.mxu0 0
        %2653 = vmatpush1.bf16.msra.mxu0 0
        %2654 = vmatprep.subr.bf16.mxu0 0
        %2655 = vmatpush1.bf16.msra.mxu0 0
        %2656 = vmatprep.subr.bf16.mxu0 0
        %2657 = vmatpush1.bf16.msra.mxu0 0
        %2658 = vmatprep.subr.bf16.mxu0 0
        %2659 = vmatpush1.bf16.msra.mxu0 0
        %2660 = vmatprep.subr.bf16.mxu0 0
        %2661 = vmatpush1.bf16.msra.mxu0 0
        %2662 = vmatprep.mubr.bf16.mxu0 0
        %2663 = vmatmul.mubr.bf16.gmra.mrb[0].mxu0 %v2549
        %v2664 = vpop.f32.mrb[0].mxu0
        %v2665 = vadd.f32 0.0, %v2664
        %v2666 = vpop.f32.mrb[0].mxu0
        %v2667 = vpop.f32.mrb[0].mxu0
        %v2668 = vadd.f32 0.0, %v2667
        %v2669 = vpop.f32.mrb[0].mxu0
        %2670 = vmatprep.mubr.bf16.mxu0 0
        %2671 = vmatmul.mubr.bf16.gmra.mrb[0].mxu0 %v2550
        %v2672 = vpop.f32.mrb[0].mxu0
        %v2673 = vadd.f32 0.0, %v2672
        %v2674 = vpop.f32.mrb[0].mxu0
        %v2675 = vpop.f32.mrb[0].mxu0
        %v2676 = vadd.f32 0.0, %v2675
        %v2677 = vpop.f32.mrb[0].mxu0
        %2678 = vmatprep.mubr.bf16.mxu0 0
        %2679 = vmatmul.mubr.bf16.gmra.mrb[0].mxu0 %v2551
        %v2680 = vpop.f32.mrb[0].mxu0
        %v2681 = vadd.f32 0.0, %v2680
        %v2682 = vpop.f32.mrb[0].mxu0
        %v2683 = vpop.f32.mrb[0].mxu0
        %v2684 = vadd.f32 0.0, %v2683
        %v2685 = vpop.f32.mrb[0].mxu0
        %2686 = vmatprep.mubr.bf16.mxu0 0
        %2687 = vmatmul.mubr.bf16.gmra.mrb[0].mxu0 %v2552
        %v2688 = vpop.f32.mrb[0].mxu0
        %v2689 = vadd.f32 0.0, %v2688
        %v2690 = vpop.f32.mrb[0].mxu0
        %v2691 = vpop.f32.mrb[0].mxu0
        %v2692 = vadd.f32 0.0, %v2691
        %v2693 = vpop.f32.mrb[0].mxu0
        %2694 = vmatprep.mubr.bf16.mxu0 0
        %2695 = vmatmul.mubr.bf16.gmra.mrb[0].mxu0 %v2553
        %v2696 = vpop.f32.mrb[0].mxu0
        %v2697 = vadd.f32 0.0, %v2696
        %v2698 = vpop.f32.mrb[0].mxu0
        %v2699 = vpop.f32.mrb[0].mxu0
        %v2700 = vadd.f32 0.0, %v2699
        %v2701 = vpop.f32.mrb[0].mxu0
        %2702 = vmatprep.mubr.bf16.mxu0 0
        %2703 = vmatmul.mubr.bf16.gmra.mrb[0].mxu0 %v2554
        %v2704 = vpop.f32.mrb[0].mxu0
        %v2705 = vadd.f32 0.0, %v2704
        %v2706 = vpop.f32.mrb[0].mxu0
        %v2707 = vpop.f32.mrb[0].mxu0
        %v2708 = vadd.f32 0.0, %v2707
        %v2709 = vpop.f32.mrb[0].mxu0
        %2710 = vmatprep.mubr.bf16.mxu0 0
        %2711 = vmatmul.mubr.bf16.gmra.mrb[0].mxu0 %v2555
        %v2712 = vpop.f32.mrb[0].mxu0
        %v2713 = vadd.f32 0.0, %v2712
        %v2714 = vpop.f32.mrb[0].mxu0
        %v2715 = vpop.f32.mrb[0].mxu0
        %v2716 = vadd.f32 0.0, %v2715
        %v2717 = vpop.f32.mrb[0].mxu0
        %2718 = vmatprep.mubr.bf16.mxu0 0
        %2719 = vmatmul.mubr.bf16.gmra.mrb[0].mxu0 %v2556
        %v2720 = vpop.f32.mrb[0].mxu0
        %v2721 = vadd.f32 0.0, %v2720
        %v2722 = vpop.f32.mrb[0].mxu0
        %v2723 = vpop.f32.mrb[0].mxu0
        %v2724 = vadd.f32 0.0, %v2723
        %v2725 = vpop.f32.mrb[0].mxu0
        %2726 = vmatprep.mubr.bf16.mxu0 0
        %2727 = vmatmul.mubr.bf16.gmra.mrb[0].mxu0 %v2557
        %v2728 = vpop.f32.mrb[0].mxu0
        %v2729 = vadd.f32 0.0, %v2728
        %v2730 = vpop.f32.mrb[0].mxu0
        %v2731 = vpop.f32.mrb[0].mxu0
        %v2732 = vadd.f32 0.0, %v2731
        %v2733 = vpop.f32.mrb[0].mxu0
        %2734 = vmatprep.mubr.bf16.mxu0 0
        %2735 = vmatmul.mubr.bf16.gmra.mrb[0].mxu0 %v2558
        %v2736 = vpop.f32.mrb[0].mxu0
        %v2737 = vadd.f32 0.0, %v2736
        %v2738 = vpop.f32.mrb[0].mxu0
        %v2739 = vpop.f32.mrb[0].mxu0
        %v2740 = vadd.f32 0.0, %v2739
        %v2741 = vpop.f32.mrb[0].mxu0
        %2742 = vmatprep.mubr.bf16.mxu0 0
        %2743 = vmatmul.mubr.bf16.gmra.mrb[0].mxu0 %v2559
        %v2744 = vpop.f32.mrb[0].mxu0
        %v2745 = vadd.f32 0.0, %v2744
        %v2746 = vpop.f32.mrb[0].mxu0
        %v2747 = vpop.f32.mrb[0].mxu0
        %v2748 = vadd.f32 0.0, %v2747
        %v2749 = vpop.f32.mrb[0].mxu0
        %2750 = vmatprep.mubr.bf16.mxu0 0
        %2751 = vmatmul.mubr.bf16.gmra.mrb[0].mxu0 %v2560
        %v2752 = vpop.f32.mrb[0].mxu0
        %v2753 = vadd.f32 0.0, %v2752
        %v2754 = vpop.f32.mrb[0].mxu0
        %v2755 = vpop.f32.mrb[0].mxu0
        %v2756 = vadd.f32 0.0, %v2755
        %v2757 = vpop.f32.mrb[0].mxu0
        %2758 = vmatprep.mubr.bf16.mxu0 0
        %2759 = vmatmul.mubr.bf16.gmra.mrb[0].mxu0 %v2561
        %v2760 = vpop.f32.mrb[0].mxu0
        %v2761 = vadd.f32 0.0, %v2760
        %v2762 = vpop.f32.mrb[0].mxu0
        %v2763 = vpop.f32.mrb[0].mxu0
        %v2764 = vadd.f32 0.0, %v2763
        %v2765 = vpop.f32.mrb[0].mxu0
        %2766 = vmatprep.mubr.bf16.mxu0 0
        %2767 = vmatmul.mubr.bf16.gmra.mrb[0].mxu0 %v2562
        %v2768 = vpop.f32.mrb[0].mxu0
        %v2769 = vadd.f32 0.0, %v2768
        %v2770 = vpop.f32.mrb[0].mxu0
        %v2771 = vpop.f32.mrb[0].mxu0
        %v2772 = vadd.f32 0.0, %v2771
        %v2773 = vpop.f32.mrb[0].mxu0
        %2774 = vmatprep.mubr.bf16.mxu0 0
        %2775 = vmatmul.mubr.bf16.gmra.mrb[0].mxu0 %v2563
        %v2776 = vpop.f32.mrb[0].mxu0
        %v2777 = vadd.f32 0.0, %v2776
        %v2778 = vpop.f32.mrb[0].mxu0
        %v2779 = vpop.f32.mrb[0].mxu0
        %v2780 = vadd.f32 0.0, %v2779
        %v2781 = vpop.f32.mrb[0].mxu0
        %2782 = vmatprep.mubr.bf16.mxu0 0
        %2783 = vmatmul.mubr.bf16.gmra.mrb[0].mxu0 %v2564
        %v2784 = vpop.f32.mrb[0].mxu0
        %v2785 = vadd.f32 0.0, %v2784
        %v2786 = vpop.f32.mrb[0].mxu0
        %v2787 = vpop.f32.mrb[0].mxu0
        %v2788 = vadd.f32 0.0, %v2787
        %v2789 = vpop.f32.mrb[0].mxu0
        %2790 = vdwg.mxu0
        %v2791 = vadd.f32 %v2485, %v2665
        %v2792 = vadd.f32 %v2486, %v2668
        %v2793 = vadd.f32 %v2487, %v2673
        %v2794 = vadd.f32 %v2488, %v2676
        %v2795 = vadd.f32 %v2489, %v2681
        %v2796 = vadd.f32 %v2490, %v2684
        %v2797 = vadd.f32 %v2491, %v2689
        %v2798 = vadd.f32 %v2492, %v2692
        %v2799 = vadd.f32 %v2493, %v2697
        %v2800 = vadd.f32 %v2494, %v2700
        %v2801 = vadd.f32 %v2495, %v2705
        %v2802 = vadd.f32 %v2496, %v2708
        %v2803 = vadd.f32 %v2497, %v2713
        %v2804 = vadd.f32 %v2498, %v2716
        %v2805 = vadd.f32 %v2499, %v2721
        %v2806 = vadd.f32 %v2500, %v2724
        %v2807 = vadd.f32 %v2501, %v2729
        %v2808 = vadd.f32 %v2502, %v2732
        %v2809 = vadd.f32 %v2503, %v2737
        %v2810 = vadd.f32 %v2504, %v2740
        %v2811 = vadd.f32 %v2505, %v2745
        %v2812 = vadd.f32 %v2506, %v2748
        %v2813 = vadd.f32 %v2507, %v2753
        %v2814 = vadd.f32 %v2508, %v2756
        %v2815 = vadd.f32 %v2509, %v2761
        %v2816 = vadd.f32 %v2510, %v2764
        %v2817 = vadd.f32 %v2511, %v2769
        %v2818 = vadd.f32 %v2512, %v2772
        %v2819 = vadd.f32 %v2513, %v2777
        %v2820 = vadd.f32 %v2514, %v2780
        %v2821 = vadd.f32 %v2515, %v2785
        %v2822 = vadd.f32 %v2516, %v2788
        %v2823 = vld [vmem:[%s2210 + $0x2] sm:$0xff]
        %v2824 = vld [vmem:[%s2210 + $0xa] sm:$0xff]
        %v2825 = vld [vmem:[%s2210 + $0x1a] sm:$0xff]
        %v2826 = vld [vmem:[%s2210 + $0x22] sm:$0xff]
        %v2827 = vld [vmem:[%s2210 + $0x32] sm:$0xff]
        %v2828 = vld [vmem:[%s2210 + $0x3a] sm:$0xff]
        %v2829 = vld [vmem:[%s2210 + $0x4a] sm:$0xff]
        %v2830 = vld [vmem:[%s2210 + $0x52] sm:$0xff]
        %v2831 = vld [vmem:[%s2210 + $0x62] sm:$0xff]
        %v2832 = vld [vmem:[%s2210 + $0x6a] sm:$0xff]
        %v2833 = vld [vmem:[%s2210 + $0x7a] sm:$0xff]
        %v2834 = vld [vmem:[%s2210 + $0x82] sm:$0xff]
        %v2835 = vld [vmem:[%s2210 + $0x92] sm:$0xff]
        %v2836 = vld [vmem:[%s2210 + $0x9a] sm:$0xff]
        %v2837 = vld [vmem:[%s2210 + $0xaa] sm:$0xff]
        %v2838 = vld [vmem:[%s2210 + $0xb2] sm:$0xff]
        %v2839 = vld [vmem:[%s2210 + $0xc2] sm:$0xff]
        %v2840 = vld [vmem:[%s2210 + $0xca] sm:$0xff]
        %v2841 = vld [vmem:[%s2210 + $0xda] sm:$0xff]
        %v2842 = vld [vmem:[%s2210 + $0xe2] sm:$0xff]
        %v2843 = vld [vmem:[%s2210 + $0xf2] sm:$0xff]
        %v2844 = vld [vmem:[%s2210 + $0xfa] sm:$0xff]
        %v2845 = vld [vmem:[%s2210 + $0x10a] sm:$0xff]
        %v2846 = vld [vmem:[%s2210 + $0x112] sm:$0xff]
        %v2847 = vld [vmem:[%s2210 + $0x122] sm:$0xff]
        %v2848 = vld [vmem:[%s2210 + $0x12a] sm:$0xff]
        %v2849 = vld [vmem:[%s2210 + $0x13a] sm:$0xff]
        %v2850 = vld [vmem:[%s2210 + $0x142] sm:$0xff]
        %v2851 = vld [vmem:[%s2210 + $0x152] sm:$0xff]
        %v2852 = vld [vmem:[%s2210 + $0x15a] sm:$0xff]
        %v2853 = vld [vmem:[%s2210 + $0x16a] sm:$0xff]
        %v2854 = vld [vmem:[%s2210 + $0x172] sm:$0xff]
        %v2855 = vpack.c.bf16 %v2824, %v2823
        %v2856 = vpack.c.bf16 %v2826, %v2825
        %v2857 = vpack.c.bf16 %v2828, %v2827
        %v2858 = vpack.c.bf16 %v2830, %v2829
        %v2859 = vpack.c.bf16 %v2832, %v2831
        %v2860 = vpack.c.bf16 %v2834, %v2833
        %v2861 = vpack.c.bf16 %v2836, %v2835
        %v2862 = vpack.c.bf16 %v2838, %v2837
        %v2863 = vpack.c.bf16 %v2840, %v2839
        %v2864 = vpack.c.bf16 %v2842, %v2841
        %v2865 = vpack.c.bf16 %v2844, %v2843
        %v2866 = vpack.c.bf16 %v2846, %v2845
        %v2867 = vpack.c.bf16 %v2848, %v2847
        %v2868 = vpack.c.bf16 %v2850, %v2849
        %v2869 = vpack.c.bf16 %v2852, %v2851
        %v2870 = vpack.c.bf16 %v2854, %v2853
        %s2871 = scalar_lea.vmem [#allocation7], 512
        %v2872 = vld [vmem:[%s2871] sm:$0xf]
        %v2873 = vld [vmem:[%s2871 + $0x4] sm:$0xf]
        %v2874 = vld [vmem:[%s2871 + $0x8] sm:$0xf]
        %v2875 = vld [vmem:[%s2871 + $0xc] sm:$0xf]
        %v2876 = vld [vmem:[%s2871 + $0x10] sm:$0xf]
        %v2877 = vld [vmem:[%s2871 + $0x14] sm:$0xf]
        %v2878 = vld [vmem:[%s2871 + $0x18] sm:$0xf]
        %v2879 = vld [vmem:[%s2871 + $0x1c] sm:$0xf]
        %v2880 = vld [vmem:[%s2871 + $0x20] sm:$0xf]
        %v2881 = vld [vmem:[%s2871 + $0x24] sm:$0xf]
        %v2882 = vld [vmem:[%s2871 + $0x28] sm:$0xf]
        %v2883 = vld [vmem:[%s2871 + $0x2c] sm:$0xf]
        %v2884 = vld [vmem:[%s2871 + $0x30] sm:$0xf]
        %v2885 = vld [vmem:[%s2871 + $0x34] sm:$0xf]
        %v2886 = vld [vmem:[%s2871 + $0x38] sm:$0xf]
        %v2887 = vld [vmem:[%s2871 + $0x3c] sm:$0xf]
        %v2904 = vunpack.c.l.b16 %v2872
        %v2905 = vunpack.c.l.b16 %v2873
        %v2906 = vunpack.c.l.b16 %v2874
        %v2907 = vunpack.c.l.b16 %v2875
        %v2908 = vunpack.c.l.b16 %v2876
        %v2909 = vunpack.c.l.b16 %v2877
        %v2910 = vunpack.c.l.b16 %v2878
        %v2911 = vunpack.c.l.b16 %v2879
        %v2912 = vunpack.c.l.b16 %v2880
        %v2913 = vunpack.c.l.b16 %v2881
        %v2914 = vunpack.c.l.b16 %v2882
        %v2915 = vunpack.c.l.b16 %v2883
        %v2916 = vunpack.c.l.b16 %v2884
        %v2917 = vunpack.c.l.b16 %v2885
        %v2918 = vunpack.c.l.b16 %v2886
        %v2919 = vunpack.c.l.b16 %v2887
        %v2920 = vpack.c.b16 %v2905, %v2904
        %v2921 = vpack.c.b16 %v2907, %v2906
        %v2922 = vpack.c.b16 %v2909, %v2908
        %v2923 = vpack.c.b16 %v2911, %v2910
        %v2924 = vpack.c.b16 %v2913, %v2912
        %v2925 = vpack.c.b16 %v2915, %v2914
        %v2926 = vpack.c.b16 %v2917, %v2916
        %v2927 = vpack.c.b16 %v2919, %v2918
        %2936 = vmatprep.subr.bf16.mxu0 0
        %2937 = vmatpush1.bf16.msra.mxu0 %v2920
        %2938 = vmatprep.subr.bf16.mxu0 0
        %2939 = vmatpush1.bf16.msra.mxu0 %v2921
        %2940 = vmatprep.subr.bf16.mxu0 0
        %2941 = vmatpush1.bf16.msra.mxu0 %v2922
        %2942 = vmatprep.subr.bf16.mxu0 0
        %2943 = vmatpush1.bf16.msra.mxu0 %v2923
        %2944 = vmatprep.subr.bf16.mxu0 0
        %2945 = vmatpush1.bf16.msra.mxu0 %v2924
        %2946 = vmatprep.subr.bf16.mxu0 0
        %2947 = vmatpush1.bf16.msra.mxu0 %v2925
        %2948 = vmatprep.subr.bf16.mxu0 0
        %2949 = vmatpush1.bf16.msra.mxu0 %v2926
        %2950 = vmatprep.subr.bf16.mxu0 0
        %2951 = vmatpush1.bf16.msra.mxu0 %v2927
        %2952 = vmatprep.subr.bf16.mxu0 0
        %2953 = vmatpush1.bf16.msra.mxu0 0
        %2954 = vmatprep.subr.bf16.mxu0 0
        %2955 = vmatpush1.bf16.msra.mxu0 0
        %2956 = vmatprep.subr.bf16.mxu0 0
        %2957 = vmatpush1.bf16.msra.mxu0 0
        %2958 = vmatprep.subr.bf16.mxu0 0
        %2959 = vmatpush1.bf16.msra.mxu0 0
        %2960 = vmatprep.subr.bf16.mxu0 0
        %2961 = vmatpush1.bf16.msra.mxu0 0
        %2962 = vmatprep.subr.bf16.mxu0 0
        %2963 = vmatpush1.bf16.msra.mxu0 0
        %2964 = vmatprep.subr.bf16.mxu0 0
        %2965 = vmatpush1.bf16.msra.mxu0 0
        %2966 = vmatprep.subr.bf16.mxu0 0
        %2967 = vmatpush1.bf16.msra.mxu0 0
        %2968 = vmatprep.mubr.bf16.mxu0 0
        %2969 = vmatmul.mubr.bf16.gmra.mrb[0].mxu0 %v2855
        %v2970 = vpop.f32.mrb[0].mxu0
        %v2971 = vadd.f32 0.0, %v2970
        %v2972 = vpop.f32.mrb[0].mxu0
        %v2973 = vpop.f32.mrb[0].mxu0
        %v2974 = vadd.f32 0.0, %v2973
        %v2975 = vpop.f32.mrb[0].mxu0
        %2976 = vmatprep.mubr.bf16.mxu0 0
        %2977 = vmatmul.mubr.bf16.gmra.mrb[0].mxu0 %v2856
        %v2978 = vpop.f32.mrb[0].mxu0
        %v2979 = vadd.f32 0.0, %v2978
        %v2980 = vpop.f32.mrb[0].mxu0
        %v2981 = vpop.f32.mrb[0].mxu0
        %v2982 = vadd.f32 0.0, %v2981
        %v2983 = vpop.f32.mrb[0].mxu0
        %2984 = vmatprep.mubr.bf16.mxu0 0
        %2985 = vmatmul.mubr.bf16.gmra.mrb[0].mxu0 %v2857
        %v2986 = vpop.f32.mrb[0].mxu0
        %v2987 = vadd.f32 0.0, %v2986
        %v2988 = vpop.f32.mrb[0].mxu0
        %v2989 = vpop.f32.mrb[0].mxu0
        %v2990 = vadd.f32 0.0, %v2989
        %v2991 = vpop.f32.mrb[0].mxu0
        %2992 = vmatprep.mubr.bf16.mxu0 0
        %2993 = vmatmul.mubr.bf16.gmra.mrb[0].mxu0 %v2858
        %v2994 = vpop.f32.mrb[0].mxu0
        %v2995 = vadd.f32 0.0, %v2994
        %v2996 = vpop.f32.mrb[0].mxu0
        %v2997 = vpop.f32.mrb[0].mxu0
        %v2998 = vadd.f32 0.0, %v2997
        %v2999 = vpop.f32.mrb[0].mxu0
        %3000 = vmatprep.mubr.bf16.mxu0 0
        %3001 = vmatmul.mubr.bf16.gmra.mrb[0].mxu0 %v2859
        %v3002 = vpop.f32.mrb[0].mxu0
        %v3003 = vadd.f32 0.0, %v3002
        %v3004 = vpop.f32.mrb[0].mxu0
        %v3005 = vpop.f32.mrb[0].mxu0
        %v3006 = vadd.f32 0.0, %v3005
        %v3007 = vpop.f32.mrb[0].mxu0
        %3008 = vmatprep.mubr.bf16.mxu0 0
        %3009 = vmatmul.mubr.bf16.gmra.mrb[0].mxu0 %v2860
        %v3010 = vpop.f32.mrb[0].mxu0
        %v3011 = vadd.f32 0.0, %v3010
        %v3012 = vpop.f32.mrb[0].mxu0
        %v3013 = vpop.f32.mrb[0].mxu0
        %v3014 = vadd.f32 0.0, %v3013
        %v3015 = vpop.f32.mrb[0].mxu0
        %3016 = vmatprep.mubr.bf16.mxu0 0
        %3017 = vmatmul.mubr.bf16.gmra.mrb[0].mxu0 %v2861
        %v3018 = vpop.f32.mrb[0].mxu0
        %v3019 = vadd.f32 0.0, %v3018
        %v3020 = vpop.f32.mrb[0].mxu0
        %v3021 = vpop.f32.mrb[0].mxu0
        %v3022 = vadd.f32 0.0, %v3021
        %v3023 = vpop.f32.mrb[0].mxu0
        %3024 = vmatprep.mubr.bf16.mxu0 0
        %3025 = vmatmul.mubr.bf16.gmra.mrb[0].mxu0 %v2862
        %v3026 = vpop.f32.mrb[0].mxu0
        %v3027 = vadd.f32 0.0, %v3026
        %v3028 = vpop.f32.mrb[0].mxu0
        %v3029 = vpop.f32.mrb[0].mxu0
        %v3030 = vadd.f32 0.0, %v3029
        %v3031 = vpop.f32.mrb[0].mxu0
        %3032 = vmatprep.mubr.bf16.mxu0 0
        %3033 = vmatmul.mubr.bf16.gmra.mrb[0].mxu0 %v2863
        %v3034 = vpop.f32.mrb[0].mxu0
        %v3035 = vadd.f32 0.0, %v3034
        %v3036 = vpop.f32.mrb[0].mxu0
        %v3037 = vpop.f32.mrb[0].mxu0
        %v3038 = vadd.f32 0.0, %v3037
        %v3039 = vpop.f32.mrb[0].mxu0
        %3040 = vmatprep.mubr.bf16.mxu0 0
        %3041 = vmatmul.mubr.bf16.gmra.mrb[0].mxu0 %v2864
        %v3042 = vpop.f32.mrb[0].mxu0
        %v3043 = vadd.f32 0.0, %v3042
        %v3044 = vpop.f32.mrb[0].mxu0
        %v3045 = vpop.f32.mrb[0].mxu0
        %v3046 = vadd.f32 0.0, %v3045
        %v3047 = vpop.f32.mrb[0].mxu0
        %3048 = vmatprep.mubr.bf16.mxu0 0
        %3049 = vmatmul.mubr.bf16.gmra.mrb[0].mxu0 %v2865
        %v3050 = vpop.f32.mrb[0].mxu0
        %v3051 = vadd.f32 0.0, %v3050
        %v3052 = vpop.f32.mrb[0].mxu0
        %v3053 = vpop.f32.mrb[0].mxu0
        %v3054 = vadd.f32 0.0, %v3053
        %v3055 = vpop.f32.mrb[0].mxu0
        %3056 = vmatprep.mubr.bf16.mxu0 0
        %3057 = vmatmul.mubr.bf16.gmra.mrb[0].mxu0 %v2866
        %v3058 = vpop.f32.mrb[0].mxu0
        %v3059 = vadd.f32 0.0, %v3058
        %v3060 = vpop.f32.mrb[0].mxu0
        %v3061 = vpop.f32.mrb[0].mxu0
        %v3062 = vadd.f32 0.0, %v3061
        %v3063 = vpop.f32.mrb[0].mxu0
        %3064 = vmatprep.mubr.bf16.mxu0 0
        %3065 = vmatmul.mubr.bf16.gmra.mrb[0].mxu0 %v2867
        %v3066 = vpop.f32.mrb[0].mxu0
        %v3067 = vadd.f32 0.0, %v3066
        %v3068 = vpop.f32.mrb[0].mxu0
        %v3069 = vpop.f32.mrb[0].mxu0
        %v3070 = vadd.f32 0.0, %v3069
        %v3071 = vpop.f32.mrb[0].mxu0
        %3072 = vmatprep.mubr.bf16.mxu0 0
        %3073 = vmatmul.mubr.bf16.gmra.mrb[0].mxu0 %v2868
        %v3074 = vpop.f32.mrb[0].mxu0
        %v3075 = vadd.f32 0.0, %v3074
        %v3076 = vpop.f32.mrb[0].mxu0
        %v3077 = vpop.f32.mrb[0].mxu0
        %v3078 = vadd.f32 0.0, %v3077
        %v3079 = vpop.f32.mrb[0].mxu0
        %3080 = vmatprep.mubr.bf16.mxu0 0
        %3081 = vmatmul.mubr.bf16.gmra.mrb[0].mxu0 %v2869
        %v3082 = vpop.f32.mrb[0].mxu0
        %v3083 = vadd.f32 0.0, %v3082
        %v3084 = vpop.f32.mrb[0].mxu0
        %v3085 = vpop.f32.mrb[0].mxu0
        %v3086 = vadd.f32 0.0, %v3085
        %v3087 = vpop.f32.mrb[0].mxu0
        %3088 = vmatprep.mubr.bf16.mxu0 0
        %3089 = vmatmul.mubr.bf16.gmra.mrb[0].mxu0 %v2870
        %v3090 = vpop.f32.mrb[0].mxu0
        %v3091 = vadd.f32 0.0, %v3090
        %v3092 = vpop.f32.mrb[0].mxu0
        %v3093 = vpop.f32.mrb[0].mxu0
        %v3094 = vadd.f32 0.0, %v3093
        %v3095 = vpop.f32.mrb[0].mxu0
        %3096 = vdwg.mxu0
        %v3097 = vadd.f32 %v2791, %v2971
        %v3098 = vadd.f32 %v2792, %v2974
        %v3099 = vadd.f32 %v2793, %v2979
        %v3100 = vadd.f32 %v2794, %v2982
        %v3101 = vadd.f32 %v2795, %v2987
        %v3102 = vadd.f32 %v2796, %v2990
        %v3103 = vadd.f32 %v2797, %v2995
        %v3104 = vadd.f32 %v2798, %v2998
        %v3105 = vadd.f32 %v2799, %v3003
        %v3106 = vadd.f32 %v2800, %v3006
        %v3107 = vadd.f32 %v2801, %v3011
        %v3108 = vadd.f32 %v2802, %v3014
        %v3109 = vadd.f32 %v2803, %v3019
        %v3110 = vadd.f32 %v2804, %v3022
        %v3111 = vadd.f32 %v2805, %v3027
        %v3112 = vadd.f32 %v2806, %v3030
        %v3113 = vadd.f32 %v2807, %v3035
        %v3114 = vadd.f32 %v2808, %v3038
        %v3115 = vadd.f32 %v2809, %v3043
        %v3116 = vadd.f32 %v2810, %v3046
        %v3117 = vadd.f32 %v2811, %v3051
        %v3118 = vadd.f32 %v2812, %v3054
        %v3119 = vadd.f32 %v2813, %v3059
        %v3120 = vadd.f32 %v2814, %v3062
        %v3121 = vadd.f32 %v2815, %v3067
        %v3122 = vadd.f32 %v2816, %v3070
        %v3123 = vadd.f32 %v2817, %v3075
        %v3124 = vadd.f32 %v2818, %v3078
        %v3125 = vadd.f32 %v2819, %v3083
        %v3126 = vadd.f32 %v2820, %v3086
        %v3127 = vadd.f32 %v2821, %v3091
        %v3128 = vadd.f32 %v2822, %v3094
        %v3130 = vlaneseq
        %v3131 = vshrl.u32 %v3130, 7
        %v3132 = vsub.s32 0, %v3131
        %v3133 = vrot.slane %v327, %v3132
        %v3135 = vmul.f32 %v3097, %v3133
        %v3136 = vmul.f32 %v3098, %v3133
        %v3137 = vmul.f32 %v3099, %v3133
        %v3138 = vmul.f32 %v3100, %v3133
        %v3139 = vmul.f32 %v3101, %v3133
        %v3140 = vmul.f32 %v3102, %v3133
        %v3141 = vmul.f32 %v3103, %v3133
        %v3142 = vmul.f32 %v3104, %v3133
        %v3143 = vmul.f32 %v3105, %v3133
        %v3144 = vmul.f32 %v3106, %v3133
        %v3145 = vmul.f32 %v3107, %v3133
        %v3146 = vmul.f32 %v3108, %v3133
        %v3147 = vmul.f32 %v3109, %v3133
        %v3148 = vmul.f32 %v3110, %v3133
        %v3149 = vmul.f32 %v3111, %v3133
        %v3150 = vmul.f32 %v3112, %v3133
        %v3151 = vmul.f32 %v3113, %v3133
        %v3152 = vmul.f32 %v3114, %v3133
        %v3153 = vmul.f32 %v3115, %v3133
        %v3154 = vmul.f32 %v3116, %v3133
        %v3155 = vmul.f32 %v3117, %v3133
        %v3156 = vmul.f32 %v3118, %v3133
        %v3157 = vmul.f32 %v3119, %v3133
        %v3158 = vmul.f32 %v3120, %v3133
        %v3159 = vmul.f32 %v3121, %v3133
        %v3160 = vmul.f32 %v3122, %v3133
        %v3161 = vmul.f32 %v3123, %v3133
        %v3162 = vmul.f32 %v3124, %v3133
        %v3163 = vmul.f32 %v3125, %v3133
        %v3164 = vmul.f32 %v3126, %v3133
        %v3165 = vmul.f32 %v3127, %v3133
        %v3166 = vmul.f32 %v3128, %v3133
        %v3168 = vlaneseq
        %v3169 = vshrl.u32 %v3168, 7
        %v3170 = vsub.s32 0, %v3169
        %v3171 = vrot.slane %v328, %v3170
        %v3173 = vadd.f32 %v3135, %v3171
        %v3174 = vadd.f32 %v3136, %v3171
        %v3175 = vadd.f32 %v3137, %v3171
        %v3176 = vadd.f32 %v3138, %v3171
        %v3177 = vadd.f32 %v3139, %v3171
        %v3178 = vadd.f32 %v3140, %v3171
        %v3179 = vadd.f32 %v3141, %v3171
        %v3180 = vadd.f32 %v3142, %v3171
        %v3181 = vadd.f32 %v3143, %v3171
        %v3182 = vadd.f32 %v3144, %v3171
        %v3183 = vadd.f32 %v3145, %v3171
        %v3184 = vadd.f32 %v3146, %v3171
        %v3185 = vadd.f32 %v3147, %v3171
        %v3186 = vadd.f32 %v3148, %v3171
        %v3187 = vadd.f32 %v3149, %v3171
        %v3188 = vadd.f32 %v3150, %v3171
        %v3189 = vadd.f32 %v3151, %v3171
        %v3190 = vadd.f32 %v3152, %v3171
        %v3191 = vadd.f32 %v3153, %v3171
        %v3192 = vadd.f32 %v3154, %v3171
        %v3193 = vadd.f32 %v3155, %v3171
        %v3194 = vadd.f32 %v3156, %v3171
        %v3195 = vadd.f32 %v3157, %v3171
        %v3196 = vadd.f32 %v3158, %v3171
        %v3197 = vadd.f32 %v3159, %v3171
        %v3198 = vadd.f32 %v3160, %v3171
        %v3199 = vadd.f32 %v3161, %v3171
        %v3200 = vadd.f32 %v3162, %v3171
        %v3201 = vadd.f32 %v3163, %v3171
        %v3202 = vadd.f32 %v3164, %v3171
        %v3203 = vadd.f32 %v3165, %v3171
        %v3204 = vadd.f32 %v3166, %v3171
        %vm3205 = vcmp.gt.f32.partialorder %v3173, 20.0
        %vm3206 = vcmp.gt.f32.partialorder %v3174, 20.0
        %vm3207 = vcmp.gt.f32.partialorder %v3175, 20.0
        %vm3208 = vcmp.gt.f32.partialorder %v3176, 20.0
        %vm3209 = vcmp.gt.f32.partialorder %v3177, 20.0
        %vm3210 = vcmp.gt.f32.partialorder %v3178, 20.0
        %vm3211 = vcmp.gt.f32.partialorder %v3179, 20.0
        %vm3212 = vcmp.gt.f32.partialorder %v3180, 20.0
        %vm3213 = vcmp.gt.f32.partialorder %v3181, 20.0
        %vm3214 = vcmp.gt.f32.partialorder %v3182, 20.0
        %vm3215 = vcmp.gt.f32.partialorder %v3183, 20.0
        %vm3216 = vcmp.gt.f32.partialorder %v3184, 20.0
        %vm3217 = vcmp.gt.f32.partialorder %v3185, 20.0
        %vm3218 = vcmp.gt.f32.partialorder %v3186, 20.0
        %vm3219 = vcmp.gt.f32.partialorder %v3187, 20.0
        %vm3220 = vcmp.gt.f32.partialorder %v3188, 20.0
        %vm3221 = vcmp.gt.f32.partialorder %v3189, 20.0
        %vm3222 = vcmp.gt.f32.partialorder %v3190, 20.0
        %vm3223 = vcmp.gt.f32.partialorder %v3191, 20.0
        %vm3224 = vcmp.gt.f32.partialorder %v3192, 20.0
        %vm3225 = vcmp.gt.f32.partialorder %v3193, 20.0
        %vm3226 = vcmp.gt.f32.partialorder %v3194, 20.0
        %vm3227 = vcmp.gt.f32.partialorder %v3195, 20.0
        %vm3228 = vcmp.gt.f32.partialorder %v3196, 20.0
        %vm3229 = vcmp.gt.f32.partialorder %v3197, 20.0
        %vm3230 = vcmp.gt.f32.partialorder %v3198, 20.0
        %vm3231 = vcmp.gt.f32.partialorder %v3199, 20.0
        %vm3232 = vcmp.gt.f32.partialorder %v3200, 20.0
        %vm3233 = vcmp.gt.f32.partialorder %v3201, 20.0
        %vm3234 = vcmp.gt.f32.partialorder %v3202, 20.0
        %vm3235 = vcmp.gt.f32.partialorder %v3203, 20.0
        %vm3236 = vcmp.gt.f32.partialorder %v3204, 20.0
        %v3237 = vmin.f32 %v3173, 20.0
        %v3238 = vmin.f32 %v3174, 20.0
        %v3239 = vmin.f32 %v3175, 20.0
        %v3240 = vmin.f32 %v3176, 20.0
        %v3241 = vmin.f32 %v3177, 20.0
        %v3242 = vmin.f32 %v3178, 20.0
        %v3243 = vmin.f32 %v3179, 20.0
        %v3244 = vmin.f32 %v3180, 20.0
        %v3245 = vmin.f32 %v3181, 20.0
        %v3246 = vmin.f32 %v3182, 20.0
        %v3247 = vmin.f32 %v3183, 20.0
        %v3248 = vmin.f32 %v3184, 20.0
        %v3249 = vmin.f32 %v3185, 20.0
        %v3250 = vmin.f32 %v3186, 20.0
        %v3251 = vmin.f32 %v3187, 20.0
        %v3252 = vmin.f32 %v3188, 20.0
        %v3253 = vmin.f32 %v3189, 20.0
        %v3254 = vmin.f32 %v3190, 20.0
        %v3255 = vmin.f32 %v3191, 20.0
        %v3256 = vmin.f32 %v3192, 20.0
        %v3257 = vmin.f32 %v3193, 20.0
        %v3258 = vmin.f32 %v3194, 20.0
        %v3259 = vmin.f32 %v3195, 20.0
        %v3260 = vmin.f32 %v3196, 20.0
        %v3261 = vmin.f32 %v3197, 20.0
        %v3262 = vmin.f32 %v3198, 20.0
        %v3263 = vmin.f32 %v3199, 20.0
        %v3264 = vmin.f32 %v3200, 20.0
        %v3265 = vmin.f32 %v3201, 20.0
        %v3266 = vmin.f32 %v3202, 20.0
        %v3267 = vmin.f32 %v3203, 20.0
        %v3268 = vmin.f32 %v3204, 20.0
        %v3269 = vmul.f32 %v3237, 1.442695
        %v3270 = vpow.pop %v3269
        %v3271 = vmul.f32 %v3238, 1.442695
        %v3272 = vpow.pop %v3271
        %v3273 = vmul.f32 %v3239, 1.442695
        %v3274 = vpow.pop %v3273
        %v3275 = vmul.f32 %v3240, 1.442695
        %v3276 = vpow.pop %v3275
        %v3277 = vmul.f32 %v3241, 1.442695
        %v3278 = vpow.pop %v3277
        %v3279 = vmul.f32 %v3242, 1.442695
        %v3280 = vpow.pop %v3279
        %v3281 = vmul.f32 %v3243, 1.442695
        %v3282 = vpow.pop %v3281
        %v3283 = vmul.f32 %v3244, 1.442695
        %v3284 = vpow.pop %v3283
        %v3285 = vmul.f32 %v3245, 1.442695
        %v3286 = vpow.pop %v3285
        %v3287 = vmul.f32 %v3246, 1.442695
        %v3288 = vpow.pop %v3287
        %v3289 = vmul.f32 %v3247, 1.442695
        %v3290 = vpow.pop %v3289
        %v3291 = vmul.f32 %v3248, 1.442695
        %v3292 = vpow.pop %v3291
        %v3293 = vmul.f32 %v3249, 1.442695
        %v3294 = vpow.pop %v3293
        %v3295 = vmul.f32 %v3250, 1.442695
        %v3296 = vpow.pop %v3295
        %v3297 = vmul.f32 %v3251, 1.442695
        %v3298 = vpow.pop %v3297
        %v3299 = vmul.f32 %v3252, 1.442695
        %v3300 = vpow.pop %v3299
        %v3301 = vmul.f32 %v3253, 1.442695
        %v3302 = vpow.pop %v3301
        %v3303 = vmul.f32 %v3254, 1.442695
        %v3304 = vpow.pop %v3303
        %v3305 = vmul.f32 %v3255, 1.442695
        %v3306 = vpow.pop %v3305
        %v3307 = vmul.f32 %v3256, 1.442695
        %v3308 = vpow.pop %v3307
        %v3309 = vmul.f32 %v3257, 1.442695
        %v3310 = vpow.pop %v3309
        %v3311 = vmul.f32 %v3258, 1.442695
        %v3312 = vpow.pop %v3311
        %v3313 = vmul.f32 %v3259, 1.442695
        %v3314 = vpow.pop %v3313
        %v3315 = vmul.f32 %v3260, 1.442695
        %v3316 = vpow.pop %v3315
        %v3317 = vmul.f32 %v3261, 1.442695
        %v3318 = vpow.pop %v3317
        %v3319 = vmul.f32 %v3262, 1.442695
        %v3320 = vpow.pop %v3319
        %v3321 = vmul.f32 %v3263, 1.442695
        %v3322 = vpow.pop %v3321
        %v3323 = vmul.f32 %v3264, 1.442695
        %v3324 = vpow.pop %v3323
        %v3325 = vmul.f32 %v3265, 1.442695
        %v3326 = vpow.pop %v3325
        %v3327 = vmul.f32 %v3266, 1.442695
        %v3328 = vpow.pop %v3327
        %v3329 = vmul.f32 %v3267, 1.442695
        %v3330 = vpow.pop %v3329
        %v3331 = vmul.f32 %v3268, 1.442695
        %v3332 = vpow.pop %v3331
        %v3333 = vadd.f32 %v3270, 1.0
        %v3334 = vlog2.pop %v3333
        %v3335 = vmul.f32 %v3334, 0.6931472
        %v3336 = vmul.f32 -0.5, %v3270
        %v3337 = vadd.f32 %v3336, 1.0
        %v3338 = vmul.f32 %v3337, %v3270
        %v3339 = vand.u32 2147483647, %v3270
        %vm3340 = vcmp.lt.f32.partialorder %v3339, 0.0004427343
        %v3341 = vsel %vm3340, %v3338, %v3335
        %v3342 = vadd.f32 %v3272, 1.0
        %v3343 = vlog2.pop %v3342
        %v3344 = vmul.f32 %v3343, 0.6931472
        %v3345 = vmul.f32 -0.5, %v3272
        %v3346 = vadd.f32 %v3345, 1.0
        %v3347 = vmul.f32 %v3346, %v3272
        %v3348 = vand.u32 2147483647, %v3272
        %vm3349 = vcmp.lt.f32.partialorder %v3348, 0.0004427343
        %v3350 = vsel %vm3349, %v3347, %v3344
        %v3351 = vadd.f32 %v3274, 1.0
        %v3352 = vlog2.pop %v3351
        %v3353 = vmul.f32 %v3352, 0.6931472
        %v3354 = vmul.f32 -0.5, %v3274
        %v3355 = vadd.f32 %v3354, 1.0
        %v3356 = vmul.f32 %v3355, %v3274
        %v3357 = vand.u32 2147483647, %v3274
        %vm3358 = vcmp.lt.f32.partialorder %v3357, 0.0004427343
        %v3359 = vsel %vm3358, %v3356, %v3353
        %v3360 = vadd.f32 %v3276, 1.0
        %v3361 = vlog2.pop %v3360
        %v3362 = vmul.f32 %v3361, 0.6931472
        %v3363 = vmul.f32 -0.5, %v3276
        %v3364 = vadd.f32 %v3363, 1.0
        %v3365 = vmul.f32 %v3364, %v3276
        %v3366 = vand.u32 2147483647, %v3276
        %vm3367 = vcmp.lt.f32.partialorder %v3366, 0.0004427343
        %v3368 = vsel %vm3367, %v3365, %v3362
        %v3369 = vadd.f32 %v3278, 1.0
        %v3370 = vlog2.pop %v3369
        %v3371 = vmul.f32 %v3370, 0.6931472
        %v3372 = vmul.f32 -0.5, %v3278
        %v3373 = vadd.f32 %v3372, 1.0
        %v3374 = vmul.f32 %v3373, %v3278
        %v3375 = vand.u32 2147483647, %v3278
        %vm3376 = vcmp.lt.f32.partialorder %v3375, 0.0004427343
        %v3377 = vsel %vm3376, %v3374, %v3371
        %v3378 = vadd.f32 %v3280, 1.0
        %v3379 = vlog2.pop %v3378
        %v3380 = vmul.f32 %v3379, 0.6931472
        %v3381 = vmul.f32 -0.5, %v3280
        %v3382 = vadd.f32 %v3381, 1.0
        %v3383 = vmul.f32 %v3382, %v3280
        %v3384 = vand.u32 2147483647, %v3280
        %vm3385 = vcmp.lt.f32.partialorder %v3384, 0.0004427343
        %v3386 = vsel %vm3385, %v3383, %v3380
        %v3387 = vadd.f32 %v3282, 1.0
        %v3388 = vlog2.pop %v3387
        %v3389 = vmul.f32 %v3388, 0.6931472
        %v3390 = vmul.f32 -0.5, %v3282
        %v3391 = vadd.f32 %v3390, 1.0
        %v3392 = vmul.f32 %v3391, %v3282
        %v3393 = vand.u32 2147483647, %v3282
        %vm3394 = vcmp.lt.f32.partialorder %v3393, 0.0004427343
        %v3395 = vsel %vm3394, %v3392, %v3389
        %v3396 = vadd.f32 %v3284, 1.0
        %v3397 = vlog2.pop %v3396
        %v3398 = vmul.f32 %v3397, 0.6931472
        %v3399 = vmul.f32 -0.5, %v3284
        %v3400 = vadd.f32 %v3399, 1.0
        %v3401 = vmul.f32 %v3400, %v3284
        %v3402 = vand.u32 2147483647, %v3284
        %vm3403 = vcmp.lt.f32.partialorder %v3402, 0.0004427343
        %v3404 = vsel %vm3403, %v3401, %v3398
        %v3405 = vadd.f32 %v3286, 1.0
        %v3406 = vlog2.pop %v3405
        %v3407 = vmul.f32 %v3406, 0.6931472
        %v3408 = vmul.f32 -0.5, %v3286
        %v3409 = vadd.f32 %v3408, 1.0
        %v3410 = vmul.f32 %v3409, %v3286
        %v3411 = vand.u32 2147483647, %v3286
        %vm3412 = vcmp.lt.f32.partialorder %v3411, 0.0004427343
        %v3413 = vsel %vm3412, %v3410, %v3407
        %v3414 = vadd.f32 %v3288, 1.0
        %v3415 = vlog2.pop %v3414
        %v3416 = vmul.f32 %v3415, 0.6931472
        %v3417 = vmul.f32 -0.5, %v3288
        %v3418 = vadd.f32 %v3417, 1.0
        %v3419 = vmul.f32 %v3418, %v3288
        %v3420 = vand.u32 2147483647, %v3288
        %vm3421 = vcmp.lt.f32.partialorder %v3420, 0.0004427343
        %v3422 = vsel %vm3421, %v3419, %v3416
        %v3423 = vadd.f32 %v3290, 1.0
        %v3424 = vlog2.pop %v3423
        %v3425 = vmul.f32 %v3424, 0.6931472
        %v3426 = vmul.f32 -0.5, %v3290
        %v3427 = vadd.f32 %v3426, 1.0
        %v3428 = vmul.f32 %v3427, %v3290
        %v3429 = vand.u32 2147483647, %v3290
        %vm3430 = vcmp.lt.f32.partialorder %v3429, 0.0004427343
        %v3431 = vsel %vm3430, %v3428, %v3425
        %v3432 = vadd.f32 %v3292, 1.0
        %v3433 = vlog2.pop %v3432
        %v3434 = vmul.f32 %v3433, 0.6931472
        %v3435 = vmul.f32 -0.5, %v3292
        %v3436 = vadd.f32 %v3435, 1.0
        %v3437 = vmul.f32 %v3436, %v3292
        %v3438 = vand.u32 2147483647, %v3292
        %vm3439 = vcmp.lt.f32.partialorder %v3438, 0.0004427343
        %v3440 = vsel %vm3439, %v3437, %v3434
        %v3441 = vadd.f32 %v3294, 1.0
        %v3442 = vlog2.pop %v3441
        %v3443 = vmul.f32 %v3442, 0.6931472
        %v3444 = vmul.f32 -0.5, %v3294
        %v3445 = vadd.f32 %v3444, 1.0
        %v3446 = vmul.f32 %v3445, %v3294
        %v3447 = vand.u32 2147483647, %v3294
        %vm3448 = vcmp.lt.f32.partialorder %v3447, 0.0004427343
        %v3449 = vsel %vm3448, %v3446, %v3443
        %v3450 = vadd.f32 %v3296, 1.0
        %v3451 = vlog2.pop %v3450
        %v3452 = vmul.f32 %v3451, 0.6931472
        %v3453 = vmul.f32 -0.5, %v3296
        %v3454 = vadd.f32 %v3453, 1.0
        %v3455 = vmul.f32 %v3454, %v3296
        %v3456 = vand.u32 2147483647, %v3296
        %vm3457 = vcmp.lt.f32.partialorder %v3456, 0.0004427343
        %v3458 = vsel %vm3457, %v3455, %v3452
        %v3459 = vadd.f32 %v3298, 1.0
        %v3460 = vlog2.pop %v3459
        %v3461 = vmul.f32 %v3460, 0.6931472
        %v3462 = vmul.f32 -0.5, %v3298
        %v3463 = vadd.f32 %v3462, 1.0
        %v3464 = vmul.f32 %v3463, %v3298
        %v3465 = vand.u32 2147483647, %v3298
        %vm3466 = vcmp.lt.f32.partialorder %v3465, 0.0004427343
        %v3467 = vsel %vm3466, %v3464, %v3461
        %v3468 = vadd.f32 %v3300, 1.0
        %v3469 = vlog2.pop %v3468
        %v3470 = vmul.f32 %v3469, 0.6931472
        %v3471 = vmul.f32 -0.5, %v3300
        %v3472 = vadd.f32 %v3471, 1.0
        %v3473 = vmul.f32 %v3472, %v3300
        %v3474 = vand.u32 2147483647, %v3300
        %vm3475 = vcmp.lt.f32.partialorder %v3474, 0.0004427343
        %v3476 = vsel %vm3475, %v3473, %v3470
        %v3477 = vadd.f32 %v3302, 1.0
        %v3478 = vlog2.pop %v3477
        %v3479 = vmul.f32 %v3478, 0.6931472
        %v3480 = vmul.f32 -0.5, %v3302
        %v3481 = vadd.f32 %v3480, 1.0
        %v3482 = vmul.f32 %v3481, %v3302
        %v3483 = vand.u32 2147483647, %v3302
        %vm3484 = vcmp.lt.f32.partialorder %v3483, 0.0004427343
        %v3485 = vsel %vm3484, %v3482, %v3479
        %v3486 = vadd.f32 %v3304, 1.0
        %v3487 = vlog2.pop %v3486
        %v3488 = vmul.f32 %v3487, 0.6931472
        %v3489 = vmul.f32 -0.5, %v3304
        %v3490 = vadd.f32 %v3489, 1.0
        %v3491 = vmul.f32 %v3490, %v3304
        %v3492 = vand.u32 2147483647, %v3304
        %vm3493 = vcmp.lt.f32.partialorder %v3492, 0.0004427343
        %v3494 = vsel %vm3493, %v3491, %v3488
        %v3495 = vadd.f32 %v3306, 1.0
        %v3496 = vlog2.pop %v3495
        %v3497 = vmul.f32 %v3496, 0.6931472
        %v3498 = vmul.f32 -0.5, %v3306
        %v3499 = vadd.f32 %v3498, 1.0
        %v3500 = vmul.f32 %v3499, %v3306
        %v3501 = vand.u32 2147483647, %v3306
        %vm3502 = vcmp.lt.f32.partialorder %v3501, 0.0004427343
        %v3503 = vsel %vm3502, %v3500, %v3497
        %v3504 = vadd.f32 %v3308, 1.0
        %v3505 = vlog2.pop %v3504
        %v3506 = vmul.f32 %v3505, 0.6931472
        %v3507 = vmul.f32 -0.5, %v3308
        %v3508 = vadd.f32 %v3507, 1.0
        %v3509 = vmul.f32 %v3508, %v3308
        %v3510 = vand.u32 2147483647, %v3308
        %vm3511 = vcmp.lt.f32.partialorder %v3510, 0.0004427343
        %v3512 = vsel %vm3511, %v3509, %v3506
        %v3513 = vadd.f32 %v3310, 1.0
        %v3514 = vlog2.pop %v3513
        %v3515 = vmul.f32 %v3514, 0.6931472
        %v3516 = vmul.f32 -0.5, %v3310
        %v3517 = vadd.f32 %v3516, 1.0
        %v3518 = vmul.f32 %v3517, %v3310
        %v3519 = vand.u32 2147483647, %v3310
        %vm3520 = vcmp.lt.f32.partialorder %v3519, 0.0004427343
        %v3521 = vsel %vm3520, %v3518, %v3515
        %v3522 = vadd.f32 %v3312, 1.0
        %v3523 = vlog2.pop %v3522
        %v3524 = vmul.f32 %v3523, 0.6931472
        %v3525 = vmul.f32 -0.5, %v3312
        %v3526 = vadd.f32 %v3525, 1.0
        %v3527 = vmul.f32 %v3526, %v3312
        %v3528 = vand.u32 2147483647, %v3312
        %vm3529 = vcmp.lt.f32.partialorder %v3528, 0.0004427343
        %v3530 = vsel %vm3529, %v3527, %v3524
        %v3531 = vadd.f32 %v3314, 1.0
        %v3532 = vlog2.pop %v3531
        %v3533 = vmul.f32 %v3532, 0.6931472
        %v3534 = vmul.f32 -0.5, %v3314
        %v3535 = vadd.f32 %v3534, 1.0
        %v3536 = vmul.f32 %v3535, %v3314
        %v3537 = vand.u32 2147483647, %v3314
        %vm3538 = vcmp.lt.f32.partialorder %v3537, 0.0004427343
        %v3539 = vsel %vm3538, %v3536, %v3533
        %v3540 = vadd.f32 %v3316, 1.0
        %v3541 = vlog2.pop %v3540
        %v3542 = vmul.f32 %v3541, 0.6931472
        %v3543 = vmul.f32 -0.5, %v3316
        %v3544 = vadd.f32 %v3543, 1.0
        %v3545 = vmul.f32 %v3544, %v3316
        %v3546 = vand.u32 2147483647, %v3316
        %vm3547 = vcmp.lt.f32.partialorder %v3546, 0.0004427343
        %v3548 = vsel %vm3547, %v3545, %v3542
        %v3549 = vadd.f32 %v3318, 1.0
        %v3550 = vlog2.pop %v3549
        %v3551 = vmul.f32 %v3550, 0.6931472
        %v3552 = vmul.f32 -0.5, %v3318
        %v3553 = vadd.f32 %v3552, 1.0
        %v3554 = vmul.f32 %v3553, %v3318
        %v3555 = vand.u32 2147483647, %v3318
        %vm3556 = vcmp.lt.f32.partialorder %v3555, 0.0004427343
        %v3557 = vsel %vm3556, %v3554, %v3551
        %v3558 = vadd.f32 %v3320, 1.0
        %v3559 = vlog2.pop %v3558
        %v3560 = vmul.f32 %v3559, 0.6931472
        %v3561 = vmul.f32 -0.5, %v3320
        %v3562 = vadd.f32 %v3561, 1.0
        %v3563 = vmul.f32 %v3562, %v3320
        %v3564 = vand.u32 2147483647, %v3320
        %vm3565 = vcmp.lt.f32.partialorder %v3564, 0.0004427343
        %v3566 = vsel %vm3565, %v3563, %v3560
        %v3567 = vadd.f32 %v3322, 1.0
        %v3568 = vlog2.pop %v3567
        %v3569 = vmul.f32 %v3568, 0.6931472
        %v3570 = vmul.f32 -0.5, %v3322
        %v3571 = vadd.f32 %v3570, 1.0
        %v3572 = vmul.f32 %v3571, %v3322
        %v3573 = vand.u32 2147483647, %v3322
        %vm3574 = vcmp.lt.f32.partialorder %v3573, 0.0004427343
        %v3575 = vsel %vm3574, %v3572, %v3569
        %v3576 = vadd.f32 %v3324, 1.0
        %v3577 = vlog2.pop %v3576
        %v3578 = vmul.f32 %v3577, 0.6931472
        %v3579 = vmul.f32 -0.5, %v3324
        %v3580 = vadd.f32 %v3579, 1.0
        %v3581 = vmul.f32 %v3580, %v3324
        %v3582 = vand.u32 2147483647, %v3324
        %vm3583 = vcmp.lt.f32.partialorder %v3582, 0.0004427343
        %v3584 = vsel %vm3583, %v3581, %v3578
        %v3585 = vadd.f32 %v3326, 1.0
        %v3586 = vlog2.pop %v3585
        %v3587 = vmul.f32 %v3586, 0.6931472
        %v3588 = vmul.f32 -0.5, %v3326
        %v3589 = vadd.f32 %v3588, 1.0
        %v3590 = vmul.f32 %v3589, %v3326
        %v3591 = vand.u32 2147483647, %v3326
        %vm3592 = vcmp.lt.f32.partialorder %v3591, 0.0004427343
        %v3593 = vsel %vm3592, %v3590, %v3587
        %v3594 = vadd.f32 %v3328, 1.0
        %v3595 = vlog2.pop %v3594
        %v3596 = vmul.f32 %v3595, 0.6931472
        %v3597 = vmul.f32 -0.5, %v3328
        %v3598 = vadd.f32 %v3597, 1.0
        %v3599 = vmul.f32 %v3598, %v3328
        %v3600 = vand.u32 2147483647, %v3328
        %vm3601 = vcmp.lt.f32.partialorder %v3600, 0.0004427343
        %v3602 = vsel %vm3601, %v3599, %v3596
        %v3603 = vadd.f32 %v3330, 1.0
        %v3604 = vlog2.pop %v3603
        %v3605 = vmul.f32 %v3604, 0.6931472
        %v3606 = vmul.f32 -0.5, %v3330
        %v3607 = vadd.f32 %v3606, 1.0
        %v3608 = vmul.f32 %v3607, %v3330
        %v3609 = vand.u32 2147483647, %v3330
        %vm3610 = vcmp.lt.f32.partialorder %v3609, 0.0004427343
        %v3611 = vsel %vm3610, %v3608, %v3605
        %v3612 = vadd.f32 %v3332, 1.0
        %v3613 = vlog2.pop %v3612
        %v3614 = vmul.f32 %v3613, 0.6931472
        %v3615 = vmul.f32 -0.5, %v3332
        %v3616 = vadd.f32 %v3615, 1.0
        %v3617 = vmul.f32 %v3616, %v3332
        %v3618 = vand.u32 2147483647, %v3332
        %vm3619 = vcmp.lt.f32.partialorder %v3618, 0.0004427343
        %v3620 = vsel %vm3619, %v3617, %v3614
        %v3621 = vsel %vm3205, %v3173, %v3341
        %v3622 = vsel %vm3206, %v3174, %v3350
        %v3623 = vsel %vm3207, %v3175, %v3359
        %v3624 = vsel %vm3208, %v3176, %v3368
        %v3625 = vsel %vm3209, %v3177, %v3377
        %v3626 = vsel %vm3210, %v3178, %v3386
        %v3627 = vsel %vm3211, %v3179, %v3395
        %v3628 = vsel %vm3212, %v3180, %v3404
        %v3629 = vsel %vm3213, %v3181, %v3413
        %v3630 = vsel %vm3214, %v3182, %v3422
        %v3631 = vsel %vm3215, %v3183, %v3431
        %v3632 = vsel %vm3216, %v3184, %v3440
        %v3633 = vsel %vm3217, %v3185, %v3449
        %v3634 = vsel %vm3218, %v3186, %v3458
        %v3635 = vsel %vm3219, %v3187, %v3467
        %v3636 = vsel %vm3220, %v3188, %v3476
        %v3637 = vsel %vm3221, %v3189, %v3485
        %v3638 = vsel %vm3222, %v3190, %v3494
        %v3639 = vsel %vm3223, %v3191, %v3503
        %v3640 = vsel %vm3224, %v3192, %v3512
        %v3641 = vsel %vm3225, %v3193, %v3521
        %v3642 = vsel %vm3226, %v3194, %v3530
        %v3643 = vsel %vm3227, %v3195, %v3539
        %v3644 = vsel %vm3228, %v3196, %v3548
        %v3645 = vsel %vm3229, %v3197, %v3557
        %v3646 = vsel %vm3230, %v3198, %v3566
        %v3647 = vsel %vm3231, %v3199, %v3575
        %v3648 = vsel %vm3232, %v3200, %v3584
        %v3649 = vsel %vm3233, %v3201, %v3593
        %v3650 = vsel %vm3234, %v3202, %v3602
        %v3651 = vsel %vm3235, %v3203, %v3611
        %v3652 = vsel %vm3236, %v3204, %v3620
        %v3653 = vtanh.pop %v3621
        %v3654 = vtanh.pop %v3622
        %v3655 = vtanh.pop %v3623
        %v3656 = vtanh.pop %v3624
        %v3657 = vtanh.pop %v3625
        %v3658 = vtanh.pop %v3626
        %v3659 = vtanh.pop %v3627
        %v3660 = vtanh.pop %v3628
        %v3661 = vtanh.pop %v3629
        %v3662 = vtanh.pop %v3630
        %v3663 = vtanh.pop %v3631
        %v3664 = vtanh.pop %v3632
        %v3665 = vtanh.pop %v3633
        %v3666 = vtanh.pop %v3634
        %v3667 = vtanh.pop %v3635
        %v3668 = vtanh.pop %v3636
        %v3669 = vtanh.pop %v3637
        %v3670 = vtanh.pop %v3638
        %v3671 = vtanh.pop %v3639
        %v3672 = vtanh.pop %v3640
        %v3673 = vtanh.pop %v3641
        %v3674 = vtanh.pop %v3642
        %v3675 = vtanh.pop %v3643
        %v3676 = vtanh.pop %v3644
        %v3677 = vtanh.pop %v3645
        %v3678 = vtanh.pop %v3646
        %v3679 = vtanh.pop %v3647
        %v3680 = vtanh.pop %v3648
        %v3681 = vtanh.pop %v3649
        %v3682 = vtanh.pop %v3650
        %v3683 = vtanh.pop %v3651
        %v3684 = vtanh.pop %v3652
        %v3685 = vmul.f32 %v3173, %v3653
        %v3686 = vmul.f32 %v3174, %v3654
        %v3687 = vmul.f32 %v3175, %v3655
        %v3688 = vmul.f32 %v3176, %v3656
        %v3689 = vmul.f32 %v3177, %v3657
        %v3690 = vmul.f32 %v3178, %v3658
        %v3691 = vmul.f32 %v3179, %v3659
        %v3692 = vmul.f32 %v3180, %v3660
        %v3693 = vmul.f32 %v3181, %v3661
        %v3694 = vmul.f32 %v3182, %v3662
        %v3695 = vmul.f32 %v3183, %v3663
        %v3696 = vmul.f32 %v3184, %v3664
        %v3697 = vmul.f32 %v3185, %v3665
        %v3698 = vmul.f32 %v3186, %v3666
        %v3699 = vmul.f32 %v3187, %v3667
        %v3700 = vmul.f32 %v3188, %v3668
        %v3701 = vmul.f32 %v3189, %v3669
        %v3702 = vmul.f32 %v3190, %v3670
        %v3703 = vmul.f32 %v3191, %v3671
        %v3704 = vmul.f32 %v3192, %v3672
        %v3705 = vmul.f32 %v3193, %v3673
        %v3706 = vmul.f32 %v3194, %v3674
        %v3707 = vmul.f32 %v3195, %v3675
        %v3708 = vmul.f32 %v3196, %v3676
        %v3709 = vmul.f32 %v3197, %v3677
        %v3710 = vmul.f32 %v3198, %v3678
        %v3711 = vmul.f32 %v3199, %v3679
        %v3712 = vmul.f32 %v3200, %v3680
        %v3713 = vmul.f32 %v3201, %v3681
        %v3714 = vmul.f32 %v3202, %v3682
        %v3715 = vmul.f32 %v3203, %v3683
        %v3716 = vmul.f32 %v3204, %v3684
        %3717 = vst [vmem:[#allocation3] sm:$0xff] 0.0
        %3718 = vst [vmem:[#allocation3 + $0x8] sm:$0xff] 0.0
        %3719 = vst [vmem:[#allocation3 + $0x10] sm:$0x3] 0.0
        %s3720 = scalar_lea.vmem [#allocation3], 408
        %3721 = vst [vmem:[%s3720] sm:$0xff] 0.0
        %3722 = vst [vmem:[%s3720 + $0x8] sm:$0xff] 0.0
        %3723 = vst [vmem:[%s3720 + $0x10] sm:$0x3] 0.0
        %3724 = vst [vmem:[#allocation3] sm:$0x1] 0.0
        %3725 = vst [vmem:[#allocation3 + $0x18] sm:$0x1] 0.0
        %3726 = vst [vmem:[#allocation3 + $0x30] sm:$0x1] 0.0
        %3727 = vst [vmem:[#allocation3 + $0x48] sm:$0x1] 0.0
        %3728 = vst [vmem:[#allocation3 + $0x60] sm:$0x1] 0.0
        %3729 = vst [vmem:[#allocation3 + $0x78] sm:$0x1] 0.0
        %3730 = vst [vmem:[#allocation3 + $0x90] sm:$0x1] 0.0
        %3731 = vst [vmem:[#allocation3 + $0xa8] sm:$0x1] 0.0
        %3732 = vst [vmem:[#allocation3 + $0xc0] sm:$0x1] 0.0
        %3733 = vst [vmem:[#allocation3 + $0xd8] sm:$0x1] 0.0
        %3734 = vst [vmem:[#allocation3 + $0xf0] sm:$0x1] 0.0
        %3735 = vst [vmem:[#allocation3 + $0x108] sm:$0x1] 0.0
        %3736 = vst [vmem:[#allocation3 + $0x120] sm:$0x1] 0.0
        %3737 = vst [vmem:[#allocation3 + $0x138] sm:$0x1] 0.0
        %3738 = vst [vmem:[#allocation3 + $0x150] sm:$0x1] 0.0
        %3739 = vst [vmem:[#allocation3 + $0x168] sm:$0x1] 0.0
        %3740 = vst [vmem:[#allocation3 + $0x180] sm:$0x1] 0.0
        %3741 = vst [vmem:[#allocation3 + $0x198] sm:$0x1] 0.0
        %3742 = vst [vmem:[#allocation3 + $0x11] sm:$0x1] 0.0
        %3743 = vst [vmem:[#allocation3 + $0x29] sm:$0x1] 0.0
        %3744 = vst [vmem:[#allocation3 + $0x41] sm:$0x1] 0.0
        %3745 = vst [vmem:[#allocation3 + $0x59] sm:$0x1] 0.0
        %3746 = vst [vmem:[#allocation3 + $0x71] sm:$0x1] 0.0
        %3747 = vst [vmem:[#allocation3 + $0x89] sm:$0x1] 0.0
        %3748 = vst [vmem:[#allocation3 + $0xa1] sm:$0x1] 0.0
        %3749 = vst [vmem:[#allocation3 + $0xb9] sm:$0x1] 0.0
        %3750 = vst [vmem:[#allocation3 + $0xd1] sm:$0x1] 0.0
        %3751 = vst [vmem:[#allocation3 + $0xe9] sm:$0x1] 0.0
        %3752 = vst [vmem:[#allocation3 + $0x101] sm:$0x1] 0.0
        %3753 = vst [vmem:[#allocation3 + $0x119] sm:$0x1] 0.0
        %3754 = vst [vmem:[#allocation3 + $0x131] sm:$0x1] 0.0
        %3755 = vst [vmem:[#allocation3 + $0x149] sm:$0x1] 0.0
        %3756 = vst [vmem:[#allocation3 + $0x161] sm:$0x1] 0.0
        %3757 = vst [vmem:[#allocation3 + $0x179] sm:$0x1] 0.0
        %3758 = vst [vmem:[#allocation3 + $0x191] sm:$0x1] 0.0
        %3759 = vst [vmem:[#allocation3 + $0x1a9] sm:$0x1] 0.0
        %s3760 = scalar_lea.vmem [#allocation3], 24
        %3761 = vst [vmem:[%s3760 + $0x1] sm:$0xff] %v3685
        %3762 = vst [vmem:[%s3760 + $0x9] sm:$0xff] %v3686
        %3763 = vst [vmem:[%s3760 + $0x19] sm:$0xff] %v3687
        %3764 = vst [vmem:[%s3760 + $0x21] sm:$0xff] %v3688
        %3765 = vst [vmem:[%s3760 + $0x31] sm:$0xff] %v3689
        %3766 = vst [vmem:[%s3760 + $0x39] sm:$0xff] %v3690
        %3767 = vst [vmem:[%s3760 + $0x49] sm:$0xff] %v3691
        %3768 = vst [vmem:[%s3760 + $0x51] sm:$0xff] %v3692
        %3769 = vst [vmem:[%s3760 + $0x61] sm:$0xff] %v3693
        %3770 = vst [vmem:[%s3760 + $0x69] sm:$0xff] %v3694
        %3771 = vst [vmem:[%s3760 + $0x79] sm:$0xff] %v3695
        %3772 = vst [vmem:[%s3760 + $0x81] sm:$0xff] %v3696
        %3773 = vst [vmem:[%s3760 + $0x91] sm:$0xff] %v3697
        %3774 = vst [vmem:[%s3760 + $0x99] sm:$0xff] %v3698
        %3775 = vst [vmem:[%s3760 + $0xa9] sm:$0xff] %v3699
        %3776 = vst [vmem:[%s3760 + $0xb1] sm:$0xff] %v3700
        %3777 = vst [vmem:[%s3760 + $0xc1] sm:$0xff] %v3701
        %3778 = vst [vmem:[%s3760 + $0xc9] sm:$0xff] %v3702
        %3779 = vst [vmem:[%s3760 + $0xd9] sm:$0xff] %v3703
        %3780 = vst [vmem:[%s3760 + $0xe1] sm:$0xff] %v3704
        %3781 = vst [vmem:[%s3760 + $0xf1] sm:$0xff] %v3705
        %3782 = vst [vmem:[%s3760 + $0xf9] sm:$0xff] %v3706
        %3783 = vst [vmem:[%s3760 + $0x109] sm:$0xff] %v3707
        %3784 = vst [vmem:[%s3760 + $0x111] sm:$0xff] %v3708
        %3785 = vst [vmem:[%s3760 + $0x121] sm:$0xff] %v3709
        %3786 = vst [vmem:[%s3760 + $0x129] sm:$0xff] %v3710
        %3787 = vst [vmem:[%s3760 + $0x139] sm:$0xff] %v3711
        %3788 = vst [vmem:[%s3760 + $0x141] sm:$0xff] %v3712
        %3789 = vst [vmem:[%s3760 + $0x151] sm:$0xff] %v3713
        %3790 = vst [vmem:[%s3760 + $0x159] sm:$0xff] %v3714
        %3791 = vst [vmem:[%s3760 + $0x169] sm:$0xff] %v3715
        %3792 = vst [vmem:[%s3760 + $0x171] sm:$0xff] %v3716
        %v3793 = vld [vmem:[#allocation3] sm:$0xff]
        %v3794 = vld [vmem:[#allocation3 + $0x8] sm:$0xff]
        %v3795 = vld [vmem:[#allocation3 + $0x18] sm:$0xff]
        %v3796 = vld [vmem:[#allocation3 + $0x20] sm:$0xff]
        %v3797 = vld [vmem:[#allocation3 + $0x30] sm:$0xff]
        %v3798 = vld [vmem:[#allocation3 + $0x38] sm:$0xff]
        %v3799 = vld [vmem:[#allocation3 + $0x48] sm:$0xff]
        %v3800 = vld [vmem:[#allocation3 + $0x50] sm:$0xff]
        %v3801 = vld [vmem:[#allocation3 + $0x60] sm:$0xff]
        %v3802 = vld [vmem:[#allocation3 + $0x68] sm:$0xff]
        %v3803 = vld [vmem:[#allocation3 + $0x78] sm:$0xff]
        %v3804 = vld [vmem:[#allocation3 + $0x80] sm:$0xff]
        %v3805 = vld [vmem:[#allocation3 + $0x90] sm:$0xff]
        %v3806 = vld [vmem:[#allocation3 + $0x98] sm:$0xff]
        %v3807 = vld [vmem:[#allocation3 + $0xa8] sm:$0xff]
        %v3808 = vld [vmem:[#allocation3 + $0xb0] sm:$0xff]
        %v3809 = vld [vmem:[#allocation3 + $0xc0] sm:$0xff]
        %v3810 = vld [vmem:[#allocation3 + $0xc8] sm:$0xff]
        %v3811 = vld [vmem:[#allocation3 + $0xd8] sm:$0xff]
        %v3812 = vld [vmem:[#allocation3 + $0xe0] sm:$0xff]
        %v3813 = vld [vmem:[#allocation3 + $0xf0] sm:$0xff]
        %v3814 = vld [vmem:[#allocation3 + $0xf8] sm:$0xff]
        %v3815 = vld [vmem:[#allocation3 + $0x108] sm:$0xff]
        %v3816 = vld [vmem:[#allocation3 + $0x110] sm:$0xff]
        %v3817 = vld [vmem:[#allocation3 + $0x120] sm:$0xff]
        %v3818 = vld [vmem:[#allocation3 + $0x128] sm:$0xff]
        %v3819 = vld [vmem:[#allocation3 + $0x138] sm:$0xff]
        %v3820 = vld [vmem:[#allocation3 + $0x140] sm:$0xff]
        %v3821 = vld [vmem:[#allocation3 + $0x150] sm:$0xff]
        %v3822 = vld [vmem:[#allocation3 + $0x158] sm:$0xff]
        %v3823 = vld [vmem:[#allocation3 + $0x168] sm:$0xff]
        %v3824 = vld [vmem:[#allocation3 + $0x170] sm:$0xff]
        %v3825 = vpack.c.bf16 %v3794, %v3793
        %v3826 = vpack.c.bf16 %v3796, %v3795
        %v3827 = vpack.c.bf16 %v3798, %v3797
        %v3828 = vpack.c.bf16 %v3800, %v3799
        %v3829 = vpack.c.bf16 %v3802, %v3801
        %v3830 = vpack.c.bf16 %v3804, %v3803
        %v3831 = vpack.c.bf16 %v3806, %v3805
        %v3832 = vpack.c.bf16 %v3808, %v3807
        %v3833 = vpack.c.bf16 %v3810, %v3809
        %v3834 = vpack.c.bf16 %v3812, %v3811
        %v3835 = vpack.c.bf16 %v3814, %v3813
        %v3836 = vpack.c.bf16 %v3816, %v3815
        %v3837 = vpack.c.bf16 %v3818, %v3817
        %v3838 = vpack.c.bf16 %v3820, %v3819
        %v3839 = vpack.c.bf16 %v3822, %v3821
        %v3840 = vpack.c.bf16 %v3824, %v3823
        %v3841 = vld [vmem:[#allocation9] sm:$0xf]
        %v3842 = vld [vmem:[#allocation9 + $0x4] sm:$0xf]
        %v3843 = vld [vmem:[#allocation9 + $0x8] sm:$0xf]
        %v3844 = vld [vmem:[#allocation9 + $0xc] sm:$0xf]
        %v3845 = vld [vmem:[#allocation9 + $0x10] sm:$0xf]
        %v3846 = vld [vmem:[#allocation9 + $0x14] sm:$0xf]
        %v3847 = vld [vmem:[#allocation9 + $0x18] sm:$0xf]
        %v3848 = vld [vmem:[#allocation9 + $0x1c] sm:$0xf]
        %v3849 = vld [vmem:[#allocation9 + $0x20] sm:$0xf]
        %v3850 = vld [vmem:[#allocation9 + $0x24] sm:$0xf]
        %v3851 = vld [vmem:[#allocation9 + $0x28] sm:$0xf]
        %v3852 = vld [vmem:[#allocation9 + $0x2c] sm:$0xf]
        %v3853 = vld [vmem:[#allocation9 + $0x30] sm:$0xf]
        %v3854 = vld [vmem:[#allocation9 + $0x34] sm:$0xf]
        %v3855 = vld [vmem:[#allocation9 + $0x38] sm:$0xf]
        %v3856 = vld [vmem:[#allocation9 + $0x3c] sm:$0xf]
        %v3857 = vld [vmem:[#allocation3 + $0x1] sm:$0xff]
        %v3858 = vld [vmem:[#allocation3 + $0x9] sm:$0xff]
        %v3859 = vld [vmem:[#allocation3 + $0x19] sm:$0xff]
        %v3860 = vld [vmem:[#allocation3 + $0x21] sm:$0xff]
        %v3861 = vld [vmem:[#allocation3 + $0x31] sm:$0xff]
        %v3862 = vld [vmem:[#allocation3 + $0x39] sm:$0xff]
        %v3863 = vld [vmem:[#allocation3 + $0x49] sm:$0xff]
        %v3864 = vld [vmem:[#allocation3 + $0x51] sm:$0xff]
        %v3865 = vld [vmem:[#allocation3 + $0x61] sm:$0xff]
        %v3866 = vld [vmem:[#allocation3 + $0x69] sm:$0xff]
        %v3867 = vld [vmem:[#allocation3 + $0x79] sm:$0xff]
        %v3868 = vld [vmem:[#allocation3 + $0x81] sm:$0xff]
        %v3869 = vld [vmem:[#allocation3 + $0x91] sm:$0xff]
        %v3870 = vld [vmem:[#allocation3 + $0x99] sm:$0xff]
        %v3871 = vld [vmem:[#allocation3 + $0xa9] sm:$0xff]
        %v3872 = vld [vmem:[#allocation3 + $0xb1] sm:$0xff]
        %v3873 = vld [vmem:[#allocation3 + $0xc1] sm:$0xff]
        %v3874 = vld [vmem:[#allocation3 + $0xc9] sm:$0xff]
        %v3875 = vld [vmem:[#allocation3 + $0xd9] sm:$0xff]
        %v3876 = vld [vmem:[#allocation3 + $0xe1] sm:$0xff]
        %v3877 = vld [vmem:[#allocation3 + $0xf1] sm:$0xff]
        %v3878 = vld [vmem:[#allocation3 + $0xf9] sm:$0xff]
        %v3879 = vld [vmem:[#allocation3 + $0x109] sm:$0xff]
        %v3880 = vld [vmem:[#allocation3 + $0x111] sm:$0xff]
        %v3881 = vld [vmem:[#allocation3 + $0x121] sm:$0xff]
        %v3882 = vld [vmem:[#allocation3 + $0x129] sm:$0xff]
        %v3883 = vld [vmem:[#allocation3 + $0x139] sm:$0xff]
        %v3884 = vld [vmem:[#allocation3 + $0x141] sm:$0xff]
        %v3885 = vld [vmem:[#allocation3 + $0x151] sm:$0xff]
        %v3886 = vld [vmem:[#allocation3 + $0x159] sm:$0xff]
        %v3887 = vld [vmem:[#allocation3 + $0x169] sm:$0xff]
        %v3888 = vld [vmem:[#allocation3 + $0x171] sm:$0xff]
        %v3889 = vpack.c.bf16 %v3858, %v3857
        %v3890 = vpack.c.bf16 %v3860, %v3859
        %v3891 = vpack.c.bf16 %v3862, %v3861
        %v3892 = vpack.c.bf16 %v3864, %v3863
        %v3893 = vpack.c.bf16 %v3866, %v3865
        %v3894 = vpack.c.bf16 %v3868, %v3867
        %v3895 = vpack.c.bf16 %v3870, %v3869
        %v3896 = vpack.c.bf16 %v3872, %v3871
        %v3897 = vpack.c.bf16 %v3874, %v3873
        %v3898 = vpack.c.bf16 %v3876, %v3875
        %v3899 = vpack.c.bf16 %v3878, %v3877
        %v3900 = vpack.c.bf16 %v3880, %v3879
        %v3901 = vpack.c.bf16 %v3882, %v3881
        %v3902 = vpack.c.bf16 %v3884, %v3883
        %v3903 = vpack.c.bf16 %v3886, %v3885
        %v3904 = vpack.c.bf16 %v3888, %v3887
        %s3905 = scalar_lea.vmem [#allocation9], 64
        %v3906 = vld [vmem:[%s3905] sm:$0xf]
        %v3907 = vld [vmem:[%s3905 + $0x4] sm:$0xf]
        %v3908 = vld [vmem:[%s3905 + $0x8] sm:$0xf]
        %v3909 = vld [vmem:[%s3905 + $0xc] sm:$0xf]
        %v3910 = vld [vmem:[%s3905 + $0x10] sm:$0xf]
        %v3911 = vld [vmem:[%s3905 + $0x14] sm:$0xf]
        %v3912 = vld [vmem:[%s3905 + $0x18] sm:$0xf]
        %v3913 = vld [vmem:[%s3905 + $0x1c] sm:$0xf]
        %v3914 = vld [vmem:[%s3905 + $0x20] sm:$0xf]
        %v3915 = vld [vmem:[%s3905 + $0x24] sm:$0xf]
        %v3916 = vld [vmem:[%s3905 + $0x28] sm:$0xf]
        %v3917 = vld [vmem:[%s3905 + $0x2c] sm:$0xf]
        %v3918 = vld [vmem:[%s3905 + $0x30] sm:$0xf]
        %v3919 = vld [vmem:[%s3905 + $0x34] sm:$0xf]
        %v3920 = vld [vmem:[%s3905 + $0x38] sm:$0xf]
        %v3921 = vld [vmem:[%s3905 + $0x3c] sm:$0xf]
        %v3938 = vunpack.c.l.b16 %v3906
        %v3939 = vunpack.c.l.b16 %v3907
        %v3940 = vunpack.c.l.b16 %v3908
        %v3941 = vunpack.c.l.b16 %v3909
        %v3942 = vunpack.c.l.b16 %v3910
        %v3943 = vunpack.c.l.b16 %v3911
        %v3944 = vunpack.c.l.b16 %v3912
        %v3945 = vunpack.c.l.b16 %v3913
        %v3946 = vunpack.c.l.b16 %v3914
        %v3947 = vunpack.c.l.b16 %v3915
        %v3948 = vunpack.c.l.b16 %v3916
        %v3949 = vunpack.c.l.b16 %v3917
        %v3950 = vunpack.c.l.b16 %v3918
        %v3951 = vunpack.c.l.b16 %v3919
        %v3952 = vunpack.c.l.b16 %v3920
        %v3953 = vunpack.c.l.b16 %v3921
        %v3954 = vpack.c.b16 %v3939, %v3938
        %v3955 = vpack.c.b16 %v3941, %v3940
        %v3956 = vpack.c.b16 %v3943, %v3942
        %v3957 = vpack.c.b16 %v3945, %v3944
        %v3958 = vpack.c.b16 %v3947, %v3946
        %v3959 = vpack.c.b16 %v3949, %v3948
        %v3960 = vpack.c.b16 %v3951, %v3950
        %v3961 = vpack.c.b16 %v3953, %v3952
        %3970 = vmatprep.subr.bf16.mxu0 0
        %3971 = vmatpush1.bf16.msra.mxu0 %v3954
        %3972 = vmatprep.subr.bf16.mxu0 0
        %3973 = vmatpush1.bf16.msra.mxu0 %v3955
        %3974 = vmatprep.subr.bf16.mxu0 0
        %3975 = vmatpush1.bf16.msra.mxu0 %v3956
        %3976 = vmatprep.subr.bf16.mxu0 0
        %3977 = vmatpush1.bf16.msra.mxu0 %v3957
        %3978 = vmatprep.subr.bf16.mxu0 0
        %3979 = vmatpush1.bf16.msra.mxu0 %v3958
        %3980 = vmatprep.subr.bf16.mxu0 0
        %3981 = vmatpush1.bf16.msra.mxu0 %v3959
        %3982 = vmatprep.subr.bf16.mxu0 0
        %3983 = vmatpush1.bf16.msra.mxu0 %v3960
        %3984 = vmatprep.subr.bf16.mxu0 0
        %3985 = vmatpush1.bf16.msra.mxu0 %v3961
        %3986 = vmatprep.subr.bf16.mxu0 0
        %3987 = vmatpush1.bf16.msra.mxu0 0
        %3988 = vmatprep.subr.bf16.mxu0 0
        %3989 = vmatpush1.bf16.msra.mxu0 0
        %3990 = vmatprep.subr.bf16.mxu0 0
        %3991 = vmatpush1.bf16.msra.mxu0 0
        %3992 = vmatprep.subr.bf16.mxu0 0
        %3993 = vmatpush1.bf16.msra.mxu0 0
        %3994 = vmatprep.subr.bf16.mxu0 0
        %3995 = vmatpush1.bf16.msra.mxu0 0
        %3996 = vmatprep.subr.bf16.mxu0 0
        %3997 = vmatpush1.bf16.msra.mxu0 0
        %3998 = vmatprep.subr.bf16.mxu0 0
        %3999 = vmatpush1.bf16.msra.mxu0 0
        %4000 = vmatprep.subr.bf16.mxu0 0
        %4001 = vmatpush1.bf16.msra.mxu0 0
        %4002 = vmatprep.mubr.bf16.mxu0 0
        %4003 = vmatmul.mubr.bf16.gmra.mrb[0].mxu0 %v3889
        %v4004 = vpop.f32.mrb[0].mxu0
        %v4005 = vadd.f32 0.0, %v4004
        %v4006 = vpop.f32.mrb[0].mxu0
        %v4007 = vpop.f32.mrb[0].mxu0
        %v4008 = vadd.f32 0.0, %v4007
        %v4009 = vpop.f32.mrb[0].mxu0
        %4010 = vmatprep.mubr.bf16.mxu0 0
        %4011 = vmatmul.mubr.bf16.gmra.mrb[0].mxu0 %v3890
        %v4012 = vpop.f32.mrb[0].mxu0
        %v4013 = vadd.f32 0.0, %v4012
        %v4014 = vpop.f32.mrb[0].mxu0
        %v4015 = vpop.f32.mrb[0].mxu0
        %v4016 = vadd.f32 0.0, %v4015
        %v4017 = vpop.f32.mrb[0].mxu0
        %4018 = vmatprep.mubr.bf16.mxu0 0
        %4019 = vmatmul.mubr.bf16.gmra.mrb[0].mxu0 %v3891
        %v4020 = vpop.f32.mrb[0].mxu0
        %v4021 = vadd.f32 0.0, %v4020
        %v4022 = vpop.f32.mrb[0].mxu0
        %v4023 = vpop.f32.mrb[0].mxu0
        %v4024 = vadd.f32 0.0, %v4023
        %v4025 = vpop.f32.mrb[0].mxu0
        %4026 = vmatprep.mubr.bf16.mxu0 0
        %4027 = vmatmul.mubr.bf16.gmra.mrb[0].mxu0 %v3892
        %v4028 = vpop.f32.mrb[0].mxu0
        %v4029 = vadd.f32 0.0, %v4028
        %v4030 = vpop.f32.mrb[0].mxu0
        %v4031 = vpop.f32.mrb[0].mxu0
        %v4032 = vadd.f32 0.0, %v4031
        %v4033 = vpop.f32.mrb[0].mxu0
        %4034 = vmatprep.mubr.bf16.mxu0 0
        %4035 = vmatmul.mubr.bf16.gmra.mrb[0].mxu0 %v3893
        %v4036 = vpop.f32.mrb[0].mxu0
        %v4037 = vadd.f32 0.0, %v4036
        %v4038 = vpop.f32.mrb[0].mxu0
        %v4039 = vpop.f32.mrb[0].mxu0
        %v4040 = vadd.f32 0.0, %v4039
        %v4041 = vpop.f32.mrb[0].mxu0
        %4042 = vmatprep.mubr.bf16.mxu0 0
        %4043 = vmatmul.mubr.bf16.gmra.mrb[0].mxu0 %v3894
        %v4044 = vpop.f32.mrb[0].mxu0
        %v4045 = vadd.f32 0.0, %v4044
        %v4046 = vpop.f32.mrb[0].mxu0
        %v4047 = vpop.f32.mrb[0].mxu0
        %v4048 = vadd.f32 0.0, %v4047
        %v4049 = vpop.f32.mrb[0].mxu0
        %4050 = vmatprep.mubr.bf16.mxu0 0
        %4051 = vmatmul.mubr.bf16.gmra.mrb[0].mxu0 %v3895
        %v4052 = vpop.f32.mrb[0].mxu0
        %v4053 = vadd.f32 0.0, %v4052
        %v4054 = vpop.f32.mrb[0].mxu0
        %v4055 = vpop.f32.mrb[0].mxu0
        %v4056 = vadd.f32 0.0, %v4055
        %v4057 = vpop.f32.mrb[0].mxu0
        %4058 = vmatprep.mubr.bf16.mxu0 0
        %4059 = vmatmul.mubr.bf16.gmra.mrb[0].mxu0 %v3896
        %v4060 = vpop.f32.mrb[0].mxu0
        %v4061 = vadd.f32 0.0, %v4060
        %v4062 = vpop.f32.mrb[0].mxu0
        %v4063 = vpop.f32.mrb[0].mxu0
        %v4064 = vadd.f32 0.0, %v4063
        %v4065 = vpop.f32.mrb[0].mxu0
        %4066 = vmatprep.mubr.bf16.mxu0 0
        %4067 = vmatmul.mubr.bf16.gmra.mrb[0].mxu0 %v3897
        %v4068 = vpop.f32.mrb[0].mxu0
        %v4069 = vadd.f32 0.0, %v4068
        %v4070 = vpop.f32.mrb[0].mxu0
        %v4071 = vpop.f32.mrb[0].mxu0
        %v4072 = vadd.f32 0.0, %v4071
        %v4073 = vpop.f32.mrb[0].mxu0
        %4074 = vmatprep.mubr.bf16.mxu0 0
        %4075 = vmatmul.mubr.bf16.gmra.mrb[0].mxu0 %v3898
        %v4076 = vpop.f32.mrb[0].mxu0
        %v4077 = vadd.f32 0.0, %v4076
        %v4078 = vpop.f32.mrb[0].mxu0
        %v4079 = vpop.f32.mrb[0].mxu0
        %v4080 = vadd.f32 0.0, %v4079
        %v4081 = vpop.f32.mrb[0].mxu0
        %4082 = vmatprep.mubr.bf16.mxu0 0
        %4083 = vmatmul.mubr.bf16.gmra.mrb[0].mxu0 %v3899
        %v4084 = vpop.f32.mrb[0].mxu0
        %v4085 = vadd.f32 0.0, %v4084
        %v4086 = vpop.f32.mrb[0].mxu0
        %v4087 = vpop.f32.mrb[0].mxu0
        %v4088 = vadd.f32 0.0, %v4087
        %v4089 = vpop.f32.mrb[0].mxu0
        %4090 = vmatprep.mubr.bf16.mxu0 0
        %4091 = vmatmul.mubr.bf16.gmra.mrb[0].mxu0 %v3900
        %v4092 = vpop.f32.mrb[0].mxu0
        %v4093 = vadd.f32 0.0, %v4092
        %v4094 = vpop.f32.mrb[0].mxu0
        %v4095 = vpop.f32.mrb[0].mxu0
        %v4096 = vadd.f32 0.0, %v4095
        %v4097 = vpop.f32.mrb[0].mxu0
        %4098 = vmatprep.mubr.bf16.mxu0 0
        %4099 = vmatmul.mubr.bf16.gmra.mrb[0].mxu0 %v3901
        %v4100 = vpop.f32.mrb[0].mxu0
        %v4101 = vadd.f32 0.0, %v4100
        %v4102 = vpop.f32.mrb[0].mxu0
        %v4103 = vpop.f32.mrb[0].mxu0
        %v4104 = vadd.f32 0.0, %v4103
        %v4105 = vpop.f32.mrb[0].mxu0
        %4106 = vmatprep.mubr.bf16.mxu0 0
        %4107 = vmatmul.mubr.bf16.gmra.mrb[0].mxu0 %v3902
        %v4108 = vpop.f32.mrb[0].mxu0
        %v4109 = vadd.f32 0.0, %v4108
        %v4110 = vpop.f32.mrb[0].mxu0
        %v4111 = vpop.f32.mrb[0].mxu0
        %v4112 = vadd.f32 0.0, %v4111
        %v4113 = vpop.f32.mrb[0].mxu0
        %4114 = vmatprep.mubr.bf16.mxu0 0
        %4115 = vmatmul.mubr.bf16.gmra.mrb[0].mxu0 %v3903
        %v4116 = vpop.f32.mrb[0].mxu0
        %v4117 = vadd.f32 0.0, %v4116
        %v4118 = vpop.f32.mrb[0].mxu0
        %v4119 = vpop.f32.mrb[0].mxu0
        %v4120 = vadd.f32 0.0, %v4119
        %v4121 = vpop.f32.mrb[0].mxu0
        %4122 = vmatprep.mubr.bf16.mxu0 0
        %4123 = vmatmul.mubr.bf16.gmra.mrb[0].mxu0 %v3904
        %v4124 = vpop.f32.mrb[0].mxu0
        %v4125 = vadd.f32 0.0, %v4124
        %v4126 = vpop.f32.mrb[0].mxu0
        %v4127 = vpop.f32.mrb[0].mxu0
        %v4128 = vadd.f32 0.0, %v4127
        %v4129 = vpop.f32.mrb[0].mxu0
        %4130 = vdwg.mxu0
        %v4147 = vunpack.c.l.b16 %v3841
        %v4148 = vunpack.c.l.b16 %v3842
        %v4149 = vunpack.c.l.b16 %v3843
        %v4150 = vunpack.c.l.b16 %v3844
        %v4151 = vunpack.c.l.b16 %v3845
        %v4152 = vunpack.c.l.b16 %v3846
        %v4153 = vunpack.c.l.b16 %v3847
        %v4154 = vunpack.c.l.b16 %v3848
        %v4155 = vunpack.c.l.b16 %v3849
        %v4156 = vunpack.c.l.b16 %v3850
        %v4157 = vunpack.c.l.b16 %v3851
        %v4158 = vunpack.c.l.b16 %v3852
        %v4159 = vunpack.c.l.b16 %v3853
        %v4160 = vunpack.c.l.b16 %v3854
        %v4161 = vunpack.c.l.b16 %v3855
        %v4162 = vunpack.c.l.b16 %v3856
        %v4163 = vpack.c.b16 %v4148, %v4147
        %v4164 = vpack.c.b16 %v4150, %v4149
        %v4165 = vpack.c.b16 %v4152, %v4151
        %v4166 = vpack.c.b16 %v4154, %v4153
        %v4167 = vpack.c.b16 %v4156, %v4155
        %v4168 = vpack.c.b16 %v4158, %v4157
        %v4169 = vpack.c.b16 %v4160, %v4159
        %v4170 = vpack.c.b16 %v4162, %v4161
        %4179 = vmatprep.subr.bf16.mxu0 0
        %4180 = vmatpush1.bf16.msra.mxu0 %v4163
        %4181 = vmatprep.subr.bf16.mxu0 0
        %4182 = vmatpush1.bf16.msra.mxu0 %v4164
        %4183 = vmatprep.subr.bf16.mxu0 0
        %4184 = vmatpush1.bf16.msra.mxu0 %v4165
        %4185 = vmatprep.subr.bf16.mxu0 0
        %4186 = vmatpush1.bf16.msra.mxu0 %v4166
        %4187 = vmatprep.subr.bf16.mxu0 0
        %4188 = vmatpush1.bf16.msra.mxu0 %v4167
        %4189 = vmatprep.subr.bf16.mxu0 0
        %4190 = vmatpush1.bf16.msra.mxu0 %v4168
        %4191 = vmatprep.subr.bf16.mxu0 0
        %4192 = vmatpush1.bf16.msra.mxu0 %v4169
        %4193 = vmatprep.subr.bf16.mxu0 0
        %4194 = vmatpush1.bf16.msra.mxu0 %v4170
        %4195 = vmatprep.subr.bf16.mxu0 0
        %4196 = vmatpush1.bf16.msra.mxu0 0
        %4197 = vmatprep.subr.bf16.mxu0 0
        %4198 = vmatpush1.bf16.msra.mxu0 0
        %4199 = vmatprep.subr.bf16.mxu0 0
        %4200 = vmatpush1.bf16.msra.mxu0 0
        %4201 = vmatprep.subr.bf16.mxu0 0
        %4202 = vmatpush1.bf16.msra.mxu0 0
        %4203 = vmatprep.subr.bf16.mxu0 0
        %4204 = vmatpush1.bf16.msra.mxu0 0
        %4205 = vmatprep.subr.bf16.mxu0 0
        %4206 = vmatpush1.bf16.msra.mxu0 0
        %4207 = vmatprep.subr.bf16.mxu0 0
        %4208 = vmatpush1.bf16.msra.mxu0 0
        %4209 = vmatprep.subr.bf16.mxu0 0
        %4210 = vmatpush1.bf16.msra.mxu0 0
        %4211 = vmatprep.mubr.bf16.mxu0 0
        %4212 = vmatmul.mubr.bf16.gmra.mrb[0].mxu0 %v3825
        %v4213 = vpop.f32.mrb[0].mxu0
        %v4214 = vadd.f32 %v4005, %v4213
        %v4215 = vpop.f32.mrb[0].mxu0
        %v4216 = vpop.f32.mrb[0].mxu0
        %v4217 = vadd.f32 %v4008, %v4216
        %v4218 = vpop.f32.mrb[0].mxu0
        %4219 = vmatprep.mubr.bf16.mxu0 0
        %4220 = vmatmul.mubr.bf16.gmra.mrb[0].mxu0 %v3826
        %v4221 = vpop.f32.mrb[0].mxu0
        %v4222 = vadd.f32 %v4013, %v4221
        %v4223 = vpop.f32.mrb[0].mxu0
        %v4224 = vpop.f32.mrb[0].mxu0
        %v4225 = vadd.f32 %v4016, %v4224
        %v4226 = vpop.f32.mrb[0].mxu0
        %4227 = vmatprep.mubr.bf16.mxu0 0
        %4228 = vmatmul.mubr.bf16.gmra.mrb[0].mxu0 %v3827
        %v4229 = vpop.f32.mrb[0].mxu0
        %v4230 = vadd.f32 %v4021, %v4229
        %v4231 = vpop.f32.mrb[0].mxu0
        %v4232 = vpop.f32.mrb[0].mxu0
        %v4233 = vadd.f32 %v4024, %v4232
        %v4234 = vpop.f32.mrb[0].mxu0
        %4235 = vmatprep.mubr.bf16.mxu0 0
        %4236 = vmatmul.mubr.bf16.gmra.mrb[0].mxu0 %v3828
        %v4237 = vpop.f32.mrb[0].mxu0
        %v4238 = vadd.f32 %v4029, %v4237
        %v4239 = vpop.f32.mrb[0].mxu0
        %v4240 = vpop.f32.mrb[0].mxu0
        %v4241 = vadd.f32 %v4032, %v4240
        %v4242 = vpop.f32.mrb[0].mxu0
        %4243 = vmatprep.mubr.bf16.mxu0 0
        %4244 = vmatmul.mubr.bf16.gmra.mrb[0].mxu0 %v3829
        %v4245 = vpop.f32.mrb[0].mxu0
        %v4246 = vadd.f32 %v4037, %v4245
        %v4247 = vpop.f32.mrb[0].mxu0
        %v4248 = vpop.f32.mrb[0].mxu0
        %v4249 = vadd.f32 %v4040, %v4248
        %v4250 = vpop.f32.mrb[0].mxu0
        %4251 = vmatprep.mubr.bf16.mxu0 0
        %4252 = vmatmul.mubr.bf16.gmra.mrb[0].mxu0 %v3830
        %v4253 = vpop.f32.mrb[0].mxu0
        %v4254 = vadd.f32 %v4045, %v4253
        %v4255 = vpop.f32.mrb[0].mxu0
        %v4256 = vpop.f32.mrb[0].mxu0
        %v4257 = vadd.f32 %v4048, %v4256
        %v4258 = vpop.f32.mrb[0].mxu0
        %4259 = vmatprep.mubr.bf16.mxu0 0
        %4260 = vmatmul.mubr.bf16.gmra.mrb[0].mxu0 %v3831
        %v4261 = vpop.f32.mrb[0].mxu0
        %v4262 = vadd.f32 %v4053, %v4261
        %v4263 = vpop.f32.mrb[0].mxu0
        %v4264 = vpop.f32.mrb[0].mxu0
        %v4265 = vadd.f32 %v4056, %v4264
        %v4266 = vpop.f32.mrb[0].mxu0
        %4267 = vmatprep.mubr.bf16.mxu0 0
        %4268 = vmatmul.mubr.bf16.gmra.mrb[0].mxu0 %v3832
        %v4269 = vpop.f32.mrb[0].mxu0
        %v4270 = vadd.f32 %v4061, %v4269
        %v4271 = vpop.f32.mrb[0].mxu0
        %v4272 = vpop.f32.mrb[0].mxu0
        %v4273 = vadd.f32 %v4064, %v4272
        %v4274 = vpop.f32.mrb[0].mxu0
        %4275 = vmatprep.mubr.bf16.mxu0 0
        %4276 = vmatmul.mubr.bf16.gmra.mrb[0].mxu0 %v3833
        %v4277 = vpop.f32.mrb[0].mxu0
        %v4278 = vadd.f32 %v4069, %v4277
        %v4279 = vpop.f32.mrb[0].mxu0
        %v4280 = vpop.f32.mrb[0].mxu0
        %v4281 = vadd.f32 %v4072, %v4280
        %v4282 = vpop.f32.mrb[0].mxu0
        %4283 = vmatprep.mubr.bf16.mxu0 0
        %4284 = vmatmul.mubr.bf16.gmra.mrb[0].mxu0 %v3834
        %v4285 = vpop.f32.mrb[0].mxu0
        %v4286 = vadd.f32 %v4077, %v4285
        %v4287 = vpop.f32.mrb[0].mxu0
        %v4288 = vpop.f32.mrb[0].mxu0
        %v4289 = vadd.f32 %v4080, %v4288
        %v4290 = vpop.f32.mrb[0].mxu0
        %4291 = vmatprep.mubr.bf16.mxu0 0
        %4292 = vmatmul.mubr.bf16.gmra.mrb[0].mxu0 %v3835
        %v4293 = vpop.f32.mrb[0].mxu0
        %v4294 = vadd.f32 %v4085, %v4293
        %v4295 = vpop.f32.mrb[0].mxu0
        %v4296 = vpop.f32.mrb[0].mxu0
        %v4297 = vadd.f32 %v4088, %v4296
        %v4298 = vpop.f32.mrb[0].mxu0
        %4299 = vmatprep.mubr.bf16.mxu0 0
        %4300 = vmatmul.mubr.bf16.gmra.mrb[0].mxu0 %v3836
        %v4301 = vpop.f32.mrb[0].mxu0
        %v4302 = vadd.f32 %v4093, %v4301
        %v4303 = vpop.f32.mrb[0].mxu0
        %v4304 = vpop.f32.mrb[0].mxu0
        %v4305 = vadd.f32 %v4096, %v4304
        %v4306 = vpop.f32.mrb[0].mxu0
        %4307 = vmatprep.mubr.bf16.mxu0 0
        %4308 = vmatmul.mubr.bf16.gmra.mrb[0].mxu0 %v3837
        %v4309 = vpop.f32.mrb[0].mxu0
        %v4310 = vadd.f32 %v4101, %v4309
        %v4311 = vpop.f32.mrb[0].mxu0
        %v4312 = vpop.f32.mrb[0].mxu0
        %v4313 = vadd.f32 %v4104, %v4312
        %v4314 = vpop.f32.mrb[0].mxu0
        %4315 = vmatprep.mubr.bf16.mxu0 0
        %4316 = vmatmul.mubr.bf16.gmra.mrb[0].mxu0 %v3838
        %v4317 = vpop.f32.mrb[0].mxu0
        %v4318 = vadd.f32 %v4109, %v4317
        %v4319 = vpop.f32.mrb[0].mxu0
        %v4320 = vpop.f32.mrb[0].mxu0
        %v4321 = vadd.f32 %v4112, %v4320
        %v4322 = vpop.f32.mrb[0].mxu0
        %4323 = vmatprep.mubr.bf16.mxu0 0
        %4324 = vmatmul.mubr.bf16.gmra.mrb[0].mxu0 %v3839
        %v4325 = vpop.f32.mrb[0].mxu0
        %v4326 = vadd.f32 %v4117, %v4325
        %v4327 = vpop.f32.mrb[0].mxu0
        %v4328 = vpop.f32.mrb[0].mxu0
        %v4329 = vadd.f32 %v4120, %v4328
        %v4330 = vpop.f32.mrb[0].mxu0
        %4331 = vmatprep.mubr.bf16.mxu0 0
        %4332 = vmatmul.mubr.bf16.gmra.mrb[0].mxu0 %v3840
        %v4333 = vpop.f32.mrb[0].mxu0
        %v4334 = vadd.f32 %v4125, %v4333
        %v4335 = vpop.f32.mrb[0].mxu0
        %v4336 = vpop.f32.mrb[0].mxu0
        %v4337 = vadd.f32 %v4128, %v4336
        %v4338 = vpop.f32.mrb[0].mxu0
        %4339 = vdwg.mxu0
        %v4340 = vld [vmem:[#allocation3 + $0x2] sm:$0xff]
        %v4341 = vld [vmem:[#allocation3 + $0xa] sm:$0xff]
        %v4342 = vld [vmem:[#allocation3 + $0x1a] sm:$0xff]
        %v4343 = vld [vmem:[#allocation3 + $0x22] sm:$0xff]
        %v4344 = vld [vmem:[#allocation3 + $0x32] sm:$0xff]
        %v4345 = vld [vmem:[#allocation3 + $0x3a] sm:$0xff]
        %v4346 = vld [vmem:[#allocation3 + $0x4a] sm:$0xff]
        %v4347 = vld [vmem:[#allocation3 + $0x52] sm:$0xff]
        %v4348 = vld [vmem:[#allocation3 + $0x62] sm:$0xff]
        %v4349 = vld [vmem:[#allocation3 + $0x6a] sm:$0xff]
        %v4350 = vld [vmem:[#allocation3 + $0x7a] sm:$0xff]
        %v4351 = vld [vmem:[#allocation3 + $0x82] sm:$0xff]
        %v4352 = vld [vmem:[#allocation3 + $0x92] sm:$0xff]
        %v4353 = vld [vmem:[#allocation3 + $0x9a] sm:$0xff]
        %v4354 = vld [vmem:[#allocation3 + $0xaa] sm:$0xff]
        %v4355 = vld [vmem:[#allocation3 + $0xb2] sm:$0xff]
        %v4356 = vld [vmem:[#allocation3 + $0xc2] sm:$0xff]
        %v4357 = vld [vmem:[#allocation3 + $0xca] sm:$0xff]
        %v4358 = vld [vmem:[#allocation3 + $0xda] sm:$0xff]
        %v4359 = vld [vmem:[#allocation3 + $0xe2] sm:$0xff]
        %v4360 = vld [vmem:[#allocation3 + $0xf2] sm:$0xff]
        %v4361 = vld [vmem:[#allocation3 + $0xfa] sm:$0xff]
        %v4362 = vld [vmem:[#allocation3 + $0x10a] sm:$0xff]
        %v4363 = vld [vmem:[#allocation3 + $0x112] sm:$0xff]
        %v4364 = vld [vmem:[#allocation3 + $0x122] sm:$0xff]
        %v4365 = vld [vmem:[#allocation3 + $0x12a] sm:$0xff]
        %v4366 = vld [vmem:[#allocation3 + $0x13a] sm:$0xff]
        %v4367 = vld [vmem:[#allocation3 + $0x142] sm:$0xff]
        %v4368 = vld [vmem:[#allocation3 + $0x152] sm:$0xff]
        %v4369 = vld [vmem:[#allocation3 + $0x15a] sm:$0xff]
        %v4370 = vld [vmem:[#allocation3 + $0x16a] sm:$0xff]
        %v4371 = vld [vmem:[#allocation3 + $0x172] sm:$0xff]
        %v4372 = vpack.c.bf16 %v4341, %v4340
        %v4373 = vpack.c.bf16 %v4343, %v4342
        %v4374 = vpack.c.bf16 %v4345, %v4344
        %v4375 = vpack.c.bf16 %v4347, %v4346
        %v4376 = vpack.c.bf16 %v4349, %v4348
        %v4377 = vpack.c.bf16 %v4351, %v4350
        %v4378 = vpack.c.bf16 %v4353, %v4352
        %v4379 = vpack.c.bf16 %v4355, %v4354
        %v4380 = vpack.c.bf16 %v4357, %v4356
        %v4381 = vpack.c.bf16 %v4359, %v4358
        %v4382 = vpack.c.bf16 %v4361, %v4360
        %v4383 = vpack.c.bf16 %v4363, %v4362
        %v4384 = vpack.c.bf16 %v4365, %v4364
        %v4385 = vpack.c.bf16 %v4367, %v4366
        %v4386 = vpack.c.bf16 %v4369, %v4368
        %v4387 = vpack.c.bf16 %v4371, %v4370
        %s4388 = scalar_lea.vmem [#allocation9], 128
        %v4389 = vld [vmem:[%s4388] sm:$0xf]
        %v4390 = vld [vmem:[%s4388 + $0x4] sm:$0xf]
        %v4391 = vld [vmem:[%s4388 + $0x8] sm:$0xf]
        %v4392 = vld [vmem:[%s4388 + $0xc] sm:$0xf]
        %v4393 = vld [vmem:[%s4388 + $0x10] sm:$0xf]
        %v4394 = vld [vmem:[%s4388 + $0x14] sm:$0xf]
        %v4395 = vld [vmem:[%s4388 + $0x18] sm:$0xf]
        %v4396 = vld [vmem:[%s4388 + $0x1c] sm:$0xf]
        %v4397 = vld [vmem:[%s4388 + $0x20] sm:$0xf]
        %v4398 = vld [vmem:[%s4388 + $0x24] sm:$0xf]
        %v4399 = vld [vmem:[%s4388 + $0x28] sm:$0xf]
        %v4400 = vld [vmem:[%s4388 + $0x2c] sm:$0xf]
        %v4401 = vld [vmem:[%s4388 + $0x30] sm:$0xf]
        %v4402 = vld [vmem:[%s4388 + $0x34] sm:$0xf]
        %v4403 = vld [vmem:[%s4388 + $0x38] sm:$0xf]
        %v4404 = vld [vmem:[%s4388 + $0x3c] sm:$0xf]
        %v4421 = vunpack.c.l.b16 %v4389
        %v4422 = vunpack.c.l.b16 %v4390
        %v4423 = vunpack.c.l.b16 %v4391
        %v4424 = vunpack.c.l.b16 %v4392
        %v4425 = vunpack.c.l.b16 %v4393
        %v4426 = vunpack.c.l.b16 %v4394
        %v4427 = vunpack.c.l.b16 %v4395
        %v4428 = vunpack.c.l.b16 %v4396
        %v4429 = vunpack.c.l.b16 %v4397
        %v4430 = vunpack.c.l.b16 %v4398
        %v4431 = vunpack.c.l.b16 %v4399
        %v4432 = vunpack.c.l.b16 %v4400
        %v4433 = vunpack.c.l.b16 %v4401
        %v4434 = vunpack.c.l.b16 %v4402
        %v4435 = vunpack.c.l.b16 %v4403
        %v4436 = vunpack.c.l.b16 %v4404
        %v4437 = vpack.c.b16 %v4422, %v4421
        %v4438 = vpack.c.b16 %v4424, %v4423
        %v4439 = vpack.c.b16 %v4426, %v4425
        %v4440 = vpack.c.b16 %v4428, %v4427
        %v4441 = vpack.c.b16 %v4430, %v4429
        %v4442 = vpack.c.b16 %v4432, %v4431
        %v4443 = vpack.c.b16 %v4434, %v4433
        %v4444 = vpack.c.b16 %v4436, %v4435
        %4453 = vmatprep.subr.bf16.mxu0 0
        %4454 = vmatpush1.bf16.msra.mxu0 %v4437
        %4455 = vmatprep.subr.bf16.mxu0 0
        %4456 = vmatpush1.bf16.msra.mxu0 %v4438
        %4457 = vmatprep.subr.bf16.mxu0 0
        %4458 = vmatpush1.bf16.msra.mxu0 %v4439
        %4459 = vmatprep.subr.bf16.mxu0 0
        %4460 = vmatpush1.bf16.msra.mxu0 %v4440
        %4461 = vmatprep.subr.bf16.mxu0 0
        %4462 = vmatpush1.bf16.msra.mxu0 %v4441
        %4463 = vmatprep.subr.bf16.mxu0 0
        %4464 = vmatpush1.bf16.msra.mxu0 %v4442
        %4465 = vmatprep.subr.bf16.mxu0 0
        %4466 = vmatpush1.bf16.msra.mxu0 %v4443
        %4467 = vmatprep.subr.bf16.mxu0 0
        %4468 = vmatpush1.bf16.msra.mxu0 %v4444
        %4469 = vmatprep.subr.bf16.mxu0 0
        %4470 = vmatpush1.bf16.msra.mxu0 0
        %4471 = vmatprep.subr.bf16.mxu0 0
        %4472 = vmatpush1.bf16.msra.mxu0 0
        %4473 = vmatprep.subr.bf16.mxu0 0
        %4474 = vmatpush1.bf16.msra.mxu0 0
        %4475 = vmatprep.subr.bf16.mxu0 0
        %4476 = vmatpush1.bf16.msra.mxu0 0
        %4477 = vmatprep.subr.bf16.mxu0 0
        %4478 = vmatpush1.bf16.msra.mxu0 0
        %4479 = vmatprep.subr.bf16.mxu0 0
        %4480 = vmatpush1.bf16.msra.mxu0 0
        %4481 = vmatprep.subr.bf16.mxu0 0
        %4482 = vmatpush1.bf16.msra.mxu0 0
        %4483 = vmatprep.subr.bf16.mxu0 0
        %4484 = vmatpush1.bf16.msra.mxu0 0
        %4485 = vmatprep.mubr.bf16.mxu0 0
        %4486 = vmatmul.mubr.bf16.gmra.mrb[0].mxu0 %v4372
        %v4487 = vpop.f32.mrb[0].mxu0
        %v4488 = vadd.f32 0.0, %v4487
        %v4489 = vpop.f32.mrb[0].mxu0
        %v4490 = vpop.f32.mrb[0].mxu0
        %v4491 = vadd.f32 0.0, %v4490
        %v4492 = vpop.f32.mrb[0].mxu0
        %4493 = vmatprep.mubr.bf16.mxu0 0
        %4494 = vmatmul.mubr.bf16.gmra.mrb[0].mxu0 %v4373
        %v4495 = vpop.f32.mrb[0].mxu0
        %v4496 = vadd.f32 0.0, %v4495
        %v4497 = vpop.f32.mrb[0].mxu0
        %v4498 = vpop.f32.mrb[0].mxu0
        %v4499 = vadd.f32 0.0, %v4498
        %v4500 = vpop.f32.mrb[0].mxu0
        %4501 = vmatprep.mubr.bf16.mxu0 0
        %4502 = vmatmul.mubr.bf16.gmra.mrb[0].mxu0 %v4374
        %v4503 = vpop.f32.mrb[0].mxu0
        %v4504 = vadd.f32 0.0, %v4503
        %v4505 = vpop.f32.mrb[0].mxu0
        %v4506 = vpop.f32.mrb[0].mxu0
        %v4507 = vadd.f32 0.0, %v4506
        %v4508 = vpop.f32.mrb[0].mxu0
        %4509 = vmatprep.mubr.bf16.mxu0 0
        %4510 = vmatmul.mubr.bf16.gmra.mrb[0].mxu0 %v4375
        %v4511 = vpop.f32.mrb[0].mxu0
        %v4512 = vadd.f32 0.0, %v4511
        %v4513 = vpop.f32.mrb[0].mxu0
        %v4514 = vpop.f32.mrb[0].mxu0
        %v4515 = vadd.f32 0.0, %v4514
        %v4516 = vpop.f32.mrb[0].mxu0
        %4517 = vmatprep.mubr.bf16.mxu0 0
        %4518 = vmatmul.mubr.bf16.gmra.mrb[0].mxu0 %v4376
        %v4519 = vpop.f32.mrb[0].mxu0
        %v4520 = vadd.f32 0.0, %v4519
        %v4521 = vpop.f32.mrb[0].mxu0
        %v4522 = vpop.f32.mrb[0].mxu0
        %v4523 = vadd.f32 0.0, %v4522
        %v4524 = vpop.f32.mrb[0].mxu0
        %4525 = vmatprep.mubr.bf16.mxu0 0
        %4526 = vmatmul.mubr.bf16.gmra.mrb[0].mxu0 %v4377
        %v4527 = vpop.f32.mrb[0].mxu0
        %v4528 = vadd.f32 0.0, %v4527
        %v4529 = vpop.f32.mrb[0].mxu0
        %v4530 = vpop.f32.mrb[0].mxu0
        %v4531 = vadd.f32 0.0, %v4530
        %v4532 = vpop.f32.mrb[0].mxu0
        %4533 = vmatprep.mubr.bf16.mxu0 0
        %4534 = vmatmul.mubr.bf16.gmra.mrb[0].mxu0 %v4378
        %v4535 = vpop.f32.mrb[0].mxu0
        %v4536 = vadd.f32 0.0, %v4535
        %v4537 = vpop.f32.mrb[0].mxu0
        %v4538 = vpop.f32.mrb[0].mxu0
        %v4539 = vadd.f32 0.0, %v4538
        %v4540 = vpop.f32.mrb[0].mxu0
        %4541 = vmatprep.mubr.bf16.mxu0 0
        %4542 = vmatmul.mubr.bf16.gmra.mrb[0].mxu0 %v4379
        %v4543 = vpop.f32.mrb[0].mxu0
        %v4544 = vadd.f32 0.0, %v4543
        %v4545 = vpop.f32.mrb[0].mxu0
        %v4546 = vpop.f32.mrb[0].mxu0
        %v4547 = vadd.f32 0.0, %v4546
        %v4548 = vpop.f32.mrb[0].mxu0
        %4549 = vmatprep.mubr.bf16.mxu0 0
        %4550 = vmatmul.mubr.bf16.gmra.mrb[0].mxu0 %v4380
        %v4551 = vpop.f32.mrb[0].mxu0
        %v4552 = vadd.f32 0.0, %v4551
        %v4553 = vpop.f32.mrb[0].mxu0
        %v4554 = vpop.f32.mrb[0].mxu0
        %v4555 = vadd.f32 0.0, %v4554
        %v4556 = vpop.f32.mrb[0].mxu0
        %4557 = vmatprep.mubr.bf16.mxu0 0
        %4558 = vmatmul.mubr.bf16.gmra.mrb[0].mxu0 %v4381
        %v4559 = vpop.f32.mrb[0].mxu0
        %v4560 = vadd.f32 0.0, %v4559
        %v4561 = vpop.f32.mrb[0].mxu0
        %v4562 = vpop.f32.mrb[0].mxu0
        %v4563 = vadd.f32 0.0, %v4562
        %v4564 = vpop.f32.mrb[0].mxu0
        %4565 = vmatprep.mubr.bf16.mxu0 0
        %4566 = vmatmul.mubr.bf16.gmra.mrb[0].mxu0 %v4382
        %v4567 = vpop.f32.mrb[0].mxu0
        %v4568 = vadd.f32 0.0, %v4567
        %v4569 = vpop.f32.mrb[0].mxu0
        %v4570 = vpop.f32.mrb[0].mxu0
        %v4571 = vadd.f32 0.0, %v4570
        %v4572 = vpop.f32.mrb[0].mxu0
        %4573 = vmatprep.mubr.bf16.mxu0 0
        %4574 = vmatmul.mubr.bf16.gmra.mrb[0].mxu0 %v4383
        %v4575 = vpop.f32.mrb[0].mxu0
        %v4576 = vadd.f32 0.0, %v4575
        %v4577 = vpop.f32.mrb[0].mxu0
        %v4578 = vpop.f32.mrb[0].mxu0
        %v4579 = vadd.f32 0.0, %v4578
        %v4580 = vpop.f32.mrb[0].mxu0
        %4581 = vmatprep.mubr.bf16.mxu0 0
        %4582 = vmatmul.mubr.bf16.gmra.mrb[0].mxu0 %v4384
        %v4583 = vpop.f32.mrb[0].mxu0
        %v4584 = vadd.f32 0.0, %v4583
        %v4585 = vpop.f32.mrb[0].mxu0
        %v4586 = vpop.f32.mrb[0].mxu0
        %v4587 = vadd.f32 0.0, %v4586
        %v4588 = vpop.f32.mrb[0].mxu0
        %4589 = vmatprep.mubr.bf16.mxu0 0
        %4590 = vmatmul.mubr.bf16.gmra.mrb[0].mxu0 %v4385
        %v4591 = vpop.f32.mrb[0].mxu0
        %v4592 = vadd.f32 0.0, %v4591
        %v4593 = vpop.f32.mrb[0].mxu0
        %v4594 = vpop.f32.mrb[0].mxu0
        %v4595 = vadd.f32 0.0, %v4594
        %v4596 = vpop.f32.mrb[0].mxu0
        %4597 = vmatprep.mubr.bf16.mxu0 0
        %4598 = vmatmul.mubr.bf16.gmra.mrb[0].mxu0 %v4386
        %v4599 = vpop.f32.mrb[0].mxu0
        %v4600 = vadd.f32 0.0, %v4599
        %v4601 = vpop.f32.mrb[0].mxu0
        %v4602 = vpop.f32.mrb[0].mxu0
        %v4603 = vadd.f32 0.0, %v4602
        %v4604 = vpop.f32.mrb[0].mxu0
        %4605 = vmatprep.mubr.bf16.mxu0 0
        %4606 = vmatmul.mubr.bf16.gmra.mrb[0].mxu0 %v4387
        %v4607 = vpop.f32.mrb[0].mxu0
        %v4608 = vadd.f32 0.0, %v4607
        %v4609 = vpop.f32.mrb[0].mxu0
        %v4610 = vpop.f32.mrb[0].mxu0
        %v4611 = vadd.f32 0.0, %v4610
        %v4612 = vpop.f32.mrb[0].mxu0
        %4613 = vdwg.mxu0
        %v4614 = vadd.f32 %v4214, %v4488
        %v4615 = vadd.f32 %v4217, %v4491
        %v4616 = vadd.f32 %v4222, %v4496
        %v4617 = vadd.f32 %v4225, %v4499
        %v4618 = vadd.f32 %v4230, %v4504
        %v4619 = vadd.f32 %v4233, %v4507
        %v4620 = vadd.f32 %v4238, %v4512
        %v4621 = vadd.f32 %v4241, %v4515
        %v4622 = vadd.f32 %v4246, %v4520
        %v4623 = vadd.f32 %v4249, %v4523
        %v4624 = vadd.f32 %v4254, %v4528
        %v4625 = vadd.f32 %v4257, %v4531
        %v4626 = vadd.f32 %v4262, %v4536
        %v4627 = vadd.f32 %v4265, %v4539
        %v4628 = vadd.f32 %v4270, %v4544
        %v4629 = vadd.f32 %v4273, %v4547
        %v4630 = vadd.f32 %v4278, %v4552
        %v4631 = vadd.f32 %v4281, %v4555
        %v4632 = vadd.f32 %v4286, %v4560
        %v4633 = vadd.f32 %v4289, %v4563
        %v4634 = vadd.f32 %v4294, %v4568
        %v4635 = vadd.f32 %v4297, %v4571
        %v4636 = vadd.f32 %v4302, %v4576
        %v4637 = vadd.f32 %v4305, %v4579
        %v4638 = vadd.f32 %v4310, %v4584
        %v4639 = vadd.f32 %v4313, %v4587
        %v4640 = vadd.f32 %v4318, %v4592
        %v4641 = vadd.f32 %v4321, %v4595
        %v4642 = vadd.f32 %v4326, %v4600
        %v4643 = vadd.f32 %v4329, %v4603
        %v4644 = vadd.f32 %v4334, %v4608
        %v4645 = vadd.f32 %v4337, %v4611
        %v4646 = vld [vmem:[%s3760] sm:$0xff]
        %v4647 = vld [vmem:[%s3760 + $0x8] sm:$0xff]
        %v4648 = vld [vmem:[%s3760 + $0x18] sm:$0xff]
        %v4649 = vld [vmem:[%s3760 + $0x20] sm:$0xff]
        %v4650 = vld [vmem:[%s3760 + $0x30] sm:$0xff]
        %v4651 = vld [vmem:[%s3760 + $0x38] sm:$0xff]
        %v4652 = vld [vmem:[%s3760 + $0x48] sm:$0xff]
        %v4653 = vld [vmem:[%s3760 + $0x50] sm:$0xff]
        %v4654 = vld [vmem:[%s3760 + $0x60] sm:$0xff]
        %v4655 = vld [vmem:[%s3760 + $0x68] sm:$0xff]
        %v4656 = vld [vmem:[%s3760 + $0x78] sm:$0xff]
        %v4657 = vld [vmem:[%s3760 + $0x80] sm:$0xff]
        %v4658 = vld [vmem:[%s3760 + $0x90] sm:$0xff]
        %v4659 = vld [vmem:[%s3760 + $0x98] sm:$0xff]
        %v4660 = vld [vmem:[%s3760 + $0xa8] sm:$0xff]
        %v4661 = vld [vmem:[%s3760 + $0xb0] sm:$0xff]
        %v4662 = vld [vmem:[%s3760 + $0xc0] sm:$0xff]
        %v4663 = vld [vmem:[%s3760 + $0xc8] sm:$0xff]
        %v4664 = vld [vmem:[%s3760 + $0xd8] sm:$0xff]
        %v4665 = vld [vmem:[%s3760 + $0xe0] sm:$0xff]
        %v4666 = vld [vmem:[%s3760 + $0xf0] sm:$0xff]
        %v4667 = vld [vmem:[%s3760 + $0xf8] sm:$0xff]
        %v4668 = vld [vmem:[%s3760 + $0x108] sm:$0xff]
        %v4669 = vld [vmem:[%s3760 + $0x110] sm:$0xff]
        %v4670 = vld [vmem:[%s3760 + $0x120] sm:$0xff]
        %v4671 = vld [vmem:[%s3760 + $0x128] sm:$0xff]
        %v4672 = vld [vmem:[%s3760 + $0x138] sm:$0xff]
        %v4673 = vld [vmem:[%s3760 + $0x140] sm:$0xff]
        %v4674 = vld [vmem:[%s3760 + $0x150] sm:$0xff]
        %v4675 = vld [vmem:[%s3760 + $0x158] sm:$0xff]
        %v4676 = vld [vmem:[%s3760 + $0x168] sm:$0xff]
        %v4677 = vld [vmem:[%s3760 + $0x170] sm:$0xff]
        %v4678 = vpack.c.bf16 %v4647, %v4646
        %v4679 = vpack.c.bf16 %v4649, %v4648
        %v4680 = vpack.c.bf16 %v4651, %v4650
        %v4681 = vpack.c.bf16 %v4653, %v4652
        %v4682 = vpack.c.bf16 %v4655, %v4654
        %v4683 = vpack.c.bf16 %v4657, %v4656
        %v4684 = vpack.c.bf16 %v4659, %v4658
        %v4685 = vpack.c.bf16 %v4661, %v4660
        %v4686 = vpack.c.bf16 %v4663, %v4662
        %v4687 = vpack.c.bf16 %v4665, %v4664
        %v4688 = vpack.c.bf16 %v4667, %v4666
        %v4689 = vpack.c.bf16 %v4669, %v4668
        %v4690 = vpack.c.bf16 %v4671, %v4670
        %v4691 = vpack.c.bf16 %v4673, %v4672
        %v4692 = vpack.c.bf16 %v4675, %v4674
        %v4693 = vpack.c.bf16 %v4677, %v4676
        %s4694 = scalar_lea.vmem [#allocation9], 192
        %v4695 = vld [vmem:[%s4694] sm:$0xf]
        %v4696 = vld [vmem:[%s4694 + $0x4] sm:$0xf]
        %v4697 = vld [vmem:[%s4694 + $0x8] sm:$0xf]
        %v4698 = vld [vmem:[%s4694 + $0xc] sm:$0xf]
        %v4699 = vld [vmem:[%s4694 + $0x10] sm:$0xf]
        %v4700 = vld [vmem:[%s4694 + $0x14] sm:$0xf]
        %v4701 = vld [vmem:[%s4694 + $0x18] sm:$0xf]
        %v4702 = vld [vmem:[%s4694 + $0x1c] sm:$0xf]
        %v4703 = vld [vmem:[%s4694 + $0x20] sm:$0xf]
        %v4704 = vld [vmem:[%s4694 + $0x24] sm:$0xf]
        %v4705 = vld [vmem:[%s4694 + $0x28] sm:$0xf]
        %v4706 = vld [vmem:[%s4694 + $0x2c] sm:$0xf]
        %v4707 = vld [vmem:[%s4694 + $0x30] sm:$0xf]
        %v4708 = vld [vmem:[%s4694 + $0x34] sm:$0xf]
        %v4709 = vld [vmem:[%s4694 + $0x38] sm:$0xf]
        %v4710 = vld [vmem:[%s4694 + $0x3c] sm:$0xf]
        %v4727 = vunpack.c.l.b16 %v4695
        %v4728 = vunpack.c.l.b16 %v4696
        %v4729 = vunpack.c.l.b16 %v4697
        %v4730 = vunpack.c.l.b16 %v4698
        %v4731 = vunpack.c.l.b16 %v4699
        %v4732 = vunpack.c.l.b16 %v4700
        %v4733 = vunpack.c.l.b16 %v4701
        %v4734 = vunpack.c.l.b16 %v4702
        %v4735 = vunpack.c.l.b16 %v4703
        %v4736 = vunpack.c.l.b16 %v4704
        %v4737 = vunpack.c.l.b16 %v4705
        %v4738 = vunpack.c.l.b16 %v4706
        %v4739 = vunpack.c.l.b16 %v4707
        %v4740 = vunpack.c.l.b16 %v4708
        %v4741 = vunpack.c.l.b16 %v4709
        %v4742 = vunpack.c.l.b16 %v4710
        %v4743 = vpack.c.b16 %v4728, %v4727
        %v4744 = vpack.c.b16 %v4730, %v4729
        %v4745 = vpack.c.b16 %v4732, %v4731
        %v4746 = vpack.c.b16 %v4734, %v4733
        %v4747 = vpack.c.b16 %v4736, %v4735
        %v4748 = vpack.c.b16 %v4738, %v4737
        %v4749 = vpack.c.b16 %v4740, %v4739
        %v4750 = vpack.c.b16 %v4742, %v4741
        %4759 = vmatprep.subr.bf16.mxu0 0
        %4760 = vmatpush1.bf16.msra.mxu0 %v4743
        %4761 = vmatprep.subr.bf16.mxu0 0
        %4762 = vmatpush1.bf16.msra.mxu0 %v4744
        %4763 = vmatprep.subr.bf16.mxu0 0
        %4764 = vmatpush1.bf16.msra.mxu0 %v4745
        %4765 = vmatprep.subr.bf16.mxu0 0
        %4766 = vmatpush1.bf16.msra.mxu0 %v4746
        %4767 = vmatprep.subr.bf16.mxu0 0
        %4768 = vmatpush1.bf16.msra.mxu0 %v4747
        %4769 = vmatprep.subr.bf16.mxu0 0
        %4770 = vmatpush1.bf16.msra.mxu0 %v4748
        %4771 = vmatprep.subr.bf16.mxu0 0
        %4772 = vmatpush1.bf16.msra.mxu0 %v4749
        %4773 = vmatprep.subr.bf16.mxu0 0
        %4774 = vmatpush1.bf16.msra.mxu0 %v4750
        %4775 = vmatprep.subr.bf16.mxu0 0
        %4776 = vmatpush1.bf16.msra.mxu0 0
        %4777 = vmatprep.subr.bf16.mxu0 0
        %4778 = vmatpush1.bf16.msra.mxu0 0
        %4779 = vmatprep.subr.bf16.mxu0 0
        %4780 = vmatpush1.bf16.msra.mxu0 0
        %4781 = vmatprep.subr.bf16.mxu0 0
        %4782 = vmatpush1.bf16.msra.mxu0 0
        %4783 = vmatprep.subr.bf16.mxu0 0
        %4784 = vmatpush1.bf16.msra.mxu0 0
        %4785 = vmatprep.subr.bf16.mxu0 0
        %4786 = vmatpush1.bf16.msra.mxu0 0
        %4787 = vmatprep.subr.bf16.mxu0 0
        %4788 = vmatpush1.bf16.msra.mxu0 0
        %4789 = vmatprep.subr.bf16.mxu0 0
        %4790 = vmatpush1.bf16.msra.mxu0 0
        %4791 = vmatprep.mubr.bf16.mxu0 0
        %4792 = vmatmul.mubr.bf16.gmra.mrb[0].mxu0 %v4678
        %v4793 = vpop.f32.mrb[0].mxu0
        %v4794 = vadd.f32 0.0, %v4793
        %v4795 = vpop.f32.mrb[0].mxu0
        %v4796 = vpop.f32.mrb[0].mxu0
        %v4797 = vadd.f32 0.0, %v4796
        %v4798 = vpop.f32.mrb[0].mxu0
        %4799 = vmatprep.mubr.bf16.mxu0 0
        %4800 = vmatmul.mubr.bf16.gmra.mrb[0].mxu0 %v4679
        %v4801 = vpop.f32.mrb[0].mxu0
        %v4802 = vadd.f32 0.0, %v4801
        %v4803 = vpop.f32.mrb[0].mxu0
        %v4804 = vpop.f32.mrb[0].mxu0
        %v4805 = vadd.f32 0.0, %v4804
        %v4806 = vpop.f32.mrb[0].mxu0
        %4807 = vmatprep.mubr.bf16.mxu0 0
        %4808 = vmatmul.mubr.bf16.gmra.mrb[0].mxu0 %v4680
        %v4809 = vpop.f32.mrb[0].mxu0
        %v4810 = vadd.f32 0.0, %v4809
        %v4811 = vpop.f32.mrb[0].mxu0
        %v4812 = vpop.f32.mrb[0].mxu0
        %v4813 = vadd.f32 0.0, %v4812
        %v4814 = vpop.f32.mrb[0].mxu0
        %4815 = vmatprep.mubr.bf16.mxu0 0
        %4816 = vmatmul.mubr.bf16.gmra.mrb[0].mxu0 %v4681
        %v4817 = vpop.f32.mrb[0].mxu0
        %v4818 = vadd.f32 0.0, %v4817
        %v4819 = vpop.f32.mrb[0].mxu0
        %v4820 = vpop.f32.mrb[0].mxu0
        %v4821 = vadd.f32 0.0, %v4820
        %v4822 = vpop.f32.mrb[0].mxu0
        %4823 = vmatprep.mubr.bf16.mxu0 0
        %4824 = vmatmul.mubr.bf16.gmra.mrb[0].mxu0 %v4682
        %v4825 = vpop.f32.mrb[0].mxu0
        %v4826 = vadd.f32 0.0, %v4825
        %v4827 = vpop.f32.mrb[0].mxu0
        %v4828 = vpop.f32.mrb[0].mxu0
        %v4829 = vadd.f32 0.0, %v4828
        %v4830 = vpop.f32.mrb[0].mxu0
        %4831 = vmatprep.mubr.bf16.mxu0 0
        %4832 = vmatmul.mubr.bf16.gmra.mrb[0].mxu0 %v4683
        %v4833 = vpop.f32.mrb[0].mxu0
        %v4834 = vadd.f32 0.0, %v4833
        %v4835 = vpop.f32.mrb[0].mxu0
        %v4836 = vpop.f32.mrb[0].mxu0
        %v4837 = vadd.f32 0.0, %v4836
        %v4838 = vpop.f32.mrb[0].mxu0
        %4839 = vmatprep.mubr.bf16.mxu0 0
        %4840 = vmatmul.mubr.bf16.gmra.mrb[0].mxu0 %v4684
        %v4841 = vpop.f32.mrb[0].mxu0
        %v4842 = vadd.f32 0.0, %v4841
        %v4843 = vpop.f32.mrb[0].mxu0
        %v4844 = vpop.f32.mrb[0].mxu0
        %v4845 = vadd.f32 0.0, %v4844
        %v4846 = vpop.f32.mrb[0].mxu0
        %4847 = vmatprep.mubr.bf16.mxu0 0
        %4848 = vmatmul.mubr.bf16.gmra.mrb[0].mxu0 %v4685
        %v4849 = vpop.f32.mrb[0].mxu0
        %v4850 = vadd.f32 0.0, %v4849
        %v4851 = vpop.f32.mrb[0].mxu0
        %v4852 = vpop.f32.mrb[0].mxu0
        %v4853 = vadd.f32 0.0, %v4852
        %v4854 = vpop.f32.mrb[0].mxu0
        %4855 = vmatprep.mubr.bf16.mxu0 0
        %4856 = vmatmul.mubr.bf16.gmra.mrb[0].mxu0 %v4686
        %v4857 = vpop.f32.mrb[0].mxu0
        %v4858 = vadd.f32 0.0, %v4857
        %v4859 = vpop.f32.mrb[0].mxu0
        %v4860 = vpop.f32.mrb[0].mxu0
        %v4861 = vadd.f32 0.0, %v4860
        %v4862 = vpop.f32.mrb[0].mxu0
        %4863 = vmatprep.mubr.bf16.mxu0 0
        %4864 = vmatmul.mubr.bf16.gmra.mrb[0].mxu0 %v4687
        %v4865 = vpop.f32.mrb[0].mxu0
        %v4866 = vadd.f32 0.0, %v4865
        %v4867 = vpop.f32.mrb[0].mxu0
        %v4868 = vpop.f32.mrb[0].mxu0
        %v4869 = vadd.f32 0.0, %v4868
        %v4870 = vpop.f32.mrb[0].mxu0
        %4871 = vmatprep.mubr.bf16.mxu0 0
        %4872 = vmatmul.mubr.bf16.gmra.mrb[0].mxu0 %v4688
        %v4873 = vpop.f32.mrb[0].mxu0
        %v4874 = vadd.f32 0.0, %v4873
        %v4875 = vpop.f32.mrb[0].mxu0
        %v4876 = vpop.f32.mrb[0].mxu0
        %v4877 = vadd.f32 0.0, %v4876
        %v4878 = vpop.f32.mrb[0].mxu0
        %4879 = vmatprep.mubr.bf16.mxu0 0
        %4880 = vmatmul.mubr.bf16.gmra.mrb[0].mxu0 %v4689
        %v4881 = vpop.f32.mrb[0].mxu0
        %v4882 = vadd.f32 0.0, %v4881
        %v4883 = vpop.f32.mrb[0].mxu0
        %v4884 = vpop.f32.mrb[0].mxu0
        %v4885 = vadd.f32 0.0, %v4884
        %v4886 = vpop.f32.mrb[0].mxu0
        %4887 = vmatprep.mubr.bf16.mxu0 0
        %4888 = vmatmul.mubr.bf16.gmra.mrb[0].mxu0 %v4690
        %v4889 = vpop.f32.mrb[0].mxu0
        %v4890 = vadd.f32 0.0, %v4889
        %v4891 = vpop.f32.mrb[0].mxu0
        %v4892 = vpop.f32.mrb[0].mxu0
        %v4893 = vadd.f32 0.0, %v4892
        %v4894 = vpop.f32.mrb[0].mxu0
        %4895 = vmatprep.mubr.bf16.mxu0 0
        %4896 = vmatmul.mubr.bf16.gmra.mrb[0].mxu0 %v4691
        %v4897 = vpop.f32.mrb[0].mxu0
        %v4898 = vadd.f32 0.0, %v4897
        %v4899 = vpop.f32.mrb[0].mxu0
        %v4900 = vpop.f32.mrb[0].mxu0
        %v4901 = vadd.f32 0.0, %v4900
        %v4902 = vpop.f32.mrb[0].mxu0
        %4903 = vmatprep.mubr.bf16.mxu0 0
        %4904 = vmatmul.mubr.bf16.gmra.mrb[0].mxu0 %v4692
        %v4905 = vpop.f32.mrb[0].mxu0
        %v4906 = vadd.f32 0.0, %v4905
        %v4907 = vpop.f32.mrb[0].mxu0
        %v4908 = vpop.f32.mrb[0].mxu0
        %v4909 = vadd.f32 0.0, %v4908
        %v4910 = vpop.f32.mrb[0].mxu0
        %4911 = vmatprep.mubr.bf16.mxu0 0
        %4912 = vmatmul.mubr.bf16.gmra.mrb[0].mxu0 %v4693
        %v4913 = vpop.f32.mrb[0].mxu0
        %v4914 = vadd.f32 0.0, %v4913
        %v4915 = vpop.f32.mrb[0].mxu0
        %v4916 = vpop.f32.mrb[0].mxu0
        %v4917 = vadd.f32 0.0, %v4916
        %v4918 = vpop.f32.mrb[0].mxu0
        %4919 = vdwg.mxu0
        %v4920 = vadd.f32 %v4614, %v4794
        %v4921 = vadd.f32 %v4615, %v4797
        %v4922 = vadd.f32 %v4616, %v4802
        %v4923 = vadd.f32 %v4617, %v4805
        %v4924 = vadd.f32 %v4618, %v4810
        %v4925 = vadd.f32 %v4619, %v4813
        %v4926 = vadd.f32 %v4620, %v4818
        %v4927 = vadd.f32 %v4621, %v4821
        %v4928 = vadd.f32 %v4622, %v4826
        %v4929 = vadd.f32 %v4623, %v4829
        %v4930 = vadd.f32 %v4624, %v4834
        %v4931 = vadd.f32 %v4625, %v4837
        %v4932 = vadd.f32 %v4626, %v4842
        %v4933 = vadd.f32 %v4627, %v4845
        %v4934 = vadd.f32 %v4628, %v4850
        %v4935 = vadd.f32 %v4629, %v4853
        %v4936 = vadd.f32 %v4630, %v4858
        %v4937 = vadd.f32 %v4631, %v4861
        %v4938 = vadd.f32 %v4632, %v4866
        %v4939 = vadd.f32 %v4633, %v4869
        %v4940 = vadd.f32 %v4634, %v4874
        %v4941 = vadd.f32 %v4635, %v4877
        %v4942 = vadd.f32 %v4636, %v4882
        %v4943 = vadd.f32 %v4637, %v4885
        %v4944 = vadd.f32 %v4638, %v4890
        %v4945 = vadd.f32 %v4639, %v4893
        %v4946 = vadd.f32 %v4640, %v4898
        %v4947 = vadd.f32 %v4641, %v4901
        %v4948 = vadd.f32 %v4642, %v4906
        %v4949 = vadd.f32 %v4643, %v4909
        %v4950 = vadd.f32 %v4644, %v4914
        %v4951 = vadd.f32 %v4645, %v4917
        %v4952 = vld [vmem:[%s3760 + $0x1] sm:$0xff]
        %v4953 = vld [vmem:[%s3760 + $0x9] sm:$0xff]
        %v4954 = vld [vmem:[%s3760 + $0x19] sm:$0xff]
        %v4955 = vld [vmem:[%s3760 + $0x21] sm:$0xff]
        %v4956 = vld [vmem:[%s3760 + $0x31] sm:$0xff]
        %v4957 = vld [vmem:[%s3760 + $0x39] sm:$0xff]
        %v4958 = vld [vmem:[%s3760 + $0x49] sm:$0xff]
        %v4959 = vld [vmem:[%s3760 + $0x51] sm:$0xff]
        %v4960 = vld [vmem:[%s3760 + $0x61] sm:$0xff]
        %v4961 = vld [vmem:[%s3760 + $0x69] sm:$0xff]
        %v4962 = vld [vmem:[%s3760 + $0x79] sm:$0xff]
        %v4963 = vld [vmem:[%s3760 + $0x81] sm:$0xff]
        %v4964 = vld [vmem:[%s3760 + $0x91] sm:$0xff]
        %v4965 = vld [vmem:[%s3760 + $0x99] sm:$0xff]
        %v4966 = vld [vmem:[%s3760 + $0xa9] sm:$0xff]
        %v4967 = vld [vmem:[%s3760 + $0xb1] sm:$0xff]
        %v4968 = vld [vmem:[%s3760 + $0xc1] sm:$0xff]
        %v4969 = vld [vmem:[%s3760 + $0xc9] sm:$0xff]
        %v4970 = vld [vmem:[%s3760 + $0xd9] sm:$0xff]
        %v4971 = vld [vmem:[%s3760 + $0xe1] sm:$0xff]
        %v4972 = vld [vmem:[%s3760 + $0xf1] sm:$0xff]
        %v4973 = vld [vmem:[%s3760 + $0xf9] sm:$0xff]
        %v4974 = vld [vmem:[%s3760 + $0x109] sm:$0xff]
        %v4975 = vld [vmem:[%s3760 + $0x111] sm:$0xff]
        %v4976 = vld [vmem:[%s3760 + $0x121] sm:$0xff]
        %v4977 = vld [vmem:[%s3760 + $0x129] sm:$0xff]
        %v4978 = vld [vmem:[%s3760 + $0x139] sm:$0xff]
        %v4979 = vld [vmem:[%s3760 + $0x141] sm:$0xff]
        %v4980 = vld [vmem:[%s3760 + $0x151] sm:$0xff]
        %v4981 = vld [vmem:[%s3760 + $0x159] sm:$0xff]
        %v4982 = vld [vmem:[%s3760 + $0x169] sm:$0xff]
        %v4983 = vld [vmem:[%s3760 + $0x171] sm:$0xff]
        %v4984 = vpack.c.bf16 %v4953, %v4952
        %v4985 = vpack.c.bf16 %v4955, %v4954
        %v4986 = vpack.c.bf16 %v4957, %v4956
        %v4987 = vpack.c.bf16 %v4959, %v4958
        %v4988 = vpack.c.bf16 %v4961, %v4960
        %v4989 = vpack.c.bf16 %v4963, %v4962
        %v4990 = vpack.c.bf16 %v4965, %v4964
        %v4991 = vpack.c.bf16 %v4967, %v4966
        %v4992 = vpack.c.bf16 %v4969, %v4968
        %v4993 = vpack.c.bf16 %v4971, %v4970
        %v4994 = vpack.c.bf16 %v4973, %v4972
        %v4995 = vpack.c.bf16 %v4975, %v4974
        %v4996 = vpack.c.bf16 %v4977, %v4976
        %v4997 = vpack.c.bf16 %v4979, %v4978
        %v4998 = vpack.c.bf16 %v4981, %v4980
        %v4999 = vpack.c.bf16 %v4983, %v4982
        %s5000 = scalar_lea.vmem [#allocation9], 256
        %v5001 = vld [vmem:[%s5000] sm:$0xf]
        %v5002 = vld [vmem:[%s5000 + $0x4] sm:$0xf]
        %v5003 = vld [vmem:[%s5000 + $0x8] sm:$0xf]
        %v5004 = vld [vmem:[%s5000 + $0xc] sm:$0xf]
        %v5005 = vld [vmem:[%s5000 + $0x10] sm:$0xf]
        %v5006 = vld [vmem:[%s5000 + $0x14] sm:$0xf]
        %v5007 = vld [vmem:[%s5000 + $0x18] sm:$0xf]
        %v5008 = vld [vmem:[%s5000 + $0x1c] sm:$0xf]
        %v5009 = vld [vmem:[%s5000 + $0x20] sm:$0xf]
        %v5010 = vld [vmem:[%s5000 + $0x24] sm:$0xf]
        %v5011 = vld [vmem:[%s5000 + $0x28] sm:$0xf]
        %v5012 = vld [vmem:[%s5000 + $0x2c] sm:$0xf]
        %v5013 = vld [vmem:[%s5000 + $0x30] sm:$0xf]
        %v5014 = vld [vmem:[%s5000 + $0x34] sm:$0xf]
        %v5015 = vld [vmem:[%s5000 + $0x38] sm:$0xf]
        %v5016 = vld [vmem:[%s5000 + $0x3c] sm:$0xf]
        %v5033 = vunpack.c.l.b16 %v5001
        %v5034 = vunpack.c.l.b16 %v5002
        %v5035 = vunpack.c.l.b16 %v5003
        %v5036 = vunpack.c.l.b16 %v5004
        %v5037 = vunpack.c.l.b16 %v5005
        %v5038 = vunpack.c.l.b16 %v5006
        %v5039 = vunpack.c.l.b16 %v5007
        %v5040 = vunpack.c.l.b16 %v5008
        %v5041 = vunpack.c.l.b16 %v5009
        %v5042 = vunpack.c.l.b16 %v5010
        %v5043 = vunpack.c.l.b16 %v5011
        %v5044 = vunpack.c.l.b16 %v5012
        %v5045 = vunpack.c.l.b16 %v5013
        %v5046 = vunpack.c.l.b16 %v5014
        %v5047 = vunpack.c.l.b16 %v5015
        %v5048 = vunpack.c.l.b16 %v5016
        %v5049 = vpack.c.b16 %v5034, %v5033
        %v5050 = vpack.c.b16 %v5036, %v5035
        %v5051 = vpack.c.b16 %v5038, %v5037
        %v5052 = vpack.c.b16 %v5040, %v5039
        %v5053 = vpack.c.b16 %v5042, %v5041
        %v5054 = vpack.c.b16 %v5044, %v5043
        %v5055 = vpack.c.b16 %v5046, %v5045
        %v5056 = vpack.c.b16 %v5048, %v5047
        %5065 = vmatprep.subr.bf16.mxu0 0
        %5066 = vmatpush1.bf16.msra.mxu0 %v5049
        %5067 = vmatprep.subr.bf16.mxu0 0
        %5068 = vmatpush1.bf16.msra.mxu0 %v5050
        %5069 = vmatprep.subr.bf16.mxu0 0
        %5070 = vmatpush1.bf16.msra.mxu0 %v5051
        %5071 = vmatprep.subr.bf16.mxu0 0
        %5072 = vmatpush1.bf16.msra.mxu0 %v5052
        %5073 = vmatprep.subr.bf16.mxu0 0
        %5074 = vmatpush1.bf16.msra.mxu0 %v5053
        %5075 = vmatprep.subr.bf16.mxu0 0
        %5076 = vmatpush1.bf16.msra.mxu0 %v5054
        %5077 = vmatprep.subr.bf16.mxu0 0
        %5078 = vmatpush1.bf16.msra.mxu0 %v5055
        %5079 = vmatprep.subr.bf16.mxu0 0
        %5080 = vmatpush1.bf16.msra.mxu0 %v5056
        %5081 = vmatprep.subr.bf16.mxu0 0
        %5082 = vmatpush1.bf16.msra.mxu0 0
        %5083 = vmatprep.subr.bf16.mxu0 0
        %5084 = vmatpush1.bf16.msra.mxu0 0
        %5085 = vmatprep.subr.bf16.mxu0 0
        %5086 = vmatpush1.bf16.msra.mxu0 0
        %5087 = vmatprep.subr.bf16.mxu0 0
        %5088 = vmatpush1.bf16.msra.mxu0 0
        %5089 = vmatprep.subr.bf16.mxu0 0
        %5090 = vmatpush1.bf16.msra.mxu0 0
        %5091 = vmatprep.subr.bf16.mxu0 0
        %5092 = vmatpush1.bf16.msra.mxu0 0
        %5093 = vmatprep.subr.bf16.mxu0 0
        %5094 = vmatpush1.bf16.msra.mxu0 0
        %5095 = vmatprep.subr.bf16.mxu0 0
        %5096 = vmatpush1.bf16.msra.mxu0 0
        %5097 = vmatprep.mubr.bf16.mxu0 0
        %5098 = vmatmul.mubr.bf16.gmra.mrb[0].mxu0 %v4984
        %v5099 = vpop.f32.mrb[0].mxu0
        %v5100 = vadd.f32 0.0, %v5099
        %v5101 = vpop.f32.mrb[0].mxu0
        %v5102 = vpop.f32.mrb[0].mxu0
        %v5103 = vadd.f32 0.0, %v5102
        %v5104 = vpop.f32.mrb[0].mxu0
        %5105 = vmatprep.mubr.bf16.mxu0 0
        %5106 = vmatmul.mubr.bf16.gmra.mrb[0].mxu0 %v4985
        %v5107 = vpop.f32.mrb[0].mxu0
        %v5108 = vadd.f32 0.0, %v5107
        %v5109 = vpop.f32.mrb[0].mxu0
        %v5110 = vpop.f32.mrb[0].mxu0
        %v5111 = vadd.f32 0.0, %v5110
        %v5112 = vpop.f32.mrb[0].mxu0
        %5113 = vmatprep.mubr.bf16.mxu0 0
        %5114 = vmatmul.mubr.bf16.gmra.mrb[0].mxu0 %v4986
        %v5115 = vpop.f32.mrb[0].mxu0
        %v5116 = vadd.f32 0.0, %v5115
        %v5117 = vpop.f32.mrb[0].mxu0
        %v5118 = vpop.f32.mrb[0].mxu0
        %v5119 = vadd.f32 0.0, %v5118
        %v5120 = vpop.f32.mrb[0].mxu0
        %5121 = vmatprep.mubr.bf16.mxu0 0
        %5122 = vmatmul.mubr.bf16.gmra.mrb[0].mxu0 %v4987
        %v5123 = vpop.f32.mrb[0].mxu0
        %v5124 = vadd.f32 0.0, %v5123
        %v5125 = vpop.f32.mrb[0].mxu0
        %v5126 = vpop.f32.mrb[0].mxu0
        %v5127 = vadd.f32 0.0, %v5126
        %v5128 = vpop.f32.mrb[0].mxu0
        %5129 = vmatprep.mubr.bf16.mxu0 0
        %5130 = vmatmul.mubr.bf16.gmra.mrb[0].mxu0 %v4988
        %v5131 = vpop.f32.mrb[0].mxu0
        %v5132 = vadd.f32 0.0, %v5131
        %v5133 = vpop.f32.mrb[0].mxu0
        %v5134 = vpop.f32.mrb[0].mxu0
        %v5135 = vadd.f32 0.0, %v5134
        %v5136 = vpop.f32.mrb[0].mxu0
        %5137 = vmatprep.mubr.bf16.mxu0 0
        %5138 = vmatmul.mubr.bf16.gmra.mrb[0].mxu0 %v4989
        %v5139 = vpop.f32.mrb[0].mxu0
        %v5140 = vadd.f32 0.0, %v5139
        %v5141 = vpop.f32.mrb[0].mxu0
        %v5142 = vpop.f32.mrb[0].mxu0
        %v5143 = vadd.f32 0.0, %v5142
        %v5144 = vpop.f32.mrb[0].mxu0
        %5145 = vmatprep.mubr.bf16.mxu0 0
        %5146 = vmatmul.mubr.bf16.gmra.mrb[0].mxu0 %v4990
        %v5147 = vpop.f32.mrb[0].mxu0
        %v5148 = vadd.f32 0.0, %v5147
        %v5149 = vpop.f32.mrb[0].mxu0
        %v5150 = vpop.f32.mrb[0].mxu0
        %v5151 = vadd.f32 0.0, %v5150
        %v5152 = vpop.f32.mrb[0].mxu0
        %5153 = vmatprep.mubr.bf16.mxu0 0
        %5154 = vmatmul.mubr.bf16.gmra.mrb[0].mxu0 %v4991
        %v5155 = vpop.f32.mrb[0].mxu0
        %v5156 = vadd.f32 0.0, %v5155
        %v5157 = vpop.f32.mrb[0].mxu0
        %v5158 = vpop.f32.mrb[0].mxu0
        %v5159 = vadd.f32 0.0, %v5158
        %v5160 = vpop.f32.mrb[0].mxu0
        %5161 = vmatprep.mubr.bf16.mxu0 0
        %5162 = vmatmul.mubr.bf16.gmra.mrb[0].mxu0 %v4992
        %v5163 = vpop.f32.mrb[0].mxu0
        %v5164 = vadd.f32 0.0, %v5163
        %v5165 = vpop.f32.mrb[0].mxu0
        %v5166 = vpop.f32.mrb[0].mxu0
        %v5167 = vadd.f32 0.0, %v5166
        %v5168 = vpop.f32.mrb[0].mxu0
        %5169 = vmatprep.mubr.bf16.mxu0 0
        %5170 = vmatmul.mubr.bf16.gmra.mrb[0].mxu0 %v4993
        %v5171 = vpop.f32.mrb[0].mxu0
        %v5172 = vadd.f32 0.0, %v5171
        %v5173 = vpop.f32.mrb[0].mxu0
        %v5174 = vpop.f32.mrb[0].mxu0
        %v5175 = vadd.f32 0.0, %v5174
        %v5176 = vpop.f32.mrb[0].mxu0
        %5177 = vmatprep.mubr.bf16.mxu0 0
        %5178 = vmatmul.mubr.bf16.gmra.mrb[0].mxu0 %v4994
        %v5179 = vpop.f32.mrb[0].mxu0
        %v5180 = vadd.f32 0.0, %v5179
        %v5181 = vpop.f32.mrb[0].mxu0
        %v5182 = vpop.f32.mrb[0].mxu0
        %v5183 = vadd.f32 0.0, %v5182
        %v5184 = vpop.f32.mrb[0].mxu0
        %5185 = vmatprep.mubr.bf16.mxu0 0
        %5186 = vmatmul.mubr.bf16.gmra.mrb[0].mxu0 %v4995
        %v5187 = vpop.f32.mrb[0].mxu0
        %v5188 = vadd.f32 0.0, %v5187
        %v5189 = vpop.f32.mrb[0].mxu0
        %v5190 = vpop.f32.mrb[0].mxu0
        %v5191 = vadd.f32 0.0, %v5190
        %v5192 = vpop.f32.mrb[0].mxu0
        %5193 = vmatprep.mubr.bf16.mxu0 0
        %5194 = vmatmul.mubr.bf16.gmra.mrb[0].mxu0 %v4996
        %v5195 = vpop.f32.mrb[0].mxu0
        %v5196 = vadd.f32 0.0, %v5195
        %v5197 = vpop.f32.mrb[0].mxu0
        %v5198 = vpop.f32.mrb[0].mxu0
        %v5199 = vadd.f32 0.0, %v5198
        %v5200 = vpop.f32.mrb[0].mxu0
        %5201 = vmatprep.mubr.bf16.mxu0 0
        %5202 = vmatmul.mubr.bf16.gmra.mrb[0].mxu0 %v4997
        %v5203 = vpop.f32.mrb[0].mxu0
        %v5204 = vadd.f32 0.0, %v5203
        %v5205 = vpop.f32.mrb[0].mxu0
        %v5206 = vpop.f32.mrb[0].mxu0
        %v5207 = vadd.f32 0.0, %v5206
        %v5208 = vpop.f32.mrb[0].mxu0
        %5209 = vmatprep.mubr.bf16.mxu0 0
        %5210 = vmatmul.mubr.bf16.gmra.mrb[0].mxu0 %v4998
        %v5211 = vpop.f32.mrb[0].mxu0
        %v5212 = vadd.f32 0.0, %v5211
        %v5213 = vpop.f32.mrb[0].mxu0
        %v5214 = vpop.f32.mrb[0].mxu0
        %v5215 = vadd.f32 0.0, %v5214
        %v5216 = vpop.f32.mrb[0].mxu0
        %5217 = vmatprep.mubr.bf16.mxu0 0
        %5218 = vmatmul.mubr.bf16.gmra.mrb[0].mxu0 %v4999
        %v5219 = vpop.f32.mrb[0].mxu0
        %v5220 = vadd.f32 0.0, %v5219
        %v5221 = vpop.f32.mrb[0].mxu0
        %v5222 = vpop.f32.mrb[0].mxu0
        %v5223 = vadd.f32 0.0, %v5222
        %v5224 = vpop.f32.mrb[0].mxu0
        %5225 = vdwg.mxu0
        %v5226 = vadd.f32 %v4920, %v5100
        %v5227 = vadd.f32 %v4921, %v5103
        %v5228 = vadd.f32 %v4922, %v5108
        %v5229 = vadd.f32 %v4923, %v5111
        %v5230 = vadd.f32 %v4924, %v5116
        %v5231 = vadd.f32 %v4925, %v5119
        %v5232 = vadd.f32 %v4926, %v5124
        %v5233 = vadd.f32 %v4927, %v5127
        %v5234 = vadd.f32 %v4928, %v5132
        %v5235 = vadd.f32 %v4929, %v5135
        %v5236 = vadd.f32 %v4930, %v5140
        %v5237 = vadd.f32 %v4931, %v5143
        %v5238 = vadd.f32 %v4932, %v5148
        %v5239 = vadd.f32 %v4933, %v5151
        %v5240 = vadd.f32 %v4934, %v5156
        %v5241 = vadd.f32 %v4935, %v5159
        %v5242 = vadd.f32 %v4936, %v5164
        %v5243 = vadd.f32 %v4937, %v5167
        %v5244 = vadd.f32 %v4938, %v5172
        %v5245 = vadd.f32 %v4939, %v5175
        %v5246 = vadd.f32 %v4940, %v5180
        %v5247 = vadd.f32 %v4941, %v5183
        %v5248 = vadd.f32 %v4942, %v5188
        %v5249 = vadd.f32 %v4943, %v5191
        %v5250 = vadd.f32 %v4944, %v5196
        %v5251 = vadd.f32 %v4945, %v5199
        %v5252 = vadd.f32 %v4946, %v5204
        %v5253 = vadd.f32 %v4947, %v5207
        %v5254 = vadd.f32 %v4948, %v5212
        %v5255 = vadd.f32 %v4949, %v5215
        %v5256 = vadd.f32 %v4950, %v5220
        %v5257 = vadd.f32 %v4951, %v5223
        %v5258 = vld [vmem:[%s3760 + $0x2] sm:$0xff]
        %v5259 = vld [vmem:[%s3760 + $0xa] sm:$0xff]
        %v5260 = vld [vmem:[%s3760 + $0x1a] sm:$0xff]
        %v5261 = vld [vmem:[%s3760 + $0x22] sm:$0xff]
        %v5262 = vld [vmem:[%s3760 + $0x32] sm:$0xff]
        %v5263 = vld [vmem:[%s3760 + $0x3a] sm:$0xff]
        %v5264 = vld [vmem:[%s3760 + $0x4a] sm:$0xff]
        %v5265 = vld [vmem:[%s3760 + $0x52] sm:$0xff]
        %v5266 = vld [vmem:[%s3760 + $0x62] sm:$0xff]
        %v5267 = vld [vmem:[%s3760 + $0x6a] sm:$0xff]
        %v5268 = vld [vmem:[%s3760 + $0x7a] sm:$0xff]
        %v5269 = vld [vmem:[%s3760 + $0x82] sm:$0xff]
        %v5270 = vld [vmem:[%s3760 + $0x92] sm:$0xff]
        %v5271 = vld [vmem:[%s3760 + $0x9a] sm:$0xff]
        %v5272 = vld [vmem:[%s3760 + $0xaa] sm:$0xff]
        %v5273 = vld [vmem:[%s3760 + $0xb2] sm:$0xff]
        %v5274 = vld [vmem:[%s3760 + $0xc2] sm:$0xff]
        %v5275 = vld [vmem:[%s3760 + $0xca] sm:$0xff]
        %v5276 = vld [vmem:[%s3760 + $0xda] sm:$0xff]
        %v5277 = vld [vmem:[%s3760 + $0xe2] sm:$0xff]
        %v5278 = vld [vmem:[%s3760 + $0xf2] sm:$0xff]
        %v5279 = vld [vmem:[%s3760 + $0xfa] sm:$0xff]
        %v5280 = vld [vmem:[%s3760 + $0x10a] sm:$0xff]
        %v5281 = vld [vmem:[%s3760 + $0x112] sm:$0xff]
        %v5282 = vld [vmem:[%s3760 + $0x122] sm:$0xff]
        %v5283 = vld [vmem:[%s3760 + $0x12a] sm:$0xff]
        %v5284 = vld [vmem:[%s3760 + $0x13a] sm:$0xff]
        %v5285 = vld [vmem:[%s3760 + $0x142] sm:$0xff]
        %v5286 = vld [vmem:[%s3760 + $0x152] sm:$0xff]
        %v5287 = vld [vmem:[%s3760 + $0x15a] sm:$0xff]
        %v5288 = vld [vmem:[%s3760 + $0x16a] sm:$0xff]
        %v5289 = vld [vmem:[%s3760 + $0x172] sm:$0xff]
        %v5290 = vpack.c.bf16 %v5259, %v5258
        %v5291 = vpack.c.bf16 %v5261, %v5260
        %v5292 = vpack.c.bf16 %v5263, %v5262
        %v5293 = vpack.c.bf16 %v5265, %v5264
        %v5294 = vpack.c.bf16 %v5267, %v5266
        %v5295 = vpack.c.bf16 %v5269, %v5268
        %v5296 = vpack.c.bf16 %v5271, %v5270
        %v5297 = vpack.c.bf16 %v5273, %v5272
        %v5298 = vpack.c.bf16 %v5275, %v5274
        %v5299 = vpack.c.bf16 %v5277, %v5276
        %v5300 = vpack.c.bf16 %v5279, %v5278
        %v5301 = vpack.c.bf16 %v5281, %v5280
        %v5302 = vpack.c.bf16 %v5283, %v5282
        %v5303 = vpack.c.bf16 %v5285, %v5284
        %v5304 = vpack.c.bf16 %v5287, %v5286
        %v5305 = vpack.c.bf16 %v5289, %v5288
        %s5306 = scalar_lea.vmem [#allocation9], 320
        %v5307 = vld [vmem:[%s5306] sm:$0xf]
        %v5308 = vld [vmem:[%s5306 + $0x4] sm:$0xf]
        %v5309 = vld [vmem:[%s5306 + $0x8] sm:$0xf]
        %v5310 = vld [vmem:[%s5306 + $0xc] sm:$0xf]
        %v5311 = vld [vmem:[%s5306 + $0x10] sm:$0xf]
        %v5312 = vld [vmem:[%s5306 + $0x14] sm:$0xf]
        %v5313 = vld [vmem:[%s5306 + $0x18] sm:$0xf]
        %v5314 = vld [vmem:[%s5306 + $0x1c] sm:$0xf]
        %v5315 = vld [vmem:[%s5306 + $0x20] sm:$0xf]
        %v5316 = vld [vmem:[%s5306 + $0x24] sm:$0xf]
        %v5317 = vld [vmem:[%s5306 + $0x28] sm:$0xf]
        %v5318 = vld [vmem:[%s5306 + $0x2c] sm:$0xf]
        %v5319 = vld [vmem:[%s5306 + $0x30] sm:$0xf]
        %v5320 = vld [vmem:[%s5306 + $0x34] sm:$0xf]
        %v5321 = vld [vmem:[%s5306 + $0x38] sm:$0xf]
        %v5322 = vld [vmem:[%s5306 + $0x3c] sm:$0xf]
        %v5339 = vunpack.c.l.b16 %v5307
        %v5340 = vunpack.c.l.b16 %v5308
        %v5341 = vunpack.c.l.b16 %v5309
        %v5342 = vunpack.c.l.b16 %v5310
        %v5343 = vunpack.c.l.b16 %v5311
        %v5344 = vunpack.c.l.b16 %v5312
        %v5345 = vunpack.c.l.b16 %v5313
        %v5346 = vunpack.c.l.b16 %v5314
        %v5347 = vunpack.c.l.b16 %v5315
        %v5348 = vunpack.c.l.b16 %v5316
        %v5349 = vunpack.c.l.b16 %v5317
        %v5350 = vunpack.c.l.b16 %v5318
        %v5351 = vunpack.c.l.b16 %v5319
        %v5352 = vunpack.c.l.b16 %v5320
        %v5353 = vunpack.c.l.b16 %v5321
        %v5354 = vunpack.c.l.b16 %v5322
        %v5355 = vpack.c.b16 %v5340, %v5339
        %v5356 = vpack.c.b16 %v5342, %v5341
        %v5357 = vpack.c.b16 %v5344, %v5343
        %v5358 = vpack.c.b16 %v5346, %v5345
        %v5359 = vpack.c.b16 %v5348, %v5347
        %v5360 = vpack.c.b16 %v5350, %v5349
        %v5361 = vpack.c.b16 %v5352, %v5351
        %v5362 = vpack.c.b16 %v5354, %v5353
        %5371 = vmatprep.subr.bf16.mxu0 0
        %5372 = vmatpush1.bf16.msra.mxu0 %v5355
        %5373 = vmatprep.subr.bf16.mxu0 0
        %5374 = vmatpush1.bf16.msra.mxu0 %v5356
        %5375 = vmatprep.subr.bf16.mxu0 0
        %5376 = vmatpush1.bf16.msra.mxu0 %v5357
        %5377 = vmatprep.subr.bf16.mxu0 0
        %5378 = vmatpush1.bf16.msra.mxu0 %v5358
        %5379 = vmatprep.subr.bf16.mxu0 0
        %5380 = vmatpush1.bf16.msra.mxu0 %v5359
        %5381 = vmatprep.subr.bf16.mxu0 0
        %5382 = vmatpush1.bf16.msra.mxu0 %v5360
        %5383 = vmatprep.subr.bf16.mxu0 0
        %5384 = vmatpush1.bf16.msra.mxu0 %v5361
        %5385 = vmatprep.subr.bf16.mxu0 0
        %5386 = vmatpush1.bf16.msra.mxu0 %v5362
        %5387 = vmatprep.subr.bf16.mxu0 0
        %5388 = vmatpush1.bf16.msra.mxu0 0
        %5389 = vmatprep.subr.bf16.mxu0 0
        %5390 = vmatpush1.bf16.msra.mxu0 0
        %5391 = vmatprep.subr.bf16.mxu0 0
        %5392 = vmatpush1.bf16.msra.mxu0 0
        %5393 = vmatprep.subr.bf16.mxu0 0
        %5394 = vmatpush1.bf16.msra.mxu0 0
        %5395 = vmatprep.subr.bf16.mxu0 0
        %5396 = vmatpush1.bf16.msra.mxu0 0
        %5397 = vmatprep.subr.bf16.mxu0 0
        %5398 = vmatpush1.bf16.msra.mxu0 0
        %5399 = vmatprep.subr.bf16.mxu0 0
        %5400 = vmatpush1.bf16.msra.mxu0 0
        %5401 = vmatprep.subr.bf16.mxu0 0
        %5402 = vmatpush1.bf16.msra.mxu0 0
        %5403 = vmatprep.mubr.bf16.mxu0 0
        %5404 = vmatmul.mubr.bf16.gmra.mrb[0].mxu0 %v5290
        %v5405 = vpop.f32.mrb[0].mxu0
        %v5406 = vadd.f32 0.0, %v5405
        %v5407 = vpop.f32.mrb[0].mxu0
        %v5408 = vpop.f32.mrb[0].mxu0
        %v5409 = vadd.f32 0.0, %v5408
        %v5410 = vpop.f32.mrb[0].mxu0
        %5411 = vmatprep.mubr.bf16.mxu0 0
        %5412 = vmatmul.mubr.bf16.gmra.mrb[0].mxu0 %v5291
        %v5413 = vpop.f32.mrb[0].mxu0
        %v5414 = vadd.f32 0.0, %v5413
        %v5415 = vpop.f32.mrb[0].mxu0
        %v5416 = vpop.f32.mrb[0].mxu0
        %v5417 = vadd.f32 0.0, %v5416
        %v5418 = vpop.f32.mrb[0].mxu0
        %5419 = vmatprep.mubr.bf16.mxu0 0
        %5420 = vmatmul.mubr.bf16.gmra.mrb[0].mxu0 %v5292
        %v5421 = vpop.f32.mrb[0].mxu0
        %v5422 = vadd.f32 0.0, %v5421
        %v5423 = vpop.f32.mrb[0].mxu0
        %v5424 = vpop.f32.mrb[0].mxu0
        %v5425 = vadd.f32 0.0, %v5424
        %v5426 = vpop.f32.mrb[0].mxu0
        %5427 = vmatprep.mubr.bf16.mxu0 0
        %5428 = vmatmul.mubr.bf16.gmra.mrb[0].mxu0 %v5293
        %v5429 = vpop.f32.mrb[0].mxu0
        %v5430 = vadd.f32 0.0, %v5429
        %v5431 = vpop.f32.mrb[0].mxu0
        %v5432 = vpop.f32.mrb[0].mxu0
        %v5433 = vadd.f32 0.0, %v5432
        %v5434 = vpop.f32.mrb[0].mxu0
        %5435 = vmatprep.mubr.bf16.mxu0 0
        %5436 = vmatmul.mubr.bf16.gmra.mrb[0].mxu0 %v5294
        %v5437 = vpop.f32.mrb[0].mxu0
        %v5438 = vadd.f32 0.0, %v5437
        %v5439 = vpop.f32.mrb[0].mxu0
        %v5440 = vpop.f32.mrb[0].mxu0
        %v5441 = vadd.f32 0.0, %v5440
        %v5442 = vpop.f32.mrb[0].mxu0
        %5443 = vmatprep.mubr.bf16.mxu0 0
        %5444 = vmatmul.mubr.bf16.gmra.mrb[0].mxu0 %v5295
        %v5445 = vpop.f32.mrb[0].mxu0
        %v5446 = vadd.f32 0.0, %v5445
        %v5447 = vpop.f32.mrb[0].mxu0
        %v5448 = vpop.f32.mrb[0].mxu0
        %v5449 = vadd.f32 0.0, %v5448
        %v5450 = vpop.f32.mrb[0].mxu0
        %5451 = vmatprep.mubr.bf16.mxu0 0
        %5452 = vmatmul.mubr.bf16.gmra.mrb[0].mxu0 %v5296
        %v5453 = vpop.f32.mrb[0].mxu0
        %v5454 = vadd.f32 0.0, %v5453
        %v5455 = vpop.f32.mrb[0].mxu0
        %v5456 = vpop.f32.mrb[0].mxu0
        %v5457 = vadd.f32 0.0, %v5456
        %v5458 = vpop.f32.mrb[0].mxu0
        %5459 = vmatprep.mubr.bf16.mxu0 0
        %5460 = vmatmul.mubr.bf16.gmra.mrb[0].mxu0 %v5297
        %v5461 = vpop.f32.mrb[0].mxu0
        %v5462 = vadd.f32 0.0, %v5461
        %v5463 = vpop.f32.mrb[0].mxu0
        %v5464 = vpop.f32.mrb[0].mxu0
        %v5465 = vadd.f32 0.0, %v5464
        %v5466 = vpop.f32.mrb[0].mxu0
        %5467 = vmatprep.mubr.bf16.mxu0 0
        %5468 = vmatmul.mubr.bf16.gmra.mrb[0].mxu0 %v5298
        %v5469 = vpop.f32.mrb[0].mxu0
        %v5470 = vadd.f32 0.0, %v5469
        %v5471 = vpop.f32.mrb[0].mxu0
        %v5472 = vpop.f32.mrb[0].mxu0
        %v5473 = vadd.f32 0.0, %v5472
        %v5474 = vpop.f32.mrb[0].mxu0
        %5475 = vmatprep.mubr.bf16.mxu0 0
        %5476 = vmatmul.mubr.bf16.gmra.mrb[0].mxu0 %v5299
        %v5477 = vpop.f32.mrb[0].mxu0
        %v5478 = vadd.f32 0.0, %v5477
        %v5479 = vpop.f32.mrb[0].mxu0
        %v5480 = vpop.f32.mrb[0].mxu0
        %v5481 = vadd.f32 0.0, %v5480
        %v5482 = vpop.f32.mrb[0].mxu0
        %5483 = vmatprep.mubr.bf16.mxu0 0
        %5484 = vmatmul.mubr.bf16.gmra.mrb[0].mxu0 %v5300
        %v5485 = vpop.f32.mrb[0].mxu0
        %v5486 = vadd.f32 0.0, %v5485
        %v5487 = vpop.f32.mrb[0].mxu0
        %v5488 = vpop.f32.mrb[0].mxu0
        %v5489 = vadd.f32 0.0, %v5488
        %v5490 = vpop.f32.mrb[0].mxu0
        %5491 = vmatprep.mubr.bf16.mxu0 0
        %5492 = vmatmul.mubr.bf16.gmra.mrb[0].mxu0 %v5301
        %v5493 = vpop.f32.mrb[0].mxu0
        %v5494 = vadd.f32 0.0, %v5493
        %v5495 = vpop.f32.mrb[0].mxu0
        %v5496 = vpop.f32.mrb[0].mxu0
        %v5497 = vadd.f32 0.0, %v5496
        %v5498 = vpop.f32.mrb[0].mxu0
        %5499 = vmatprep.mubr.bf16.mxu0 0
        %5500 = vmatmul.mubr.bf16.gmra.mrb[0].mxu0 %v5302
        %v5501 = vpop.f32.mrb[0].mxu0
        %v5502 = vadd.f32 0.0, %v5501
        %v5503 = vpop.f32.mrb[0].mxu0
        %v5504 = vpop.f32.mrb[0].mxu0
        %v5505 = vadd.f32 0.0, %v5504
        %v5506 = vpop.f32.mrb[0].mxu0
        %5507 = vmatprep.mubr.bf16.mxu0 0
        %5508 = vmatmul.mubr.bf16.gmra.mrb[0].mxu0 %v5303
        %v5509 = vpop.f32.mrb[0].mxu0
        %v5510 = vadd.f32 0.0, %v5509
        %v5511 = vpop.f32.mrb[0].mxu0
        %v5512 = vpop.f32.mrb[0].mxu0
        %v5513 = vadd.f32 0.0, %v5512
        %v5514 = vpop.f32.mrb[0].mxu0
        %5515 = vmatprep.mubr.bf16.mxu0 0
        %5516 = vmatmul.mubr.bf16.gmra.mrb[0].mxu0 %v5304
        %v5517 = vpop.f32.mrb[0].mxu0
        %v5518 = vadd.f32 0.0, %v5517
        %v5519 = vpop.f32.mrb[0].mxu0
        %v5520 = vpop.f32.mrb[0].mxu0
        %v5521 = vadd.f32 0.0, %v5520
        %v5522 = vpop.f32.mrb[0].mxu0
        %5523 = vmatprep.mubr.bf16.mxu0 0
        %5524 = vmatmul.mubr.bf16.gmra.mrb[0].mxu0 %v5305
        %v5525 = vpop.f32.mrb[0].mxu0
        %v5526 = vadd.f32 0.0, %v5525
        %v5527 = vpop.f32.mrb[0].mxu0
        %v5528 = vpop.f32.mrb[0].mxu0
        %v5529 = vadd.f32 0.0, %v5528
        %v5530 = vpop.f32.mrb[0].mxu0
        %5531 = vdwg.mxu0
        %v5532 = vadd.f32 %v5226, %v5406
        %v5533 = vadd.f32 %v5227, %v5409
        %v5534 = vadd.f32 %v5228, %v5414
        %v5535 = vadd.f32 %v5229, %v5417
        %v5536 = vadd.f32 %v5230, %v5422
        %v5537 = vadd.f32 %v5231, %v5425
        %v5538 = vadd.f32 %v5232, %v5430
        %v5539 = vadd.f32 %v5233, %v5433
        %v5540 = vadd.f32 %v5234, %v5438
        %v5541 = vadd.f32 %v5235, %v5441
        %v5542 = vadd.f32 %v5236, %v5446
        %v5543 = vadd.f32 %v5237, %v5449
        %v5544 = vadd.f32 %v5238, %v5454
        %v5545 = vadd.f32 %v5239, %v5457
        %v5546 = vadd.f32 %v5240, %v5462
        %v5547 = vadd.f32 %v5241, %v5465
        %v5548 = vadd.f32 %v5242, %v5470
        %v5549 = vadd.f32 %v5243, %v5473
        %v5550 = vadd.f32 %v5244, %v5478
        %v5551 = vadd.f32 %v5245, %v5481
        %v5552 = vadd.f32 %v5246, %v5486
        %v5553 = vadd.f32 %v5247, %v5489
        %v5554 = vadd.f32 %v5248, %v5494
        %v5555 = vadd.f32 %v5249, %v5497
        %v5556 = vadd.f32 %v5250, %v5502
        %v5557 = vadd.f32 %v5251, %v5505
        %v5558 = vadd.f32 %v5252, %v5510
        %v5559 = vadd.f32 %v5253, %v5513
        %v5560 = vadd.f32 %v5254, %v5518
        %v5561 = vadd.f32 %v5255, %v5521
        %v5562 = vadd.f32 %v5256, %v5526
        %v5563 = vadd.f32 %v5257, %v5529
        %s5564 = scalar_lea.vmem [#allocation3], 48
        %v5565 = vld [vmem:[%s5564] sm:$0xff]
        %v5566 = vld [vmem:[%s5564 + $0x8] sm:$0xff]
        %v5567 = vld [vmem:[%s5564 + $0x18] sm:$0xff]
        %v5568 = vld [vmem:[%s5564 + $0x20] sm:$0xff]
        %v5569 = vld [vmem:[%s5564 + $0x30] sm:$0xff]
        %v5570 = vld [vmem:[%s5564 + $0x38] sm:$0xff]
        %v5571 = vld [vmem:[%s5564 + $0x48] sm:$0xff]
        %v5572 = vld [vmem:[%s5564 + $0x50] sm:$0xff]
        %v5573 = vld [vmem:[%s5564 + $0x60] sm:$0xff]
        %v5574 = vld [vmem:[%s5564 + $0x68] sm:$0xff]
        %v5575 = vld [vmem:[%s5564 + $0x78] sm:$0xff]
        %v5576 = vld [vmem:[%s5564 + $0x80] sm:$0xff]
        %v5577 = vld [vmem:[%s5564 + $0x90] sm:$0xff]
        %v5578 = vld [vmem:[%s5564 + $0x98] sm:$0xff]
        %v5579 = vld [vmem:[%s5564 + $0xa8] sm:$0xff]
        %v5580 = vld [vmem:[%s5564 + $0xb0] sm:$0xff]
        %v5581 = vld [vmem:[%s5564 + $0xc0] sm:$0xff]
        %v5582 = vld [vmem:[%s5564 + $0xc8] sm:$0xff]
        %v5583 = vld [vmem:[%s5564 + $0xd8] sm:$0xff]
        %v5584 = vld [vmem:[%s5564 + $0xe0] sm:$0xff]
        %v5585 = vld [vmem:[%s5564 + $0xf0] sm:$0xff]
        %v5586 = vld [vmem:[%s5564 + $0xf8] sm:$0xff]
        %v5587 = vld [vmem:[%s5564 + $0x108] sm:$0xff]
        %v5588 = vld [vmem:[%s5564 + $0x110] sm:$0xff]
        %v5589 = vld [vmem:[%s5564 + $0x120] sm:$0xff]
        %v5590 = vld [vmem:[%s5564 + $0x128] sm:$0xff]
        %v5591 = vld [vmem:[%s5564 + $0x138] sm:$0xff]
        %v5592 = vld [vmem:[%s5564 + $0x140] sm:$0xff]
        %v5593 = vld [vmem:[%s5564 + $0x150] sm:$0xff]
        %v5594 = vld [vmem:[%s5564 + $0x158] sm:$0xff]
        %v5595 = vld [vmem:[%s5564 + $0x168] sm:$0xff]
        %v5596 = vld [vmem:[%s5564 + $0x170] sm:$0xff]
        %v5597 = vpack.c.bf16 %v5566, %v5565
        %v5598 = vpack.c.bf16 %v5568, %v5567
        %v5599 = vpack.c.bf16 %v5570, %v5569
        %v5600 = vpack.c.bf16 %v5572, %v5571
        %v5601 = vpack.c.bf16 %v5574, %v5573
        %v5602 = vpack.c.bf16 %v5576, %v5575
        %v5603 = vpack.c.bf16 %v5578, %v5577
        %v5604 = vpack.c.bf16 %v5580, %v5579
        %v5605 = vpack.c.bf16 %v5582, %v5581
        %v5606 = vpack.c.bf16 %v5584, %v5583
        %v5607 = vpack.c.bf16 %v5586, %v5585
        %v5608 = vpack.c.bf16 %v5588, %v5587
        %v5609 = vpack.c.bf16 %v5590, %v5589
        %v5610 = vpack.c.bf16 %v5592, %v5591
        %v5611 = vpack.c.bf16 %v5594, %v5593
        %v5612 = vpack.c.bf16 %v5596, %v5595
        %s5613 = scalar_lea.vmem [#allocation9], 384
        %v5614 = vld [vmem:[%s5613] sm:$0xf]
        %v5615 = vld [vmem:[%s5613 + $0x4] sm:$0xf]
        %v5616 = vld [vmem:[%s5613 + $0x8] sm:$0xf]
        %v5617 = vld [vmem:[%s5613 + $0xc] sm:$0xf]
        %v5618 = vld [vmem:[%s5613 + $0x10] sm:$0xf]
        %v5619 = vld [vmem:[%s5613 + $0x14] sm:$0xf]
        %v5620 = vld [vmem:[%s5613 + $0x18] sm:$0xf]
        %v5621 = vld [vmem:[%s5613 + $0x1c] sm:$0xf]
        %v5622 = vld [vmem:[%s5613 + $0x20] sm:$0xf]
        %v5623 = vld [vmem:[%s5613 + $0x24] sm:$0xf]
        %v5624 = vld [vmem:[%s5613 + $0x28] sm:$0xf]
        %v5625 = vld [vmem:[%s5613 + $0x2c] sm:$0xf]
        %v5626 = vld [vmem:[%s5613 + $0x30] sm:$0xf]
        %v5627 = vld [vmem:[%s5613 + $0x34] sm:$0xf]
        %v5628 = vld [vmem:[%s5613 + $0x38] sm:$0xf]
        %v5629 = vld [vmem:[%s5613 + $0x3c] sm:$0xf]
        %v5646 = vunpack.c.l.b16 %v5614
        %v5647 = vunpack.c.l.b16 %v5615
        %v5648 = vunpack.c.l.b16 %v5616
        %v5649 = vunpack.c.l.b16 %v5617
        %v5650 = vunpack.c.l.b16 %v5618
        %v5651 = vunpack.c.l.b16 %v5619
        %v5652 = vunpack.c.l.b16 %v5620
        %v5653 = vunpack.c.l.b16 %v5621
        %v5654 = vunpack.c.l.b16 %v5622
        %v5655 = vunpack.c.l.b16 %v5623
        %v5656 = vunpack.c.l.b16 %v5624
        %v5657 = vunpack.c.l.b16 %v5625
        %v5658 = vunpack.c.l.b16 %v5626
        %v5659 = vunpack.c.l.b16 %v5627
        %v5660 = vunpack.c.l.b16 %v5628
        %v5661 = vunpack.c.l.b16 %v5629
        %v5662 = vpack.c.b16 %v5647, %v5646
        %v5663 = vpack.c.b16 %v5649, %v5648
        %v5664 = vpack.c.b16 %v5651, %v5650
        %v5665 = vpack.c.b16 %v5653, %v5652
        %v5666 = vpack.c.b16 %v5655, %v5654
        %v5667 = vpack.c.b16 %v5657, %v5656
        %v5668 = vpack.c.b16 %v5659, %v5658
        %v5669 = vpack.c.b16 %v5661, %v5660
        %5678 = vmatprep.subr.bf16.mxu0 0
        %5679 = vmatpush1.bf16.msra.mxu0 %v5662
        %5680 = vmatprep.subr.bf16.mxu0 0
        %5681 = vmatpush1.bf16.msra.mxu0 %v5663
        %5682 = vmatprep.subr.bf16.mxu0 0
        %5683 = vmatpush1.bf16.msra.mxu0 %v5664
        %5684 = vmatprep.subr.bf16.mxu0 0
        %5685 = vmatpush1.bf16.msra.mxu0 %v5665
        %5686 = vmatprep.subr.bf16.mxu0 0
        %5687 = vmatpush1.bf16.msra.mxu0 %v5666
        %5688 = vmatprep.subr.bf16.mxu0 0
        %5689 = vmatpush1.bf16.msra.mxu0 %v5667
        %5690 = vmatprep.subr.bf16.mxu0 0
        %5691 = vmatpush1.bf16.msra.mxu0 %v5668
        %5692 = vmatprep.subr.bf16.mxu0 0
        %5693 = vmatpush1.bf16.msra.mxu0 %v5669
        %5694 = vmatprep.subr.bf16.mxu0 0
        %5695 = vmatpush1.bf16.msra.mxu0 0
        %5696 = vmatprep.subr.bf16.mxu0 0
        %5697 = vmatpush1.bf16.msra.mxu0 0
        %5698 = vmatprep.subr.bf16.mxu0 0
        %5699 = vmatpush1.bf16.msra.mxu0 0
        %5700 = vmatprep.subr.bf16.mxu0 0
        %5701 = vmatpush1.bf16.msra.mxu0 0
        %5702 = vmatprep.subr.bf16.mxu0 0
        %5703 = vmatpush1.bf16.msra.mxu0 0
        %5704 = vmatprep.subr.bf16.mxu0 0
        %5705 = vmatpush1.bf16.msra.mxu0 0
        %5706 = vmatprep.subr.bf16.mxu0 0
        %5707 = vmatpush1.bf16.msra.mxu0 0
        %5708 = vmatprep.subr.bf16.mxu0 0
        %5709 = vmatpush1.bf16.msra.mxu0 0
        %5710 = vmatprep.mubr.bf16.mxu0 0
        %5711 = vmatmul.mubr.bf16.gmra.mrb[0].mxu0 %v5597
        %v5712 = vpop.f32.mrb[0].mxu0
        %v5713 = vadd.f32 0.0, %v5712
        %v5714 = vpop.f32.mrb[0].mxu0
        %v5715 = vpop.f32.mrb[0].mxu0
        %v5716 = vadd.f32 0.0, %v5715
        %v5717 = vpop.f32.mrb[0].mxu0
        %5718 = vmatprep.mubr.bf16.mxu0 0
        %5719 = vmatmul.mubr.bf16.gmra.mrb[0].mxu0 %v5598
        %v5720 = vpop.f32.mrb[0].mxu0
        %v5721 = vadd.f32 0.0, %v5720
        %v5722 = vpop.f32.mrb[0].mxu0
        %v5723 = vpop.f32.mrb[0].mxu0
        %v5724 = vadd.f32 0.0, %v5723
        %v5725 = vpop.f32.mrb[0].mxu0
        %5726 = vmatprep.mubr.bf16.mxu0 0
        %5727 = vmatmul.mubr.bf16.gmra.mrb[0].mxu0 %v5599
        %v5728 = vpop.f32.mrb[0].mxu0
        %v5729 = vadd.f32 0.0, %v5728
        %v5730 = vpop.f32.mrb[0].mxu0
        %v5731 = vpop.f32.mrb[0].mxu0
        %v5732 = vadd.f32 0.0, %v5731
        %v5733 = vpop.f32.mrb[0].mxu0
        %5734 = vmatprep.mubr.bf16.mxu0 0
        %5735 = vmatmul.mubr.bf16.gmra.mrb[0].mxu0 %v5600
        %v5736 = vpop.f32.mrb[0].mxu0
        %v5737 = vadd.f32 0.0, %v5736
        %v5738 = vpop.f32.mrb[0].mxu0
        %v5739 = vpop.f32.mrb[0].mxu0
        %v5740 = vadd.f32 0.0, %v5739
        %v5741 = vpop.f32.mrb[0].mxu0
        %5742 = vmatprep.mubr.bf16.mxu0 0
        %5743 = vmatmul.mubr.bf16.gmra.mrb[0].mxu0 %v5601
        %v5744 = vpop.f32.mrb[0].mxu0
        %v5745 = vadd.f32 0.0, %v5744
        %v5746 = vpop.f32.mrb[0].mxu0
        %v5747 = vpop.f32.mrb[0].mxu0
        %v5748 = vadd.f32 0.0, %v5747
        %v5749 = vpop.f32.mrb[0].mxu0
        %5750 = vmatprep.mubr.bf16.mxu0 0
        %5751 = vmatmul.mubr.bf16.gmra.mrb[0].mxu0 %v5602
        %v5752 = vpop.f32.mrb[0].mxu0
        %v5753 = vadd.f32 0.0, %v5752
        %v5754 = vpop.f32.mrb[0].mxu0
        %v5755 = vpop.f32.mrb[0].mxu0
        %v5756 = vadd.f32 0.0, %v5755
        %v5757 = vpop.f32.mrb[0].mxu0
        %5758 = vmatprep.mubr.bf16.mxu0 0
        %5759 = vmatmul.mubr.bf16.gmra.mrb[0].mxu0 %v5603
        %v5760 = vpop.f32.mrb[0].mxu0
        %v5761 = vadd.f32 0.0, %v5760
        %v5762 = vpop.f32.mrb[0].mxu0
        %v5763 = vpop.f32.mrb[0].mxu0
        %v5764 = vadd.f32 0.0, %v5763
        %v5765 = vpop.f32.mrb[0].mxu0
        %5766 = vmatprep.mubr.bf16.mxu0 0
        %5767 = vmatmul.mubr.bf16.gmra.mrb[0].mxu0 %v5604
        %v5768 = vpop.f32.mrb[0].mxu0
        %v5769 = vadd.f32 0.0, %v5768
        %v5770 = vpop.f32.mrb[0].mxu0
        %v5771 = vpop.f32.mrb[0].mxu0
        %v5772 = vadd.f32 0.0, %v5771
        %v5773 = vpop.f32.mrb[0].mxu0
        %5774 = vmatprep.mubr.bf16.mxu0 0
        %5775 = vmatmul.mubr.bf16.gmra.mrb[0].mxu0 %v5605
        %v5776 = vpop.f32.mrb[0].mxu0
        %v5777 = vadd.f32 0.0, %v5776
        %v5778 = vpop.f32.mrb[0].mxu0
        %v5779 = vpop.f32.mrb[0].mxu0
        %v5780 = vadd.f32 0.0, %v5779
        %v5781 = vpop.f32.mrb[0].mxu0
        %5782 = vmatprep.mubr.bf16.mxu0 0
        %5783 = vmatmul.mubr.bf16.gmra.mrb[0].mxu0 %v5606
        %v5784 = vpop.f32.mrb[0].mxu0
        %v5785 = vadd.f32 0.0, %v5784
        %v5786 = vpop.f32.mrb[0].mxu0
        %v5787 = vpop.f32.mrb[0].mxu0
        %v5788 = vadd.f32 0.0, %v5787
        %v5789 = vpop.f32.mrb[0].mxu0
        %5790 = vmatprep.mubr.bf16.mxu0 0
        %5791 = vmatmul.mubr.bf16.gmra.mrb[0].mxu0 %v5607
        %v5792 = vpop.f32.mrb[0].mxu0
        %v5793 = vadd.f32 0.0, %v5792
        %v5794 = vpop.f32.mrb[0].mxu0
        %v5795 = vpop.f32.mrb[0].mxu0
        %v5796 = vadd.f32 0.0, %v5795
        %v5797 = vpop.f32.mrb[0].mxu0
        %5798 = vmatprep.mubr.bf16.mxu0 0
        %5799 = vmatmul.mubr.bf16.gmra.mrb[0].mxu0 %v5608
        %v5800 = vpop.f32.mrb[0].mxu0
        %v5801 = vadd.f32 0.0, %v5800
        %v5802 = vpop.f32.mrb[0].mxu0
        %v5803 = vpop.f32.mrb[0].mxu0
        %v5804 = vadd.f32 0.0, %v5803
        %v5805 = vpop.f32.mrb[0].mxu0
        %5806 = vmatprep.mubr.bf16.mxu0 0
        %5807 = vmatmul.mubr.bf16.gmra.mrb[0].mxu0 %v5609
        %v5808 = vpop.f32.mrb[0].mxu0
        %v5809 = vadd.f32 0.0, %v5808
        %v5810 = vpop.f32.mrb[0].mxu0
        %v5811 = vpop.f32.mrb[0].mxu0
        %v5812 = vadd.f32 0.0, %v5811
        %v5813 = vpop.f32.mrb[0].mxu0
        %5814 = vmatprep.mubr.bf16.mxu0 0
        %5815 = vmatmul.mubr.bf16.gmra.mrb[0].mxu0 %v5610
        %v5816 = vpop.f32.mrb[0].mxu0
        %v5817 = vadd.f32 0.0, %v5816
        %v5818 = vpop.f32.mrb[0].mxu0
        %v5819 = vpop.f32.mrb[0].mxu0
        %v5820 = vadd.f32 0.0, %v5819
        %v5821 = vpop.f32.mrb[0].mxu0
        %5822 = vmatprep.mubr.bf16.mxu0 0
        %5823 = vmatmul.mubr.bf16.gmra.mrb[0].mxu0 %v5611
        %v5824 = vpop.f32.mrb[0].mxu0
        %v5825 = vadd.f32 0.0, %v5824
        %v5826 = vpop.f32.mrb[0].mxu0
        %v5827 = vpop.f32.mrb[0].mxu0
        %v5828 = vadd.f32 0.0, %v5827
        %v5829 = vpop.f32.mrb[0].mxu0
        %5830 = vmatprep.mubr.bf16.mxu0 0
        %5831 = vmatmul.mubr.bf16.gmra.mrb[0].mxu0 %v5612
        %v5832 = vpop.f32.mrb[0].mxu0
        %v5833 = vadd.f32 0.0, %v5832
        %v5834 = vpop.f32.mrb[0].mxu0
        %v5835 = vpop.f32.mrb[0].mxu0
        %v5836 = vadd.f32 0.0, %v5835
        %v5837 = vpop.f32.mrb[0].mxu0
        %5838 = vdwg.mxu0
        %v5839 = vadd.f32 %v5532, %v5713
        %v5840 = vadd.f32 %v5533, %v5716
        %v5841 = vadd.f32 %v5534, %v5721
        %v5842 = vadd.f32 %v5535, %v5724
        %v5843 = vadd.f32 %v5536, %v5729
        %v5844 = vadd.f32 %v5537, %v5732
        %v5845 = vadd.f32 %v5538, %v5737
        %v5846 = vadd.f32 %v5539, %v5740
        %v5847 = vadd.f32 %v5540, %v5745
        %v5848 = vadd.f32 %v5541, %v5748
        %v5849 = vadd.f32 %v5542, %v5753
        %v5850 = vadd.f32 %v5543, %v5756
        %v5851 = vadd.f32 %v5544, %v5761
        %v5852 = vadd.f32 %v5545, %v5764
        %v5853 = vadd.f32 %v5546, %v5769
        %v5854 = vadd.f32 %v5547, %v5772
        %v5855 = vadd.f32 %v5548, %v5777
        %v5856 = vadd.f32 %v5549, %v5780
        %v5857 = vadd.f32 %v5550, %v5785
        %v5858 = vadd.f32 %v5551, %v5788
        %v5859 = vadd.f32 %v5552, %v5793
        %v5860 = vadd.f32 %v5553, %v5796
        %v5861 = vadd.f32 %v5554, %v5801
        %v5862 = vadd.f32 %v5555, %v5804
        %v5863 = vadd.f32 %v5556, %v5809
        %v5864 = vadd.f32 %v5557, %v5812
        %v5865 = vadd.f32 %v5558, %v5817
        %v5866 = vadd.f32 %v5559, %v5820
        %v5867 = vadd.f32 %v5560, %v5825
        %v5868 = vadd.f32 %v5561, %v5828
        %v5869 = vadd.f32 %v5562, %v5833
        %v5870 = vadd.f32 %v5563, %v5836
        %v5871 = vld [vmem:[%s5564 + $0x1] sm:$0xff]
        %v5872 = vld [vmem:[%s5564 + $0x9] sm:$0xff]
        %v5873 = vld [vmem:[%s5564 + $0x19] sm:$0xff]
        %v5874 = vld [vmem:[%s5564 + $0x21] sm:$0xff]
        %v5875 = vld [vmem:[%s5564 + $0x31] sm:$0xff]
        %v5876 = vld [vmem:[%s5564 + $0x39] sm:$0xff]
        %v5877 = vld [vmem:[%s5564 + $0x49] sm:$0xff]
        %v5878 = vld [vmem:[%s5564 + $0x51] sm:$0xff]
        %v5879 = vld [vmem:[%s5564 + $0x61] sm:$0xff]
        %v5880 = vld [vmem:[%s5564 + $0x69] sm:$0xff]
        %v5881 = vld [vmem:[%s5564 + $0x79] sm:$0xff]
        %v5882 = vld [vmem:[%s5564 + $0x81] sm:$0xff]
        %v5883 = vld [vmem:[%s5564 + $0x91] sm:$0xff]
        %v5884 = vld [vmem:[%s5564 + $0x99] sm:$0xff]
        %v5885 = vld [vmem:[%s5564 + $0xa9] sm:$0xff]
        %v5886 = vld [vmem:[%s5564 + $0xb1] sm:$0xff]
        %v5887 = vld [vmem:[%s5564 + $0xc1] sm:$0xff]
        %v5888 = vld [vmem:[%s5564 + $0xc9] sm:$0xff]
        %v5889 = vld [vmem:[%s5564 + $0xd9] sm:$0xff]
        %v5890 = vld [vmem:[%s5564 + $0xe1] sm:$0xff]
        %v5891 = vld [vmem:[%s5564 + $0xf1] sm:$0xff]
        %v5892 = vld [vmem:[%s5564 + $0xf9] sm:$0xff]
        %v5893 = vld [vmem:[%s5564 + $0x109] sm:$0xff]
        %v5894 = vld [vmem:[%s5564 + $0x111] sm:$0xff]
        %v5895 = vld [vmem:[%s5564 + $0x121] sm:$0xff]
        %v5896 = vld [vmem:[%s5564 + $0x129] sm:$0xff]
        %v5897 = vld [vmem:[%s5564 + $0x139] sm:$0xff]
        %v5898 = vld [vmem:[%s5564 + $0x141] sm:$0xff]
        %v5899 = vld [vmem:[%s5564 + $0x151] sm:$0xff]
        %v5900 = vld [vmem:[%s5564 + $0x159] sm:$0xff]
        %v5901 = vld [vmem:[%s5564 + $0x169] sm:$0xff]
        %v5902 = vld [vmem:[%s5564 + $0x171] sm:$0xff]
        %v5903 = vpack.c.bf16 %v5872, %v5871
        %v5904 = vpack.c.bf16 %v5874, %v5873
        %v5905 = vpack.c.bf16 %v5876, %v5875
        %v5906 = vpack.c.bf16 %v5878, %v5877
        %v5907 = vpack.c.bf16 %v5880, %v5879
        %v5908 = vpack.c.bf16 %v5882, %v5881
        %v5909 = vpack.c.bf16 %v5884, %v5883
        %v5910 = vpack.c.bf16 %v5886, %v5885
        %v5911 = vpack.c.bf16 %v5888, %v5887
        %v5912 = vpack.c.bf16 %v5890, %v5889
        %v5913 = vpack.c.bf16 %v5892, %v5891
        %v5914 = vpack.c.bf16 %v5894, %v5893
        %v5915 = vpack.c.bf16 %v5896, %v5895
        %v5916 = vpack.c.bf16 %v5898, %v5897
        %v5917 = vpack.c.bf16 %v5900, %v5899
        %v5918 = vpack.c.bf16 %v5902, %v5901
        %s5919 = scalar_lea.vmem [#allocation9], 448
        %v5920 = vld [vmem:[%s5919] sm:$0xf]
        %v5921 = vld [vmem:[%s5919 + $0x4] sm:$0xf]
        %v5922 = vld [vmem:[%s5919 + $0x8] sm:$0xf]
        %v5923 = vld [vmem:[%s5919 + $0xc] sm:$0xf]
        %v5924 = vld [vmem:[%s5919 + $0x10] sm:$0xf]
        %v5925 = vld [vmem:[%s5919 + $0x14] sm:$0xf]
        %v5926 = vld [vmem:[%s5919 + $0x18] sm:$0xf]
        %v5927 = vld [vmem:[%s5919 + $0x1c] sm:$0xf]
        %v5928 = vld [vmem:[%s5919 + $0x20] sm:$0xf]
        %v5929 = vld [vmem:[%s5919 + $0x24] sm:$0xf]
        %v5930 = vld [vmem:[%s5919 + $0x28] sm:$0xf]
        %v5931 = vld [vmem:[%s5919 + $0x2c] sm:$0xf]
        %v5932 = vld [vmem:[%s5919 + $0x30] sm:$0xf]
        %v5933 = vld [vmem:[%s5919 + $0x34] sm:$0xf]
        %v5934 = vld [vmem:[%s5919 + $0x38] sm:$0xf]
        %v5935 = vld [vmem:[%s5919 + $0x3c] sm:$0xf]
        %v5952 = vunpack.c.l.b16 %v5920
        %v5953 = vunpack.c.l.b16 %v5921
        %v5954 = vunpack.c.l.b16 %v5922
        %v5955 = vunpack.c.l.b16 %v5923
        %v5956 = vunpack.c.l.b16 %v5924
        %v5957 = vunpack.c.l.b16 %v5925
        %v5958 = vunpack.c.l.b16 %v5926
        %v5959 = vunpack.c.l.b16 %v5927
        %v5960 = vunpack.c.l.b16 %v5928
        %v5961 = vunpack.c.l.b16 %v5929
        %v5962 = vunpack.c.l.b16 %v5930
        %v5963 = vunpack.c.l.b16 %v5931
        %v5964 = vunpack.c.l.b16 %v5932
        %v5965 = vunpack.c.l.b16 %v5933
        %v5966 = vunpack.c.l.b16 %v5934
        %v5967 = vunpack.c.l.b16 %v5935
        %v5968 = vpack.c.b16 %v5953, %v5952
        %v5969 = vpack.c.b16 %v5955, %v5954
        %v5970 = vpack.c.b16 %v5957, %v5956
        %v5971 = vpack.c.b16 %v5959, %v5958
        %v5972 = vpack.c.b16 %v5961, %v5960
        %v5973 = vpack.c.b16 %v5963, %v5962
        %v5974 = vpack.c.b16 %v5965, %v5964
        %v5975 = vpack.c.b16 %v5967, %v5966
        %5984 = vmatprep.subr.bf16.mxu0 0
        %5985 = vmatpush1.bf16.msra.mxu0 %v5968
        %5986 = vmatprep.subr.bf16.mxu0 0
        %5987 = vmatpush1.bf16.msra.mxu0 %v5969
        %5988 = vmatprep.subr.bf16.mxu0 0
        %5989 = vmatpush1.bf16.msra.mxu0 %v5970
        %5990 = vmatprep.subr.bf16.mxu0 0
        %5991 = vmatpush1.bf16.msra.mxu0 %v5971
        %5992 = vmatprep.subr.bf16.mxu0 0
        %5993 = vmatpush1.bf16.msra.mxu0 %v5972
        %5994 = vmatprep.subr.bf16.mxu0 0
        %5995 = vmatpush1.bf16.msra.mxu0 %v5973
        %5996 = vmatprep.subr.bf16.mxu0 0
        %5997 = vmatpush1.bf16.msra.mxu0 %v5974
        %5998 = vmatprep.subr.bf16.mxu0 0
        %5999 = vmatpush1.bf16.msra.mxu0 %v5975
        %6000 = vmatprep.subr.bf16.mxu0 0
        %6001 = vmatpush1.bf16.msra.mxu0 0
        %6002 = vmatprep.subr.bf16.mxu0 0
        %6003 = vmatpush1.bf16.msra.mxu0 0
        %6004 = vmatprep.subr.bf16.mxu0 0
        %6005 = vmatpush1.bf16.msra.mxu0 0
        %6006 = vmatprep.subr.bf16.mxu0 0
        %6007 = vmatpush1.bf16.msra.mxu0 0
        %6008 = vmatprep.subr.bf16.mxu0 0
        %6009 = vmatpush1.bf16.msra.mxu0 0
        %6010 = vmatprep.subr.bf16.mxu0 0
        %6011 = vmatpush1.bf16.msra.mxu0 0
        %6012 = vmatprep.subr.bf16.mxu0 0
        %6013 = vmatpush1.bf16.msra.mxu0 0
        %6014 = vmatprep.subr.bf16.mxu0 0
        %6015 = vmatpush1.bf16.msra.mxu0 0
        %6016 = vmatprep.mubr.bf16.mxu0 0
        %6017 = vmatmul.mubr.bf16.gmra.mrb[0].mxu0 %v5903
        %v6018 = vpop.f32.mrb[0].mxu0
        %v6019 = vadd.f32 0.0, %v6018
        %v6020 = vpop.f32.mrb[0].mxu0
        %v6021 = vpop.f32.mrb[0].mxu0
        %v6022 = vadd.f32 0.0, %v6021
        %v6023 = vpop.f32.mrb[0].mxu0
        %6024 = vmatprep.mubr.bf16.mxu0 0
        %6025 = vmatmul.mubr.bf16.gmra.mrb[0].mxu0 %v5904
        %v6026 = vpop.f32.mrb[0].mxu0
        %v6027 = vadd.f32 0.0, %v6026
        %v6028 = vpop.f32.mrb[0].mxu0
        %v6029 = vpop.f32.mrb[0].mxu0
        %v6030 = vadd.f32 0.0, %v6029
        %v6031 = vpop.f32.mrb[0].mxu0
        %6032 = vmatprep.mubr.bf16.mxu0 0
        %6033 = vmatmul.mubr.bf16.gmra.mrb[0].mxu0 %v5905
        %v6034 = vpop.f32.mrb[0].mxu0
        %v6035 = vadd.f32 0.0, %v6034
        %v6036 = vpop.f32.mrb[0].mxu0
        %v6037 = vpop.f32.mrb[0].mxu0
        %v6038 = vadd.f32 0.0, %v6037
        %v6039 = vpop.f32.mrb[0].mxu0
        %6040 = vmatprep.mubr.bf16.mxu0 0
        %6041 = vmatmul.mubr.bf16.gmra.mrb[0].mxu0 %v5906
        %v6042 = vpop.f32.mrb[0].mxu0
        %v6043 = vadd.f32 0.0, %v6042
        %v6044 = vpop.f32.mrb[0].mxu0
        %v6045 = vpop.f32.mrb[0].mxu0
        %v6046 = vadd.f32 0.0, %v6045
        %v6047 = vpop.f32.mrb[0].mxu0
        %6048 = vmatprep.mubr.bf16.mxu0 0
        %6049 = vmatmul.mubr.bf16.gmra.mrb[0].mxu0 %v5907
        %v6050 = vpop.f32.mrb[0].mxu0
        %v6051 = vadd.f32 0.0, %v6050
        %v6052 = vpop.f32.mrb[0].mxu0
        %v6053 = vpop.f32.mrb[0].mxu0
        %v6054 = vadd.f32 0.0, %v6053
        %v6055 = vpop.f32.mrb[0].mxu0
        %6056 = vmatprep.mubr.bf16.mxu0 0
        %6057 = vmatmul.mubr.bf16.gmra.mrb[0].mxu0 %v5908
        %v6058 = vpop.f32.mrb[0].mxu0
        %v6059 = vadd.f32 0.0, %v6058
        %v6060 = vpop.f32.mrb[0].mxu0
        %v6061 = vpop.f32.mrb[0].mxu0
        %v6062 = vadd.f32 0.0, %v6061
        %v6063 = vpop.f32.mrb[0].mxu0
        %6064 = vmatprep.mubr.bf16.mxu0 0
        %6065 = vmatmul.mubr.bf16.gmra.mrb[0].mxu0 %v5909
        %v6066 = vpop.f32.mrb[0].mxu0
        %v6067 = vadd.f32 0.0, %v6066
        %v6068 = vpop.f32.mrb[0].mxu0
        %v6069 = vpop.f32.mrb[0].mxu0
        %v6070 = vadd.f32 0.0, %v6069
        %v6071 = vpop.f32.mrb[0].mxu0
        %6072 = vmatprep.mubr.bf16.mxu0 0
        %6073 = vmatmul.mubr.bf16.gmra.mrb[0].mxu0 %v5910
        %v6074 = vpop.f32.mrb[0].mxu0
        %v6075 = vadd.f32 0.0, %v6074
        %v6076 = vpop.f32.mrb[0].mxu0
        %v6077 = vpop.f32.mrb[0].mxu0
        %v6078 = vadd.f32 0.0, %v6077
        %v6079 = vpop.f32.mrb[0].mxu0
        %6080 = vmatprep.mubr.bf16.mxu0 0
        %6081 = vmatmul.mubr.bf16.gmra.mrb[0].mxu0 %v5911
        %v6082 = vpop.f32.mrb[0].mxu0
        %v6083 = vadd.f32 0.0, %v6082
        %v6084 = vpop.f32.mrb[0].mxu0
        %v6085 = vpop.f32.mrb[0].mxu0
        %v6086 = vadd.f32 0.0, %v6085
        %v6087 = vpop.f32.mrb[0].mxu0
        %6088 = vmatprep.mubr.bf16.mxu0 0
        %6089 = vmatmul.mubr.bf16.gmra.mrb[0].mxu0 %v5912
        %v6090 = vpop.f32.mrb[0].mxu0
        %v6091 = vadd.f32 0.0, %v6090
        %v6092 = vpop.f32.mrb[0].mxu0
        %v6093 = vpop.f32.mrb[0].mxu0
        %v6094 = vadd.f32 0.0, %v6093
        %v6095 = vpop.f32.mrb[0].mxu0
        %6096 = vmatprep.mubr.bf16.mxu0 0
        %6097 = vmatmul.mubr.bf16.gmra.mrb[0].mxu0 %v5913
        %v6098 = vpop.f32.mrb[0].mxu0
        %v6099 = vadd.f32 0.0, %v6098
        %v6100 = vpop.f32.mrb[0].mxu0
        %v6101 = vpop.f32.mrb[0].mxu0
        %v6102 = vadd.f32 0.0, %v6101
        %v6103 = vpop.f32.mrb[0].mxu0
        %6104 = vmatprep.mubr.bf16.mxu0 0
        %6105 = vmatmul.mubr.bf16.gmra.mrb[0].mxu0 %v5914
        %v6106 = vpop.f32.mrb[0].mxu0
        %v6107 = vadd.f32 0.0, %v6106
        %v6108 = vpop.f32.mrb[0].mxu0
        %v6109 = vpop.f32.mrb[0].mxu0
        %v6110 = vadd.f32 0.0, %v6109
        %v6111 = vpop.f32.mrb[0].mxu0
        %6112 = vmatprep.mubr.bf16.mxu0 0
        %6113 = vmatmul.mubr.bf16.gmra.mrb[0].mxu0 %v5915
        %v6114 = vpop.f32.mrb[0].mxu0
        %v6115 = vadd.f32 0.0, %v6114
        %v6116 = vpop.f32.mrb[0].mxu0
        %v6117 = vpop.f32.mrb[0].mxu0
        %v6118 = vadd.f32 0.0, %v6117
        %v6119 = vpop.f32.mrb[0].mxu0
        %6120 = vmatprep.mubr.bf16.mxu0 0
        %6121 = vmatmul.mubr.bf16.gmra.mrb[0].mxu0 %v5916
        %v6122 = vpop.f32.mrb[0].mxu0
        %v6123 = vadd.f32 0.0, %v6122
        %v6124 = vpop.f32.mrb[0].mxu0
        %v6125 = vpop.f32.mrb[0].mxu0
        %v6126 = vadd.f32 0.0, %v6125
        %v6127 = vpop.f32.mrb[0].mxu0
        %6128 = vmatprep.mubr.bf16.mxu0 0
        %6129 = vmatmul.mubr.bf16.gmra.mrb[0].mxu0 %v5917
        %v6130 = vpop.f32.mrb[0].mxu0
        %v6131 = vadd.f32 0.0, %v6130
        %v6132 = vpop.f32.mrb[0].mxu0
        %v6133 = vpop.f32.mrb[0].mxu0
        %v6134 = vadd.f32 0.0, %v6133
        %v6135 = vpop.f32.mrb[0].mxu0
        %6136 = vmatprep.mubr.bf16.mxu0 0
        %6137 = vmatmul.mubr.bf16.gmra.mrb[0].mxu0 %v5918
        %v6138 = vpop.f32.mrb[0].mxu0
        %v6139 = vadd.f32 0.0, %v6138
        %v6140 = vpop.f32.mrb[0].mxu0
        %v6141 = vpop.f32.mrb[0].mxu0
        %v6142 = vadd.f32 0.0, %v6141
        %v6143 = vpop.f32.mrb[0].mxu0
        %6144 = vdwg.mxu0
        %v6145 = vadd.f32 %v5839, %v6019
        %v6146 = vadd.f32 %v5840, %v6022
        %v6147 = vadd.f32 %v5841, %v6027
        %v6148 = vadd.f32 %v5842, %v6030
        %v6149 = vadd.f32 %v5843, %v6035
        %v6150 = vadd.f32 %v5844, %v6038
        %v6151 = vadd.f32 %v5845, %v6043
        %v6152 = vadd.f32 %v5846, %v6046
        %v6153 = vadd.f32 %v5847, %v6051
        %v6154 = vadd.f32 %v5848, %v6054
        %v6155 = vadd.f32 %v5849, %v6059
        %v6156 = vadd.f32 %v5850, %v6062
        %v6157 = vadd.f32 %v5851, %v6067
        %v6158 = vadd.f32 %v5852, %v6070
        %v6159 = vadd.f32 %v5853, %v6075
        %v6160 = vadd.f32 %v5854, %v6078
        %v6161 = vadd.f32 %v5855, %v6083
        %v6162 = vadd.f32 %v5856, %v6086
        %v6163 = vadd.f32 %v5857, %v6091
        %v6164 = vadd.f32 %v5858, %v6094
        %v6165 = vadd.f32 %v5859, %v6099
        %v6166 = vadd.f32 %v5860, %v6102
        %v6167 = vadd.f32 %v5861, %v6107
        %v6168 = vadd.f32 %v5862, %v6110
        %v6169 = vadd.f32 %v5863, %v6115
        %v6170 = vadd.f32 %v5864, %v6118
        %v6171 = vadd.f32 %v5865, %v6123
        %v6172 = vadd.f32 %v5866, %v6126
        %v6173 = vadd.f32 %v5867, %v6131
        %v6174 = vadd.f32 %v5868, %v6134
        %v6175 = vadd.f32 %v5869, %v6139
        %v6176 = vadd.f32 %v5870, %v6142
        %v6177 = vld [vmem:[%s5564 + $0x2] sm:$0xff]
        %v6178 = vld [vmem:[%s5564 + $0xa] sm:$0xff]
        %v6179 = vld [vmem:[%s5564 + $0x1a] sm:$0xff]
        %v6180 = vld [vmem:[%s5564 + $0x22] sm:$0xff]
        %v6181 = vld [vmem:[%s5564 + $0x32] sm:$0xff]
        %v6182 = vld [vmem:[%s5564 + $0x3a] sm:$0xff]
        %v6183 = vld [vmem:[%s5564 + $0x4a] sm:$0xff]
        %v6184 = vld [vmem:[%s5564 + $0x52] sm:$0xff]
        %v6185 = vld [vmem:[%s5564 + $0x62] sm:$0xff]
        %v6186 = vld [vmem:[%s5564 + $0x6a] sm:$0xff]
        %v6187 = vld [vmem:[%s5564 + $0x7a] sm:$0xff]
        %v6188 = vld [vmem:[%s5564 + $0x82] sm:$0xff]
        %v6189 = vld [vmem:[%s5564 + $0x92] sm:$0xff]
        %v6190 = vld [vmem:[%s5564 + $0x9a] sm:$0xff]
        %v6191 = vld [vmem:[%s5564 + $0xaa] sm:$0xff]
        %v6192 = vld [vmem:[%s5564 + $0xb2] sm:$0xff]
        %v6193 = vld [vmem:[%s5564 + $0xc2] sm:$0xff]
        %v6194 = vld [vmem:[%s5564 + $0xca] sm:$0xff]
        %v6195 = vld [vmem:[%s5564 + $0xda] sm:$0xff]
        %v6196 = vld [vmem:[%s5564 + $0xe2] sm:$0xff]
        %v6197 = vld [vmem:[%s5564 + $0xf2] sm:$0xff]
        %v6198 = vld [vmem:[%s5564 + $0xfa] sm:$0xff]
        %v6199 = vld [vmem:[%s5564 + $0x10a] sm:$0xff]
        %v6200 = vld [vmem:[%s5564 + $0x112] sm:$0xff]
        %v6201 = vld [vmem:[%s5564 + $0x122] sm:$0xff]
        %v6202 = vld [vmem:[%s5564 + $0x12a] sm:$0xff]
        %v6203 = vld [vmem:[%s5564 + $0x13a] sm:$0xff]
        %v6204 = vld [vmem:[%s5564 + $0x142] sm:$0xff]
        %v6205 = vld [vmem:[%s5564 + $0x152] sm:$0xff]
        %v6206 = vld [vmem:[%s5564 + $0x15a] sm:$0xff]
        %v6207 = vld [vmem:[%s5564 + $0x16a] sm:$0xff]
        %v6208 = vld [vmem:[%s5564 + $0x172] sm:$0xff]
        %v6209 = vpack.c.bf16 %v6178, %v6177
        %v6210 = vpack.c.bf16 %v6180, %v6179
        %v6211 = vpack.c.bf16 %v6182, %v6181
        %v6212 = vpack.c.bf16 %v6184, %v6183
        %v6213 = vpack.c.bf16 %v6186, %v6185
        %v6214 = vpack.c.bf16 %v6188, %v6187
        %v6215 = vpack.c.bf16 %v6190, %v6189
        %v6216 = vpack.c.bf16 %v6192, %v6191
        %v6217 = vpack.c.bf16 %v6194, %v6193
        %v6218 = vpack.c.bf16 %v6196, %v6195
        %v6219 = vpack.c.bf16 %v6198, %v6197
        %v6220 = vpack.c.bf16 %v6200, %v6199
        %v6221 = vpack.c.bf16 %v6202, %v6201
        %v6222 = vpack.c.bf16 %v6204, %v6203
        %v6223 = vpack.c.bf16 %v6206, %v6205
        %v6224 = vpack.c.bf16 %v6208, %v6207
        %s6225 = scalar_lea.vmem [#allocation9], 512
        %v6226 = vld [vmem:[%s6225] sm:$0xf]
        %v6227 = vld [vmem:[%s6225 + $0x4] sm:$0xf]
        %v6228 = vld [vmem:[%s6225 + $0x8] sm:$0xf]
        %v6229 = vld [vmem:[%s6225 + $0xc] sm:$0xf]
        %v6230 = vld [vmem:[%s6225 + $0x10] sm:$0xf]
        %v6231 = vld [vmem:[%s6225 + $0x14] sm:$0xf]
        %v6232 = vld [vmem:[%s6225 + $0x18] sm:$0xf]
        %v6233 = vld [vmem:[%s6225 + $0x1c] sm:$0xf]
        %v6234 = vld [vmem:[%s6225 + $0x20] sm:$0xf]
        %v6235 = vld [vmem:[%s6225 + $0x24] sm:$0xf]
        %v6236 = vld [vmem:[%s6225 + $0x28] sm:$0xf]
        %v6237 = vld [vmem:[%s6225 + $0x2c] sm:$0xf]
        %v6238 = vld [vmem:[%s6225 + $0x30] sm:$0xf]
        %v6239 = vld [vmem:[%s6225 + $0x34] sm:$0xf]
        %v6240 = vld [vmem:[%s6225 + $0x38] sm:$0xf]
        %v6241 = vld [vmem:[%s6225 + $0x3c] sm:$0xf]
        %v6258 = vunpack.c.l.b16 %v6226
        %v6259 = vunpack.c.l.b16 %v6227
        %v6260 = vunpack.c.l.b16 %v6228
        %v6261 = vunpack.c.l.b16 %v6229
        %v6262 = vunpack.c.l.b16 %v6230
        %v6263 = vunpack.c.l.b16 %v6231
        %v6264 = vunpack.c.l.b16 %v6232
        %v6265 = vunpack.c.l.b16 %v6233
        %v6266 = vunpack.c.l.b16 %v6234
        %v6267 = vunpack.c.l.b16 %v6235
        %v6268 = vunpack.c.l.b16 %v6236
        %v6269 = vunpack.c.l.b16 %v6237
        %v6270 = vunpack.c.l.b16 %v6238
        %v6271 = vunpack.c.l.b16 %v6239
        %v6272 = vunpack.c.l.b16 %v6240
        %v6273 = vunpack.c.l.b16 %v6241
        %v6274 = vpack.c.b16 %v6259, %v6258
        %v6275 = vpack.c.b16 %v6261, %v6260
        %v6276 = vpack.c.b16 %v6263, %v6262
        %v6277 = vpack.c.b16 %v6265, %v6264
        %v6278 = vpack.c.b16 %v6267, %v6266
        %v6279 = vpack.c.b16 %v6269, %v6268
        %v6280 = vpack.c.b16 %v6271, %v6270
        %v6281 = vpack.c.b16 %v6273, %v6272
        %6290 = vmatprep.subr.bf16.mxu0 0
        %6291 = vmatpush1.bf16.msra.mxu0 %v6274
        %6292 = vmatprep.subr.bf16.mxu0 0
        %6293 = vmatpush1.bf16.msra.mxu0 %v6275
        %6294 = vmatprep.subr.bf16.mxu0 0
        %6295 = vmatpush1.bf16.msra.mxu0 %v6276
        %6296 = vmatprep.subr.bf16.mxu0 0
        %6297 = vmatpush1.bf16.msra.mxu0 %v6277
        %6298 = vmatprep.subr.bf16.mxu0 0
        %6299 = vmatpush1.bf16.msra.mxu0 %v6278
        %6300 = vmatprep.subr.bf16.mxu0 0
        %6301 = vmatpush1.bf16.msra.mxu0 %v6279
        %6302 = vmatprep.subr.bf16.mxu0 0
        %6303 = vmatpush1.bf16.msra.mxu0 %v6280
        %6304 = vmatprep.subr.bf16.mxu0 0
        %6305 = vmatpush1.bf16.msra.mxu0 %v6281
        %6306 = vmatprep.subr.bf16.mxu0 0
        %6307 = vmatpush1.bf16.msra.mxu0 0
        %6308 = vmatprep.subr.bf16.mxu0 0
        %6309 = vmatpush1.bf16.msra.mxu0 0
        %6310 = vmatprep.subr.bf16.mxu0 0
        %6311 = vmatpush1.bf16.msra.mxu0 0
        %6312 = vmatprep.subr.bf16.mxu0 0
        %6313 = vmatpush1.bf16.msra.mxu0 0
        %6314 = vmatprep.subr.bf16.mxu0 0
        %6315 = vmatpush1.bf16.msra.mxu0 0
        %6316 = vmatprep.subr.bf16.mxu0 0
        %6317 = vmatpush1.bf16.msra.mxu0 0
        %6318 = vmatprep.subr.bf16.mxu0 0
        %6319 = vmatpush1.bf16.msra.mxu0 0
        %6320 = vmatprep.subr.bf16.mxu0 0
        %6321 = vmatpush1.bf16.msra.mxu0 0
        %6322 = vmatprep.mubr.bf16.mxu0 0
        %6323 = vmatmul.mubr.bf16.gmra.mrb[0].mxu0 %v6209
        %v6324 = vpop.f32.mrb[0].mxu0
        %v6325 = vadd.f32 0.0, %v6324
        %v6326 = vpop.f32.mrb[0].mxu0
        %v6327 = vpop.f32.mrb[0].mxu0
        %v6328 = vadd.f32 0.0, %v6327
        %v6329 = vpop.f32.mrb[0].mxu0
        %6330 = vmatprep.mubr.bf16.mxu0 0
        %6331 = vmatmul.mubr.bf16.gmra.mrb[0].mxu0 %v6210
        %v6332 = vpop.f32.mrb[0].mxu0
        %v6333 = vadd.f32 0.0, %v6332
        %v6334 = vpop.f32.mrb[0].mxu0
        %v6335 = vpop.f32.mrb[0].mxu0
        %v6336 = vadd.f32 0.0, %v6335
        %v6337 = vpop.f32.mrb[0].mxu0
        %6338 = vmatprep.mubr.bf16.mxu0 0
        %6339 = vmatmul.mubr.bf16.gmra.mrb[0].mxu0 %v6211
        %v6340 = vpop.f32.mrb[0].mxu0
        %v6341 = vadd.f32 0.0, %v6340
        %v6342 = vpop.f32.mrb[0].mxu0
        %v6343 = vpop.f32.mrb[0].mxu0
        %v6344 = vadd.f32 0.0, %v6343
        %v6345 = vpop.f32.mrb[0].mxu0
        %6346 = vmatprep.mubr.bf16.mxu0 0
        %6347 = vmatmul.mubr.bf16.gmra.mrb[0].mxu0 %v6212
        %v6348 = vpop.f32.mrb[0].mxu0
        %v6349 = vadd.f32 0.0, %v6348
        %v6350 = vpop.f32.mrb[0].mxu0
        %v6351 = vpop.f32.mrb[0].mxu0
        %v6352 = vadd.f32 0.0, %v6351
        %v6353 = vpop.f32.mrb[0].mxu0
        %6354 = vmatprep.mubr.bf16.mxu0 0
        %6355 = vmatmul.mubr.bf16.gmra.mrb[0].mxu0 %v6213
        %v6356 = vpop.f32.mrb[0].mxu0
        %v6357 = vadd.f32 0.0, %v6356
        %v6358 = vpop.f32.mrb[0].mxu0
        %v6359 = vpop.f32.mrb[0].mxu0
        %v6360 = vadd.f32 0.0, %v6359
        %v6361 = vpop.f32.mrb[0].mxu0
        %6362 = vmatprep.mubr.bf16.mxu0 0
        %6363 = vmatmul.mubr.bf16.gmra.mrb[0].mxu0 %v6214
        %v6364 = vpop.f32.mrb[0].mxu0
        %v6365 = vadd.f32 0.0, %v6364
        %v6366 = vpop.f32.mrb[0].mxu0
        %v6367 = vpop.f32.mrb[0].mxu0
        %v6368 = vadd.f32 0.0, %v6367
        %v6369 = vpop.f32.mrb[0].mxu0
        %6370 = vmatprep.mubr.bf16.mxu0 0
        %6371 = vmatmul.mubr.bf16.gmra.mrb[0].mxu0 %v6215
        %v6372 = vpop.f32.mrb[0].mxu0
        %v6373 = vadd.f32 0.0, %v6372
        %v6374 = vpop.f32.mrb[0].mxu0
        %v6375 = vpop.f32.mrb[0].mxu0
        %v6376 = vadd.f32 0.0, %v6375
        %v6377 = vpop.f32.mrb[0].mxu0
        %6378 = vmatprep.mubr.bf16.mxu0 0
        %6379 = vmatmul.mubr.bf16.gmra.mrb[0].mxu0 %v6216
        %v6380 = vpop.f32.mrb[0].mxu0
        %v6381 = vadd.f32 0.0, %v6380
        %v6382 = vpop.f32.mrb[0].mxu0
        %v6383 = vpop.f32.mrb[0].mxu0
        %v6384 = vadd.f32 0.0, %v6383
        %v6385 = vpop.f32.mrb[0].mxu0
        %6386 = vmatprep.mubr.bf16.mxu0 0
        %6387 = vmatmul.mubr.bf16.gmra.mrb[0].mxu0 %v6217
        %v6388 = vpop.f32.mrb[0].mxu0
        %v6389 = vadd.f32 0.0, %v6388
        %v6390 = vpop.f32.mrb[0].mxu0
        %v6391 = vpop.f32.mrb[0].mxu0
        %v6392 = vadd.f32 0.0, %v6391
        %v6393 = vpop.f32.mrb[0].mxu0
        %6394 = vmatprep.mubr.bf16.mxu0 0
        %6395 = vmatmul.mubr.bf16.gmra.mrb[0].mxu0 %v6218
        %v6396 = vpop.f32.mrb[0].mxu0
        %v6397 = vadd.f32 0.0, %v6396
        %v6398 = vpop.f32.mrb[0].mxu0
        %v6399 = vpop.f32.mrb[0].mxu0
        %v6400 = vadd.f32 0.0, %v6399
        %v6401 = vpop.f32.mrb[0].mxu0
        %6402 = vmatprep.mubr.bf16.mxu0 0
        %6403 = vmatmul.mubr.bf16.gmra.mrb[0].mxu0 %v6219
        %v6404 = vpop.f32.mrb[0].mxu0
        %v6405 = vadd.f32 0.0, %v6404
        %v6406 = vpop.f32.mrb[0].mxu0
        %v6407 = vpop.f32.mrb[0].mxu0
        %v6408 = vadd.f32 0.0, %v6407
        %v6409 = vpop.f32.mrb[0].mxu0
        %6410 = vmatprep.mubr.bf16.mxu0 0
        %6411 = vmatmul.mubr.bf16.gmra.mrb[0].mxu0 %v6220
        %v6412 = vpop.f32.mrb[0].mxu0
        %v6413 = vadd.f32 0.0, %v6412
        %v6414 = vpop.f32.mrb[0].mxu0
        %v6415 = vpop.f32.mrb[0].mxu0
        %v6416 = vadd.f32 0.0, %v6415
        %v6417 = vpop.f32.mrb[0].mxu0
        %6418 = vmatprep.mubr.bf16.mxu0 0
        %6419 = vmatmul.mubr.bf16.gmra.mrb[0].mxu0 %v6221
        %v6420 = vpop.f32.mrb[0].mxu0
        %v6421 = vadd.f32 0.0, %v6420
        %v6422 = vpop.f32.mrb[0].mxu0
        %v6423 = vpop.f32.mrb[0].mxu0
        %v6424 = vadd.f32 0.0, %v6423
        %v6425 = vpop.f32.mrb[0].mxu0
        %6426 = vmatprep.mubr.bf16.mxu0 0
        %6427 = vmatmul.mubr.bf16.gmra.mrb[0].mxu0 %v6222
        %v6428 = vpop.f32.mrb[0].mxu0
        %v6429 = vadd.f32 0.0, %v6428
        %v6430 = vpop.f32.mrb[0].mxu0
        %v6431 = vpop.f32.mrb[0].mxu0
        %v6432 = vadd.f32 0.0, %v6431
        %v6433 = vpop.f32.mrb[0].mxu0
        %6434 = vmatprep.mubr.bf16.mxu0 0
        %6435 = vmatmul.mubr.bf16.gmra.mrb[0].mxu0 %v6223
        %v6436 = vpop.f32.mrb[0].mxu0
        %v6437 = vadd.f32 0.0, %v6436
        %v6438 = vpop.f32.mrb[0].mxu0
        %v6439 = vpop.f32.mrb[0].mxu0
        %v6440 = vadd.f32 0.0, %v6439
        %v6441 = vpop.f32.mrb[0].mxu0
        %6442 = vmatprep.mubr.bf16.mxu0 0
        %6443 = vmatmul.mubr.bf16.gmra.mrb[0].mxu0 %v6224
        %v6444 = vpop.f32.mrb[0].mxu0
        %v6445 = vadd.f32 0.0, %v6444
        %v6446 = vpop.f32.mrb[0].mxu0
        %v6447 = vpop.f32.mrb[0].mxu0
        %v6448 = vadd.f32 0.0, %v6447
        %v6449 = vpop.f32.mrb[0].mxu0
        %6450 = vdwg.mxu0
        %v6451 = vadd.f32 %v6145, %v6325
        %v6452 = vadd.f32 %v6146, %v6328
        %v6453 = vadd.f32 %v6147, %v6333
        %v6454 = vadd.f32 %v6148, %v6336
        %v6455 = vadd.f32 %v6149, %v6341
        %v6456 = vadd.f32 %v6150, %v6344
        %v6457 = vadd.f32 %v6151, %v6349
        %v6458 = vadd.f32 %v6152, %v6352
        %v6459 = vadd.f32 %v6153, %v6357
        %v6460 = vadd.f32 %v6154, %v6360
        %v6461 = vadd.f32 %v6155, %v6365
        %v6462 = vadd.f32 %v6156, %v6368
        %v6463 = vadd.f32 %v6157, %v6373
        %v6464 = vadd.f32 %v6158, %v6376
        %v6465 = vadd.f32 %v6159, %v6381
        %v6466 = vadd.f32 %v6160, %v6384
        %v6467 = vadd.f32 %v6161, %v6389
        %v6468 = vadd.f32 %v6162, %v6392
        %v6469 = vadd.f32 %v6163, %v6397
        %v6470 = vadd.f32 %v6164, %v6400
        %v6471 = vadd.f32 %v6165, %v6405
        %v6472 = vadd.f32 %v6166, %v6408
        %v6473 = vadd.f32 %v6167, %v6413
        %v6474 = vadd.f32 %v6168, %v6416
        %v6475 = vadd.f32 %v6169, %v6421
        %v6476 = vadd.f32 %v6170, %v6424
        %v6477 = vadd.f32 %v6171, %v6429
        %v6478 = vadd.f32 %v6172, %v6432
        %v6479 = vadd.f32 %v6173, %v6437
        %v6480 = vadd.f32 %v6174, %v6440
        %v6481 = vadd.f32 %v6175, %v6445
        %v6482 = vadd.f32 %v6176, %v6448
        %v6484 = vlaneseq
        %v6485 = vshrl.u32 %v6484, 7
        %v6486 = vsub.s32 0, %v6485
        %v6487 = vrot.slane %v329, %v6486
        %v6489 = vmul.f32 %v6451, %v6487
        %v6490 = vmul.f32 %v6452, %v6487
        %v6491 = vmul.f32 %v6453, %v6487
        %v6492 = vmul.f32 %v6454, %v6487
        %v6493 = vmul.f32 %v6455, %v6487
        %v6494 = vmul.f32 %v6456, %v6487
        %v6495 = vmul.f32 %v6457, %v6487
        %v6496 = vmul.f32 %v6458, %v6487
        %v6497 = vmul.f32 %v6459, %v6487
        %v6498 = vmul.f32 %v6460, %v6487
        %v6499 = vmul.f32 %v6461, %v6487
        %v6500 = vmul.f32 %v6462, %v6487
        %v6501 = vmul.f32 %v6463, %v6487
        %v6502 = vmul.f32 %v6464, %v6487
        %v6503 = vmul.f32 %v6465, %v6487
        %v6504 = vmul.f32 %v6466, %v6487
        %v6505 = vmul.f32 %v6467, %v6487
        %v6506 = vmul.f32 %v6468, %v6487
        %v6507 = vmul.f32 %v6469, %v6487
        %v6508 = vmul.f32 %v6470, %v6487
        %v6509 = vmul.f32 %v6471, %v6487
        %v6510 = vmul.f32 %v6472, %v6487
        %v6511 = vmul.f32 %v6473, %v6487
        %v6512 = vmul.f32 %v6474, %v6487
        %v6513 = vmul.f32 %v6475, %v6487
        %v6514 = vmul.f32 %v6476, %v6487
        %v6515 = vmul.f32 %v6477, %v6487
        %v6516 = vmul.f32 %v6478, %v6487
        %v6517 = vmul.f32 %v6479, %v6487
        %v6518 = vmul.f32 %v6480, %v6487
        %v6519 = vmul.f32 %v6481, %v6487
        %v6520 = vmul.f32 %v6482, %v6487
        %v6522 = vlaneseq
        %v6523 = vshrl.u32 %v6522, 7
        %v6524 = vsub.s32 0, %v6523
        %v6525 = vrot.slane %v330, %v6524
        %v6527 = vadd.f32 %v6489, %v6525
        %v6528 = vadd.f32 %v6490, %v6525
        %v6529 = vadd.f32 %v6491, %v6525
        %v6530 = vadd.f32 %v6492, %v6525
        %v6531 = vadd.f32 %v6493, %v6525
        %v6532 = vadd.f32 %v6494, %v6525
        %v6533 = vadd.f32 %v6495, %v6525
        %v6534 = vadd.f32 %v6496, %v6525
        %v6535 = vadd.f32 %v6497, %v6525
        %v6536 = vadd.f32 %v6498, %v6525
        %v6537 = vadd.f32 %v6499, %v6525
        %v6538 = vadd.f32 %v6500, %v6525
        %v6539 = vadd.f32 %v6501, %v6525
        %v6540 = vadd.f32 %v6502, %v6525
        %v6541 = vadd.f32 %v6503, %v6525
        %v6542 = vadd.f32 %v6504, %v6525
        %v6543 = vadd.f32 %v6505, %v6525
        %v6544 = vadd.f32 %v6506, %v6525
        %v6545 = vadd.f32 %v6507, %v6525
        %v6546 = vadd.f32 %v6508, %v6525
        %v6547 = vadd.f32 %v6509, %v6525
        %v6548 = vadd.f32 %v6510, %v6525
        %v6549 = vadd.f32 %v6511, %v6525
        %v6550 = vadd.f32 %v6512, %v6525
        %v6551 = vadd.f32 %v6513, %v6525
        %v6552 = vadd.f32 %v6514, %v6525
        %v6553 = vadd.f32 %v6515, %v6525
        %v6554 = vadd.f32 %v6516, %v6525
        %v6555 = vadd.f32 %v6517, %v6525
        %v6556 = vadd.f32 %v6518, %v6525
        %v6557 = vadd.f32 %v6519, %v6525
        %v6558 = vadd.f32 %v6520, %v6525
        %v6559 = vld [vmem:[%s287] sm:$0xff]
        %v6560 = vld [vmem:[%s287 + $0x8] sm:$0xff]
        %v6561 = vld [vmem:[%s287 + $0x10] sm:$0xff]
        %v6562 = vld [vmem:[%s287 + $0x18] sm:$0xff]
        %v6563 = vld [vmem:[%s287 + $0x20] sm:$0xff]
        %v6564 = vld [vmem:[%s287 + $0x28] sm:$0xff]
        %v6565 = vld [vmem:[%s287 + $0x30] sm:$0xff]
        %v6566 = vld [vmem:[%s287 + $0x38] sm:$0xff]
        %v6567 = vld [vmem:[%s287 + $0x40] sm:$0xff]
        %v6568 = vld [vmem:[%s287 + $0x48] sm:$0xff]
        %v6569 = vld [vmem:[%s287 + $0x50] sm:$0xff]
        %v6570 = vld [vmem:[%s287 + $0x58] sm:$0xff]
        %v6571 = vld [vmem:[%s287 + $0x60] sm:$0xff]
        %v6572 = vld [vmem:[%s287 + $0x68] sm:$0xff]
        %v6573 = vld [vmem:[%s287 + $0x70] sm:$0xff]
        %v6574 = vld [vmem:[%s287 + $0x78] sm:$0xff]
        %v6575 = vld [vmem:[%s287 + $0x80] sm:$0xff]
        %v6576 = vld [vmem:[%s287 + $0x88] sm:$0xff]
        %v6577 = vld [vmem:[%s287 + $0x90] sm:$0xff]
        %v6578 = vld [vmem:[%s287 + $0x98] sm:$0xff]
        %v6579 = vld [vmem:[%s287 + $0xa0] sm:$0xff]
        %v6580 = vld [vmem:[%s287 + $0xa8] sm:$0xff]
        %v6581 = vld [vmem:[%s287 + $0xb0] sm:$0xff]
        %v6582 = vld [vmem:[%s287 + $0xb8] sm:$0xff]
        %v6583 = vld [vmem:[%s287 + $0xc0] sm:$0xff]
        %v6584 = vld [vmem:[%s287 + $0xc8] sm:$0xff]
        %v6585 = vld [vmem:[%s287 + $0xd0] sm:$0xff]
        %v6586 = vld [vmem:[%s287 + $0xd8] sm:$0xff]
        %v6587 = vld [vmem:[%s287 + $0xe0] sm:$0xff]
        %v6588 = vld [vmem:[%s287 + $0xe8] sm:$0xff]
        %v6589 = vld [vmem:[%s287 + $0xf0] sm:$0xff]
        %v6590 = vld [vmem:[%s287 + $0xf8] sm:$0xff]
        %v6591 = vadd.f32 %v6527, %v6559
        %v6592 = vadd.f32 %v6528, %v6560
        %v6593 = vadd.f32 %v6529, %v6561
        %v6594 = vadd.f32 %v6530, %v6562
        %v6595 = vadd.f32 %v6531, %v6563
        %v6596 = vadd.f32 %v6532, %v6564
        %v6597 = vadd.f32 %v6533, %v6565
        %v6598 = vadd.f32 %v6534, %v6566
        %v6599 = vadd.f32 %v6535, %v6567
        %v6600 = vadd.f32 %v6536, %v6568
        %v6601 = vadd.f32 %v6537, %v6569
        %v6602 = vadd.f32 %v6538, %v6570
        %v6603 = vadd.f32 %v6539, %v6571
        %v6604 = vadd.f32 %v6540, %v6572
        %v6605 = vadd.f32 %v6541, %v6573
        %v6606 = vadd.f32 %v6542, %v6574
        %v6607 = vadd.f32 %v6543, %v6575
        %v6608 = vadd.f32 %v6544, %v6576
        %v6609 = vadd.f32 %v6545, %v6577
        %v6610 = vadd.f32 %v6546, %v6578
        %v6611 = vadd.f32 %v6547, %v6579
        %v6612 = vadd.f32 %v6548, %v6580
        %v6613 = vadd.f32 %v6549, %v6581
        %v6614 = vadd.f32 %v6550, %v6582
        %v6615 = vadd.f32 %v6551, %v6583
        %v6616 = vadd.f32 %v6552, %v6584
        %v6617 = vadd.f32 %v6553, %v6585
        %v6618 = vadd.f32 %v6554, %v6586
        %v6619 = vadd.f32 %v6555, %v6587
        %v6620 = vadd.f32 %v6556, %v6588
        %v6621 = vadd.f32 %v6557, %v6589
        %v6622 = vadd.f32 %v6558, %v6590
        %vm6623 = vcmp.gt.f32.partialorder %v6591, 20.0
        %vm6624 = vcmp.gt.f32.partialorder %v6592, 20.0
        %vm6625 = vcmp.gt.f32.partialorder %v6593, 20.0
        %vm6626 = vcmp.gt.f32.partialorder %v6594, 20.0
        %vm6627 = vcmp.gt.f32.partialorder %v6595, 20.0
        %vm6628 = vcmp.gt.f32.partialorder %v6596, 20.0
        %vm6629 = vcmp.gt.f32.partialorder %v6597, 20.0
        %vm6630 = vcmp.gt.f32.partialorder %v6598, 20.0
        %vm6631 = vcmp.gt.f32.partialorder %v6599, 20.0
        %vm6632 = vcmp.gt.f32.partialorder %v6600, 20.0
        %vm6633 = vcmp.gt.f32.partialorder %v6601, 20.0
        %vm6634 = vcmp.gt.f32.partialorder %v6602, 20.0
        %vm6635 = vcmp.gt.f32.partialorder %v6603, 20.0
        %vm6636 = vcmp.gt.f32.partialorder %v6604, 20.0
        %vm6637 = vcmp.gt.f32.partialorder %v6605, 20.0
        %vm6638 = vcmp.gt.f32.partialorder %v6606, 20.0
        %vm6639 = vcmp.gt.f32.partialorder %v6607, 20.0
        %vm6640 = vcmp.gt.f32.partialorder %v6608, 20.0
        %vm6641 = vcmp.gt.f32.partialorder %v6609, 20.0
        %vm6642 = vcmp.gt.f32.partialorder %v6610, 20.0
        %vm6643 = vcmp.gt.f32.partialorder %v6611, 20.0
        %vm6644 = vcmp.gt.f32.partialorder %v6612, 20.0
        %vm6645 = vcmp.gt.f32.partialorder %v6613, 20.0
        %vm6646 = vcmp.gt.f32.partialorder %v6614, 20.0
        %vm6647 = vcmp.gt.f32.partialorder %v6615, 20.0
        %vm6648 = vcmp.gt.f32.partialorder %v6616, 20.0
        %vm6649 = vcmp.gt.f32.partialorder %v6617, 20.0
        %vm6650 = vcmp.gt.f32.partialorder %v6618, 20.0
        %vm6651 = vcmp.gt.f32.partialorder %v6619, 20.0
        %vm6652 = vcmp.gt.f32.partialorder %v6620, 20.0
        %vm6653 = vcmp.gt.f32.partialorder %v6621, 20.0
        %vm6654 = vcmp.gt.f32.partialorder %v6622, 20.0
        %v6655 = vmin.f32 %v6591, 20.0
        %v6656 = vmin.f32 %v6592, 20.0
        %v6657 = vmin.f32 %v6593, 20.0
        %v6658 = vmin.f32 %v6594, 20.0
        %v6659 = vmin.f32 %v6595, 20.0
        %v6660 = vmin.f32 %v6596, 20.0
        %v6661 = vmin.f32 %v6597, 20.0
        %v6662 = vmin.f32 %v6598, 20.0
        %v6663 = vmin.f32 %v6599, 20.0
        %v6664 = vmin.f32 %v6600, 20.0
        %v6665 = vmin.f32 %v6601, 20.0
        %v6666 = vmin.f32 %v6602, 20.0
        %v6667 = vmin.f32 %v6603, 20.0
        %v6668 = vmin.f32 %v6604, 20.0
        %v6669 = vmin.f32 %v6605, 20.0
        %v6670 = vmin.f32 %v6606, 20.0
        %v6671 = vmin.f32 %v6607, 20.0
        %v6672 = vmin.f32 %v6608, 20.0
        %v6673 = vmin.f32 %v6609, 20.0
        %v6674 = vmin.f32 %v6610, 20.0
        %v6675 = vmin.f32 %v6611, 20.0
        %v6676 = vmin.f32 %v6612, 20.0
        %v6677 = vmin.f32 %v6613, 20.0
        %v6678 = vmin.f32 %v6614, 20.0
        %v6679 = vmin.f32 %v6615, 20.0
        %v6680 = vmin.f32 %v6616, 20.0
        %v6681 = vmin.f32 %v6617, 20.0
        %v6682 = vmin.f32 %v6618, 20.0
        %v6683 = vmin.f32 %v6619, 20.0
        %v6684 = vmin.f32 %v6620, 20.0
        %v6685 = vmin.f32 %v6621, 20.0
        %v6686 = vmin.f32 %v6622, 20.0
        %v6687 = vmul.f32 %v6655, 1.442695
        %v6688 = vpow.pop %v6687
        %v6689 = vmul.f32 %v6656, 1.442695
        %v6690 = vpow.pop %v6689
        %v6691 = vmul.f32 %v6657, 1.442695
        %v6692 = vpow.pop %v6691
        %v6693 = vmul.f32 %v6658, 1.442695
        %v6694 = vpow.pop %v6693
        %v6695 = vmul.f32 %v6659, 1.442695
        %v6696 = vpow.pop %v6695
        %v6697 = vmul.f32 %v6660, 1.442695
        %v6698 = vpow.pop %v6697
        %v6699 = vmul.f32 %v6661, 1.442695
        %v6700 = vpow.pop %v6699
        %v6701 = vmul.f32 %v6662, 1.442695
        %v6702 = vpow.pop %v6701
        %v6703 = vmul.f32 %v6663, 1.442695
        %v6704 = vpow.pop %v6703
        %v6705 = vmul.f32 %v6664, 1.442695
        %v6706 = vpow.pop %v6705
        %v6707 = vmul.f32 %v6665, 1.442695
        %v6708 = vpow.pop %v6707
        %v6709 = vmul.f32 %v6666, 1.442695
        %v6710 = vpow.pop %v6709
        %v6711 = vmul.f32 %v6667, 1.442695
        %v6712 = vpow.pop %v6711
        %v6713 = vmul.f32 %v6668, 1.442695
        %v6714 = vpow.pop %v6713
        %v6715 = vmul.f32 %v6669, 1.442695
        %v6716 = vpow.pop %v6715
        %v6717 = vmul.f32 %v6670, 1.442695
        %v6718 = vpow.pop %v6717
        %v6719 = vmul.f32 %v6671, 1.442695
        %v6720 = vpow.pop %v6719
        %v6721 = vmul.f32 %v6672, 1.442695
        %v6722 = vpow.pop %v6721
        %v6723 = vmul.f32 %v6673, 1.442695
        %v6724 = vpow.pop %v6723
        %v6725 = vmul.f32 %v6674, 1.442695
        %v6726 = vpow.pop %v6725
        %v6727 = vmul.f32 %v6675, 1.442695
        %v6728 = vpow.pop %v6727
        %v6729 = vmul.f32 %v6676, 1.442695
        %v6730 = vpow.pop %v6729
        %v6731 = vmul.f32 %v6677, 1.442695
        %v6732 = vpow.pop %v6731
        %v6733 = vmul.f32 %v6678, 1.442695
        %v6734 = vpow.pop %v6733
        %v6735 = vmul.f32 %v6679, 1.442695
        %v6736 = vpow.pop %v6735
        %v6737 = vmul.f32 %v6680, 1.442695
        %v6738 = vpow.pop %v6737
        %v6739 = vmul.f32 %v6681, 1.442695
        %v6740 = vpow.pop %v6739
        %v6741 = vmul.f32 %v6682, 1.442695
        %v6742 = vpow.pop %v6741
        %v6743 = vmul.f32 %v6683, 1.442695
        %v6744 = vpow.pop %v6743
        %v6745 = vmul.f32 %v6684, 1.442695
        %v6746 = vpow.pop %v6745
        %v6747 = vmul.f32 %v6685, 1.442695
        %v6748 = vpow.pop %v6747
        %v6749 = vmul.f32 %v6686, 1.442695
        %v6750 = vpow.pop %v6749
        %v6751 = vadd.f32 %v6688, 1.0
        %v6752 = vlog2.pop %v6751
        %v6753 = vmul.f32 %v6752, 0.6931472
        %v6754 = vmul.f32 -0.5, %v6688
        %v6755 = vadd.f32 %v6754, 1.0
        %v6756 = vmul.f32 %v6755, %v6688
        %v6757 = vand.u32 2147483647, %v6688
        %vm6758 = vcmp.lt.f32.partialorder %v6757, 0.0004427343
        %v6759 = vsel %vm6758, %v6756, %v6753
        %v6760 = vadd.f32 %v6690, 1.0
        %v6761 = vlog2.pop %v6760
        %v6762 = vmul.f32 %v6761, 0.6931472
        %v6763 = vmul.f32 -0.5, %v6690
        %v6764 = vadd.f32 %v6763, 1.0
        %v6765 = vmul.f32 %v6764, %v6690
        %v6766 = vand.u32 2147483647, %v6690
        %vm6767 = vcmp.lt.f32.partialorder %v6766, 0.0004427343
        %v6768 = vsel %vm6767, %v6765, %v6762
        %v6769 = vadd.f32 %v6692, 1.0
        %v6770 = vlog2.pop %v6769
        %v6771 = vmul.f32 %v6770, 0.6931472
        %v6772 = vmul.f32 -0.5, %v6692
        %v6773 = vadd.f32 %v6772, 1.0
        %v6774 = vmul.f32 %v6773, %v6692
        %v6775 = vand.u32 2147483647, %v6692
        %vm6776 = vcmp.lt.f32.partialorder %v6775, 0.0004427343
        %v6777 = vsel %vm6776, %v6774, %v6771
        %v6778 = vadd.f32 %v6694, 1.0
        %v6779 = vlog2.pop %v6778
        %v6780 = vmul.f32 %v6779, 0.6931472
        %v6781 = vmul.f32 -0.5, %v6694
        %v6782 = vadd.f32 %v6781, 1.0
        %v6783 = vmul.f32 %v6782, %v6694
        %v6784 = vand.u32 2147483647, %v6694
        %vm6785 = vcmp.lt.f32.partialorder %v6784, 0.0004427343
        %v6786 = vsel %vm6785, %v6783, %v6780
        %v6787 = vadd.f32 %v6696, 1.0
        %v6788 = vlog2.pop %v6787
        %v6789 = vmul.f32 %v6788, 0.6931472
        %v6790 = vmul.f32 -0.5, %v6696
        %v6791 = vadd.f32 %v6790, 1.0
        %v6792 = vmul.f32 %v6791, %v6696
        %v6793 = vand.u32 2147483647, %v6696
        %vm6794 = vcmp.lt.f32.partialorder %v6793, 0.0004427343
        %v6795 = vsel %vm6794, %v6792, %v6789
        %v6796 = vadd.f32 %v6698, 1.0
        %v6797 = vlog2.pop %v6796
        %v6798 = vmul.f32 %v6797, 0.6931472
        %v6799 = vmul.f32 -0.5, %v6698
        %v6800 = vadd.f32 %v6799, 1.0
        %v6801 = vmul.f32 %v6800, %v6698
        %v6802 = vand.u32 2147483647, %v6698
        %vm6803 = vcmp.lt.f32.partialorder %v6802, 0.0004427343
        %v6804 = vsel %vm6803, %v6801, %v6798
        %v6805 = vadd.f32 %v6700, 1.0
        %v6806 = vlog2.pop %v6805
        %v6807 = vmul.f32 %v6806, 0.6931472
        %v6808 = vmul.f32 -0.5, %v6700
        %v6809 = vadd.f32 %v6808, 1.0
        %v6810 = vmul.f32 %v6809, %v6700
        %v6811 = vand.u32 2147483647, %v6700
        %vm6812 = vcmp.lt.f32.partialorder %v6811, 0.0004427343
        %v6813 = vsel %vm6812, %v6810, %v6807
        %v6814 = vadd.f32 %v6702, 1.0
        %v6815 = vlog2.pop %v6814
        %v6816 = vmul.f32 %v6815, 0.6931472
        %v6817 = vmul.f32 -0.5, %v6702
        %v6818 = vadd.f32 %v6817, 1.0
        %v6819 = vmul.f32 %v6818, %v6702
        %v6820 = vand.u32 2147483647, %v6702
        %vm6821 = vcmp.lt.f32.partialorder %v6820, 0.0004427343
        %v6822 = vsel %vm6821, %v6819, %v6816
        %v6823 = vadd.f32 %v6704, 1.0
        %v6824 = vlog2.pop %v6823
        %v6825 = vmul.f32 %v6824, 0.6931472
        %v6826 = vmul.f32 -0.5, %v6704
        %v6827 = vadd.f32 %v6826, 1.0
        %v6828 = vmul.f32 %v6827, %v6704
        %v6829 = vand.u32 2147483647, %v6704
        %vm6830 = vcmp.lt.f32.partialorder %v6829, 0.0004427343
        %v6831 = vsel %vm6830, %v6828, %v6825
        %v6832 = vadd.f32 %v6706, 1.0
        %v6833 = vlog2.pop %v6832
        %v6834 = vmul.f32 %v6833, 0.6931472
        %v6835 = vmul.f32 -0.5, %v6706
        %v6836 = vadd.f32 %v6835, 1.0
        %v6837 = vmul.f32 %v6836, %v6706
        %v6838 = vand.u32 2147483647, %v6706
        %vm6839 = vcmp.lt.f32.partialorder %v6838, 0.0004427343
        %v6840 = vsel %vm6839, %v6837, %v6834
        %v6841 = vadd.f32 %v6708, 1.0
        %v6842 = vlog2.pop %v6841
        %v6843 = vmul.f32 %v6842, 0.6931472
        %v6844 = vmul.f32 -0.5, %v6708
        %v6845 = vadd.f32 %v6844, 1.0
        %v6846 = vmul.f32 %v6845, %v6708
        %v6847 = vand.u32 2147483647, %v6708
        %vm6848 = vcmp.lt.f32.partialorder %v6847, 0.0004427343
        %v6849 = vsel %vm6848, %v6846, %v6843
        %v6850 = vadd.f32 %v6710, 1.0
        %v6851 = vlog2.pop %v6850
        %v6852 = vmul.f32 %v6851, 0.6931472
        %v6853 = vmul.f32 -0.5, %v6710
        %v6854 = vadd.f32 %v6853, 1.0
        %v6855 = vmul.f32 %v6854, %v6710
        %v6856 = vand.u32 2147483647, %v6710
        %vm6857 = vcmp.lt.f32.partialorder %v6856, 0.0004427343
        %v6858 = vsel %vm6857, %v6855, %v6852
        %v6859 = vadd.f32 %v6712, 1.0
        %v6860 = vlog2.pop %v6859
        %v6861 = vmul.f32 %v6860, 0.6931472
        %v6862 = vmul.f32 -0.5, %v6712
        %v6863 = vadd.f32 %v6862, 1.0
        %v6864 = vmul.f32 %v6863, %v6712
        %v6865 = vand.u32 2147483647, %v6712
        %vm6866 = vcmp.lt.f32.partialorder %v6865, 0.0004427343
        %v6867 = vsel %vm6866, %v6864, %v6861
        %v6868 = vadd.f32 %v6714, 1.0
        %v6869 = vlog2.pop %v6868
        %v6870 = vmul.f32 %v6869, 0.6931472
        %v6871 = vmul.f32 -0.5, %v6714
        %v6872 = vadd.f32 %v6871, 1.0
        %v6873 = vmul.f32 %v6872, %v6714
        %v6874 = vand.u32 2147483647, %v6714
        %vm6875 = vcmp.lt.f32.partialorder %v6874, 0.0004427343
        %v6876 = vsel %vm6875, %v6873, %v6870
        %v6877 = vadd.f32 %v6716, 1.0
        %v6878 = vlog2.pop %v6877
        %v6879 = vmul.f32 %v6878, 0.6931472
        %v6880 = vmul.f32 -0.5, %v6716
        %v6881 = vadd.f32 %v6880, 1.0
        %v6882 = vmul.f32 %v6881, %v6716
        %v6883 = vand.u32 2147483647, %v6716
        %vm6884 = vcmp.lt.f32.partialorder %v6883, 0.0004427343
        %v6885 = vsel %vm6884, %v6882, %v6879
        %v6886 = vadd.f32 %v6718, 1.0
        %v6887 = vlog2.pop %v6886
        %v6888 = vmul.f32 %v6887, 0.6931472
        %v6889 = vmul.f32 -0.5, %v6718
        %v6890 = vadd.f32 %v6889, 1.0
        %v6891 = vmul.f32 %v6890, %v6718
        %v6892 = vand.u32 2147483647, %v6718
        %vm6893 = vcmp.lt.f32.partialorder %v6892, 0.0004427343
        %v6894 = vsel %vm6893, %v6891, %v6888
        %v6895 = vadd.f32 %v6720, 1.0
        %v6896 = vlog2.pop %v6895
        %v6897 = vmul.f32 %v6896, 0.6931472
        %v6898 = vmul.f32 -0.5, %v6720
        %v6899 = vadd.f32 %v6898, 1.0
        %v6900 = vmul.f32 %v6899, %v6720
        %v6901 = vand.u32 2147483647, %v6720
        %vm6902 = vcmp.lt.f32.partialorder %v6901, 0.0004427343
        %v6903 = vsel %vm6902, %v6900, %v6897
        %v6904 = vadd.f32 %v6722, 1.0
        %v6905 = vlog2.pop %v6904
        %v6906 = vmul.f32 %v6905, 0.6931472
        %v6907 = vmul.f32 -0.5, %v6722
        %v6908 = vadd.f32 %v6907, 1.0
        %v6909 = vmul.f32 %v6908, %v6722
        %v6910 = vand.u32 2147483647, %v6722
        %vm6911 = vcmp.lt.f32.partialorder %v6910, 0.0004427343
        %v6912 = vsel %vm6911, %v6909, %v6906
        %v6913 = vadd.f32 %v6724, 1.0
        %v6914 = vlog2.pop %v6913
        %v6915 = vmul.f32 %v6914, 0.6931472
        %v6916 = vmul.f32 -0.5, %v6724
        %v6917 = vadd.f32 %v6916, 1.0
        %v6918 = vmul.f32 %v6917, %v6724
        %v6919 = vand.u32 2147483647, %v6724
        %vm6920 = vcmp.lt.f32.partialorder %v6919, 0.0004427343
        %v6921 = vsel %vm6920, %v6918, %v6915
        %v6922 = vadd.f32 %v6726, 1.0
        %v6923 = vlog2.pop %v6922
        %v6924 = vmul.f32 %v6923, 0.6931472
        %v6925 = vmul.f32 -0.5, %v6726
        %v6926 = vadd.f32 %v6925, 1.0
        %v6927 = vmul.f32 %v6926, %v6726
        %v6928 = vand.u32 2147483647, %v6726
        %vm6929 = vcmp.lt.f32.partialorder %v6928, 0.0004427343
        %v6930 = vsel %vm6929, %v6927, %v6924
        %v6931 = vadd.f32 %v6728, 1.0
        %v6932 = vlog2.pop %v6931
        %v6933 = vmul.f32 %v6932, 0.6931472
        %v6934 = vmul.f32 -0.5, %v6728
        %v6935 = vadd.f32 %v6934, 1.0
        %v6936 = vmul.f32 %v6935, %v6728
        %v6937 = vand.u32 2147483647, %v6728
        %vm6938 = vcmp.lt.f32.partialorder %v6937, 0.0004427343
        %v6939 = vsel %vm6938, %v6936, %v6933
        %v6940 = vadd.f32 %v6730, 1.0
        %v6941 = vlog2.pop %v6940
        %v6942 = vmul.f32 %v6941, 0.6931472
        %v6943 = vmul.f32 -0.5, %v6730
        %v6944 = vadd.f32 %v6943, 1.0
        %v6945 = vmul.f32 %v6944, %v6730
        %v6946 = vand.u32 2147483647, %v6730
        %vm6947 = vcmp.lt.f32.partialorder %v6946, 0.0004427343
        %v6948 = vsel %vm6947, %v6945, %v6942
        %v6949 = vadd.f32 %v6732, 1.0
        %v6950 = vlog2.pop %v6949
        %v6951 = vmul.f32 %v6950, 0.6931472
        %v6952 = vmul.f32 -0.5, %v6732
        %v6953 = vadd.f32 %v6952, 1.0
        %v6954 = vmul.f32 %v6953, %v6732
        %v6955 = vand.u32 2147483647, %v6732
        %vm6956 = vcmp.lt.f32.partialorder %v6955, 0.0004427343
        %v6957 = vsel %vm6956, %v6954, %v6951
        %v6958 = vadd.f32 %v6734, 1.0
        %v6959 = vlog2.pop %v6958
        %v6960 = vmul.f32 %v6959, 0.6931472
        %v6961 = vmul.f32 -0.5, %v6734
        %v6962 = vadd.f32 %v6961, 1.0
        %v6963 = vmul.f32 %v6962, %v6734
        %v6964 = vand.u32 2147483647, %v6734
        %vm6965 = vcmp.lt.f32.partialorder %v6964, 0.0004427343
        %v6966 = vsel %vm6965, %v6963, %v6960
        %v6967 = vadd.f32 %v6736, 1.0
        %v6968 = vlog2.pop %v6967
        %v6969 = vmul.f32 %v6968, 0.6931472
        %v6970 = vmul.f32 -0.5, %v6736
        %v6971 = vadd.f32 %v6970, 1.0
        %v6972 = vmul.f32 %v6971, %v6736
        %v6973 = vand.u32 2147483647, %v6736
        %vm6974 = vcmp.lt.f32.partialorder %v6973, 0.0004427343
        %v6975 = vsel %vm6974, %v6972, %v6969
        %v6976 = vadd.f32 %v6738, 1.0
        %v6977 = vlog2.pop %v6976
        %v6978 = vmul.f32 %v6977, 0.6931472
        %v6979 = vmul.f32 -0.5, %v6738
        %v6980 = vadd.f32 %v6979, 1.0
        %v6981 = vmul.f32 %v6980, %v6738
        %v6982 = vand.u32 2147483647, %v6738
        %vm6983 = vcmp.lt.f32.partialorder %v6982, 0.0004427343
        %v6984 = vsel %vm6983, %v6981, %v6978
        %v6985 = vadd.f32 %v6740, 1.0
        %v6986 = vlog2.pop %v6985
        %v6987 = vmul.f32 %v6986, 0.6931472
        %v6988 = vmul.f32 -0.5, %v6740
        %v6989 = vadd.f32 %v6988, 1.0
        %v6990 = vmul.f32 %v6989, %v6740
        %v6991 = vand.u32 2147483647, %v6740
        %vm6992 = vcmp.lt.f32.partialorder %v6991, 0.0004427343
        %v6993 = vsel %vm6992, %v6990, %v6987
        %v6994 = vadd.f32 %v6742, 1.0
        %v6995 = vlog2.pop %v6994
        %v6996 = vmul.f32 %v6995, 0.6931472
        %v6997 = vmul.f32 -0.5, %v6742
        %v6998 = vadd.f32 %v6997, 1.0
        %v6999 = vmul.f32 %v6998, %v6742
        %v7000 = vand.u32 2147483647, %v6742
        %vm7001 = vcmp.lt.f32.partialorder %v7000, 0.0004427343
        %v7002 = vsel %vm7001, %v6999, %v6996
        %v7003 = vadd.f32 %v6744, 1.0
        %v7004 = vlog2.pop %v7003
        %v7005 = vmul.f32 %v7004, 0.6931472
        %v7006 = vmul.f32 -0.5, %v6744
        %v7007 = vadd.f32 %v7006, 1.0
        %v7008 = vmul.f32 %v7007, %v6744
        %v7009 = vand.u32 2147483647, %v6744
        %vm7010 = vcmp.lt.f32.partialorder %v7009, 0.0004427343
        %v7011 = vsel %vm7010, %v7008, %v7005
        %v7012 = vadd.f32 %v6746, 1.0
        %v7013 = vlog2.pop %v7012
        %v7014 = vmul.f32 %v7013, 0.6931472
        %v7015 = vmul.f32 -0.5, %v6746
        %v7016 = vadd.f32 %v7015, 1.0
        %v7017 = vmul.f32 %v7016, %v6746
        %v7018 = vand.u32 2147483647, %v6746
        %vm7019 = vcmp.lt.f32.partialorder %v7018, 0.0004427343
        %v7020 = vsel %vm7019, %v7017, %v7014
        %v7021 = vadd.f32 %v6748, 1.0
        %v7022 = vlog2.pop %v7021
        %v7023 = vmul.f32 %v7022, 0.6931472
        %v7024 = vmul.f32 -0.5, %v6748
        %v7025 = vadd.f32 %v7024, 1.0
        %v7026 = vmul.f32 %v7025, %v6748
        %v7027 = vand.u32 2147483647, %v6748
        %vm7028 = vcmp.lt.f32.partialorder %v7027, 0.0004427343
        %v7029 = vsel %vm7028, %v7026, %v7023
        %v7030 = vadd.f32 %v6750, 1.0
        %v7031 = vlog2.pop %v7030
        %v7032 = vmul.f32 %v7031, 0.6931472
        %v7033 = vmul.f32 -0.5, %v6750
        %v7034 = vadd.f32 %v7033, 1.0
        %v7035 = vmul.f32 %v7034, %v6750
        %v7036 = vand.u32 2147483647, %v6750
        %vm7037 = vcmp.lt.f32.partialorder %v7036, 0.0004427343
        %v7038 = vsel %vm7037, %v7035, %v7032
        %v7039 = vsel %vm6623, %v6591, %v6759
        %v7040 = vsel %vm6624, %v6592, %v6768
        %v7041 = vsel %vm6625, %v6593, %v6777
        %v7042 = vsel %vm6626, %v6594, %v6786
        %v7043 = vsel %vm6627, %v6595, %v6795
        %v7044 = vsel %vm6628, %v6596, %v6804
        %v7045 = vsel %vm6629, %v6597, %v6813
        %v7046 = vsel %vm6630, %v6598, %v6822
        %v7047 = vsel %vm6631, %v6599, %v6831
        %v7048 = vsel %vm6632, %v6600, %v6840
        %v7049 = vsel %vm6633, %v6601, %v6849
        %v7050 = vsel %vm6634, %v6602, %v6858
        %v7051 = vsel %vm6635, %v6603, %v6867
        %v7052 = vsel %vm6636, %v6604, %v6876
        %v7053 = vsel %vm6637, %v6605, %v6885
        %v7054 = vsel %vm6638, %v6606, %v6894
        %v7055 = vsel %vm6639, %v6607, %v6903
        %v7056 = vsel %vm6640, %v6608, %v6912
        %v7057 = vsel %vm6641, %v6609, %v6921
        %v7058 = vsel %vm6642, %v6610, %v6930
        %v7059 = vsel %vm6643, %v6611, %v6939
        %v7060 = vsel %vm6644, %v6612, %v6948
        %v7061 = vsel %vm6645, %v6613, %v6957
        %v7062 = vsel %vm6646, %v6614, %v6966
        %v7063 = vsel %vm6647, %v6615, %v6975
        %v7064 = vsel %vm6648, %v6616, %v6984
        %v7065 = vsel %vm6649, %v6617, %v6993
        %v7066 = vsel %vm6650, %v6618, %v7002
        %v7067 = vsel %vm6651, %v6619, %v7011
        %v7068 = vsel %vm6652, %v6620, %v7020
        %v7069 = vsel %vm6653, %v6621, %v7029
        %v7070 = vsel %vm6654, %v6622, %v7038
        %v7071 = vtanh.pop %v7039
        %v7072 = vtanh.pop %v7040
        %v7073 = vtanh.pop %v7041
        %v7074 = vtanh.pop %v7042
        %v7075 = vtanh.pop %v7043
        %v7076 = vtanh.pop %v7044
        %v7077 = vtanh.pop %v7045
        %v7078 = vtanh.pop %v7046
        %v7079 = vtanh.pop %v7047
        %v7080 = vtanh.pop %v7048
        %v7081 = vtanh.pop %v7049
        %v7082 = vtanh.pop %v7050
        %v7083 = vtanh.pop %v7051
        %v7084 = vtanh.pop %v7052
        %v7085 = vtanh.pop %v7053
        %v7086 = vtanh.pop %v7054
        %v7087 = vtanh.pop %v7055
        %v7088 = vtanh.pop %v7056
        %v7089 = vtanh.pop %v7057
        %v7090 = vtanh.pop %v7058
        %v7091 = vtanh.pop %v7059
        %v7092 = vtanh.pop %v7060
        %v7093 = vtanh.pop %v7061
        %v7094 = vtanh.pop %v7062
        %v7095 = vtanh.pop %v7063
        %v7096 = vtanh.pop %v7064
        %v7097 = vtanh.pop %v7065
        %v7098 = vtanh.pop %v7066
        %v7099 = vtanh.pop %v7067
        %v7100 = vtanh.pop %v7068
        %v7101 = vtanh.pop %v7069
        %v7102 = vtanh.pop %v7070
        %v7103 = vmul.f32 %v6591, %v7071
        %v7104 = vmul.f32 %v6592, %v7072
        %v7105 = vmul.f32 %v6593, %v7073
        %v7106 = vmul.f32 %v6594, %v7074
        %v7107 = vmul.f32 %v6595, %v7075
        %v7108 = vmul.f32 %v6596, %v7076
        %v7109 = vmul.f32 %v6597, %v7077
        %v7110 = vmul.f32 %v6598, %v7078
        %v7111 = vmul.f32 %v6599, %v7079
        %v7112 = vmul.f32 %v6600, %v7080
        %v7113 = vmul.f32 %v6601, %v7081
        %v7114 = vmul.f32 %v6602, %v7082
        %v7115 = vmul.f32 %v6603, %v7083
        %v7116 = vmul.f32 %v6604, %v7084
        %v7117 = vmul.f32 %v6605, %v7085
        %v7118 = vmul.f32 %v6606, %v7086
        %v7119 = vmul.f32 %v6607, %v7087
        %v7120 = vmul.f32 %v6608, %v7088
        %v7121 = vmul.f32 %v6609, %v7089
        %v7122 = vmul.f32 %v6610, %v7090
        %v7123 = vmul.f32 %v6611, %v7091
        %v7124 = vmul.f32 %v6612, %v7092
        %v7125 = vmul.f32 %v6613, %v7093
        %v7126 = vmul.f32 %v6614, %v7094
        %v7127 = vmul.f32 %v6615, %v7095
        %v7128 = vmul.f32 %v6616, %v7096
        %v7129 = vmul.f32 %v6617, %v7097
        %v7130 = vmul.f32 %v6618, %v7098
        %v7131 = vmul.f32 %v6619, %v7099
        %v7132 = vmul.f32 %v6620, %v7100
        %v7133 = vmul.f32 %v6621, %v7101
        %v7134 = vmul.f32 %v6622, %v7102
        %7135 = vst [vmem:[%s325] sm:$0xff] %v7103
        %7136 = vst [vmem:[%s325 + $0x8] sm:$0xff] %v7104
        %7137 = vst [vmem:[%s325 + $0x10] sm:$0xff] %v7105
        %7138 = vst [vmem:[%s325 + $0x18] sm:$0xff] %v7106
        %7139 = vst [vmem:[%s325 + $0x20] sm:$0xff] %v7107
        %7140 = vst [vmem:[%s325 + $0x28] sm:$0xff] %v7108
        %7141 = vst [vmem:[%s325 + $0x30] sm:$0xff] %v7109
        %7142 = vst [vmem:[%s325 + $0x38] sm:$0xff] %v7110
        %7143 = vst [vmem:[%s325 + $0x40] sm:$0xff] %v7111
        %7144 = vst [vmem:[%s325 + $0x48] sm:$0xff] %v7112
        %7145 = vst [vmem:[%s325 + $0x50] sm:$0xff] %v7113
        %7146 = vst [vmem:[%s325 + $0x58] sm:$0xff] %v7114
        %7147 = vst [vmem:[%s325 + $0x60] sm:$0xff] %v7115
        %7148 = vst [vmem:[%s325 + $0x68] sm:$0xff] %v7116
        %7149 = vst [vmem:[%s325 + $0x70] sm:$0xff] %v7117
        %7150 = vst [vmem:[%s325 + $0x78] sm:$0xff] %v7118
        %7151 = vst [vmem:[%s325 + $0x80] sm:$0xff] %v7119
        %7152 = vst [vmem:[%s325 + $0x88] sm:$0xff] %v7120
        %7153 = vst [vmem:[%s325 + $0x90] sm:$0xff] %v7121
        %7154 = vst [vmem:[%s325 + $0x98] sm:$0xff] %v7122
        %7155 = vst [vmem:[%s325 + $0xa0] sm:$0xff] %v7123
        %7156 = vst [vmem:[%s325 + $0xa8] sm:$0xff] %v7124
        %7157 = vst [vmem:[%s325 + $0xb0] sm:$0xff] %v7125
        %7158 = vst [vmem:[%s325 + $0xb8] sm:$0xff] %v7126
        %7159 = vst [vmem:[%s325 + $0xc0] sm:$0xff] %v7127
        %7160 = vst [vmem:[%s325 + $0xc8] sm:$0xff] %v7128
        %7161 = vst [vmem:[%s325 + $0xd0] sm:$0xff] %v7129
        %7162 = vst [vmem:[%s325 + $0xd8] sm:$0xff] %v7130
        %7163 = vst [vmem:[%s325 + $0xe0] sm:$0xff] %v7131
        %7164 = vst [vmem:[%s325 + $0xe8] sm:$0xff] %v7132
        %7165 = vst [vmem:[%s325 + $0xf0] sm:$0xff] %v7133
        %7166 = vst [vmem:[%s325 + $0xf8] sm:$0xff] %v7134
        %s7167 = sand.u32 %s185, 1
        %s7168 = scalar_lea.sflag [#allocation6], %s7167
        %s7169 = sand.u32 %s185, 1
        %s7170 = smul.addr %s7169, 256
        %s7171 = scalar_lea.vmem [#allocation10], %s7170
        // Predicated region
        $region61: #{tpu_custom_call.1} parent=47 // pred_check
          %p7172 = pneg %p195
        $region62: #{tpu_custom_call.1} parent=47 // pred_check_branch
          %7174 = sbr.rel (%p7172) target = $region64
        $region63: #{tpu_custom_call.1} parent=47 // pred_region
          %s7176 = ssub.s32 4096, 4096
          %7177 = vsyncadd %s7168, %s7176
          %s7178 = smul.addr %s25, 32
          %s7179 = smul.addr %s7178, 128
          %s7180 = scalar_lea.hbm %s7, %s7179
          %s7181 = sshll.u32 %s7171, 4
          %s7182 = int_to_ptr.vmem [resolvable:$true] %s7181
          %7187 = dma.vmem_to_hbm [thread:$0]  %s7182, 4096, %s7180, %s7168, 128, 128, 8
        $region64: #{tpu_custom_call.1} parent=47 // pred_fallthru
          _
      $region48: #{tpu_custom_call.1} parent=5 // pred_fallthru
        _
      %p7188 = scmp.le.s32.totalorder 2, %s20
      // Predicated region
      $region65: #{tpu_custom_call.1} parent=5 // pred_check
        %p7189 = pneg %p7188
      $region66: #{tpu_custom_call.1} parent=5 // pred_check_branch
        %7191 = sbr.rel (%p7189) target = $region68
      $region67: #{tpu_custom_call.1} parent=5 // pred_region
        %s7192 = ssub.s32 %s20, 2
        // Predicated region
        $region69: #{tpu_custom_call.1} parent=67 // pred_check
          %p7193 = pneg %p201
        $region70: #{tpu_custom_call.1} parent=67 // pred_check_branch
          %7195 = sbr.rel (%p7193) target = $region72
        $region71: #{tpu_custom_call.1} parent=67 // pred_region
          %s7196 = sand.u32 %s186, 1
          %s7197 = scalar_lea.sflag [#allocation6], %s7196
          %s7198 = sand.u32 %s186, 1
          %s7199 = smul.addr %s7198, 256
          %s7200 = scalar_lea.vmem [#allocation10], %s7199
          %7201 = dma.done %s7197, 4096
        $region72: #{tpu_custom_call.1} parent=67 // pred_fallthru
          _
      $region68: #{tpu_custom_call.1} parent=5 // pred_fallthru
        _
    $region6: #{tpu_custom_call.1} parent=1 // loop_footer
      %s24 = sadd.s32 1, %s20
    $region7: #{tpu_custom_call.1} parent=1 // loop_footer_branch
      %19 = sbr.rel target = $region3
    $region8: #{tpu_custom_call.1} parent=1 // loop_exit
      _
    %7202 = vsyncpa [#allocation5], 1
    %s7203 = scalar_lea.sflag [#allocation5], 1
    %7204 = vsyncpa %s7203, 1
    %7205 = vsyncpa [#allocation8], 1
    %7206 = vsyncpa [#allocation6], 1
    %s7207 = scalar_lea.sflag [#allocation6], 1
    %7208 = vsyncpa %s7207, 1

</llo_original>
